<compile_context>
chip_gen: v5e
topology: v5e:2x2
jax: 0.10.0
libtpu: 0.0.40
codegen_flags: <defaults>
</compile_context>

<pallas_src>
import jax
import jax.numpy as jnp
from jax.experimental import pallas as pl
from jax.experimental.pallas import tpu as pltpu


def _relu(x):
    return jnp.maximum(x, 0.0)


def sneaker_kernel(
    # VMEM-resident (auto-copied) operands:
    img_ref, txt_ref, tab_ref,
    w_img_ref, b_img_ref,
    w_txt_ref, b_txt_ref,
    w_tab_ref, b_tab_ref,
    b1_ref, b2_ref, b3_ref,
    w4_row_ref, b4_ref,
    # Head weights left in HBM (memory_space=pl.ANY), DMA'd manually:
    w1_hbm, w2_hbm, w3_hbm,
    # Output:
    out_ref,
    # Scratch:
    w1_vmem, w2_vmem, w3_vmem, sem,
):
    f32 = jnp.float32
    bf16 = jnp.bfloat16

    # Kick off the head-weight DMAs immediately so they stream into VMEM
    # underneath the three branch matmuls (they are consumed only later).
    cp_w1 = pltpu.make_async_copy(w1_hbm, w1_vmem, sem.at[0])
    cp_w2 = pltpu.make_async_copy(w2_hbm, w2_vmem, sem.at[1])
    cp_w3 = pltpu.make_async_copy(w3_hbm, w3_vmem, sem.at[2])
    cp_w1.start()
    cp_w2.start()
    cp_w3.start()

    # --- branch MLPs: Linear -> ReLU -> Dropout(identity, eval mode) ---
    img_out = _relu(
        jnp.dot(img_ref[...].astype(bf16), w_img_ref[...],
                preferred_element_type=f32)
        + b_img_ref[...]
    )  # [B, 512]
    txt_out = _relu(
        jnp.dot(txt_ref[...].astype(bf16), w_txt_ref[...],
                preferred_element_type=f32)
        + b_txt_ref[...]
    )  # [B, 512]
    tab_out = _relu(
        jnp.dot(tab_ref[...].astype(bf16), w_tab_ref[...],
                preferred_element_type=f32)
        + b_tab_ref[...]
    )  # [B, 256]

    # --- combined head ---
    # torch.cat((img_out, text_out, tab_out), dim=1) @ W1 is computed as a
    # sum of three partial matmuls over row-blocks of W1 (bit-identical,
    # avoids an in-kernel lane-axis concatenate).
    cp_w1.wait()
    h1 = _relu(
        jnp.dot(img_out.astype(bf16), w1_vmem[0:512, :],
                preferred_element_type=f32)
        + jnp.dot(txt_out.astype(bf16), w1_vmem[512:1024, :],
                  preferred_element_type=f32)
        + jnp.dot(tab_out.astype(bf16), w1_vmem[1024:1280, :],
                  preferred_element_type=f32)
        + b1_ref[...]
    )  # [B, 512]

    cp_w2.wait()
    h2 = _relu(
        jnp.dot(h1.astype(bf16), w2_vmem[...], preferred_element_type=f32)
        + b2_ref[...]
    )  # [B, 256]

    cp_w3.wait()
    h3 = _relu(
        jnp.dot(h2.astype(bf16), w3_vmem[...], preferred_element_type=f32)
        + b3_ref[...]
    )  # [B, 128]

    # Final [B,128] @ [128,1]: a 1-lane-wide matmul wastes an MXU pass and
    # forces lane-padded tiles, so do it as a VPU multiply + XLU reduction.
    out_ref[...] = (
        jnp.sum(h3 * w4_row_ref[...], axis=-1, keepdims=True) + b4_ref[...]
    )  # [B, 1]


def sneaker_price_predictor(img, txt, tab, params):
    """Run the full forward pass in one pallas_call (everything fits VMEM)."""
    B = img.shape[0]
    bf16 = jnp.bfloat16

    # Stream the big weight matrices as bf16 (f32 accumulation in-kernel).
    # NOTE: int8 (v5e/v6e) or fp8 (v7x) would halve bytes again if the
    # accuracy budget allows; kept bf16 here for cross-generation portability.
    wq = {k: params[k].astype(bf16)
          for k in ("w_img", "w_txt", "w_tab", "w1", "w2", "w3")}
    w4_row = params["w4"].reshape(1, -1)  # [1, 128], kept f32 (tiny)

    vmem_spec = pl.BlockSpec(memory_space=pltpu.VMEM)
    hbm_spec = pl.BlockSpec(memory_space=pl.ANY)

    vmem_args = (
        img, txt, tab,
        wq["w_img"], params["b_img"],
        wq["w_txt"], params["b_txt"],
        wq["w_tab"], params["b_tab"],
        params["b1"], params["b2"], params["b3"],
        w4_row, params["b4"],
    )
    hbm_args = (wq["w1"], wq["w2"], wq["w3"])

    return pl.pallas_call(
        sneaker_kernel,
        out_shape=jax.ShapeDtypeStruct((B, 1), jnp.float32),
        in_specs=[vmem_spec] * len(vmem_args) + [hbm_spec] * len(hbm_args),
        out_specs=vmem_spec,
        scratch_shapes=[
            pltpu.VMEM(wq["w1"].shape, bf16),
            pltpu.VMEM(wq["w2"].shape, bf16),
            pltpu.VMEM(wq["w3"].shape, bf16),
            pltpu.SemaphoreType.DMA((3,)),
        ],
        # ~5 MiB actual footprint; 32 MiB leaves headroom on v7x (64 MiB phys).
        compiler_params=pltpu.CompilerParams(vmem_limit_bytes=32 << 20),
    )(*vmem_args, *hbm_args)


def init_params(key, tabular_dim, text_dim=768, img_dim=2048):
    """Deterministic synthetic parameters (PyTorch-shaped, stored as [in,out])."""
    dims = {
        "img": (img_dim, 512),
        "txt": (text_dim, 512),
        "tab": (tabular_dim, 256),
        "1": (512 + 512 + 256, 512),
        "2": (512, 256),
        "3": (256, 128),
        "4": (128, 1),
    }
    params = {}
    for name, (din, dout) in dims.items():
        key, kw, kb = jax.random.split(key, 3)
        scale = 1.0 / jnp.sqrt(jnp.float32(din))
        wname = f"w_{name}" if not name.isdigit() else f"w{name}"
        bname = f"b_{name}" if not name.isdigit() else f"b{name}"
        params[wname] = jax.random.uniform(kw, (din, dout), jnp.float32, -scale, scale)
        # biases stored as [1, dout] for in-kernel broadcast over batch
        params[bname] = jax.random.uniform(kb, (1, dout), jnp.float32, -scale, scale)
    return params


def reference_forward(img, txt, tab, p):
    """Plain-JAX reference mirroring the kernel's bf16 quantization points
    (eval-mode dropout = identity)."""
    f32, bf16 = jnp.float32, jnp.bfloat16
    relu = lambda x: jnp.maximum(x, 0.0)
    q = lambda x: x.astype(bf16).astype(f32)

    img_out = relu(q(img) @ q(p["w_img"]) + p["b_img"])
    txt_out = relu(q(txt) @ q(p["w_txt"]) + p["b_txt"])
    tab_out = relu(q(tab) @ q(p["w_tab"]) + p["b_tab"])
    combined = jnp.concatenate([img_out, txt_out, tab_out], axis=1)
    h1 = relu(q(combined) @ q(p["w1"]) + p["b1"])
    h2 = relu(q(h1) @ q(p["w2"]) + p["b2"])
    h3 = relu(q(h2) @ q(p["w3"]) + p["b3"])
    # Final layer in f32 (same as the kernel's VPU reduction path).
    return jnp.sum(h3 * p["w4"].reshape(1, -1), axis=-1, keepdims=True) + p["b4"]


if __name__ == "__main__":
    key = jax.random.PRNGKey(0)

    batch = 8          # multiple of 8 -> clean sublane tiling
    tabular_dim = 32
    text_dim = 768
    img_dim = 2048

    k_img, k_txt, k_tab, k_par = jax.random.split(key, 4)
    img = jax.random.normal(k_img, (batch, img_dim), jnp.float32)
    txt = jax.random.normal(k_txt, (batch, text_dim), jnp.float32)
    tab = jax.random.normal(k_tab, (batch, tabular_dim), jnp.float32)

    params = init_params(k_par, tabular_dim, text_dim, img_dim)

    out = sneaker_price_predictor(img, txt, tab, params)
    out = jax.block_until_ready(out)

    ref = reference_forward(img, txt, tab, params)
    assert out.shape == (batch, 1)
    assert jnp.allclose(out, ref, atol=1e-3, rtol=1e-3), "mismatch vs reference"

    print("KERNEL_OK")
</pallas_src>

<mosaic_0001>
module attributes {stable_mosaic.version = 11 : i64} {
  func.func @sneaker_kernel(%arg0: memref<8x2048xf32, #tpu.memory_space<vmem>>, %arg1: memref<8x768xf32, #tpu.memory_space<vmem>>, %arg2: memref<8x32xf32, #tpu.memory_space<vmem>>, %arg3: memref<2048x512xbf16, #tpu.memory_space<vmem>>, %arg4: memref<1x512xf32, #tpu.memory_space<vmem>>, %arg5: memref<768x512xbf16, #tpu.memory_space<vmem>>, %arg6: memref<1x512xf32, #tpu.memory_space<vmem>>, %arg7: memref<32x256xbf16, #tpu.memory_space<vmem>>, %arg8: memref<1x256xf32, #tpu.memory_space<vmem>>, %arg9: memref<1x512xf32, #tpu.memory_space<vmem>>, %arg10: memref<1x256xf32, #tpu.memory_space<vmem>>, %arg11: memref<1x128xf32, #tpu.memory_space<vmem>>, %arg12: memref<1x128xf32, #tpu.memory_space<vmem>>, %arg13: memref<1x1xf32, #tpu.memory_space<vmem>>, %arg14: memref<1280x512xbf16, #tpu.memory_space<any>>, %arg15: memref<512x256xbf16, #tpu.memory_space<any>>, %arg16: memref<256x128xbf16, #tpu.memory_space<any>>, %arg17: memref<8x1xf32, #tpu.memory_space<vmem>>, %arg18: memref<1280x512xbf16, #tpu.memory_space<vmem>>, %arg19: memref<512x256xbf16, #tpu.memory_space<vmem>>, %arg20: memref<256x128xbf16, #tpu.memory_space<vmem>>, %arg21: memref<3x!tpu.dma_semaphore, #tpu.memory_space<semaphore_mem>>) attributes {dimension_semantics = [], scalar_prefetch = 0 : i64, scratch_operands = 4 : i64, tpu.core_type = #tpu.core_type<tc>} {
    %c0_i32 = arith.constant 0 : i32
    %0 = tpu.memref_slice %arg21[%c0_i32] : memref<3x!tpu.dma_semaphore, #tpu.memory_space<semaphore_mem>> -> memref<1x!tpu.dma_semaphore, #tpu.memory_space<semaphore_mem>>
    %1 = tpu.memref_squeeze %0 : memref<1x!tpu.dma_semaphore, #tpu.memory_space<semaphore_mem>> -> memref<!tpu.dma_semaphore, #tpu.memory_space<semaphore_mem>>
    tpu.enqueue_dma source(%arg14 : memref<1280x512xbf16, #tpu.memory_space<any>>) target(%arg18 : memref<1280x512xbf16, #tpu.memory_space<vmem>>) target_semaphore(%1 : memref<!tpu.dma_semaphore, #tpu.memory_space<semaphore_mem>>)
    %c1_i32 = arith.constant 1 : i32
    %2 = tpu.memref_slice %arg21[%c1_i32] : memref<3x!tpu.dma_semaphore, #tpu.memory_space<semaphore_mem>> -> memref<1x!tpu.dma_semaphore, #tpu.memory_space<semaphore_mem>>
    %3 = tpu.memref_squeeze %2 : memref<1x!tpu.dma_semaphore, #tpu.memory_space<semaphore_mem>> -> memref<!tpu.dma_semaphore, #tpu.memory_space<semaphore_mem>>
    tpu.enqueue_dma source(%arg15 : memref<512x256xbf16, #tpu.memory_space<any>>) target(%arg19 : memref<512x256xbf16, #tpu.memory_space<vmem>>) target_semaphore(%3 : memref<!tpu.dma_semaphore, #tpu.memory_space<semaphore_mem>>)
    %c2_i32 = arith.constant 2 : i32
    %4 = tpu.memref_slice %arg21[%c2_i32] : memref<3x!tpu.dma_semaphore, #tpu.memory_space<semaphore_mem>> -> memref<1x!tpu.dma_semaphore, #tpu.memory_space<semaphore_mem>>
    %5 = tpu.memref_squeeze %4 : memref<1x!tpu.dma_semaphore, #tpu.memory_space<semaphore_mem>> -> memref<!tpu.dma_semaphore, #tpu.memory_space<semaphore_mem>>
    tpu.enqueue_dma source(%arg16 : memref<256x128xbf16, #tpu.memory_space<any>>) target(%arg20 : memref<256x128xbf16, #tpu.memory_space<vmem>>) target_semaphore(%5 : memref<!tpu.dma_semaphore, #tpu.memory_space<semaphore_mem>>)
    %c0 = arith.constant 0 : index
    %c0_0 = arith.constant 0 : index
    %6 = vector.load %arg0[%c0, %c0_0] : memref<8x2048xf32, #tpu.memory_space<vmem>>, vector<8x2048xf32>
    %7 = arith.truncf %6 : vector<8x2048xf32> to vector<8x2048xbf16>
    %c0_1 = arith.constant 0 : index
    %c0_2 = arith.constant 0 : index
    %8 = vector.load %arg3[%c0_1, %c0_2] : memref<2048x512xbf16, #tpu.memory_space<vmem>>, vector<2048x512xbf16>
    %cst = arith.constant dense<0.000000e+00> : vector<8x512xf32>
    %9 = tpu.matmul %7, %8, %cst {dimension_numbers = #tpu.dot_dimension_numbers<[1], [0], [0], [1], [0, 0, 1, 1], [], []>} : vector<8x2048xbf16>, vector<2048x512xbf16>, vector<8x512xf32> -> vector<8x512xf32>
    %c0_3 = arith.constant 0 : index
    %c0_4 = arith.constant 0 : index
    %10 = vector.load %arg4[%c0_3, %c0_4] : memref<1x512xf32, #tpu.memory_space<vmem>>, vector<1x512xf32>
    %11 = vector.broadcast %10 : vector<1x512xf32> to vector<8x512xf32>
    %12 = arith.addf %9, %11 : vector<8x512xf32>
    %cst_5 = arith.constant 0.000000e+00 : f32
    %13 = vector.broadcast %cst_5 : f32 to vector<8x512xf32>
    %14 = arith.maximumf %12, %13 : vector<8x512xf32>
    %c0_6 = arith.constant 0 : index
    %c0_7 = arith.constant 0 : index
    %15 = vector.load %arg1[%c0_6, %c0_7] : memref<8x768xf32, #tpu.memory_space<vmem>>, vector<8x768xf32>
    %16 = arith.truncf %15 : vector<8x768xf32> to vector<8x768xbf16>
    %c0_8 = arith.constant 0 : index
    %c0_9 = arith.constant 0 : index
    %17 = vector.load %arg5[%c0_8, %c0_9] : memref<768x512xbf16, #tpu.memory_space<vmem>>, vector<768x512xbf16>
    %cst_10 = arith.constant dense<0.000000e+00> : vector<8x512xf32>
    %18 = tpu.matmul %16, %17, %cst_10 {dimension_numbers = #tpu.dot_dimension_numbers<[1], [0], [0], [1], [0, 0, 1, 1], [], []>} : vector<8x768xbf16>, vector<768x512xbf16>, vector<8x512xf32> -> vector<8x512xf32>
    %c0_11 = arith.constant 0 : index
    %c0_12 = arith.constant 0 : index
    %19 = vector.load %arg6[%c0_11, %c0_12] : memref<1x512xf32, #tpu.memory_space<vmem>>, vector<1x512xf32>
    %20 = vector.broadcast %19 : vector<1x512xf32> to vector<8x512xf32>
    %21 = arith.addf %18, %20 : vector<8x512xf32>
    %cst_13 = arith.constant 0.000000e+00 : f32
    %22 = vector.broadcast %cst_13 : f32 to vector<8x512xf32>
    %23 = arith.maximumf %21, %22 : vector<8x512xf32>
    %c0_14 = arith.constant 0 : index
    %c0_15 = arith.constant 0 : index
    %24 = vector.load %arg2[%c0_14, %c0_15] : memref<8x32xf32, #tpu.memory_space<vmem>>, vector<8x32xf32>
    %25 = arith.truncf %24 : vector<8x32xf32> to vector<8x32xbf16>
    %c0_16 = arith.constant 0 : index
    %c0_17 = arith.constant 0 : index
    %26 = vector.load %arg7[%c0_16, %c0_17] : memref<32x256xbf16, #tpu.memory_space<vmem>>, vector<32x256xbf16>
    %cst_18 = arith.constant dense<0.000000e+00> : vector<8x256xf32>
    %27 = tpu.matmul %25, %26, %cst_18 {dimension_numbers = #tpu.dot_dimension_numbers<[1], [0], [0], [1], [0, 0, 1, 1], [], []>} : vector<8x32xbf16>, vector<32x256xbf16>, vector<8x256xf32> -> vector<8x256xf32>
    %c0_19 = arith.constant 0 : index
    %c0_20 = arith.constant 0 : index
    %28 = vector.load %arg8[%c0_19, %c0_20] : memref<1x256xf32, #tpu.memory_space<vmem>>, vector<1x256xf32>
    %29 = vector.broadcast %28 : vector<1x256xf32> to vector<8x256xf32>
    %30 = arith.addf %27, %29 : vector<8x256xf32>
    %cst_21 = arith.constant 0.000000e+00 : f32
    %31 = vector.broadcast %cst_21 : f32 to vector<8x256xf32>
    %32 = arith.maximumf %30, %31 : vector<8x256xf32>
    %c0_i32_22 = arith.constant 0 : i32
    %33 = tpu.memref_slice %arg21[%c0_i32_22] : memref<3x!tpu.dma_semaphore, #tpu.memory_space<semaphore_mem>> -> memref<1x!tpu.dma_semaphore, #tpu.memory_space<semaphore_mem>>
    %34 = tpu.memref_squeeze %33 : memref<1x!tpu.dma_semaphore, #tpu.memory_space<semaphore_mem>> -> memref<!tpu.dma_semaphore, #tpu.memory_space<semaphore_mem>>
    tpu.wait_dma2 semaphore(%34 : memref<!tpu.dma_semaphore, #tpu.memory_space<semaphore_mem>>) src(%arg14 : memref<1280x512xbf16, #tpu.memory_space<any>>) dst(%arg18 : memref<1280x512xbf16, #tpu.memory_space<vmem>>)
    %35 = arith.truncf %14 : vector<8x512xf32> to vector<8x512xbf16>
    %c0_23 = arith.constant 0 : index
    %c0_24 = arith.constant 0 : index
    %36 = vector.load %arg18[%c0_23, %c0_24] : memref<1280x512xbf16, #tpu.memory_space<vmem>>, vector<512x512xbf16>
    %cst_25 = arith.constant dense<0.000000e+00> : vector<8x512xf32>
    %37 = tpu.matmul %35, %36, %cst_25 {dimension_numbers = #tpu.dot_dimension_numbers<[1], [0], [0], [1], [0, 0, 1, 1], [], []>} : vector<8x512xbf16>, vector<512x512xbf16>, vector<8x512xf32> -> vector<8x512xf32>
    %38 = arith.truncf %23 : vector<8x512xf32> to vector<8x512xbf16>
    %c512 = arith.constant 512 : index
    %c0_26 = arith.constant 0 : index
    %39 = vector.load %arg18[%c512, %c0_26] : memref<1280x512xbf16, #tpu.memory_space<vmem>>, vector<512x512xbf16>
    %cst_27 = arith.constant dense<0.000000e+00> : vector<8x512xf32>
    %40 = tpu.matmul %38, %39, %cst_27 {dimension_numbers = #tpu.dot_dimension_numbers<[1], [0], [0], [1], [0, 0, 1, 1], [], []>} : vector<8x512xbf16>, vector<512x512xbf16>, vector<8x512xf32> -> vector<8x512xf32>
    %41 = arith.addf %37, %40 : vector<8x512xf32>
    %42 = arith.truncf %32 : vector<8x256xf32> to vector<8x256xbf16>
    %c1024 = arith.constant 1024 : index
    %c0_28 = arith.constant 0 : index
    %43 = vector.load %arg18[%c1024, %c0_28] : memref<1280x512xbf16, #tpu.memory_space<vmem>>, vector<256x512xbf16>
    %cst_29 = arith.constant dense<0.000000e+00> : vector<8x512xf32>
    %44 = tpu.matmul %42, %43, %cst_29 {dimension_numbers = #tpu.dot_dimension_numbers<[1], [0], [0], [1], [0, 0, 1, 1], [], []>} : vector<8x256xbf16>, vector<256x512xbf16>, vector<8x512xf32> -> vector<8x512xf32>
    %45 = arith.addf %41, %44 : vector<8x512xf32>
    %c0_30 = arith.constant 0 : index
    %c0_31 = arith.constant 0 : index
    %46 = vector.load %arg9[%c0_30, %c0_31] : memref<1x512xf32, #tpu.memory_space<vmem>>, vector<1x512xf32>
    %47 = vector.broadcast %46 : vector<1x512xf32> to vector<8x512xf32>
    %48 = arith.addf %45, %47 : vector<8x512xf32>
    %cst_32 = arith.constant 0.000000e+00 : f32
    %49 = vector.broadcast %cst_32 : f32 to vector<8x512xf32>
    %50 = arith.maximumf %48, %49 : vector<8x512xf32>
    %c1_i32_33 = arith.constant 1 : i32
    %51 = tpu.memref_slice %arg21[%c1_i32_33] : memref<3x!tpu.dma_semaphore, #tpu.memory_space<semaphore_mem>> -> memref<1x!tpu.dma_semaphore, #tpu.memory_space<semaphore_mem>>
    %52 = tpu.memref_squeeze %51 : memref<1x!tpu.dma_semaphore, #tpu.memory_space<semaphore_mem>> -> memref<!tpu.dma_semaphore, #tpu.memory_space<semaphore_mem>>
    tpu.wait_dma2 semaphore(%52 : memref<!tpu.dma_semaphore, #tpu.memory_space<semaphore_mem>>) src(%arg15 : memref<512x256xbf16, #tpu.memory_space<any>>) dst(%arg19 : memref<512x256xbf16, #tpu.memory_space<vmem>>)
    %53 = arith.truncf %50 : vector<8x512xf32> to vector<8x512xbf16>
    %c0_34 = arith.constant 0 : index
    %c0_35 = arith.constant 0 : index
    %54 = vector.load %arg19[%c0_34, %c0_35] : memref<512x256xbf16, #tpu.memory_space<vmem>>, vector<512x256xbf16>
    %cst_36 = arith.constant dense<0.000000e+00> : vector<8x256xf32>
    %55 = tpu.matmul %53, %54, %cst_36 {dimension_numbers = #tpu.dot_dimension_numbers<[1], [0], [0], [1], [0, 0, 1, 1], [], []>} : vector<8x512xbf16>, vector<512x256xbf16>, vector<8x256xf32> -> vector<8x256xf32>
    %c0_37 = arith.constant 0 : index
    %c0_38 = arith.constant 0 : index
    %56 = vector.load %arg10[%c0_37, %c0_38] : memref<1x256xf32, #tpu.memory_space<vmem>>, vector<1x256xf32>
    %57 = vector.broadcast %56 : vector<1x256xf32> to vector<8x256xf32>
    %58 = arith.addf %55, %57 : vector<8x256xf32>
    %cst_39 = arith.constant 0.000000e+00 : f32
    %59 = vector.broadcast %cst_39 : f32 to vector<8x256xf32>
    %60 = arith.maximumf %58, %59 : vector<8x256xf32>
    %c2_i32_40 = arith.constant 2 : i32
    %61 = tpu.memref_slice %arg21[%c2_i32_40] : memref<3x!tpu.dma_semaphore, #tpu.memory_space<semaphore_mem>> -> memref<1x!tpu.dma_semaphore, #tpu.memory_space<semaphore_mem>>
    %62 = tpu.memref_squeeze %61 : memref<1x!tpu.dma_semaphore, #tpu.memory_space<semaphore_mem>> -> memref<!tpu.dma_semaphore, #tpu.memory_space<semaphore_mem>>
    tpu.wait_dma2 semaphore(%62 : memref<!tpu.dma_semaphore, #tpu.memory_space<semaphore_mem>>) src(%arg16 : memref<256x128xbf16, #tpu.memory_space<any>>) dst(%arg20 : memref<256x128xbf16, #tpu.memory_space<vmem>>)
    %63 = arith.truncf %60 : vector<8x256xf32> to vector<8x256xbf16>
    %c0_41 = arith.constant 0 : index
    %c0_42 = arith.constant 0 : index
    %64 = vector.load %arg20[%c0_41, %c0_42] : memref<256x128xbf16, #tpu.memory_space<vmem>>, vector<256x128xbf16>
    %cst_43 = arith.constant dense<0.000000e+00> : vector<8x128xf32>
    %65 = tpu.matmul %63, %64, %cst_43 {dimension_numbers = #tpu.dot_dimension_numbers<[1], [0], [0], [1], [0, 0, 1, 1], [], []>} : vector<8x256xbf16>, vector<256x128xbf16>, vector<8x128xf32> -> vector<8x128xf32>
    %c0_44 = arith.constant 0 : index
    %c0_45 = arith.constant 0 : index
    %66 = vector.load %arg11[%c0_44, %c0_45] : memref<1x128xf32, #tpu.memory_space<vmem>>, vector<1x128xf32>
    %67 = vector.broadcast %66 : vector<1x128xf32> to vector<8x128xf32>
    %68 = arith.addf %65, %67 : vector<8x128xf32>
    %cst_46 = arith.constant 0.000000e+00 : f32
    %69 = vector.broadcast %cst_46 : f32 to vector<8x128xf32>
    %70 = arith.maximumf %68, %69 : vector<8x128xf32>
    %c0_47 = arith.constant 0 : index
    %c0_48 = arith.constant 0 : index
    %71 = vector.load %arg12[%c0_47, %c0_48] : memref<1x128xf32, #tpu.memory_space<vmem>>, vector<1x128xf32>
    %72 = vector.broadcast %71 : vector<1x128xf32> to vector<8x128xf32>
    %73 = arith.mulf %70, %72 : vector<8x128xf32>
    %cst_49 = arith.constant dense<0.000000e+00> : vector<8xf32>
    %74 = vector.multi_reduction <add>, %73, %cst_49 [1] : vector<8x128xf32> to vector<8xf32>
    %75 = vector.shape_cast %74 : vector<8xf32> to vector<8x1xf32>
    %c0_50 = arith.constant 0 : index
    %c0_51 = arith.constant 0 : index
    %76 = vector.load %arg13[%c0_50, %c0_51] : memref<1x1xf32, #tpu.memory_space<vmem>>, vector<1x1xf32>
    %77 = vector.broadcast %76 : vector<1x1xf32> to vector<8x1xf32>
    %78 = arith.addf %75, %77 : vector<8x1xf32>
    %c0_52 = arith.constant 0 : index
    %c0_53 = arith.constant 0 : index
    %79 = vector.load %arg17[%c0_52, %c0_53] : memref<8x1xf32, #tpu.memory_space<vmem>>, vector<8x1xf32>
    tpu.vector_store %arg17[%c0_52, %c0_53], %78 {strides = array<i32>} : memref<8x1xf32, #tpu.memory_space<vmem>>, vector<8x1xf32>,
    return
  }
}

</mosaic_0001>

<llo_original>
// kernel: tpu_custom_call.1
$region0: #{tpu_custom_call.1}
  #allocation0 [shape = 'u32[]', space=smem, size = 0x4, offset = 0x4, fixed_abs, tag = 'smem constant byte address 0x4 - core index']
  #allocation1 [shape = 'u32[72,128]{1,0:T(1,128)}', space=vmem, size = 0x9000, scoped, tag = 'internal scratch']
  #allocation2 [shape = 'bf16[1280,512]{1,0:T(8,128)(2,1)}', space=vmem, size = 0x140000, scoped, tag = 'scratch operand']
  #allocation3 [shape = 'bf16[512,256]{1,0:T(8,128)(2,1)}', space=vmem, size = 0x40000, scoped, tag = 'scratch operand']
  #allocation4 [shape = 'bf16[256,128]{1,0:T(8,128)(2,1)}', space=vmem, size = 0x10000, scoped, tag = 'scratch operand']
  #allocation5 [shape = 's32[3]{0}', space=sflag, size = 0xc, scoped, tag = 'scratch operand']
  #allocation6 [shape = 'f32[1,1]{1,0:T(1,128)S(1)}', space=vmem, size = 0x200, scoped, tag = 'scoped memory for tpu_custom_call.1']
  #allocation27 [shape = 's32[]', space=sflag, size = 0x4, offset = 0, fixed_abs, tag = 'sflag constant byte address 0x0 - dummy sync flag']
  #allocation28 [shape = 's32[]', space=sflag, size = 0x4, offset = 0, fixed_abs, tag = 'sflag constant byte address 0x0 - dummy sync flag']
  #allocation29 [shape = 'u32[]', space=smem, size = 0x4, offset = 0x44, fixed_abs, tag = 'smem constant byte address 0x44 - assertion arg 0']
  #allocation30 [shape = 'u32[]', space=smem, size = 0x4, offset = 0x48, fixed_abs, tag = 'smem constant byte address 0x48 - assertion arg 1']
  #allocation31 [shape = 's32[]', space=sflag, size = 0x4, offset = 0, fixed_abs, tag = 'sflag constant byte address 0x0 - dummy sync flag']
  #allocation32 [shape = 's32[]', space=sflag, size = 0x4, offset = 0, fixed_abs, tag = 'sflag constant byte address 0x0 - dummy sync flag']
  #allocation33 [shape = 's32[]', space=sflag, size = 0x4, offset = 0, fixed_abs, tag = 'sflag constant byte address 0x0 - dummy sync flag']
  #allocation34 [shape = 's32[]', space=sflag, size = 0x4, offset = 0, fixed_abs, tag = 'sflag constant byte address 0x0 - dummy sync flag']
  %s0 = inlined_call_operand.hbm [shape: f32[8,2048], index: 0, kind: input, shape index: {}]
  %s1 = inlined_call_operand.hbm [shape: f32[8,768], index: 1, kind: input, shape index: {}]
  %s2 = inlined_call_operand.hbm [shape: f32[8,32], index: 2, kind: input, shape index: {}]
  %s3 = inlined_call_operand.hbm [shape: bf16[2048,512], index: 3, kind: input, shape index: {}]
  %s4 = inlined_call_operand.hbm [shape: f32[1,512], index: 4, kind: input, shape index: {}]
  %s5 = inlined_call_operand.hbm [shape: bf16[768,512], index: 5, kind: input, shape index: {}]
  %s6 = inlined_call_operand.hbm [shape: f32[1,512], index: 6, kind: input, shape index: {}]
  %s7 = inlined_call_operand.hbm [shape: bf16[32,256], index: 7, kind: input, shape index: {}]
  %s8 = inlined_call_operand.hbm [shape: f32[1,256], index: 8, kind: input, shape index: {}]
  %s9 = inlined_call_operand.hbm [shape: f32[1,512], index: 9, kind: input, shape index: {}]
  %s10 = inlined_call_operand.hbm [shape: f32[1,256], index: 10, kind: input, shape index: {}]
  %s11 = inlined_call_operand.hbm [shape: f32[1,128], index: 11, kind: input, shape index: {}]
  %s12 = inlined_call_operand.hbm [shape: f32[1,128], index: 12, kind: input, shape index: {}]
  %s13 = inlined_call_operand.<no memory space> [shape: f32[1,1], index: 13, kind: input, shape index: {}]
  %s14 = inlined_call_operand.hbm [shape: bf16[1280,512], index: 14, kind: input, shape index: {}]
  %s15 = inlined_call_operand.hbm [shape: bf16[512,256], index: 15, kind: input, shape index: {}]
  %s16 = inlined_call_operand.hbm [shape: bf16[256,128], index: 16, kind: input, shape index: {}]
  %s17 = inlined_call_operand.vmem [shape: f32[8,1], index: 17, kind: output, shape index: {}]
  %s18 = sld [smem:[#allocation0]]
  $region130: #{tpu_custom_call.1} parent=0
    _
  %s20 = ssub.s32 1, %s18
  %s21 = scalar_select 0, %s20, %s18
  %v22 = vstv %s13
  %23 = vst [vmem:[#allocation6] sm:$0x1] %v22
  $region1: #{tpu_custom_call.1} parent=0
    #allocation7 [shape = 'u8[65536]{0}', space=vmem, size = 0x10000, scoped, tag = 'input window, operand 0, single buffered']
    #allocation8 [shape = 's32[1]{0}', space=sflag, size = 0x4, scoped, tag = 'scoped memory for tpu_custom_call.1']
    #allocation9 [shape = 'u8[24576]{0}', space=vmem, size = 0x6000, scoped, tag = 'input window, operand 1, single buffered']
    #allocation10 [shape = 's32[1]{0}', space=sflag, size = 0x4, scoped, tag = 'scoped memory for tpu_custom_call.1']
    #allocation11 [shape = 'u8[4096]{0}', space=vmem, size = 0x1000, scoped, tag = 'input window, operand 2, single buffered']
    #allocation12 [shape = 'u8[2097152]{0}', space=vmem, size = 0x200000, scoped, tag = 'input window, operand 3, single buffered']
    #allocation13 [shape = 's32[1]{0}', space=sflag, size = 0x4, scoped, tag = 'scoped memory for tpu_custom_call.1']
    #allocation14 [shape = 'u8[2048]{0}', space=vmem, size = 0x800, scoped, tag = 'input window, operand 4, single buffered']
    #allocation15 [shape = 'u8[786432]{0}', space=vmem, size = 0xc0000, scoped, tag = 'input window, operand 5, single buffered']
    #allocation16 [shape = 's32[1]{0}', space=sflag, size = 0x4, scoped, tag = 'scoped memory for tpu_custom_call.1']
    #allocation17 [shape = 'u8[2048]{0}', space=vmem, size = 0x800, scoped, tag = 'input window, operand 6, single buffered']
    #allocation18 [shape = 'u8[16384]{0}', space=vmem, size = 0x4000, scoped, tag = 'input window, operand 7, single buffered']
    #allocation19 [shape = 's32[1]{0}', space=sflag, size = 0x4, scoped, tag = 'scoped memory for tpu_custom_call.1']
    #allocation20 [shape = 'u8[1024]{0}', space=vmem, size = 0x400, scoped, tag = 'input window, operand 8, single buffered']
    #allocation21 [shape = 'u8[2048]{0}', space=vmem, size = 0x800, scoped, tag = 'input window, operand 9, single buffered']
    #allocation22 [shape = 's32[1]{0}', space=sflag, size = 0x4, scoped, tag = 'scoped memory for tpu_custom_call.1']
    #allocation23 [shape = 'u8[1024]{0}', space=vmem, size = 0x400, scoped, tag = 'input window, operand 10, single buffered']
    #allocation24 [shape = 'u8[512]{0}', space=vmem, size = 0x400, scoped, tag = 'input window, operand 11, single buffered']
    #allocation25 [shape = 's32[1]{0}', space=sflag, size = 0x4, scoped, tag = 'scoped memory for tpu_custom_call.1']
    #allocation26 [shape = 'u8[512]{0}', space=vmem, size = 0x400, scoped, tag = 'input window, operand 12, single buffered']
    %24 = vsyncpa [#allocation8], 0
    %25 = vsyncpa [#allocation10], 0
    %26 = vsyncpa [#allocation13], 0
    %27 = vsyncpa [#allocation16], 0
    %28 = vsyncpa [#allocation19], 0
    %29 = vsyncpa [#allocation22], 0
    %30 = vsyncpa [#allocation25], 0
    // Predicated region
    $region2: #{tpu_custom_call.1} parent=1 // pred_check
      _
    $region3: #{tpu_custom_call.1} parent=1 // pred_check_branch
      %32 = sbr.rel (0) target = $region5
    $region4: #{tpu_custom_call.1} parent=1 // pred_region
      %34 = vsyncadd [#allocation8], 0
      %s36 = sshll.u32 %s0, 4
      %s37 = int_to_ptr.hbm [resolvable:$true] %s36
      %s38 = sshll.u32 [#allocation7], 4
      %s39 = int_to_ptr.vmem [resolvable:$true] %s38
      %41 = dma.hbm_to_vmem [thread:$0]  %s37, 2048, %s39, [#allocation8]
    $region5: #{tpu_custom_call.1} parent=1 // pred_fallthru
      _
    // Predicated region
    $region6: #{tpu_custom_call.1} parent=1 // pred_check
      _
    $region7: #{tpu_custom_call.1} parent=1 // pred_check_branch
      %43 = sbr.rel (0) target = $region9
    $region8: #{tpu_custom_call.1} parent=1 // pred_region
      %45 = vsyncadd [#allocation10], 0
      %s47 = sshll.u32 %s1, 4
      %s48 = int_to_ptr.hbm [resolvable:$true] %s47
      %s49 = sshll.u32 [#allocation9], 4
      %s50 = int_to_ptr.vmem [resolvable:$true] %s49
      %52 = dma.hbm_to_vmem [thread:$0]  %s48, 768, %s50, [#allocation10]
    $region9: #{tpu_custom_call.1} parent=1 // pred_fallthru
      _
    // Predicated region
    $region10: #{tpu_custom_call.1} parent=1 // pred_check
      _
    $region11: #{tpu_custom_call.1} parent=1 // pred_check_branch
      %54 = sbr.rel (0) target = $region13
    $region12: #{tpu_custom_call.1} parent=1 // pred_region
      %56 = vsyncadd [#allocation10], 0
      %s58 = sshll.u32 %s2, 4
      %s59 = int_to_ptr.hbm [resolvable:$true] %s58
      %s60 = sshll.u32 [#allocation11], 4
      %s61 = int_to_ptr.vmem [resolvable:$true] %s60
      %63 = dma.hbm_to_vmem [thread:$0]  %s59, 128, %s61, [#allocation10]
    $region13: #{tpu_custom_call.1} parent=1 // pred_fallthru
      _
    // Predicated region
    $region14: #{tpu_custom_call.1} parent=1 // pred_check
      _
    $region15: #{tpu_custom_call.1} parent=1 // pred_check_branch
      %65 = sbr.rel (0) target = $region17
    $region16: #{tpu_custom_call.1} parent=1 // pred_region
      %67 = vsyncadd [#allocation13], 0
      %s68 = sshll.u32 %s3, 4
      %s69 = int_to_ptr.hbm [resolvable:$true] %s68
      %s70 = sshll.u32 [#allocation12], 4
      %s71 = int_to_ptr.vmem [resolvable:$true] %s70
      %76 = dma.hbm_to_vmem [thread:$0]  %s69, 65536, %s71, [#allocation13], 256, 256, 16
    $region17: #{tpu_custom_call.1} parent=1 // pred_fallthru
      _
    // Predicated region
    $region18: #{tpu_custom_call.1} parent=1 // pred_check
      _
    $region19: #{tpu_custom_call.1} parent=1 // pred_check_branch
      %78 = sbr.rel (0) target = $region21
    $region20: #{tpu_custom_call.1} parent=1 // pred_region
      %80 = vsyncadd [#allocation13], 0
      %s82 = sshll.u32 %s4, 4
      %s83 = int_to_ptr.hbm [resolvable:$true] %s82
      %s84 = sshll.u32 [#allocation14], 4
      %s85 = int_to_ptr.vmem [resolvable:$true] %s84
      %87 = dma.hbm_to_vmem [thread:$0]  %s83, 64, %s85, [#allocation13]
    $region21: #{tpu_custom_call.1} parent=1 // pred_fallthru
      _
    // Predicated region
    $region22: #{tpu_custom_call.1} parent=1 // pred_check
      _
    $region23: #{tpu_custom_call.1} parent=1 // pred_check_branch
      %89 = sbr.rel (0) target = $region25
    $region24: #{tpu_custom_call.1} parent=1 // pred_region
      %91 = vsyncadd [#allocation16], 0
      %s92 = sshll.u32 %s5, 4
      %s93 = int_to_ptr.hbm [resolvable:$true] %s92
      %s94 = sshll.u32 [#allocation15], 4
      %s95 = int_to_ptr.vmem [resolvable:$true] %s94
      %100 = dma.hbm_to_vmem [thread:$0]  %s93, 24576, %s95, [#allocation16], 256, 256, 16
    $region25: #{tpu_custom_call.1} parent=1 // pred_fallthru
      _
    // Predicated region
    $region26: #{tpu_custom_call.1} parent=1 // pred_check
      _
    $region27: #{tpu_custom_call.1} parent=1 // pred_check_branch
      %102 = sbr.rel (0) target = $region29
    $region28: #{tpu_custom_call.1} parent=1 // pred_region
      %104 = vsyncadd [#allocation16], 0
      %s106 = sshll.u32 %s6, 4
      %s107 = int_to_ptr.hbm [resolvable:$true] %s106
      %s108 = sshll.u32 [#allocation17], 4
      %s109 = int_to_ptr.vmem [resolvable:$true] %s108
      %111 = dma.hbm_to_vmem [thread:$0]  %s107, 64, %s109, [#allocation16]
    $region29: #{tpu_custom_call.1} parent=1 // pred_fallthru
      _
    // Predicated region
    $region30: #{tpu_custom_call.1} parent=1 // pred_check
      _
    $region31: #{tpu_custom_call.1} parent=1 // pred_check_branch
      %113 = sbr.rel (0) target = $region33
    $region32: #{tpu_custom_call.1} parent=1 // pred_region
      %115 = vsyncadd [#allocation19], 0
      %s116 = sshll.u32 %s7, 4
      %s117 = int_to_ptr.hbm [resolvable:$true] %s116
      %s118 = sshll.u32 [#allocation18], 4
      %s119 = int_to_ptr.vmem [resolvable:$true] %s118
      %124 = dma.hbm_to_vmem [thread:$0]  %s117, 512, %s119, [#allocation19], 128, 128, 8
    $region33: #{tpu_custom_call.1} parent=1 // pred_fallthru
      _
    // Predicated region
    $region34: #{tpu_custom_call.1} parent=1 // pred_check
      _
    $region35: #{tpu_custom_call.1} parent=1 // pred_check_branch
      %126 = sbr.rel (0) target = $region37
    $region36: #{tpu_custom_call.1} parent=1 // pred_region
      %128 = vsyncadd [#allocation19], 0
      %s130 = sshll.u32 %s8, 4
      %s131 = int_to_ptr.hbm [resolvable:$true] %s130
      %s132 = sshll.u32 [#allocation20], 4
      %s133 = int_to_ptr.vmem [resolvable:$true] %s132
      %135 = dma.hbm_to_vmem [thread:$0]  %s131, 32, %s133, [#allocation19]
    $region37: #{tpu_custom_call.1} parent=1 // pred_fallthru
      _
    // Predicated region
    $region38: #{tpu_custom_call.1} parent=1 // pred_check
      _
    $region39: #{tpu_custom_call.1} parent=1 // pred_check_branch
      %137 = sbr.rel (0) target = $region41
    $region40: #{tpu_custom_call.1} parent=1 // pred_region
      %139 = vsyncadd [#allocation22], 0
      %s141 = sshll.u32 %s9, 4
      %s142 = int_to_ptr.hbm [resolvable:$true] %s141
      %s143 = sshll.u32 [#allocation21], 4
      %s144 = int_to_ptr.vmem [resolvable:$true] %s143
      %146 = dma.hbm_to_vmem [thread:$0]  %s142, 64, %s144, [#allocation22]
    $region41: #{tpu_custom_call.1} parent=1 // pred_fallthru
      _
    // Predicated region
    $region42: #{tpu_custom_call.1} parent=1 // pred_check
      _
    $region43: #{tpu_custom_call.1} parent=1 // pred_check_branch
      %148 = sbr.rel (0) target = $region45
    $region44: #{tpu_custom_call.1} parent=1 // pred_region
      %150 = vsyncadd [#allocation22], 0
      %s152 = sshll.u32 %s10, 4
      %s153 = int_to_ptr.hbm [resolvable:$true] %s152
      %s154 = sshll.u32 [#allocation23], 4
      %s155 = int_to_ptr.vmem [resolvable:$true] %s154
      %157 = dma.hbm_to_vmem [thread:$0]  %s153, 32, %s155, [#allocation22]
    $region45: #{tpu_custom_call.1} parent=1 // pred_fallthru
      _
    // Predicated region
    $region46: #{tpu_custom_call.1} parent=1 // pred_check
      _
    $region47: #{tpu_custom_call.1} parent=1 // pred_check_branch
      %159 = sbr.rel (0) target = $region49
    $region48: #{tpu_custom_call.1} parent=1 // pred_region
      %161 = vsyncadd [#allocation25], 0
      %s163 = sshll.u32 %s11, 4
      %s164 = int_to_ptr.hbm [resolvable:$true] %s163
      %s165 = sshll.u32 [#allocation24], 4
      %s166 = int_to_ptr.vmem [resolvable:$true] %s165
      %168 = dma.hbm_to_vmem [thread:$0]  %s164, 16, %s166, [#allocation25]
    $region49: #{tpu_custom_call.1} parent=1 // pred_fallthru
      _
    // Predicated region
    $region50: #{tpu_custom_call.1} parent=1 // pred_check
      _
    $region51: #{tpu_custom_call.1} parent=1 // pred_check_branch
      %170 = sbr.rel (0) target = $region53
    $region52: #{tpu_custom_call.1} parent=1 // pred_region
      %172 = vsyncadd [#allocation25], 0
      %s174 = sshll.u32 %s12, 4
      %s175 = int_to_ptr.hbm [resolvable:$true] %s174
      %s176 = sshll.u32 [#allocation26], 4
      %s177 = int_to_ptr.vmem [resolvable:$true] %s176
      %179 = dma.hbm_to_vmem [thread:$0]  %s175, 16, %s177, [#allocation25]
    $region53: #{tpu_custom_call.1} parent=1 // pred_fallthru
      _
    // Predicated region
    $region54: #{tpu_custom_call.1} parent=1 // pred_check
      _
    $region55: #{tpu_custom_call.1} parent=1 // pred_check_branch
      %181 = sbr.rel (0) target = $region57
    $region56: #{tpu_custom_call.1} parent=1 // pred_region
      _
    $region57: #{tpu_custom_call.1} parent=1 // pred_fallthru
      _
    // Predicated region
    $region58: #{tpu_custom_call.1} parent=1 // pred_check
      _
    $region59: #{tpu_custom_call.1} parent=1 // pred_check_branch
      %183 = sbr.rel (0) target = $region61
    $region60: #{tpu_custom_call.1} parent=1 // pred_region
      %185 = dma.done [#allocation8], 2048
    $region61: #{tpu_custom_call.1} parent=1 // pred_fallthru
      _
    // Predicated region
    $region62: #{tpu_custom_call.1} parent=1 // pred_check
      _
    $region63: #{tpu_custom_call.1} parent=1 // pred_check_branch
      %187 = sbr.rel (0) target = $region65
    $region64: #{tpu_custom_call.1} parent=1 // pred_region
      %189 = dma.done [#allocation10], 768
    $region65: #{tpu_custom_call.1} parent=1 // pred_fallthru
      _
    // Predicated region
    $region66: #{tpu_custom_call.1} parent=1 // pred_check
      _
    $region67: #{tpu_custom_call.1} parent=1 // pred_check_branch
      %191 = sbr.rel (0) target = $region69
    $region68: #{tpu_custom_call.1} parent=1 // pred_region
      %193 = dma.done [#allocation10], 128
    $region69: #{tpu_custom_call.1} parent=1 // pred_fallthru
      _
    // Predicated region
    $region70: #{tpu_custom_call.1} parent=1 // pred_check
      _
    $region71: #{tpu_custom_call.1} parent=1 // pred_check_branch
      %195 = sbr.rel (0) target = $region73
    $region72: #{tpu_custom_call.1} parent=1 // pred_region
      %197 = dma.done [#allocation13], 65536
    $region73: #{tpu_custom_call.1} parent=1 // pred_fallthru
      _
    // Predicated region
    $region74: #{tpu_custom_call.1} parent=1 // pred_check
      _
    $region75: #{tpu_custom_call.1} parent=1 // pred_check_branch
      %199 = sbr.rel (0) target = $region77
    $region76: #{tpu_custom_call.1} parent=1 // pred_region
      %201 = dma.done [#allocation13], 64
    $region77: #{tpu_custom_call.1} parent=1 // pred_fallthru
      _
    // Predicated region
    $region78: #{tpu_custom_call.1} parent=1 // pred_check
      _
    $region79: #{tpu_custom_call.1} parent=1 // pred_check_branch
      %203 = sbr.rel (0) target = $region81
    $region80: #{tpu_custom_call.1} parent=1 // pred_region
      %205 = dma.done [#allocation16], 24576
    $region81: #{tpu_custom_call.1} parent=1 // pred_fallthru
      _
    // Predicated region
    $region82: #{tpu_custom_call.1} parent=1 // pred_check
      _
    $region83: #{tpu_custom_call.1} parent=1 // pred_check_branch
      %207 = sbr.rel (0) target = $region85
    $region84: #{tpu_custom_call.1} parent=1 // pred_region
      %209 = dma.done [#allocation16], 64
    $region85: #{tpu_custom_call.1} parent=1 // pred_fallthru
      _
    // Predicated region
    $region86: #{tpu_custom_call.1} parent=1 // pred_check
      _
    $region87: #{tpu_custom_call.1} parent=1 // pred_check_branch
      %211 = sbr.rel (0) target = $region89
    $region88: #{tpu_custom_call.1} parent=1 // pred_region
      %213 = dma.done [#allocation19], 512
    $region89: #{tpu_custom_call.1} parent=1 // pred_fallthru
      _
    // Predicated region
    $region90: #{tpu_custom_call.1} parent=1 // pred_check
      _
    $region91: #{tpu_custom_call.1} parent=1 // pred_check_branch
      %215 = sbr.rel (0) target = $region93
    $region92: #{tpu_custom_call.1} parent=1 // pred_region
      %217 = dma.done [#allocation19], 32
    $region93: #{tpu_custom_call.1} parent=1 // pred_fallthru
      _
    // Predicated region
    $region94: #{tpu_custom_call.1} parent=1 // pred_check
      _
    $region95: #{tpu_custom_call.1} parent=1 // pred_check_branch
      %219 = sbr.rel (0) target = $region97
    $region96: #{tpu_custom_call.1} parent=1 // pred_region
      %221 = dma.done [#allocation22], 64
    $region97: #{tpu_custom_call.1} parent=1 // pred_fallthru
      _
    // Predicated region
    $region98: #{tpu_custom_call.1} parent=1 // pred_check
      _
    $region99: #{tpu_custom_call.1} parent=1 // pred_check_branch
      %223 = sbr.rel (0) target = $region101
    $region100: #{tpu_custom_call.1} parent=1 // pred_region
      %225 = dma.done [#allocation22], 32
    $region101: #{tpu_custom_call.1} parent=1 // pred_fallthru
      _
    // Predicated region
    $region102: #{tpu_custom_call.1} parent=1 // pred_check
      _
    $region103: #{tpu_custom_call.1} parent=1 // pred_check_branch
      %227 = sbr.rel (0) target = $region105
    $region104: #{tpu_custom_call.1} parent=1 // pred_region
      %229 = dma.done [#allocation25], 16
    $region105: #{tpu_custom_call.1} parent=1 // pred_fallthru
      _
    // Predicated region
    $region106: #{tpu_custom_call.1} parent=1 // pred_check
      _
    $region107: #{tpu_custom_call.1} parent=1 // pred_check_branch
      %231 = sbr.rel (0) target = $region109
    $region108: #{tpu_custom_call.1} parent=1 // pred_region
      %233 = dma.done [#allocation25], 16
    $region109: #{tpu_custom_call.1} parent=1 // pred_fallthru
      _
    // Predicated region
    $region110: #{tpu_custom_call.1} parent=1 // pred_check
      _
    $region111: #{tpu_custom_call.1} parent=1 // pred_check_branch
      %236 = sbr.rel target = $region113
    $region112: #{tpu_custom_call.1} parent=1 // pred_region
      %237 = sst [smem:[#allocation29]] [#allocation28]
      %238 = sst [smem:[#allocation30]] [#allocation27]
    $region113: #{tpu_custom_call.1} parent=1 // pred_fallthru
      _
    %240 = shalt.err (0)
    %s242 = sshll.u32 %s14, 4
    %s243 = int_to_ptr.hbm [resolvable:$true] %s242
    %s244 = sshll.u32 [#allocation2], 4
    %s245 = int_to_ptr.vmem [resolvable:$true] %s244
    %247 = dma.hbm_to_vmem [thread:$0]  %s243, 40960, %s245, [#allocation5]
    %s248 = scalar_lea.sflag [#allocation5], 1
    // Predicated region
    $region114: #{tpu_custom_call.1} parent=1 // pred_check
      _
    $region115: #{tpu_custom_call.1} parent=1 // pred_check_branch
      %250 = sbr.rel target = $region117
    $region116: #{tpu_custom_call.1} parent=1 // pred_region
      %251 = sst [smem:[#allocation29]] [#allocation32]
      %252 = sst [smem:[#allocation30]] [#allocation31]
    $region117: #{tpu_custom_call.1} parent=1 // pred_fallthru
      _
    %254 = shalt.err (0)
    %s256 = sshll.u32 %s15, 4
    %s257 = int_to_ptr.hbm [resolvable:$true] %s256
    %s258 = sshll.u32 [#allocation3], 4
    %s259 = int_to_ptr.vmem [resolvable:$true] %s258
    %261 = dma.hbm_to_vmem [thread:$0]  %s257, 8192, %s259, %s248
    %s262 = scalar_lea.sflag [#allocation5], 2
    // Predicated region
    $region118: #{tpu_custom_call.1} parent=1 // pred_check
      _
    $region119: #{tpu_custom_call.1} parent=1 // pred_check_branch
      %264 = sbr.rel target = $region121
    $region120: #{tpu_custom_call.1} parent=1 // pred_region
      %265 = sst [smem:[#allocation29]] [#allocation34]
      %266 = sst [smem:[#allocation30]] [#allocation33]
    $region121: #{tpu_custom_call.1} parent=1 // pred_fallthru
      _
    %268 = shalt.err (0)
    %s270 = sshll.u32 %s16, 4
    %s271 = int_to_ptr.hbm [resolvable:$true] %s270
    %s272 = sshll.u32 [#allocation4], 4
    %s273 = int_to_ptr.vmem [resolvable:$true] %s272
    %275 = dma.hbm_to_vmem [thread:$0]  %s271, 2048, %s273, %s262
    %v276 = vld [vmem:[#allocation7] sm:$0xff]
    %v277 = vld [vmem:[#allocation7 + $0x8] sm:$0xff]
    %v278 = vld [vmem:[#allocation7 + $0x10] sm:$0xff]
    %v279 = vld [vmem:[#allocation7 + $0x18] sm:$0xff]
    %v280 = vld [vmem:[#allocation7 + $0x20] sm:$0xff]
    %v281 = vld [vmem:[#allocation7 + $0x28] sm:$0xff]
    %v282 = vld [vmem:[#allocation7 + $0x30] sm:$0xff]
    %v283 = vld [vmem:[#allocation7 + $0x38] sm:$0xff]
    %v284 = vld [vmem:[#allocation7 + $0x40] sm:$0xff]
    %v285 = vld [vmem:[#allocation7 + $0x48] sm:$0xff]
    %v286 = vld [vmem:[#allocation7 + $0x50] sm:$0xff]
    %v287 = vld [vmem:[#allocation7 + $0x58] sm:$0xff]
    %v288 = vld [vmem:[#allocation7 + $0x60] sm:$0xff]
    %v289 = vld [vmem:[#allocation7 + $0x68] sm:$0xff]
    %v290 = vld [vmem:[#allocation7 + $0x70] sm:$0xff]
    %v291 = vld [vmem:[#allocation7 + $0x78] sm:$0xff]
    %v292 = vpack.c.bf16 %v276, %v276
    %v293 = vpack.c.bf16 %v277, %v277
    %v294 = vpack.c.bf16 %v278, %v278
    %v295 = vpack.c.bf16 %v279, %v279
    %v296 = vpack.c.bf16 %v280, %v280
    %v297 = vpack.c.bf16 %v281, %v281
    %v298 = vpack.c.bf16 %v282, %v282
    %v299 = vpack.c.bf16 %v283, %v283
    %v300 = vpack.c.bf16 %v284, %v284
    %v301 = vpack.c.bf16 %v285, %v285
    %v302 = vpack.c.bf16 %v286, %v286
    %v303 = vpack.c.bf16 %v287, %v287
    %v304 = vpack.c.bf16 %v288, %v288
    %v305 = vpack.c.bf16 %v289, %v289
    %v306 = vpack.c.bf16 %v290, %v290
    %v307 = vpack.c.bf16 %v291, %v291
    %v308 = vld [vmem:[#allocation12] sm:$0xff]
    %v309 = vld [vmem:[#allocation12 + $0x8] sm:$0xff]
    %v310 = vld [vmem:[#allocation12 + $0x10] sm:$0xff]
    %v311 = vld [vmem:[#allocation12 + $0x18] sm:$0xff]
    %v312 = vld [vmem:[#allocation12 + $0x20] sm:$0xff]
    %v313 = vld [vmem:[#allocation12 + $0x28] sm:$0xff]
    %v314 = vld [vmem:[#allocation12 + $0x30] sm:$0xff]
    %v315 = vld [vmem:[#allocation12 + $0x38] sm:$0xff]
    %v316 = vld [vmem:[#allocation12 + $0x40] sm:$0xff]
    %v317 = vld [vmem:[#allocation12 + $0x48] sm:$0xff]
    %v318 = vld [vmem:[#allocation12 + $0x50] sm:$0xff]
    %v319 = vld [vmem:[#allocation12 + $0x58] sm:$0xff]
    %v320 = vld [vmem:[#allocation12 + $0x60] sm:$0xff]
    %v321 = vld [vmem:[#allocation12 + $0x68] sm:$0xff]
    %v322 = vld [vmem:[#allocation12 + $0x70] sm:$0xff]
    %v323 = vld [vmem:[#allocation12 + $0x78] sm:$0xff]
    %v324 = vld [vmem:[#allocation12 + $0x80] sm:$0xff]
    %v325 = vld [vmem:[#allocation12 + $0x88] sm:$0xff]
    %v326 = vld [vmem:[#allocation12 + $0x90] sm:$0xff]
    %v327 = vld [vmem:[#allocation12 + $0x98] sm:$0xff]
    %v328 = vld [vmem:[#allocation12 + $0xa0] sm:$0xff]
    %v329 = vld [vmem:[#allocation12 + $0xa8] sm:$0xff]
    %v330 = vld [vmem:[#allocation12 + $0xb0] sm:$0xff]
    %v331 = vld [vmem:[#allocation12 + $0xb8] sm:$0xff]
    %v332 = vld [vmem:[#allocation12 + $0xc0] sm:$0xff]
    %v333 = vld [vmem:[#allocation12 + $0xc8] sm:$0xff]
    %v334 = vld [vmem:[#allocation12 + $0xd0] sm:$0xff]
    %v335 = vld [vmem:[#allocation12 + $0xd8] sm:$0xff]
    %v336 = vld [vmem:[#allocation12 + $0xe0] sm:$0xff]
    %v337 = vld [vmem:[#allocation12 + $0xe8] sm:$0xff]
    %v338 = vld [vmem:[#allocation12 + $0xf0] sm:$0xff]
    %v339 = vld [vmem:[#allocation12 + $0xf8] sm:$0xff]
    %v340 = vld [vmem:[#allocation12 + $0x100] sm:$0xff]
    %v341 = vld [vmem:[#allocation12 + $0x108] sm:$0xff]
    %v342 = vld [vmem:[#allocation12 + $0x110] sm:$0xff]
    %v343 = vld [vmem:[#allocation12 + $0x118] sm:$0xff]
    %v344 = vld [vmem:[#allocation12 + $0x120] sm:$0xff]
    %v345 = vld [vmem:[#allocation12 + $0x128] sm:$0xff]
    %v346 = vld [vmem:[#allocation12 + $0x130] sm:$0xff]
    %v347 = vld [vmem:[#allocation12 + $0x138] sm:$0xff]
    %v348 = vld [vmem:[#allocation12 + $0x140] sm:$0xff]
    %v349 = vld [vmem:[#allocation12 + $0x148] sm:$0xff]
    %v350 = vld [vmem:[#allocation12 + $0x150] sm:$0xff]
    %v351 = vld [vmem:[#allocation12 + $0x158] sm:$0xff]
    %v352 = vld [vmem:[#allocation12 + $0x160] sm:$0xff]
    %v353 = vld [vmem:[#allocation12 + $0x168] sm:$0xff]
    %v354 = vld [vmem:[#allocation12 + $0x170] sm:$0xff]
    %v355 = vld [vmem:[#allocation12 + $0x178] sm:$0xff]
    %v356 = vld [vmem:[#allocation12 + $0x180] sm:$0xff]
    %v357 = vld [vmem:[#allocation12 + $0x188] sm:$0xff]
    %v358 = vld [vmem:[#allocation12 + $0x190] sm:$0xff]
    %v359 = vld [vmem:[#allocation12 + $0x198] sm:$0xff]
    %v360 = vld [vmem:[#allocation12 + $0x1a0] sm:$0xff]
    %v361 = vld [vmem:[#allocation12 + $0x1a8] sm:$0xff]
    %v362 = vld [vmem:[#allocation12 + $0x1b0] sm:$0xff]
    %v363 = vld [vmem:[#allocation12 + $0x1b8] sm:$0xff]
    %v364 = vld [vmem:[#allocation12 + $0x1c0] sm:$0xff]
    %v365 = vld [vmem:[#allocation12 + $0x1c8] sm:$0xff]
    %v366 = vld [vmem:[#allocation12 + $0x1d0] sm:$0xff]
    %v367 = vld [vmem:[#allocation12 + $0x1d8] sm:$0xff]
    %v368 = vld [vmem:[#allocation12 + $0x1e0] sm:$0xff]
    %v369 = vld [vmem:[#allocation12 + $0x1e8] sm:$0xff]
    %v370 = vld [vmem:[#allocation12 + $0x1f0] sm:$0xff]
    %v371 = vld [vmem:[#allocation12 + $0x1f8] sm:$0xff]
    %v372 = vld [vmem:[#allocation12 + $0x200] sm:$0xff]
    %v373 = vld [vmem:[#allocation12 + $0x208] sm:$0xff]
    %v374 = vld [vmem:[#allocation12 + $0x210] sm:$0xff]
    %v375 = vld [vmem:[#allocation12 + $0x218] sm:$0xff]
    %v376 = vld [vmem:[#allocation12 + $0x220] sm:$0xff]
    %v377 = vld [vmem:[#allocation12 + $0x228] sm:$0xff]
    %v378 = vld [vmem:[#allocation12 + $0x230] sm:$0xff]
    %v379 = vld [vmem:[#allocation12 + $0x238] sm:$0xff]
    %v380 = vld [vmem:[#allocation12 + $0x240] sm:$0xff]
    %v381 = vld [vmem:[#allocation12 + $0x248] sm:$0xff]
    %v382 = vld [vmem:[#allocation12 + $0x250] sm:$0xff]
    %v383 = vld [vmem:[#allocation12 + $0x258] sm:$0xff]
    %v384 = vld [vmem:[#allocation12 + $0x260] sm:$0xff]
    %v385 = vld [vmem:[#allocation12 + $0x268] sm:$0xff]
    %v386 = vld [vmem:[#allocation12 + $0x270] sm:$0xff]
    %v387 = vld [vmem:[#allocation12 + $0x278] sm:$0xff]
    %v388 = vld [vmem:[#allocation12 + $0x280] sm:$0xff]
    %v389 = vld [vmem:[#allocation12 + $0x288] sm:$0xff]
    %v390 = vld [vmem:[#allocation12 + $0x290] sm:$0xff]
    %v391 = vld [vmem:[#allocation12 + $0x298] sm:$0xff]
    %v392 = vld [vmem:[#allocation12 + $0x2a0] sm:$0xff]
    %v393 = vld [vmem:[#allocation12 + $0x2a8] sm:$0xff]
    %v394 = vld [vmem:[#allocation12 + $0x2b0] sm:$0xff]
    %v395 = vld [vmem:[#allocation12 + $0x2b8] sm:$0xff]
    %v396 = vld [vmem:[#allocation12 + $0x2c0] sm:$0xff]
    %v397 = vld [vmem:[#allocation12 + $0x2c8] sm:$0xff]
    %v398 = vld [vmem:[#allocation12 + $0x2d0] sm:$0xff]
    %v399 = vld [vmem:[#allocation12 + $0x2d8] sm:$0xff]
    %v400 = vld [vmem:[#allocation12 + $0x2e0] sm:$0xff]
    %v401 = vld [vmem:[#allocation12 + $0x2e8] sm:$0xff]
    %v402 = vld [vmem:[#allocation12 + $0x2f0] sm:$0xff]
    %v403 = vld [vmem:[#allocation12 + $0x2f8] sm:$0xff]
    %v404 = vld [vmem:[#allocation12 + $0x300] sm:$0xff]
    %v405 = vld [vmem:[#allocation12 + $0x308] sm:$0xff]
    %v406 = vld [vmem:[#allocation12 + $0x310] sm:$0xff]
    %v407 = vld [vmem:[#allocation12 + $0x318] sm:$0xff]
    %v408 = vld [vmem:[#allocation12 + $0x320] sm:$0xff]
    %v409 = vld [vmem:[#allocation12 + $0x328] sm:$0xff]
    %v410 = vld [vmem:[#allocation12 + $0x330] sm:$0xff]
    %v411 = vld [vmem:[#allocation12 + $0x338] sm:$0xff]
    %v412 = vld [vmem:[#allocation12 + $0x340] sm:$0xff]
    %v413 = vld [vmem:[#allocation12 + $0x348] sm:$0xff]
    %v414 = vld [vmem:[#allocation12 + $0x350] sm:$0xff]
    %v415 = vld [vmem:[#allocation12 + $0x358] sm:$0xff]
    %v416 = vld [vmem:[#allocation12 + $0x360] sm:$0xff]
    %v417 = vld [vmem:[#allocation12 + $0x368] sm:$0xff]
    %v418 = vld [vmem:[#allocation12 + $0x370] sm:$0xff]
    %v419 = vld [vmem:[#allocation12 + $0x378] sm:$0xff]
    %v420 = vld [vmem:[#allocation12 + $0x380] sm:$0xff]
    %v421 = vld [vmem:[#allocation12 + $0x388] sm:$0xff]
    %v422 = vld [vmem:[#allocation12 + $0x390] sm:$0xff]
    %v423 = vld [vmem:[#allocation12 + $0x398] sm:$0xff]
    %v424 = vld [vmem:[#allocation12 + $0x3a0] sm:$0xff]
    %v425 = vld [vmem:[#allocation12 + $0x3a8] sm:$0xff]
    %v426 = vld [vmem:[#allocation12 + $0x3b0] sm:$0xff]
    %v427 = vld [vmem:[#allocation12 + $0x3b8] sm:$0xff]
    %v428 = vld [vmem:[#allocation12 + $0x3c0] sm:$0xff]
    %v429 = vld [vmem:[#allocation12 + $0x3c8] sm:$0xff]
    %v430 = vld [vmem:[#allocation12 + $0x3d0] sm:$0xff]
    %v431 = vld [vmem:[#allocation12 + $0x3d8] sm:$0xff]
    %v432 = vld [vmem:[#allocation12 + $0x3e0] sm:$0xff]
    %v433 = vld [vmem:[#allocation12 + $0x3e8] sm:$0xff]
    %v434 = vld [vmem:[#allocation12 + $0x3f0] sm:$0xff]
    %v435 = vld [vmem:[#allocation12 + $0x3f8] sm:$0xff]
    %v436 = vld [vmem:[#allocation12 + $0x400] sm:$0xff]
    %v437 = vld [vmem:[#allocation12 + $0x408] sm:$0xff]
    %v438 = vld [vmem:[#allocation12 + $0x410] sm:$0xff]
    %v439 = vld [vmem:[#allocation12 + $0x418] sm:$0xff]
    %v440 = vld [vmem:[#allocation12 + $0x420] sm:$0xff]
    %v441 = vld [vmem:[#allocation12 + $0x428] sm:$0xff]
    %v442 = vld [vmem:[#allocation12 + $0x430] sm:$0xff]
    %v443 = vld [vmem:[#allocation12 + $0x438] sm:$0xff]
    %v444 = vld [vmem:[#allocation12 + $0x440] sm:$0xff]
    %v445 = vld [vmem:[#allocation12 + $0x448] sm:$0xff]
    %v446 = vld [vmem:[#allocation12 + $0x450] sm:$0xff]
    %v447 = vld [vmem:[#allocation12 + $0x458] sm:$0xff]
    %v448 = vld [vmem:[#allocation12 + $0x460] sm:$0xff]
    %v449 = vld [vmem:[#allocation12 + $0x468] sm:$0xff]
    %v450 = vld [vmem:[#allocation12 + $0x470] sm:$0xff]
    %v451 = vld [vmem:[#allocation12 + $0x478] sm:$0xff]
    %v452 = vld [vmem:[#allocation12 + $0x480] sm:$0xff]
    %v453 = vld [vmem:[#allocation12 + $0x488] sm:$0xff]
    %v454 = vld [vmem:[#allocation12 + $0x490] sm:$0xff]
    %v455 = vld [vmem:[#allocation12 + $0x498] sm:$0xff]
    %v456 = vld [vmem:[#allocation12 + $0x4a0] sm:$0xff]
    %v457 = vld [vmem:[#allocation12 + $0x4a8] sm:$0xff]
    %v458 = vld [vmem:[#allocation12 + $0x4b0] sm:$0xff]
    %v459 = vld [vmem:[#allocation12 + $0x4b8] sm:$0xff]
    %v460 = vld [vmem:[#allocation12 + $0x4c0] sm:$0xff]
    %v461 = vld [vmem:[#allocation12 + $0x4c8] sm:$0xff]
    %v462 = vld [vmem:[#allocation12 + $0x4d0] sm:$0xff]
    %v463 = vld [vmem:[#allocation12 + $0x4d8] sm:$0xff]
    %v464 = vld [vmem:[#allocation12 + $0x4e0] sm:$0xff]
    %v465 = vld [vmem:[#allocation12 + $0x4e8] sm:$0xff]
    %v466 = vld [vmem:[#allocation12 + $0x4f0] sm:$0xff]
    %v467 = vld [vmem:[#allocation12 + $0x4f8] sm:$0xff]
    %v468 = vld [vmem:[#allocation12 + $0x500] sm:$0xff]
    %v469 = vld [vmem:[#allocation12 + $0x508] sm:$0xff]
    %v470 = vld [vmem:[#allocation12 + $0x510] sm:$0xff]
    %v471 = vld [vmem:[#allocation12 + $0x518] sm:$0xff]
    %v472 = vld [vmem:[#allocation12 + $0x520] sm:$0xff]
    %v473 = vld [vmem:[#allocation12 + $0x528] sm:$0xff]
    %v474 = vld [vmem:[#allocation12 + $0x530] sm:$0xff]
    %v475 = vld [vmem:[#allocation12 + $0x538] sm:$0xff]
    %v476 = vld [vmem:[#allocation12 + $0x540] sm:$0xff]
    %v477 = vld [vmem:[#allocation12 + $0x548] sm:$0xff]
    %v478 = vld [vmem:[#allocation12 + $0x550] sm:$0xff]
    %v479 = vld [vmem:[#allocation12 + $0x558] sm:$0xff]
    %v480 = vld [vmem:[#allocation12 + $0x560] sm:$0xff]
    %v481 = vld [vmem:[#allocation12 + $0x568] sm:$0xff]
    %v482 = vld [vmem:[#allocation12 + $0x570] sm:$0xff]
    %v483 = vld [vmem:[#allocation12 + $0x578] sm:$0xff]
    %v484 = vld [vmem:[#allocation12 + $0x580] sm:$0xff]
    %v485 = vld [vmem:[#allocation12 + $0x588] sm:$0xff]
    %v486 = vld [vmem:[#allocation12 + $0x590] sm:$0xff]
    %v487 = vld [vmem:[#allocation12 + $0x598] sm:$0xff]
    %v488 = vld [vmem:[#allocation12 + $0x5a0] sm:$0xff]
    %v489 = vld [vmem:[#allocation12 + $0x5a8] sm:$0xff]
    %v490 = vld [vmem:[#allocation12 + $0x5b0] sm:$0xff]
    %v491 = vld [vmem:[#allocation12 + $0x5b8] sm:$0xff]
    %v492 = vld [vmem:[#allocation12 + $0x5c0] sm:$0xff]
    %v493 = vld [vmem:[#allocation12 + $0x5c8] sm:$0xff]
    %v494 = vld [vmem:[#allocation12 + $0x5d0] sm:$0xff]
    %v495 = vld [vmem:[#allocation12 + $0x5d8] sm:$0xff]
    %v496 = vld [vmem:[#allocation12 + $0x5e0] sm:$0xff]
    %v497 = vld [vmem:[#allocation12 + $0x5e8] sm:$0xff]
    %v498 = vld [vmem:[#allocation12 + $0x5f0] sm:$0xff]
    %v499 = vld [vmem:[#allocation12 + $0x5f8] sm:$0xff]
    %v500 = vld [vmem:[#allocation12 + $0x600] sm:$0xff]
    %v501 = vld [vmem:[#allocation12 + $0x608] sm:$0xff]
    %v502 = vld [vmem:[#allocation12 + $0x610] sm:$0xff]
    %v503 = vld [vmem:[#allocation12 + $0x618] sm:$0xff]
    %v504 = vld [vmem:[#allocation12 + $0x620] sm:$0xff]
    %v505 = vld [vmem:[#allocation12 + $0x628] sm:$0xff]
    %v506 = vld [vmem:[#allocation12 + $0x630] sm:$0xff]
    %v507 = vld [vmem:[#allocation12 + $0x638] sm:$0xff]
    %v508 = vld [vmem:[#allocation12 + $0x640] sm:$0xff]
    %v509 = vld [vmem:[#allocation12 + $0x648] sm:$0xff]
    %v510 = vld [vmem:[#allocation12 + $0x650] sm:$0xff]
    %v511 = vld [vmem:[#allocation12 + $0x658] sm:$0xff]
    %v512 = vld [vmem:[#allocation12 + $0x660] sm:$0xff]
    %v513 = vld [vmem:[#allocation12 + $0x668] sm:$0xff]
    %v514 = vld [vmem:[#allocation12 + $0x670] sm:$0xff]
    %v515 = vld [vmem:[#allocation12 + $0x678] sm:$0xff]
    %v516 = vld [vmem:[#allocation12 + $0x680] sm:$0xff]
    %v517 = vld [vmem:[#allocation12 + $0x688] sm:$0xff]
    %v518 = vld [vmem:[#allocation12 + $0x690] sm:$0xff]
    %v519 = vld [vmem:[#allocation12 + $0x698] sm:$0xff]
    %v520 = vld [vmem:[#allocation12 + $0x6a0] sm:$0xff]
    %v521 = vld [vmem:[#allocation12 + $0x6a8] sm:$0xff]
    %v522 = vld [vmem:[#allocation12 + $0x6b0] sm:$0xff]
    %v523 = vld [vmem:[#allocation12 + $0x6b8] sm:$0xff]
    %v524 = vld [vmem:[#allocation12 + $0x6c0] sm:$0xff]
    %v525 = vld [vmem:[#allocation12 + $0x6c8] sm:$0xff]
    %v526 = vld [vmem:[#allocation12 + $0x6d0] sm:$0xff]
    %v527 = vld [vmem:[#allocation12 + $0x6d8] sm:$0xff]
    %v528 = vld [vmem:[#allocation12 + $0x6e0] sm:$0xff]
    %v529 = vld [vmem:[#allocation12 + $0x6e8] sm:$0xff]
    %v530 = vld [vmem:[#allocation12 + $0x6f0] sm:$0xff]
    %v531 = vld [vmem:[#allocation12 + $0x6f8] sm:$0xff]
    %v532 = vld [vmem:[#allocation12 + $0x700] sm:$0xff]
    %v533 = vld [vmem:[#allocation12 + $0x708] sm:$0xff]
    %v534 = vld [vmem:[#allocation12 + $0x710] sm:$0xff]
    %v535 = vld [vmem:[#allocation12 + $0x718] sm:$0xff]
    %v536 = vld [vmem:[#allocation12 + $0x720] sm:$0xff]
    %v537 = vld [vmem:[#allocation12 + $0x728] sm:$0xff]
    %v538 = vld [vmem:[#allocation12 + $0x730] sm:$0xff]
    %v539 = vld [vmem:[#allocation12 + $0x738] sm:$0xff]
    %v540 = vld [vmem:[#allocation12 + $0x740] sm:$0xff]
    %v541 = vld [vmem:[#allocation12 + $0x748] sm:$0xff]
    %v542 = vld [vmem:[#allocation12 + $0x750] sm:$0xff]
    %v543 = vld [vmem:[#allocation12 + $0x758] sm:$0xff]
    %v544 = vld [vmem:[#allocation12 + $0x760] sm:$0xff]
    %v545 = vld [vmem:[#allocation12 + $0x768] sm:$0xff]
    %v546 = vld [vmem:[#allocation12 + $0x770] sm:$0xff]
    %v547 = vld [vmem:[#allocation12 + $0x778] sm:$0xff]
    %v548 = vld [vmem:[#allocation12 + $0x780] sm:$0xff]
    %v549 = vld [vmem:[#allocation12 + $0x788] sm:$0xff]
    %v550 = vld [vmem:[#allocation12 + $0x790] sm:$0xff]
    %v551 = vld [vmem:[#allocation12 + $0x798] sm:$0xff]
    %v552 = vld [vmem:[#allocation12 + $0x7a0] sm:$0xff]
    %v553 = vld [vmem:[#allocation12 + $0x7a8] sm:$0xff]
    %v554 = vld [vmem:[#allocation12 + $0x7b0] sm:$0xff]
    %v555 = vld [vmem:[#allocation12 + $0x7b8] sm:$0xff]
    %v556 = vld [vmem:[#allocation12 + $0x7c0] sm:$0xff]
    %v557 = vld [vmem:[#allocation12 + $0x7c8] sm:$0xff]
    %v558 = vld [vmem:[#allocation12 + $0x7d0] sm:$0xff]
    %v559 = vld [vmem:[#allocation12 + $0x7d8] sm:$0xff]
    %v560 = vld [vmem:[#allocation12 + $0x7e0] sm:$0xff]
    %v561 = vld [vmem:[#allocation12 + $0x7e8] sm:$0xff]
    %v562 = vld [vmem:[#allocation12 + $0x7f0] sm:$0xff]
    %v563 = vld [vmem:[#allocation12 + $0x7f8] sm:$0xff]
    %v564 = vld [vmem:[#allocation12 + $0x800] sm:$0xff]
    %v565 = vld [vmem:[#allocation12 + $0x808] sm:$0xff]
    %v566 = vld [vmem:[#allocation12 + $0x810] sm:$0xff]
    %v567 = vld [vmem:[#allocation12 + $0x818] sm:$0xff]
    %v568 = vld [vmem:[#allocation12 + $0x820] sm:$0xff]
    %v569 = vld [vmem:[#allocation12 + $0x828] sm:$0xff]
    %v570 = vld [vmem:[#allocation12 + $0x830] sm:$0xff]
    %v571 = vld [vmem:[#allocation12 + $0x838] sm:$0xff]
    %v572 = vld [vmem:[#allocation12 + $0x840] sm:$0xff]
    %v573 = vld [vmem:[#allocation12 + $0x848] sm:$0xff]
    %v574 = vld [vmem:[#allocation12 + $0x850] sm:$0xff]
    %v575 = vld [vmem:[#allocation12 + $0x858] sm:$0xff]
    %v576 = vld [vmem:[#allocation12 + $0x860] sm:$0xff]
    %v577 = vld [vmem:[#allocation12 + $0x868] sm:$0xff]
    %v578 = vld [vmem:[#allocation12 + $0x870] sm:$0xff]
    %v579 = vld [vmem:[#allocation12 + $0x878] sm:$0xff]
    %v580 = vld [vmem:[#allocation12 + $0x880] sm:$0xff]
    %v581 = vld [vmem:[#allocation12 + $0x888] sm:$0xff]
    %v582 = vld [vmem:[#allocation12 + $0x890] sm:$0xff]
    %v583 = vld [vmem:[#allocation12 + $0x898] sm:$0xff]
    %v584 = vld [vmem:[#allocation12 + $0x8a0] sm:$0xff]
    %v585 = vld [vmem:[#allocation12 + $0x8a8] sm:$0xff]
    %v586 = vld [vmem:[#allocation12 + $0x8b0] sm:$0xff]
    %v587 = vld [vmem:[#allocation12 + $0x8b8] sm:$0xff]
    %v588 = vld [vmem:[#allocation12 + $0x8c0] sm:$0xff]
    %v589 = vld [vmem:[#allocation12 + $0x8c8] sm:$0xff]
    %v590 = vld [vmem:[#allocation12 + $0x8d0] sm:$0xff]
    %v591 = vld [vmem:[#allocation12 + $0x8d8] sm:$0xff]
    %v592 = vld [vmem:[#allocation12 + $0x8e0] sm:$0xff]
    %v593 = vld [vmem:[#allocation12 + $0x8e8] sm:$0xff]
    %v594 = vld [vmem:[#allocation12 + $0x8f0] sm:$0xff]
    %v595 = vld [vmem:[#allocation12 + $0x8f8] sm:$0xff]
    %v596 = vld [vmem:[#allocation12 + $0x900] sm:$0xff]
    %v597 = vld [vmem:[#allocation12 + $0x908] sm:$0xff]
    %v598 = vld [vmem:[#allocation12 + $0x910] sm:$0xff]
    %v599 = vld [vmem:[#allocation12 + $0x918] sm:$0xff]
    %v600 = vld [vmem:[#allocation12 + $0x920] sm:$0xff]
    %v601 = vld [vmem:[#allocation12 + $0x928] sm:$0xff]
    %v602 = vld [vmem:[#allocation12 + $0x930] sm:$0xff]
    %v603 = vld [vmem:[#allocation12 + $0x938] sm:$0xff]
    %v604 = vld [vmem:[#allocation12 + $0x940] sm:$0xff]
    %v605 = vld [vmem:[#allocation12 + $0x948] sm:$0xff]
    %v606 = vld [vmem:[#allocation12 + $0x950] sm:$0xff]
    %v607 = vld [vmem:[#allocation12 + $0x958] sm:$0xff]
    %v608 = vld [vmem:[#allocation12 + $0x960] sm:$0xff]
    %v609 = vld [vmem:[#allocation12 + $0x968] sm:$0xff]
    %v610 = vld [vmem:[#allocation12 + $0x970] sm:$0xff]
    %v611 = vld [vmem:[#allocation12 + $0x978] sm:$0xff]
    %v612 = vld [vmem:[#allocation12 + $0x980] sm:$0xff]
    %v613 = vld [vmem:[#allocation12 + $0x988] sm:$0xff]
    %v614 = vld [vmem:[#allocation12 + $0x990] sm:$0xff]
    %v615 = vld [vmem:[#allocation12 + $0x998] sm:$0xff]
    %v616 = vld [vmem:[#allocation12 + $0x9a0] sm:$0xff]
    %v617 = vld [vmem:[#allocation12 + $0x9a8] sm:$0xff]
    %v618 = vld [vmem:[#allocation12 + $0x9b0] sm:$0xff]
    %v619 = vld [vmem:[#allocation12 + $0x9b8] sm:$0xff]
    %v620 = vld [vmem:[#allocation12 + $0x9c0] sm:$0xff]
    %v621 = vld [vmem:[#allocation12 + $0x9c8] sm:$0xff]
    %v622 = vld [vmem:[#allocation12 + $0x9d0] sm:$0xff]
    %v623 = vld [vmem:[#allocation12 + $0x9d8] sm:$0xff]
    %v624 = vld [vmem:[#allocation12 + $0x9e0] sm:$0xff]
    %v625 = vld [vmem:[#allocation12 + $0x9e8] sm:$0xff]
    %v626 = vld [vmem:[#allocation12 + $0x9f0] sm:$0xff]
    %v627 = vld [vmem:[#allocation12 + $0x9f8] sm:$0xff]
    %v628 = vld [vmem:[#allocation12 + $0xa00] sm:$0xff]
    %v629 = vld [vmem:[#allocation12 + $0xa08] sm:$0xff]
    %v630 = vld [vmem:[#allocation12 + $0xa10] sm:$0xff]
    %v631 = vld [vmem:[#allocation12 + $0xa18] sm:$0xff]
    %v632 = vld [vmem:[#allocation12 + $0xa20] sm:$0xff]
    %v633 = vld [vmem:[#allocation12 + $0xa28] sm:$0xff]
    %v634 = vld [vmem:[#allocation12 + $0xa30] sm:$0xff]
    %v635 = vld [vmem:[#allocation12 + $0xa38] sm:$0xff]
    %v636 = vld [vmem:[#allocation12 + $0xa40] sm:$0xff]
    %v637 = vld [vmem:[#allocation12 + $0xa48] sm:$0xff]
    %v638 = vld [vmem:[#allocation12 + $0xa50] sm:$0xff]
    %v639 = vld [vmem:[#allocation12 + $0xa58] sm:$0xff]
    %v640 = vld [vmem:[#allocation12 + $0xa60] sm:$0xff]
    %v641 = vld [vmem:[#allocation12 + $0xa68] sm:$0xff]
    %v642 = vld [vmem:[#allocation12 + $0xa70] sm:$0xff]
    %v643 = vld [vmem:[#allocation12 + $0xa78] sm:$0xff]
    %v644 = vld [vmem:[#allocation12 + $0xa80] sm:$0xff]
    %v645 = vld [vmem:[#allocation12 + $0xa88] sm:$0xff]
    %v646 = vld [vmem:[#allocation12 + $0xa90] sm:$0xff]
    %v647 = vld [vmem:[#allocation12 + $0xa98] sm:$0xff]
    %v648 = vld [vmem:[#allocation12 + $0xaa0] sm:$0xff]
    %v649 = vld [vmem:[#allocation12 + $0xaa8] sm:$0xff]
    %v650 = vld [vmem:[#allocation12 + $0xab0] sm:$0xff]
    %v651 = vld [vmem:[#allocation12 + $0xab8] sm:$0xff]
    %v652 = vld [vmem:[#allocation12 + $0xac0] sm:$0xff]
    %v653 = vld [vmem:[#allocation12 + $0xac8] sm:$0xff]
    %v654 = vld [vmem:[#allocation12 + $0xad0] sm:$0xff]
    %v655 = vld [vmem:[#allocation12 + $0xad8] sm:$0xff]
    %v656 = vld [vmem:[#allocation12 + $0xae0] sm:$0xff]
    %v657 = vld [vmem:[#allocation12 + $0xae8] sm:$0xff]
    %v658 = vld [vmem:[#allocation12 + $0xaf0] sm:$0xff]
    %v659 = vld [vmem:[#allocation12 + $0xaf8] sm:$0xff]
    %v660 = vld [vmem:[#allocation12 + $0xb00] sm:$0xff]
    %v661 = vld [vmem:[#allocation12 + $0xb08] sm:$0xff]
    %v662 = vld [vmem:[#allocation12 + $0xb10] sm:$0xff]
    %v663 = vld [vmem:[#allocation12 + $0xb18] sm:$0xff]
    %v664 = vld [vmem:[#allocation12 + $0xb20] sm:$0xff]
    %v665 = vld [vmem:[#allocation12 + $0xb28] sm:$0xff]
    %v666 = vld [vmem:[#allocation12 + $0xb30] sm:$0xff]
    %v667 = vld [vmem:[#allocation12 + $0xb38] sm:$0xff]
    %v668 = vld [vmem:[#allocation12 + $0xb40] sm:$0xff]
    %v669 = vld [vmem:[#allocation12 + $0xb48] sm:$0xff]
    %v670 = vld [vmem:[#allocation12 + $0xb50] sm:$0xff]
    %v671 = vld [vmem:[#allocation12 + $0xb58] sm:$0xff]
    %v672 = vld [vmem:[#allocation12 + $0xb60] sm:$0xff]
    %v673 = vld [vmem:[#allocation12 + $0xb68] sm:$0xff]
    %v674 = vld [vmem:[#allocation12 + $0xb70] sm:$0xff]
    %v675 = vld [vmem:[#allocation12 + $0xb78] sm:$0xff]
    %v676 = vld [vmem:[#allocation12 + $0xb80] sm:$0xff]
    %v677 = vld [vmem:[#allocation12 + $0xb88] sm:$0xff]
    %v678 = vld [vmem:[#allocation12 + $0xb90] sm:$0xff]
    %v679 = vld [vmem:[#allocation12 + $0xb98] sm:$0xff]
    %v680 = vld [vmem:[#allocation12 + $0xba0] sm:$0xff]
    %v681 = vld [vmem:[#allocation12 + $0xba8] sm:$0xff]
    %v682 = vld [vmem:[#allocation12 + $0xbb0] sm:$0xff]
    %v683 = vld [vmem:[#allocation12 + $0xbb8] sm:$0xff]
    %v684 = vld [vmem:[#allocation12 + $0xbc0] sm:$0xff]
    %v685 = vld [vmem:[#allocation12 + $0xbc8] sm:$0xff]
    %v686 = vld [vmem:[#allocation12 + $0xbd0] sm:$0xff]
    %v687 = vld [vmem:[#allocation12 + $0xbd8] sm:$0xff]
    %v688 = vld [vmem:[#allocation12 + $0xbe0] sm:$0xff]
    %v689 = vld [vmem:[#allocation12 + $0xbe8] sm:$0xff]
    %v690 = vld [vmem:[#allocation12 + $0xbf0] sm:$0xff]
    %v691 = vld [vmem:[#allocation12 + $0xbf8] sm:$0xff]
    %v692 = vld [vmem:[#allocation12 + $0xc00] sm:$0xff]
    %v693 = vld [vmem:[#allocation12 + $0xc08] sm:$0xff]
    %v694 = vld [vmem:[#allocation12 + $0xc10] sm:$0xff]
    %v695 = vld [vmem:[#allocation12 + $0xc18] sm:$0xff]
    %v696 = vld [vmem:[#allocation12 + $0xc20] sm:$0xff]
    %v697 = vld [vmem:[#allocation12 + $0xc28] sm:$0xff]
    %v698 = vld [vmem:[#allocation12 + $0xc30] sm:$0xff]
    %v699 = vld [vmem:[#allocation12 + $0xc38] sm:$0xff]
    %v700 = vld [vmem:[#allocation12 + $0xc40] sm:$0xff]
    %v701 = vld [vmem:[#allocation12 + $0xc48] sm:$0xff]
    %v702 = vld [vmem:[#allocation12 + $0xc50] sm:$0xff]
    %v703 = vld [vmem:[#allocation12 + $0xc58] sm:$0xff]
    %v704 = vld [vmem:[#allocation12 + $0xc60] sm:$0xff]
    %v705 = vld [vmem:[#allocation12 + $0xc68] sm:$0xff]
    %v706 = vld [vmem:[#allocation12 + $0xc70] sm:$0xff]
    %v707 = vld [vmem:[#allocation12 + $0xc78] sm:$0xff]
    %v708 = vld [vmem:[#allocation12 + $0xc80] sm:$0xff]
    %v709 = vld [vmem:[#allocation12 + $0xc88] sm:$0xff]
    %v710 = vld [vmem:[#allocation12 + $0xc90] sm:$0xff]
    %v711 = vld [vmem:[#allocation12 + $0xc98] sm:$0xff]
    %v712 = vld [vmem:[#allocation12 + $0xca0] sm:$0xff]
    %v713 = vld [vmem:[#allocation12 + $0xca8] sm:$0xff]
    %v714 = vld [vmem:[#allocation12 + $0xcb0] sm:$0xff]
    %v715 = vld [vmem:[#allocation12 + $0xcb8] sm:$0xff]
    %v716 = vld [vmem:[#allocation12 + $0xcc0] sm:$0xff]
    %v717 = vld [vmem:[#allocation12 + $0xcc8] sm:$0xff]
    %v718 = vld [vmem:[#allocation12 + $0xcd0] sm:$0xff]
    %v719 = vld [vmem:[#allocation12 + $0xcd8] sm:$0xff]
    %v720 = vld [vmem:[#allocation12 + $0xce0] sm:$0xff]
    %v721 = vld [vmem:[#allocation12 + $0xce8] sm:$0xff]
    %v722 = vld [vmem:[#allocation12 + $0xcf0] sm:$0xff]
    %v723 = vld [vmem:[#allocation12 + $0xcf8] sm:$0xff]
    %v724 = vld [vmem:[#allocation12 + $0xd00] sm:$0xff]
    %v725 = vld [vmem:[#allocation12 + $0xd08] sm:$0xff]
    %v726 = vld [vmem:[#allocation12 + $0xd10] sm:$0xff]
    %v727 = vld [vmem:[#allocation12 + $0xd18] sm:$0xff]
    %v728 = vld [vmem:[#allocation12 + $0xd20] sm:$0xff]
    %v729 = vld [vmem:[#allocation12 + $0xd28] sm:$0xff]
    %v730 = vld [vmem:[#allocation12 + $0xd30] sm:$0xff]
    %v731 = vld [vmem:[#allocation12 + $0xd38] sm:$0xff]
    %v732 = vld [vmem:[#allocation12 + $0xd40] sm:$0xff]
    %v733 = vld [vmem:[#allocation12 + $0xd48] sm:$0xff]
    %v734 = vld [vmem:[#allocation12 + $0xd50] sm:$0xff]
    %v735 = vld [vmem:[#allocation12 + $0xd58] sm:$0xff]
    %v736 = vld [vmem:[#allocation12 + $0xd60] sm:$0xff]
    %v737 = vld [vmem:[#allocation12 + $0xd68] sm:$0xff]
    %v738 = vld [vmem:[#allocation12 + $0xd70] sm:$0xff]
    %v739 = vld [vmem:[#allocation12 + $0xd78] sm:$0xff]
    %v740 = vld [vmem:[#allocation12 + $0xd80] sm:$0xff]
    %v741 = vld [vmem:[#allocation12 + $0xd88] sm:$0xff]
    %v742 = vld [vmem:[#allocation12 + $0xd90] sm:$0xff]
    %v743 = vld [vmem:[#allocation12 + $0xd98] sm:$0xff]
    %v744 = vld [vmem:[#allocation12 + $0xda0] sm:$0xff]
    %v745 = vld [vmem:[#allocation12 + $0xda8] sm:$0xff]
    %v746 = vld [vmem:[#allocation12 + $0xdb0] sm:$0xff]
    %v747 = vld [vmem:[#allocation12 + $0xdb8] sm:$0xff]
    %v748 = vld [vmem:[#allocation12 + $0xdc0] sm:$0xff]
    %v749 = vld [vmem:[#allocation12 + $0xdc8] sm:$0xff]
    %v750 = vld [vmem:[#allocation12 + $0xdd0] sm:$0xff]
    %v751 = vld [vmem:[#allocation12 + $0xdd8] sm:$0xff]
    %v752 = vld [vmem:[#allocation12 + $0xde0] sm:$0xff]
    %v753 = vld [vmem:[#allocation12 + $0xde8] sm:$0xff]
    %v754 = vld [vmem:[#allocation12 + $0xdf0] sm:$0xff]
    %v755 = vld [vmem:[#allocation12 + $0xdf8] sm:$0xff]
    %v756 = vld [vmem:[#allocation12 + $0xe00] sm:$0xff]
    %v757 = vld [vmem:[#allocation12 + $0xe08] sm:$0xff]
    %v758 = vld [vmem:[#allocation12 + $0xe10] sm:$0xff]
    %v759 = vld [vmem:[#allocation12 + $0xe18] sm:$0xff]
    %v760 = vld [vmem:[#allocation12 + $0xe20] sm:$0xff]
    %v761 = vld [vmem:[#allocation12 + $0xe28] sm:$0xff]
    %v762 = vld [vmem:[#allocation12 + $0xe30] sm:$0xff]
    %v763 = vld [vmem:[#allocation12 + $0xe38] sm:$0xff]
    %v764 = vld [vmem:[#allocation12 + $0xe40] sm:$0xff]
    %v765 = vld [vmem:[#allocation12 + $0xe48] sm:$0xff]
    %v766 = vld [vmem:[#allocation12 + $0xe50] sm:$0xff]
    %v767 = vld [vmem:[#allocation12 + $0xe58] sm:$0xff]
    %v768 = vld [vmem:[#allocation12 + $0xe60] sm:$0xff]
    %v769 = vld [vmem:[#allocation12 + $0xe68] sm:$0xff]
    %v770 = vld [vmem:[#allocation12 + $0xe70] sm:$0xff]
    %v771 = vld [vmem:[#allocation12 + $0xe78] sm:$0xff]
    %v772 = vld [vmem:[#allocation12 + $0xe80] sm:$0xff]
    %v773 = vld [vmem:[#allocation12 + $0xe88] sm:$0xff]
    %v774 = vld [vmem:[#allocation12 + $0xe90] sm:$0xff]
    %v775 = vld [vmem:[#allocation12 + $0xe98] sm:$0xff]
    %v776 = vld [vmem:[#allocation12 + $0xea0] sm:$0xff]
    %v777 = vld [vmem:[#allocation12 + $0xea8] sm:$0xff]
    %v778 = vld [vmem:[#allocation12 + $0xeb0] sm:$0xff]
    %v779 = vld [vmem:[#allocation12 + $0xeb8] sm:$0xff]
    %v780 = vld [vmem:[#allocation12 + $0xec0] sm:$0xff]
    %v781 = vld [vmem:[#allocation12 + $0xec8] sm:$0xff]
    %v782 = vld [vmem:[#allocation12 + $0xed0] sm:$0xff]
    %v783 = vld [vmem:[#allocation12 + $0xed8] sm:$0xff]
    %v784 = vld [vmem:[#allocation12 + $0xee0] sm:$0xff]
    %v785 = vld [vmem:[#allocation12 + $0xee8] sm:$0xff]
    %v786 = vld [vmem:[#allocation12 + $0xef0] sm:$0xff]
    %v787 = vld [vmem:[#allocation12 + $0xef8] sm:$0xff]
    %v788 = vld [vmem:[#allocation12 + $0xf00] sm:$0xff]
    %v789 = vld [vmem:[#allocation12 + $0xf08] sm:$0xff]
    %v790 = vld [vmem:[#allocation12 + $0xf10] sm:$0xff]
    %v791 = vld [vmem:[#allocation12 + $0xf18] sm:$0xff]
    %v792 = vld [vmem:[#allocation12 + $0xf20] sm:$0xff]
    %v793 = vld [vmem:[#allocation12 + $0xf28] sm:$0xff]
    %v794 = vld [vmem:[#allocation12 + $0xf30] sm:$0xff]
    %v795 = vld [vmem:[#allocation12 + $0xf38] sm:$0xff]
    %v796 = vld [vmem:[#allocation12 + $0xf40] sm:$0xff]
    %v797 = vld [vmem:[#allocation12 + $0xf48] sm:$0xff]
    %v798 = vld [vmem:[#allocation12 + $0xf50] sm:$0xff]
    %v799 = vld [vmem:[#allocation12 + $0xf58] sm:$0xff]
    %v800 = vld [vmem:[#allocation12 + $0xf60] sm:$0xff]
    %v801 = vld [vmem:[#allocation12 + $0xf68] sm:$0xff]
    %v802 = vld [vmem:[#allocation12 + $0xf70] sm:$0xff]
    %v803 = vld [vmem:[#allocation12 + $0xf78] sm:$0xff]
    %v804 = vld [vmem:[#allocation12 + $0xf80] sm:$0xff]
    %v805 = vld [vmem:[#allocation12 + $0xf88] sm:$0xff]
    %v806 = vld [vmem:[#allocation12 + $0xf90] sm:$0xff]
    %v807 = vld [vmem:[#allocation12 + $0xf98] sm:$0xff]
    %v808 = vld [vmem:[#allocation12 + $0xfa0] sm:$0xff]
    %v809 = vld [vmem:[#allocation12 + $0xfa8] sm:$0xff]
    %v810 = vld [vmem:[#allocation12 + $0xfb0] sm:$0xff]
    %v811 = vld [vmem:[#allocation12 + $0xfb8] sm:$0xff]
    %v812 = vld [vmem:[#allocation12 + $0xfc0] sm:$0xff]
    %v813 = vld [vmem:[#allocation12 + $0xfc8] sm:$0xff]
    %v814 = vld [vmem:[#allocation12 + $0xfd0] sm:$0xff]
    %v815 = vld [vmem:[#allocation12 + $0xfd8] sm:$0xff]
    %v816 = vld [vmem:[#allocation12 + $0xfe0] sm:$0xff]
    %v817 = vld [vmem:[#allocation12 + $0xfe8] sm:$0xff]
    %v818 = vld [vmem:[#allocation12 + $0xff0] sm:$0xff]
    %v819 = vld [vmem:[#allocation12 + $0xff8] sm:$0xff]
    %v820 = vld [vmem:[#allocation14] sm:$0xf]
    %v822 = vperm.slane %v820, 0
    %v823 = vperm.slane %v820, 1
    %v824 = vperm.slane %v820, 2
    %v825 = vperm.slane %v820, 3
    %v1342 = vunpack.c.l.b16 %v308
    %v1343 = vunpack.c.h.b16 %v308
    %v1344 = vunpack.c.l.b16 %v309
    %v1345 = vunpack.c.h.b16 %v309
    %v1346 = vunpack.c.l.b16 %v310
    %v1347 = vunpack.c.h.b16 %v310
    %v1348 = vunpack.c.l.b16 %v311
    %v1349 = vunpack.c.h.b16 %v311
    %v1350 = vunpack.c.l.b16 %v312
    %v1351 = vunpack.c.h.b16 %v312
    %v1352 = vunpack.c.l.b16 %v313
    %v1353 = vunpack.c.h.b16 %v313
    %v1354 = vunpack.c.l.b16 %v314
    %v1355 = vunpack.c.h.b16 %v314
    %v1356 = vunpack.c.l.b16 %v315
    %v1357 = vunpack.c.h.b16 %v315
    %v1358 = vunpack.c.l.b16 %v316
    %v1359 = vunpack.c.h.b16 %v316
    %v1360 = vunpack.c.l.b16 %v317
    %v1361 = vunpack.c.h.b16 %v317
    %v1362 = vunpack.c.l.b16 %v318
    %v1363 = vunpack.c.h.b16 %v318
    %v1364 = vunpack.c.l.b16 %v319
    %v1365 = vunpack.c.h.b16 %v319
    %v1366 = vunpack.c.l.b16 %v320
    %v1367 = vunpack.c.h.b16 %v320
    %v1368 = vunpack.c.l.b16 %v321
    %v1369 = vunpack.c.h.b16 %v321
    %v1370 = vunpack.c.l.b16 %v322
    %v1371 = vunpack.c.h.b16 %v322
    %v1372 = vunpack.c.l.b16 %v323
    %v1373 = vunpack.c.h.b16 %v323
    %v1374 = vunpack.c.l.b16 %v324
    %v1375 = vunpack.c.h.b16 %v324
    %v1376 = vunpack.c.l.b16 %v325
    %v1377 = vunpack.c.h.b16 %v325
    %v1378 = vunpack.c.l.b16 %v326
    %v1379 = vunpack.c.h.b16 %v326
    %v1380 = vunpack.c.l.b16 %v327
    %v1381 = vunpack.c.h.b16 %v327
    %v1382 = vunpack.c.l.b16 %v328
    %v1383 = vunpack.c.h.b16 %v328
    %v1384 = vunpack.c.l.b16 %v329
    %v1385 = vunpack.c.h.b16 %v329
    %v1386 = vunpack.c.l.b16 %v330
    %v1387 = vunpack.c.h.b16 %v330
    %v1388 = vunpack.c.l.b16 %v331
    %v1389 = vunpack.c.h.b16 %v331
    %v1390 = vunpack.c.l.b16 %v332
    %v1391 = vunpack.c.h.b16 %v332
    %v1392 = vunpack.c.l.b16 %v333
    %v1393 = vunpack.c.h.b16 %v333
    %v1394 = vunpack.c.l.b16 %v334
    %v1395 = vunpack.c.h.b16 %v334
    %v1396 = vunpack.c.l.b16 %v335
    %v1397 = vunpack.c.h.b16 %v335
    %v1398 = vunpack.c.l.b16 %v336
    %v1399 = vunpack.c.h.b16 %v336
    %v1400 = vunpack.c.l.b16 %v337
    %v1401 = vunpack.c.h.b16 %v337
    %v1402 = vunpack.c.l.b16 %v338
    %v1403 = vunpack.c.h.b16 %v338
    %v1404 = vunpack.c.l.b16 %v339
    %v1405 = vunpack.c.h.b16 %v339
    %v1406 = vunpack.c.l.b16 %v340
    %v1407 = vunpack.c.h.b16 %v340
    %v1408 = vunpack.c.l.b16 %v341
    %v1409 = vunpack.c.h.b16 %v341
    %v1410 = vunpack.c.l.b16 %v342
    %v1411 = vunpack.c.h.b16 %v342
    %v1412 = vunpack.c.l.b16 %v343
    %v1413 = vunpack.c.h.b16 %v343
    %v1414 = vunpack.c.l.b16 %v344
    %v1415 = vunpack.c.h.b16 %v344
    %v1416 = vunpack.c.l.b16 %v345
    %v1417 = vunpack.c.h.b16 %v345
    %v1418 = vunpack.c.l.b16 %v346
    %v1419 = vunpack.c.h.b16 %v346
    %v1420 = vunpack.c.l.b16 %v347
    %v1421 = vunpack.c.h.b16 %v347
    %v1422 = vunpack.c.l.b16 %v348
    %v1423 = vunpack.c.h.b16 %v348
    %v1424 = vunpack.c.l.b16 %v349
    %v1425 = vunpack.c.h.b16 %v349
    %v1426 = vunpack.c.l.b16 %v350
    %v1427 = vunpack.c.h.b16 %v350
    %v1428 = vunpack.c.l.b16 %v351
    %v1429 = vunpack.c.h.b16 %v351
    %v1430 = vunpack.c.l.b16 %v352
    %v1431 = vunpack.c.h.b16 %v352
    %v1432 = vunpack.c.l.b16 %v353
    %v1433 = vunpack.c.h.b16 %v353
    %v1434 = vunpack.c.l.b16 %v354
    %v1435 = vunpack.c.h.b16 %v354
    %v1436 = vunpack.c.l.b16 %v355
    %v1437 = vunpack.c.h.b16 %v355
    %v1438 = vunpack.c.l.b16 %v356
    %v1439 = vunpack.c.h.b16 %v356
    %v1440 = vunpack.c.l.b16 %v357
    %v1441 = vunpack.c.h.b16 %v357
    %v1442 = vunpack.c.l.b16 %v358
    %v1443 = vunpack.c.h.b16 %v358
    %v1444 = vunpack.c.l.b16 %v359
    %v1445 = vunpack.c.h.b16 %v359
    %v1446 = vunpack.c.l.b16 %v360
    %v1447 = vunpack.c.h.b16 %v360
    %v1448 = vunpack.c.l.b16 %v361
    %v1449 = vunpack.c.h.b16 %v361
    %v1450 = vunpack.c.l.b16 %v362
    %v1451 = vunpack.c.h.b16 %v362
    %v1452 = vunpack.c.l.b16 %v363
    %v1453 = vunpack.c.h.b16 %v363
    %v1454 = vunpack.c.l.b16 %v364
    %v1455 = vunpack.c.h.b16 %v364
    %v1456 = vunpack.c.l.b16 %v365
    %v1457 = vunpack.c.h.b16 %v365
    %v1458 = vunpack.c.l.b16 %v366
    %v1459 = vunpack.c.h.b16 %v366
    %v1460 = vunpack.c.l.b16 %v367
    %v1461 = vunpack.c.h.b16 %v367
    %v1462 = vunpack.c.l.b16 %v368
    %v1463 = vunpack.c.h.b16 %v368
    %v1464 = vunpack.c.l.b16 %v369
    %v1465 = vunpack.c.h.b16 %v369
    %v1466 = vunpack.c.l.b16 %v370
    %v1467 = vunpack.c.h.b16 %v370
    %v1468 = vunpack.c.l.b16 %v371
    %v1469 = vunpack.c.h.b16 %v371
    %v1470 = vunpack.c.l.b16 %v372
    %v1471 = vunpack.c.h.b16 %v372
    %v1472 = vunpack.c.l.b16 %v373
    %v1473 = vunpack.c.h.b16 %v373
    %v1474 = vunpack.c.l.b16 %v374
    %v1475 = vunpack.c.h.b16 %v374
    %v1476 = vunpack.c.l.b16 %v375
    %v1477 = vunpack.c.h.b16 %v375
    %v1478 = vunpack.c.l.b16 %v376
    %v1479 = vunpack.c.h.b16 %v376
    %v1480 = vunpack.c.l.b16 %v377
    %v1481 = vunpack.c.h.b16 %v377
    %v1482 = vunpack.c.l.b16 %v378
    %v1483 = vunpack.c.h.b16 %v378
    %v1484 = vunpack.c.l.b16 %v379
    %v1485 = vunpack.c.h.b16 %v379
    %v1486 = vunpack.c.l.b16 %v380
    %v1487 = vunpack.c.h.b16 %v380
    %v1488 = vunpack.c.l.b16 %v381
    %v1489 = vunpack.c.h.b16 %v381
    %v1490 = vunpack.c.l.b16 %v382
    %v1491 = vunpack.c.h.b16 %v382
    %v1492 = vunpack.c.l.b16 %v383
    %v1493 = vunpack.c.h.b16 %v383
    %v1494 = vunpack.c.l.b16 %v384
    %v1495 = vunpack.c.h.b16 %v384
    %v1496 = vunpack.c.l.b16 %v385
    %v1497 = vunpack.c.h.b16 %v385
    %v1498 = vunpack.c.l.b16 %v386
    %v1499 = vunpack.c.h.b16 %v386
    %v1500 = vunpack.c.l.b16 %v387
    %v1501 = vunpack.c.h.b16 %v387
    %v1502 = vunpack.c.l.b16 %v388
    %v1503 = vunpack.c.h.b16 %v388
    %v1504 = vunpack.c.l.b16 %v389
    %v1505 = vunpack.c.h.b16 %v389
    %v1506 = vunpack.c.l.b16 %v390
    %v1507 = vunpack.c.h.b16 %v390
    %v1508 = vunpack.c.l.b16 %v391
    %v1509 = vunpack.c.h.b16 %v391
    %v1510 = vunpack.c.l.b16 %v392
    %v1511 = vunpack.c.h.b16 %v392
    %v1512 = vunpack.c.l.b16 %v393
    %v1513 = vunpack.c.h.b16 %v393
    %v1514 = vunpack.c.l.b16 %v394
    %v1515 = vunpack.c.h.b16 %v394
    %v1516 = vunpack.c.l.b16 %v395
    %v1517 = vunpack.c.h.b16 %v395
    %v1518 = vunpack.c.l.b16 %v396
    %v1519 = vunpack.c.h.b16 %v396
    %v1520 = vunpack.c.l.b16 %v397
    %v1521 = vunpack.c.h.b16 %v397
    %v1522 = vunpack.c.l.b16 %v398
    %v1523 = vunpack.c.h.b16 %v398
    %v1524 = vunpack.c.l.b16 %v399
    %v1525 = vunpack.c.h.b16 %v399
    %v1526 = vunpack.c.l.b16 %v400
    %v1527 = vunpack.c.h.b16 %v400
    %v1528 = vunpack.c.l.b16 %v401
    %v1529 = vunpack.c.h.b16 %v401
    %v1530 = vunpack.c.l.b16 %v402
    %v1531 = vunpack.c.h.b16 %v402
    %v1532 = vunpack.c.l.b16 %v403
    %v1533 = vunpack.c.h.b16 %v403
    %v1534 = vunpack.c.l.b16 %v404
    %v1535 = vunpack.c.h.b16 %v404
    %v1536 = vunpack.c.l.b16 %v405
    %v1537 = vunpack.c.h.b16 %v405
    %v1538 = vunpack.c.l.b16 %v406
    %v1539 = vunpack.c.h.b16 %v406
    %v1540 = vunpack.c.l.b16 %v407
    %v1541 = vunpack.c.h.b16 %v407
    %v1542 = vunpack.c.l.b16 %v408
    %v1543 = vunpack.c.h.b16 %v408
    %v1544 = vunpack.c.l.b16 %v409
    %v1545 = vunpack.c.h.b16 %v409
    %v1546 = vunpack.c.l.b16 %v410
    %v1547 = vunpack.c.h.b16 %v410
    %v1548 = vunpack.c.l.b16 %v411
    %v1549 = vunpack.c.h.b16 %v411
    %v1550 = vunpack.c.l.b16 %v412
    %v1551 = vunpack.c.h.b16 %v412
    %v1552 = vunpack.c.l.b16 %v413
    %v1553 = vunpack.c.h.b16 %v413
    %v1554 = vunpack.c.l.b16 %v414
    %v1555 = vunpack.c.h.b16 %v414
    %v1556 = vunpack.c.l.b16 %v415
    %v1557 = vunpack.c.h.b16 %v415
    %v1558 = vunpack.c.l.b16 %v416
    %v1559 = vunpack.c.h.b16 %v416
    %v1560 = vunpack.c.l.b16 %v417
    %v1561 = vunpack.c.h.b16 %v417
    %v1562 = vunpack.c.l.b16 %v418
    %v1563 = vunpack.c.h.b16 %v418
    %v1564 = vunpack.c.l.b16 %v419
    %v1565 = vunpack.c.h.b16 %v419
    %v1566 = vunpack.c.l.b16 %v420
    %v1567 = vunpack.c.h.b16 %v420
    %v1568 = vunpack.c.l.b16 %v421
    %v1569 = vunpack.c.h.b16 %v421
    %v1570 = vunpack.c.l.b16 %v422
    %v1571 = vunpack.c.h.b16 %v422
    %v1572 = vunpack.c.l.b16 %v423
    %v1573 = vunpack.c.h.b16 %v423
    %v1574 = vunpack.c.l.b16 %v424
    %v1575 = vunpack.c.h.b16 %v424
    %v1576 = vunpack.c.l.b16 %v425
    %v1577 = vunpack.c.h.b16 %v425
    %v1578 = vunpack.c.l.b16 %v426
    %v1579 = vunpack.c.h.b16 %v426
    %v1580 = vunpack.c.l.b16 %v427
    %v1581 = vunpack.c.h.b16 %v427
    %v1582 = vunpack.c.l.b16 %v428
    %v1583 = vunpack.c.h.b16 %v428
    %v1584 = vunpack.c.l.b16 %v429
    %v1585 = vunpack.c.h.b16 %v429
    %v1586 = vunpack.c.l.b16 %v430
    %v1587 = vunpack.c.h.b16 %v430
    %v1588 = vunpack.c.l.b16 %v431
    %v1589 = vunpack.c.h.b16 %v431
    %v1590 = vunpack.c.l.b16 %v432
    %v1591 = vunpack.c.h.b16 %v432
    %v1592 = vunpack.c.l.b16 %v433
    %v1593 = vunpack.c.h.b16 %v433
    %v1594 = vunpack.c.l.b16 %v434
    %v1595 = vunpack.c.h.b16 %v434
    %v1596 = vunpack.c.l.b16 %v435
    %v1597 = vunpack.c.h.b16 %v435
    %v1598 = vunpack.c.l.b16 %v436
    %v1599 = vunpack.c.h.b16 %v436
    %v1600 = vunpack.c.l.b16 %v437
    %v1601 = vunpack.c.h.b16 %v437
    %v1602 = vunpack.c.l.b16 %v438
    %v1603 = vunpack.c.h.b16 %v438
    %v1604 = vunpack.c.l.b16 %v439
    %v1605 = vunpack.c.h.b16 %v439
    %v1606 = vunpack.c.l.b16 %v440
    %v1607 = vunpack.c.h.b16 %v440
    %v1608 = vunpack.c.l.b16 %v441
    %v1609 = vunpack.c.h.b16 %v441
    %v1610 = vunpack.c.l.b16 %v442
    %v1611 = vunpack.c.h.b16 %v442
    %v1612 = vunpack.c.l.b16 %v443
    %v1613 = vunpack.c.h.b16 %v443
    %v1614 = vunpack.c.l.b16 %v444
    %v1615 = vunpack.c.h.b16 %v444
    %v1616 = vunpack.c.l.b16 %v445
    %v1617 = vunpack.c.h.b16 %v445
    %v1618 = vunpack.c.l.b16 %v446
    %v1619 = vunpack.c.h.b16 %v446
    %v1620 = vunpack.c.l.b16 %v447
    %v1621 = vunpack.c.h.b16 %v447
    %v1622 = vunpack.c.l.b16 %v448
    %v1623 = vunpack.c.h.b16 %v448
    %v1624 = vunpack.c.l.b16 %v449
    %v1625 = vunpack.c.h.b16 %v449
    %v1626 = vunpack.c.l.b16 %v450
    %v1627 = vunpack.c.h.b16 %v450
    %v1628 = vunpack.c.l.b16 %v451
    %v1629 = vunpack.c.h.b16 %v451
    %v1630 = vunpack.c.l.b16 %v452
    %v1631 = vunpack.c.h.b16 %v452
    %v1632 = vunpack.c.l.b16 %v453
    %v1633 = vunpack.c.h.b16 %v453
    %v1634 = vunpack.c.l.b16 %v454
    %v1635 = vunpack.c.h.b16 %v454
    %v1636 = vunpack.c.l.b16 %v455
    %v1637 = vunpack.c.h.b16 %v455
    %v1638 = vunpack.c.l.b16 %v456
    %v1639 = vunpack.c.h.b16 %v456
    %v1640 = vunpack.c.l.b16 %v457
    %v1641 = vunpack.c.h.b16 %v457
    %v1642 = vunpack.c.l.b16 %v458
    %v1643 = vunpack.c.h.b16 %v458
    %v1644 = vunpack.c.l.b16 %v459
    %v1645 = vunpack.c.h.b16 %v459
    %v1646 = vunpack.c.l.b16 %v460
    %v1647 = vunpack.c.h.b16 %v460
    %v1648 = vunpack.c.l.b16 %v461
    %v1649 = vunpack.c.h.b16 %v461
    %v1650 = vunpack.c.l.b16 %v462
    %v1651 = vunpack.c.h.b16 %v462
    %v1652 = vunpack.c.l.b16 %v463
    %v1653 = vunpack.c.h.b16 %v463
    %v1654 = vunpack.c.l.b16 %v464
    %v1655 = vunpack.c.h.b16 %v464
    %v1656 = vunpack.c.l.b16 %v465
    %v1657 = vunpack.c.h.b16 %v465
    %v1658 = vunpack.c.l.b16 %v466
    %v1659 = vunpack.c.h.b16 %v466
    %v1660 = vunpack.c.l.b16 %v467
    %v1661 = vunpack.c.h.b16 %v467
    %v1662 = vunpack.c.l.b16 %v468
    %v1663 = vunpack.c.h.b16 %v468
    %v1664 = vunpack.c.l.b16 %v469
    %v1665 = vunpack.c.h.b16 %v469
    %v1666 = vunpack.c.l.b16 %v470
    %v1667 = vunpack.c.h.b16 %v470
    %v1668 = vunpack.c.l.b16 %v471
    %v1669 = vunpack.c.h.b16 %v471
    %v1670 = vunpack.c.l.b16 %v472
    %v1671 = vunpack.c.h.b16 %v472
    %v1672 = vunpack.c.l.b16 %v473
    %v1673 = vunpack.c.h.b16 %v473
    %v1674 = vunpack.c.l.b16 %v474
    %v1675 = vunpack.c.h.b16 %v474
    %v1676 = vunpack.c.l.b16 %v475
    %v1677 = vunpack.c.h.b16 %v475
    %v1678 = vunpack.c.l.b16 %v476
    %v1679 = vunpack.c.h.b16 %v476
    %v1680 = vunpack.c.l.b16 %v477
    %v1681 = vunpack.c.h.b16 %v477
    %v1682 = vunpack.c.l.b16 %v478
    %v1683 = vunpack.c.h.b16 %v478
    %v1684 = vunpack.c.l.b16 %v479
    %v1685 = vunpack.c.h.b16 %v479
    %v1686 = vunpack.c.l.b16 %v480
    %v1687 = vunpack.c.h.b16 %v480
    %v1688 = vunpack.c.l.b16 %v481
    %v1689 = vunpack.c.h.b16 %v481
    %v1690 = vunpack.c.l.b16 %v482
    %v1691 = vunpack.c.h.b16 %v482
    %v1692 = vunpack.c.l.b16 %v483
    %v1693 = vunpack.c.h.b16 %v483
    %v1694 = vunpack.c.l.b16 %v484
    %v1695 = vunpack.c.h.b16 %v484
    %v1696 = vunpack.c.l.b16 %v485
    %v1697 = vunpack.c.h.b16 %v485
    %v1698 = vunpack.c.l.b16 %v486
    %v1699 = vunpack.c.h.b16 %v486
    %v1700 = vunpack.c.l.b16 %v487
    %v1701 = vunpack.c.h.b16 %v487
    %v1702 = vunpack.c.l.b16 %v488
    %v1703 = vunpack.c.h.b16 %v488
    %v1704 = vunpack.c.l.b16 %v489
    %v1705 = vunpack.c.h.b16 %v489
    %v1706 = vunpack.c.l.b16 %v490
    %v1707 = vunpack.c.h.b16 %v490
    %v1708 = vunpack.c.l.b16 %v491
    %v1709 = vunpack.c.h.b16 %v491
    %v1710 = vunpack.c.l.b16 %v492
    %v1711 = vunpack.c.h.b16 %v492
    %v1712 = vunpack.c.l.b16 %v493
    %v1713 = vunpack.c.h.b16 %v493
    %v1714 = vunpack.c.l.b16 %v494
    %v1715 = vunpack.c.h.b16 %v494
    %v1716 = vunpack.c.l.b16 %v495
    %v1717 = vunpack.c.h.b16 %v495
    %v1718 = vunpack.c.l.b16 %v496
    %v1719 = vunpack.c.h.b16 %v496
    %v1720 = vunpack.c.l.b16 %v497
    %v1721 = vunpack.c.h.b16 %v497
    %v1722 = vunpack.c.l.b16 %v498
    %v1723 = vunpack.c.h.b16 %v498
    %v1724 = vunpack.c.l.b16 %v499
    %v1725 = vunpack.c.h.b16 %v499
    %v1726 = vunpack.c.l.b16 %v500
    %v1727 = vunpack.c.h.b16 %v500
    %v1728 = vunpack.c.l.b16 %v501
    %v1729 = vunpack.c.h.b16 %v501
    %v1730 = vunpack.c.l.b16 %v502
    %v1731 = vunpack.c.h.b16 %v502
    %v1732 = vunpack.c.l.b16 %v503
    %v1733 = vunpack.c.h.b16 %v503
    %v1734 = vunpack.c.l.b16 %v504
    %v1735 = vunpack.c.h.b16 %v504
    %v1736 = vunpack.c.l.b16 %v505
    %v1737 = vunpack.c.h.b16 %v505
    %v1738 = vunpack.c.l.b16 %v506
    %v1739 = vunpack.c.h.b16 %v506
    %v1740 = vunpack.c.l.b16 %v507
    %v1741 = vunpack.c.h.b16 %v507
    %v1742 = vunpack.c.l.b16 %v508
    %v1743 = vunpack.c.h.b16 %v508
    %v1744 = vunpack.c.l.b16 %v509
    %v1745 = vunpack.c.h.b16 %v509
    %v1746 = vunpack.c.l.b16 %v510
    %v1747 = vunpack.c.h.b16 %v510
    %v1748 = vunpack.c.l.b16 %v511
    %v1749 = vunpack.c.h.b16 %v511
    %v1750 = vunpack.c.l.b16 %v512
    %v1751 = vunpack.c.h.b16 %v512
    %v1752 = vunpack.c.l.b16 %v513
    %v1753 = vunpack.c.h.b16 %v513
    %v1754 = vunpack.c.l.b16 %v514
    %v1755 = vunpack.c.h.b16 %v514
    %v1756 = vunpack.c.l.b16 %v515
    %v1757 = vunpack.c.h.b16 %v515
    %v1758 = vunpack.c.l.b16 %v516
    %v1759 = vunpack.c.h.b16 %v516
    %v1760 = vunpack.c.l.b16 %v517
    %v1761 = vunpack.c.h.b16 %v517
    %v1762 = vunpack.c.l.b16 %v518
    %v1763 = vunpack.c.h.b16 %v518
    %v1764 = vunpack.c.l.b16 %v519
    %v1765 = vunpack.c.h.b16 %v519
    %v1766 = vunpack.c.l.b16 %v520
    %v1767 = vunpack.c.h.b16 %v520
    %v1768 = vunpack.c.l.b16 %v521
    %v1769 = vunpack.c.h.b16 %v521
    %v1770 = vunpack.c.l.b16 %v522
    %v1771 = vunpack.c.h.b16 %v522
    %v1772 = vunpack.c.l.b16 %v523
    %v1773 = vunpack.c.h.b16 %v523
    %v1774 = vunpack.c.l.b16 %v524
    %v1775 = vunpack.c.h.b16 %v524
    %v1776 = vunpack.c.l.b16 %v525
    %v1777 = vunpack.c.h.b16 %v525
    %v1778 = vunpack.c.l.b16 %v526
    %v1779 = vunpack.c.h.b16 %v526
    %v1780 = vunpack.c.l.b16 %v527
    %v1781 = vunpack.c.h.b16 %v527
    %v1782 = vunpack.c.l.b16 %v528
    %v1783 = vunpack.c.h.b16 %v528
    %v1784 = vunpack.c.l.b16 %v529
    %v1785 = vunpack.c.h.b16 %v529
    %v1786 = vunpack.c.l.b16 %v530
    %v1787 = vunpack.c.h.b16 %v530
    %v1788 = vunpack.c.l.b16 %v531
    %v1789 = vunpack.c.h.b16 %v531
    %v1790 = vunpack.c.l.b16 %v532
    %v1791 = vunpack.c.h.b16 %v532
    %v1792 = vunpack.c.l.b16 %v533
    %v1793 = vunpack.c.h.b16 %v533
    %v1794 = vunpack.c.l.b16 %v534
    %v1795 = vunpack.c.h.b16 %v534
    %v1796 = vunpack.c.l.b16 %v535
    %v1797 = vunpack.c.h.b16 %v535
    %v1798 = vunpack.c.l.b16 %v536
    %v1799 = vunpack.c.h.b16 %v536
    %v1800 = vunpack.c.l.b16 %v537
    %v1801 = vunpack.c.h.b16 %v537
    %v1802 = vunpack.c.l.b16 %v538
    %v1803 = vunpack.c.h.b16 %v538
    %v1804 = vunpack.c.l.b16 %v539
    %v1805 = vunpack.c.h.b16 %v539
    %v1806 = vunpack.c.l.b16 %v540
    %v1807 = vunpack.c.h.b16 %v540
    %v1808 = vunpack.c.l.b16 %v541
    %v1809 = vunpack.c.h.b16 %v541
    %v1810 = vunpack.c.l.b16 %v542
    %v1811 = vunpack.c.h.b16 %v542
    %v1812 = vunpack.c.l.b16 %v543
    %v1813 = vunpack.c.h.b16 %v543
    %v1814 = vunpack.c.l.b16 %v544
    %v1815 = vunpack.c.h.b16 %v544
    %v1816 = vunpack.c.l.b16 %v545
    %v1817 = vunpack.c.h.b16 %v545
    %v1818 = vunpack.c.l.b16 %v546
    %v1819 = vunpack.c.h.b16 %v546
    %v1820 = vunpack.c.l.b16 %v547
    %v1821 = vunpack.c.h.b16 %v547
    %v1822 = vunpack.c.l.b16 %v548
    %v1823 = vunpack.c.h.b16 %v548
    %v1824 = vunpack.c.l.b16 %v549
    %v1825 = vunpack.c.h.b16 %v549
    %v1826 = vunpack.c.l.b16 %v550
    %v1827 = vunpack.c.h.b16 %v550
    %v1828 = vunpack.c.l.b16 %v551
    %v1829 = vunpack.c.h.b16 %v551
    %v1830 = vunpack.c.l.b16 %v552
    %v1831 = vunpack.c.h.b16 %v552
    %v1832 = vunpack.c.l.b16 %v553
    %v1833 = vunpack.c.h.b16 %v553
    %v1834 = vunpack.c.l.b16 %v554
    %v1835 = vunpack.c.h.b16 %v554
    %v1836 = vunpack.c.l.b16 %v555
    %v1837 = vunpack.c.h.b16 %v555
    %v1838 = vunpack.c.l.b16 %v556
    %v1839 = vunpack.c.h.b16 %v556
    %v1840 = vunpack.c.l.b16 %v557
    %v1841 = vunpack.c.h.b16 %v557
    %v1842 = vunpack.c.l.b16 %v558
    %v1843 = vunpack.c.h.b16 %v558
    %v1844 = vunpack.c.l.b16 %v559
    %v1845 = vunpack.c.h.b16 %v559
    %v1846 = vunpack.c.l.b16 %v560
    %v1847 = vunpack.c.h.b16 %v560
    %v1848 = vunpack.c.l.b16 %v561
    %v1849 = vunpack.c.h.b16 %v561
    %v1850 = vunpack.c.l.b16 %v562
    %v1851 = vunpack.c.h.b16 %v562
    %v1852 = vunpack.c.l.b16 %v563
    %v1853 = vunpack.c.h.b16 %v563
    %v1854 = vunpack.c.l.b16 %v564
    %v1855 = vunpack.c.h.b16 %v564
    %v1856 = vunpack.c.l.b16 %v565
    %v1857 = vunpack.c.h.b16 %v565
    %v1858 = vunpack.c.l.b16 %v566
    %v1859 = vunpack.c.h.b16 %v566
    %v1860 = vunpack.c.l.b16 %v567
    %v1861 = vunpack.c.h.b16 %v567
    %v1862 = vunpack.c.l.b16 %v568
    %v1863 = vunpack.c.h.b16 %v568
    %v1864 = vunpack.c.l.b16 %v569
    %v1865 = vunpack.c.h.b16 %v569
    %v1866 = vunpack.c.l.b16 %v570
    %v1867 = vunpack.c.h.b16 %v570
    %v1868 = vunpack.c.l.b16 %v571
    %v1869 = vunpack.c.h.b16 %v571
    %v1870 = vunpack.c.l.b16 %v572
    %v1871 = vunpack.c.h.b16 %v572
    %v1872 = vunpack.c.l.b16 %v573
    %v1873 = vunpack.c.h.b16 %v573
    %v1874 = vunpack.c.l.b16 %v574
    %v1875 = vunpack.c.h.b16 %v574
    %v1876 = vunpack.c.l.b16 %v575
    %v1877 = vunpack.c.h.b16 %v575
    %v1878 = vunpack.c.l.b16 %v576
    %v1879 = vunpack.c.h.b16 %v576
    %v1880 = vunpack.c.l.b16 %v577
    %v1881 = vunpack.c.h.b16 %v577
    %v1882 = vunpack.c.l.b16 %v578
    %v1883 = vunpack.c.h.b16 %v578
    %v1884 = vunpack.c.l.b16 %v579
    %v1885 = vunpack.c.h.b16 %v579
    %v1886 = vunpack.c.l.b16 %v580
    %v1887 = vunpack.c.h.b16 %v580
    %v1888 = vunpack.c.l.b16 %v581
    %v1889 = vunpack.c.h.b16 %v581
    %v1890 = vunpack.c.l.b16 %v582
    %v1891 = vunpack.c.h.b16 %v582
    %v1892 = vunpack.c.l.b16 %v583
    %v1893 = vunpack.c.h.b16 %v583
    %v1894 = vunpack.c.l.b16 %v584
    %v1895 = vunpack.c.h.b16 %v584
    %v1896 = vunpack.c.l.b16 %v585
    %v1897 = vunpack.c.h.b16 %v585
    %v1898 = vunpack.c.l.b16 %v586
    %v1899 = vunpack.c.h.b16 %v586
    %v1900 = vunpack.c.l.b16 %v587
    %v1901 = vunpack.c.h.b16 %v587
    %v1902 = vunpack.c.l.b16 %v588
    %v1903 = vunpack.c.h.b16 %v588
    %v1904 = vunpack.c.l.b16 %v589
    %v1905 = vunpack.c.h.b16 %v589
    %v1906 = vunpack.c.l.b16 %v590
    %v1907 = vunpack.c.h.b16 %v590
    %v1908 = vunpack.c.l.b16 %v591
    %v1909 = vunpack.c.h.b16 %v591
    %v1910 = vunpack.c.l.b16 %v592
    %v1911 = vunpack.c.h.b16 %v592
    %v1912 = vunpack.c.l.b16 %v593
    %v1913 = vunpack.c.h.b16 %v593
    %v1914 = vunpack.c.l.b16 %v594
    %v1915 = vunpack.c.h.b16 %v594
    %v1916 = vunpack.c.l.b16 %v595
    %v1917 = vunpack.c.h.b16 %v595
    %v1918 = vunpack.c.l.b16 %v596
    %v1919 = vunpack.c.h.b16 %v596
    %v1920 = vunpack.c.l.b16 %v597
    %v1921 = vunpack.c.h.b16 %v597
    %v1922 = vunpack.c.l.b16 %v598
    %v1923 = vunpack.c.h.b16 %v598
    %v1924 = vunpack.c.l.b16 %v599
    %v1925 = vunpack.c.h.b16 %v599
    %v1926 = vunpack.c.l.b16 %v600
    %v1927 = vunpack.c.h.b16 %v600
    %v1928 = vunpack.c.l.b16 %v601
    %v1929 = vunpack.c.h.b16 %v601
    %v1930 = vunpack.c.l.b16 %v602
    %v1931 = vunpack.c.h.b16 %v602
    %v1932 = vunpack.c.l.b16 %v603
    %v1933 = vunpack.c.h.b16 %v603
    %v1934 = vunpack.c.l.b16 %v604
    %v1935 = vunpack.c.h.b16 %v604
    %v1936 = vunpack.c.l.b16 %v605
    %v1937 = vunpack.c.h.b16 %v605
    %v1938 = vunpack.c.l.b16 %v606
    %v1939 = vunpack.c.h.b16 %v606
    %v1940 = vunpack.c.l.b16 %v607
    %v1941 = vunpack.c.h.b16 %v607
    %v1942 = vunpack.c.l.b16 %v608
    %v1943 = vunpack.c.h.b16 %v608
    %v1944 = vunpack.c.l.b16 %v609
    %v1945 = vunpack.c.h.b16 %v609
    %v1946 = vunpack.c.l.b16 %v610
    %v1947 = vunpack.c.h.b16 %v610
    %v1948 = vunpack.c.l.b16 %v611
    %v1949 = vunpack.c.h.b16 %v611
    %v1950 = vunpack.c.l.b16 %v612
    %v1951 = vunpack.c.h.b16 %v612
    %v1952 = vunpack.c.l.b16 %v613
    %v1953 = vunpack.c.h.b16 %v613
    %v1954 = vunpack.c.l.b16 %v614
    %v1955 = vunpack.c.h.b16 %v614
    %v1956 = vunpack.c.l.b16 %v615
    %v1957 = vunpack.c.h.b16 %v615
    %v1958 = vunpack.c.l.b16 %v616
    %v1959 = vunpack.c.h.b16 %v616
    %v1960 = vunpack.c.l.b16 %v617
    %v1961 = vunpack.c.h.b16 %v617
    %v1962 = vunpack.c.l.b16 %v618
    %v1963 = vunpack.c.h.b16 %v618
    %v1964 = vunpack.c.l.b16 %v619
    %v1965 = vunpack.c.h.b16 %v619
    %v1966 = vunpack.c.l.b16 %v620
    %v1967 = vunpack.c.h.b16 %v620
    %v1968 = vunpack.c.l.b16 %v621
    %v1969 = vunpack.c.h.b16 %v621
    %v1970 = vunpack.c.l.b16 %v622
    %v1971 = vunpack.c.h.b16 %v622
    %v1972 = vunpack.c.l.b16 %v623
    %v1973 = vunpack.c.h.b16 %v623
    %v1974 = vunpack.c.l.b16 %v624
    %v1975 = vunpack.c.h.b16 %v624
    %v1976 = vunpack.c.l.b16 %v625
    %v1977 = vunpack.c.h.b16 %v625
    %v1978 = vunpack.c.l.b16 %v626
    %v1979 = vunpack.c.h.b16 %v626
    %v1980 = vunpack.c.l.b16 %v627
    %v1981 = vunpack.c.h.b16 %v627
    %v1982 = vunpack.c.l.b16 %v628
    %v1983 = vunpack.c.h.b16 %v628
    %v1984 = vunpack.c.l.b16 %v629
    %v1985 = vunpack.c.h.b16 %v629
    %v1986 = vunpack.c.l.b16 %v630
    %v1987 = vunpack.c.h.b16 %v630
    %v1988 = vunpack.c.l.b16 %v631
    %v1989 = vunpack.c.h.b16 %v631
    %v1990 = vunpack.c.l.b16 %v632
    %v1991 = vunpack.c.h.b16 %v632
    %v1992 = vunpack.c.l.b16 %v633
    %v1993 = vunpack.c.h.b16 %v633
    %v1994 = vunpack.c.l.b16 %v634
    %v1995 = vunpack.c.h.b16 %v634
    %v1996 = vunpack.c.l.b16 %v635
    %v1997 = vunpack.c.h.b16 %v635
    %v1998 = vunpack.c.l.b16 %v636
    %v1999 = vunpack.c.h.b16 %v636
    %v2000 = vunpack.c.l.b16 %v637
    %v2001 = vunpack.c.h.b16 %v637
    %v2002 = vunpack.c.l.b16 %v638
    %v2003 = vunpack.c.h.b16 %v638
    %v2004 = vunpack.c.l.b16 %v639
    %v2005 = vunpack.c.h.b16 %v639
    %v2006 = vunpack.c.l.b16 %v640
    %v2007 = vunpack.c.h.b16 %v640
    %v2008 = vunpack.c.l.b16 %v641
    %v2009 = vunpack.c.h.b16 %v641
    %v2010 = vunpack.c.l.b16 %v642
    %v2011 = vunpack.c.h.b16 %v642
    %v2012 = vunpack.c.l.b16 %v643
    %v2013 = vunpack.c.h.b16 %v643
    %v2014 = vunpack.c.l.b16 %v644
    %v2015 = vunpack.c.h.b16 %v644
    %v2016 = vunpack.c.l.b16 %v645
    %v2017 = vunpack.c.h.b16 %v645
    %v2018 = vunpack.c.l.b16 %v646
    %v2019 = vunpack.c.h.b16 %v646
    %v2020 = vunpack.c.l.b16 %v647
    %v2021 = vunpack.c.h.b16 %v647
    %v2022 = vunpack.c.l.b16 %v648
    %v2023 = vunpack.c.h.b16 %v648
    %v2024 = vunpack.c.l.b16 %v649
    %v2025 = vunpack.c.h.b16 %v649
    %v2026 = vunpack.c.l.b16 %v650
    %v2027 = vunpack.c.h.b16 %v650
    %v2028 = vunpack.c.l.b16 %v651
    %v2029 = vunpack.c.h.b16 %v651
    %v2030 = vunpack.c.l.b16 %v652
    %v2031 = vunpack.c.h.b16 %v652
    %v2032 = vunpack.c.l.b16 %v653
    %v2033 = vunpack.c.h.b16 %v653
    %v2034 = vunpack.c.l.b16 %v654
    %v2035 = vunpack.c.h.b16 %v654
    %v2036 = vunpack.c.l.b16 %v655
    %v2037 = vunpack.c.h.b16 %v655
    %v2038 = vunpack.c.l.b16 %v656
    %v2039 = vunpack.c.h.b16 %v656
    %v2040 = vunpack.c.l.b16 %v657
    %v2041 = vunpack.c.h.b16 %v657
    %v2042 = vunpack.c.l.b16 %v658
    %v2043 = vunpack.c.h.b16 %v658
    %v2044 = vunpack.c.l.b16 %v659
    %v2045 = vunpack.c.h.b16 %v659
    %v2046 = vunpack.c.l.b16 %v660
    %v2047 = vunpack.c.h.b16 %v660
    %v2048 = vunpack.c.l.b16 %v661
    %v2049 = vunpack.c.h.b16 %v661
    %v2050 = vunpack.c.l.b16 %v662
    %v2051 = vunpack.c.h.b16 %v662
    %v2052 = vunpack.c.l.b16 %v663
    %v2053 = vunpack.c.h.b16 %v663
    %v2054 = vunpack.c.l.b16 %v664
    %v2055 = vunpack.c.h.b16 %v664
    %v2056 = vunpack.c.l.b16 %v665
    %v2057 = vunpack.c.h.b16 %v665
    %v2058 = vunpack.c.l.b16 %v666
    %v2059 = vunpack.c.h.b16 %v666
    %v2060 = vunpack.c.l.b16 %v667
    %v2061 = vunpack.c.h.b16 %v667
    %v2062 = vunpack.c.l.b16 %v668
    %v2063 = vunpack.c.h.b16 %v668
    %v2064 = vunpack.c.l.b16 %v669
    %v2065 = vunpack.c.h.b16 %v669
    %v2066 = vunpack.c.l.b16 %v670
    %v2067 = vunpack.c.h.b16 %v670
    %v2068 = vunpack.c.l.b16 %v671
    %v2069 = vunpack.c.h.b16 %v671
    %v2070 = vunpack.c.l.b16 %v672
    %v2071 = vunpack.c.h.b16 %v672
    %v2072 = vunpack.c.l.b16 %v673
    %v2073 = vunpack.c.h.b16 %v673
    %v2074 = vunpack.c.l.b16 %v674
    %v2075 = vunpack.c.h.b16 %v674
    %v2076 = vunpack.c.l.b16 %v675
    %v2077 = vunpack.c.h.b16 %v675
    %v2078 = vunpack.c.l.b16 %v676
    %v2079 = vunpack.c.h.b16 %v676
    %v2080 = vunpack.c.l.b16 %v677
    %v2081 = vunpack.c.h.b16 %v677
    %v2082 = vunpack.c.l.b16 %v678
    %v2083 = vunpack.c.h.b16 %v678
    %v2084 = vunpack.c.l.b16 %v679
    %v2085 = vunpack.c.h.b16 %v679
    %v2086 = vunpack.c.l.b16 %v680
    %v2087 = vunpack.c.h.b16 %v680
    %v2088 = vunpack.c.l.b16 %v681
    %v2089 = vunpack.c.h.b16 %v681
    %v2090 = vunpack.c.l.b16 %v682
    %v2091 = vunpack.c.h.b16 %v682
    %v2092 = vunpack.c.l.b16 %v683
    %v2093 = vunpack.c.h.b16 %v683
    %v2094 = vunpack.c.l.b16 %v684
    %v2095 = vunpack.c.h.b16 %v684
    %v2096 = vunpack.c.l.b16 %v685
    %v2097 = vunpack.c.h.b16 %v685
    %v2098 = vunpack.c.l.b16 %v686
    %v2099 = vunpack.c.h.b16 %v686
    %v2100 = vunpack.c.l.b16 %v687
    %v2101 = vunpack.c.h.b16 %v687
    %v2102 = vunpack.c.l.b16 %v688
    %v2103 = vunpack.c.h.b16 %v688
    %v2104 = vunpack.c.l.b16 %v689
    %v2105 = vunpack.c.h.b16 %v689
    %v2106 = vunpack.c.l.b16 %v690
    %v2107 = vunpack.c.h.b16 %v690
    %v2108 = vunpack.c.l.b16 %v691
    %v2109 = vunpack.c.h.b16 %v691
    %v2110 = vunpack.c.l.b16 %v692
    %v2111 = vunpack.c.h.b16 %v692
    %v2112 = vunpack.c.l.b16 %v693
    %v2113 = vunpack.c.h.b16 %v693
    %v2114 = vunpack.c.l.b16 %v694
    %v2115 = vunpack.c.h.b16 %v694
    %v2116 = vunpack.c.l.b16 %v695
    %v2117 = vunpack.c.h.b16 %v695
    %v2118 = vunpack.c.l.b16 %v696
    %v2119 = vunpack.c.h.b16 %v696
    %v2120 = vunpack.c.l.b16 %v697
    %v2121 = vunpack.c.h.b16 %v697
    %v2122 = vunpack.c.l.b16 %v698
    %v2123 = vunpack.c.h.b16 %v698
    %v2124 = vunpack.c.l.b16 %v699
    %v2125 = vunpack.c.h.b16 %v699
    %v2126 = vunpack.c.l.b16 %v700
    %v2127 = vunpack.c.h.b16 %v700
    %v2128 = vunpack.c.l.b16 %v701
    %v2129 = vunpack.c.h.b16 %v701
    %v2130 = vunpack.c.l.b16 %v702
    %v2131 = vunpack.c.h.b16 %v702
    %v2132 = vunpack.c.l.b16 %v703
    %v2133 = vunpack.c.h.b16 %v703
    %v2134 = vunpack.c.l.b16 %v704
    %v2135 = vunpack.c.h.b16 %v704
    %v2136 = vunpack.c.l.b16 %v705
    %v2137 = vunpack.c.h.b16 %v705
    %v2138 = vunpack.c.l.b16 %v706
    %v2139 = vunpack.c.h.b16 %v706
    %v2140 = vunpack.c.l.b16 %v707
    %v2141 = vunpack.c.h.b16 %v707
    %v2142 = vunpack.c.l.b16 %v708
    %v2143 = vunpack.c.h.b16 %v708
    %v2144 = vunpack.c.l.b16 %v709
    %v2145 = vunpack.c.h.b16 %v709
    %v2146 = vunpack.c.l.b16 %v710
    %v2147 = vunpack.c.h.b16 %v710
    %v2148 = vunpack.c.l.b16 %v711
    %v2149 = vunpack.c.h.b16 %v711
    %v2150 = vunpack.c.l.b16 %v712
    %v2151 = vunpack.c.h.b16 %v712
    %v2152 = vunpack.c.l.b16 %v713
    %v2153 = vunpack.c.h.b16 %v713
    %v2154 = vunpack.c.l.b16 %v714
    %v2155 = vunpack.c.h.b16 %v714
    %v2156 = vunpack.c.l.b16 %v715
    %v2157 = vunpack.c.h.b16 %v715
    %v2158 = vunpack.c.l.b16 %v716
    %v2159 = vunpack.c.h.b16 %v716
    %v2160 = vunpack.c.l.b16 %v717
    %v2161 = vunpack.c.h.b16 %v717
    %v2162 = vunpack.c.l.b16 %v718
    %v2163 = vunpack.c.h.b16 %v718
    %v2164 = vunpack.c.l.b16 %v719
    %v2165 = vunpack.c.h.b16 %v719
    %v2166 = vunpack.c.l.b16 %v720
    %v2167 = vunpack.c.h.b16 %v720
    %v2168 = vunpack.c.l.b16 %v721
    %v2169 = vunpack.c.h.b16 %v721
    %v2170 = vunpack.c.l.b16 %v722
    %v2171 = vunpack.c.h.b16 %v722
    %v2172 = vunpack.c.l.b16 %v723
    %v2173 = vunpack.c.h.b16 %v723
    %v2174 = vunpack.c.l.b16 %v724
    %v2175 = vunpack.c.h.b16 %v724
    %v2176 = vunpack.c.l.b16 %v725
    %v2177 = vunpack.c.h.b16 %v725
    %v2178 = vunpack.c.l.b16 %v726
    %v2179 = vunpack.c.h.b16 %v726
    %v2180 = vunpack.c.l.b16 %v727
    %v2181 = vunpack.c.h.b16 %v727
    %v2182 = vunpack.c.l.b16 %v728
    %v2183 = vunpack.c.h.b16 %v728
    %v2184 = vunpack.c.l.b16 %v729
    %v2185 = vunpack.c.h.b16 %v729
    %v2186 = vunpack.c.l.b16 %v730
    %v2187 = vunpack.c.h.b16 %v730
    %v2188 = vunpack.c.l.b16 %v731
    %v2189 = vunpack.c.h.b16 %v731
    %v2190 = vunpack.c.l.b16 %v732
    %v2191 = vunpack.c.h.b16 %v732
    %v2192 = vunpack.c.l.b16 %v733
    %v2193 = vunpack.c.h.b16 %v733
    %v2194 = vunpack.c.l.b16 %v734
    %v2195 = vunpack.c.h.b16 %v734
    %v2196 = vunpack.c.l.b16 %v735
    %v2197 = vunpack.c.h.b16 %v735
    %v2198 = vunpack.c.l.b16 %v736
    %v2199 = vunpack.c.h.b16 %v736
    %v2200 = vunpack.c.l.b16 %v737
    %v2201 = vunpack.c.h.b16 %v737
    %v2202 = vunpack.c.l.b16 %v738
    %v2203 = vunpack.c.h.b16 %v738
    %v2204 = vunpack.c.l.b16 %v739
    %v2205 = vunpack.c.h.b16 %v739
    %v2206 = vunpack.c.l.b16 %v740
    %v2207 = vunpack.c.h.b16 %v740
    %v2208 = vunpack.c.l.b16 %v741
    %v2209 = vunpack.c.h.b16 %v741
    %v2210 = vunpack.c.l.b16 %v742
    %v2211 = vunpack.c.h.b16 %v742
    %v2212 = vunpack.c.l.b16 %v743
    %v2213 = vunpack.c.h.b16 %v743
    %v2214 = vunpack.c.l.b16 %v744
    %v2215 = vunpack.c.h.b16 %v744
    %v2216 = vunpack.c.l.b16 %v745
    %v2217 = vunpack.c.h.b16 %v745
    %v2218 = vunpack.c.l.b16 %v746
    %v2219 = vunpack.c.h.b16 %v746
    %v2220 = vunpack.c.l.b16 %v747
    %v2221 = vunpack.c.h.b16 %v747
    %v2222 = vunpack.c.l.b16 %v748
    %v2223 = vunpack.c.h.b16 %v748
    %v2224 = vunpack.c.l.b16 %v749
    %v2225 = vunpack.c.h.b16 %v749
    %v2226 = vunpack.c.l.b16 %v750
    %v2227 = vunpack.c.h.b16 %v750
    %v2228 = vunpack.c.l.b16 %v751
    %v2229 = vunpack.c.h.b16 %v751
    %v2230 = vunpack.c.l.b16 %v752
    %v2231 = vunpack.c.h.b16 %v752
    %v2232 = vunpack.c.l.b16 %v753
    %v2233 = vunpack.c.h.b16 %v753
    %v2234 = vunpack.c.l.b16 %v754
    %v2235 = vunpack.c.h.b16 %v754
    %v2236 = vunpack.c.l.b16 %v755
    %v2237 = vunpack.c.h.b16 %v755
    %v2238 = vunpack.c.l.b16 %v756
    %v2239 = vunpack.c.h.b16 %v756
    %v2240 = vunpack.c.l.b16 %v757
    %v2241 = vunpack.c.h.b16 %v757
    %v2242 = vunpack.c.l.b16 %v758
    %v2243 = vunpack.c.h.b16 %v758
    %v2244 = vunpack.c.l.b16 %v759
    %v2245 = vunpack.c.h.b16 %v759
    %v2246 = vunpack.c.l.b16 %v760
    %v2247 = vunpack.c.h.b16 %v760
    %v2248 = vunpack.c.l.b16 %v761
    %v2249 = vunpack.c.h.b16 %v761
    %v2250 = vunpack.c.l.b16 %v762
    %v2251 = vunpack.c.h.b16 %v762
    %v2252 = vunpack.c.l.b16 %v763
    %v2253 = vunpack.c.h.b16 %v763
    %v2254 = vunpack.c.l.b16 %v764
    %v2255 = vunpack.c.h.b16 %v764
    %v2256 = vunpack.c.l.b16 %v765
    %v2257 = vunpack.c.h.b16 %v765
    %v2258 = vunpack.c.l.b16 %v766
    %v2259 = vunpack.c.h.b16 %v766
    %v2260 = vunpack.c.l.b16 %v767
    %v2261 = vunpack.c.h.b16 %v767
    %v2262 = vunpack.c.l.b16 %v768
    %v2263 = vunpack.c.h.b16 %v768
    %v2264 = vunpack.c.l.b16 %v769
    %v2265 = vunpack.c.h.b16 %v769
    %v2266 = vunpack.c.l.b16 %v770
    %v2267 = vunpack.c.h.b16 %v770
    %v2268 = vunpack.c.l.b16 %v771
    %v2269 = vunpack.c.h.b16 %v771
    %v2270 = vunpack.c.l.b16 %v772
    %v2271 = vunpack.c.h.b16 %v772
    %v2272 = vunpack.c.l.b16 %v773
    %v2273 = vunpack.c.h.b16 %v773
    %v2274 = vunpack.c.l.b16 %v774
    %v2275 = vunpack.c.h.b16 %v774
    %v2276 = vunpack.c.l.b16 %v775
    %v2277 = vunpack.c.h.b16 %v775
    %v2278 = vunpack.c.l.b16 %v776
    %v2279 = vunpack.c.h.b16 %v776
    %v2280 = vunpack.c.l.b16 %v777
    %v2281 = vunpack.c.h.b16 %v777
    %v2282 = vunpack.c.l.b16 %v778
    %v2283 = vunpack.c.h.b16 %v778
    %v2284 = vunpack.c.l.b16 %v779
    %v2285 = vunpack.c.h.b16 %v779
    %v2286 = vunpack.c.l.b16 %v780
    %v2287 = vunpack.c.h.b16 %v780
    %v2288 = vunpack.c.l.b16 %v781
    %v2289 = vunpack.c.h.b16 %v781
    %v2290 = vunpack.c.l.b16 %v782
    %v2291 = vunpack.c.h.b16 %v782
    %v2292 = vunpack.c.l.b16 %v783
    %v2293 = vunpack.c.h.b16 %v783
    %v2294 = vunpack.c.l.b16 %v784
    %v2295 = vunpack.c.h.b16 %v784
    %v2296 = vunpack.c.l.b16 %v785
    %v2297 = vunpack.c.h.b16 %v785
    %v2298 = vunpack.c.l.b16 %v786
    %v2299 = vunpack.c.h.b16 %v786
    %v2300 = vunpack.c.l.b16 %v787
    %v2301 = vunpack.c.h.b16 %v787
    %v2302 = vunpack.c.l.b16 %v788
    %v2303 = vunpack.c.h.b16 %v788
    %v2304 = vunpack.c.l.b16 %v789
    %v2305 = vunpack.c.h.b16 %v789
    %v2306 = vunpack.c.l.b16 %v790
    %v2307 = vunpack.c.h.b16 %v790
    %v2308 = vunpack.c.l.b16 %v791
    %v2309 = vunpack.c.h.b16 %v791
    %v2310 = vunpack.c.l.b16 %v792
    %v2311 = vunpack.c.h.b16 %v792
    %v2312 = vunpack.c.l.b16 %v793
    %v2313 = vunpack.c.h.b16 %v793
    %v2314 = vunpack.c.l.b16 %v794
    %v2315 = vunpack.c.h.b16 %v794
    %v2316 = vunpack.c.l.b16 %v795
    %v2317 = vunpack.c.h.b16 %v795
    %v2318 = vunpack.c.l.b16 %v796
    %v2319 = vunpack.c.h.b16 %v796
    %v2320 = vunpack.c.l.b16 %v797
    %v2321 = vunpack.c.h.b16 %v797
    %v2322 = vunpack.c.l.b16 %v798
    %v2323 = vunpack.c.h.b16 %v798
    %v2324 = vunpack.c.l.b16 %v799
    %v2325 = vunpack.c.h.b16 %v799
    %v2326 = vunpack.c.l.b16 %v800
    %v2327 = vunpack.c.h.b16 %v800
    %v2328 = vunpack.c.l.b16 %v801
    %v2329 = vunpack.c.h.b16 %v801
    %v2330 = vunpack.c.l.b16 %v802
    %v2331 = vunpack.c.h.b16 %v802
    %v2332 = vunpack.c.l.b16 %v803
    %v2333 = vunpack.c.h.b16 %v803
    %v2334 = vunpack.c.l.b16 %v804
    %v2335 = vunpack.c.h.b16 %v804
    %v2336 = vunpack.c.l.b16 %v805
    %v2337 = vunpack.c.h.b16 %v805
    %v2338 = vunpack.c.l.b16 %v806
    %v2339 = vunpack.c.h.b16 %v806
    %v2340 = vunpack.c.l.b16 %v807
    %v2341 = vunpack.c.h.b16 %v807
    %v2342 = vunpack.c.l.b16 %v808
    %v2343 = vunpack.c.h.b16 %v808
    %v2344 = vunpack.c.l.b16 %v809
    %v2345 = vunpack.c.h.b16 %v809
    %v2346 = vunpack.c.l.b16 %v810
    %v2347 = vunpack.c.h.b16 %v810
    %v2348 = vunpack.c.l.b16 %v811
    %v2349 = vunpack.c.h.b16 %v811
    %v2350 = vunpack.c.l.b16 %v812
    %v2351 = vunpack.c.h.b16 %v812
    %v2352 = vunpack.c.l.b16 %v813
    %v2353 = vunpack.c.h.b16 %v813
    %v2354 = vunpack.c.l.b16 %v814
    %v2355 = vunpack.c.h.b16 %v814
    %v2356 = vunpack.c.l.b16 %v815
    %v2357 = vunpack.c.h.b16 %v815
    %v2358 = vunpack.c.l.b16 %v816
    %v2359 = vunpack.c.h.b16 %v816
    %v2360 = vunpack.c.l.b16 %v817
    %v2361 = vunpack.c.h.b16 %v817
    %v2362 = vunpack.c.l.b16 %v818
    %v2363 = vunpack.c.h.b16 %v818
    %v2364 = vunpack.c.l.b16 %v819
    %v2365 = vunpack.c.h.b16 %v819
    %v2366 = vpack.c.b16 %v1346, %v1342
    %v2367 = vpack.c.b16 %v1347, %v1343
    %v2368 = vpack.c.b16 %v1348, %v1344
    %v2369 = vpack.c.b16 %v1349, %v1345
    %v2370 = vpack.c.b16 %v1354, %v1350
    %v2371 = vpack.c.b16 %v1355, %v1351
    %v2372 = vpack.c.b16 %v1356, %v1352
    %v2373 = vpack.c.b16 %v1357, %v1353
    %v2374 = vpack.c.b16 %v1362, %v1358
    %v2375 = vpack.c.b16 %v1363, %v1359
    %v2376 = vpack.c.b16 %v1364, %v1360
    %v2377 = vpack.c.b16 %v1365, %v1361
    %v2378 = vpack.c.b16 %v1370, %v1366
    %v2379 = vpack.c.b16 %v1371, %v1367
    %v2380 = vpack.c.b16 %v1372, %v1368
    %v2381 = vpack.c.b16 %v1373, %v1369
    %v2382 = vpack.c.b16 %v1378, %v1374
    %v2383 = vpack.c.b16 %v1379, %v1375
    %v2384 = vpack.c.b16 %v1380, %v1376
    %v2385 = vpack.c.b16 %v1381, %v1377
    %v2386 = vpack.c.b16 %v1386, %v1382
    %v2387 = vpack.c.b16 %v1387, %v1383
    %v2388 = vpack.c.b16 %v1388, %v1384
    %v2389 = vpack.c.b16 %v1389, %v1385
    %v2390 = vpack.c.b16 %v1394, %v1390
    %v2391 = vpack.c.b16 %v1395, %v1391
    %v2392 = vpack.c.b16 %v1396, %v1392
    %v2393 = vpack.c.b16 %v1397, %v1393
    %v2394 = vpack.c.b16 %v1402, %v1398
    %v2395 = vpack.c.b16 %v1403, %v1399
    %v2396 = vpack.c.b16 %v1404, %v1400
    %v2397 = vpack.c.b16 %v1405, %v1401
    %v2398 = vpack.c.b16 %v1410, %v1406
    %v2399 = vpack.c.b16 %v1411, %v1407
    %v2400 = vpack.c.b16 %v1412, %v1408
    %v2401 = vpack.c.b16 %v1413, %v1409
    %v2402 = vpack.c.b16 %v1418, %v1414
    %v2403 = vpack.c.b16 %v1419, %v1415
    %v2404 = vpack.c.b16 %v1420, %v1416
    %v2405 = vpack.c.b16 %v1421, %v1417
    %v2406 = vpack.c.b16 %v1426, %v1422
    %v2407 = vpack.c.b16 %v1427, %v1423
    %v2408 = vpack.c.b16 %v1428, %v1424
    %v2409 = vpack.c.b16 %v1429, %v1425
    %v2410 = vpack.c.b16 %v1434, %v1430
    %v2411 = vpack.c.b16 %v1435, %v1431
    %v2412 = vpack.c.b16 %v1436, %v1432
    %v2413 = vpack.c.b16 %v1437, %v1433
    %v2414 = vpack.c.b16 %v1442, %v1438
    %v2415 = vpack.c.b16 %v1443, %v1439
    %v2416 = vpack.c.b16 %v1444, %v1440
    %v2417 = vpack.c.b16 %v1445, %v1441
    %v2418 = vpack.c.b16 %v1450, %v1446
    %v2419 = vpack.c.b16 %v1451, %v1447
    %v2420 = vpack.c.b16 %v1452, %v1448
    %v2421 = vpack.c.b16 %v1453, %v1449
    %v2422 = vpack.c.b16 %v1458, %v1454
    %v2423 = vpack.c.b16 %v1459, %v1455
    %v2424 = vpack.c.b16 %v1460, %v1456
    %v2425 = vpack.c.b16 %v1461, %v1457
    %v2426 = vpack.c.b16 %v1466, %v1462
    %v2427 = vpack.c.b16 %v1467, %v1463
    %v2428 = vpack.c.b16 %v1468, %v1464
    %v2429 = vpack.c.b16 %v1469, %v1465
    %v2430 = vpack.c.b16 %v1474, %v1470
    %v2431 = vpack.c.b16 %v1475, %v1471
    %v2432 = vpack.c.b16 %v1476, %v1472
    %v2433 = vpack.c.b16 %v1477, %v1473
    %v2434 = vpack.c.b16 %v1482, %v1478
    %v2435 = vpack.c.b16 %v1483, %v1479
    %v2436 = vpack.c.b16 %v1484, %v1480
    %v2437 = vpack.c.b16 %v1485, %v1481
    %v2438 = vpack.c.b16 %v1490, %v1486
    %v2439 = vpack.c.b16 %v1491, %v1487
    %v2440 = vpack.c.b16 %v1492, %v1488
    %v2441 = vpack.c.b16 %v1493, %v1489
    %v2442 = vpack.c.b16 %v1498, %v1494
    %v2443 = vpack.c.b16 %v1499, %v1495
    %v2444 = vpack.c.b16 %v1500, %v1496
    %v2445 = vpack.c.b16 %v1501, %v1497
    %v2446 = vpack.c.b16 %v1506, %v1502
    %v2447 = vpack.c.b16 %v1507, %v1503
    %v2448 = vpack.c.b16 %v1508, %v1504
    %v2449 = vpack.c.b16 %v1509, %v1505
    %v2450 = vpack.c.b16 %v1514, %v1510
    %v2451 = vpack.c.b16 %v1515, %v1511
    %v2452 = vpack.c.b16 %v1516, %v1512
    %v2453 = vpack.c.b16 %v1517, %v1513
    %v2454 = vpack.c.b16 %v1522, %v1518
    %v2455 = vpack.c.b16 %v1523, %v1519
    %v2456 = vpack.c.b16 %v1524, %v1520
    %v2457 = vpack.c.b16 %v1525, %v1521
    %v2458 = vpack.c.b16 %v1530, %v1526
    %v2459 = vpack.c.b16 %v1531, %v1527
    %v2460 = vpack.c.b16 %v1532, %v1528
    %v2461 = vpack.c.b16 %v1533, %v1529
    %v2462 = vpack.c.b16 %v1538, %v1534
    %v2463 = vpack.c.b16 %v1539, %v1535
    %v2464 = vpack.c.b16 %v1540, %v1536
    %v2465 = vpack.c.b16 %v1541, %v1537
    %v2466 = vpack.c.b16 %v1546, %v1542
    %v2467 = vpack.c.b16 %v1547, %v1543
    %v2468 = vpack.c.b16 %v1548, %v1544
    %v2469 = vpack.c.b16 %v1549, %v1545
    %v2470 = vpack.c.b16 %v1554, %v1550
    %v2471 = vpack.c.b16 %v1555, %v1551
    %v2472 = vpack.c.b16 %v1556, %v1552
    %v2473 = vpack.c.b16 %v1557, %v1553
    %v2474 = vpack.c.b16 %v1562, %v1558
    %v2475 = vpack.c.b16 %v1563, %v1559
    %v2476 = vpack.c.b16 %v1564, %v1560
    %v2477 = vpack.c.b16 %v1565, %v1561
    %v2478 = vpack.c.b16 %v1570, %v1566
    %v2479 = vpack.c.b16 %v1571, %v1567
    %v2480 = vpack.c.b16 %v1572, %v1568
    %v2481 = vpack.c.b16 %v1573, %v1569
    %v2482 = vpack.c.b16 %v1578, %v1574
    %v2483 = vpack.c.b16 %v1579, %v1575
    %v2484 = vpack.c.b16 %v1580, %v1576
    %v2485 = vpack.c.b16 %v1581, %v1577
    %v2486 = vpack.c.b16 %v1586, %v1582
    %v2487 = vpack.c.b16 %v1587, %v1583
    %v2488 = vpack.c.b16 %v1588, %v1584
    %v2489 = vpack.c.b16 %v1589, %v1585
    %v2490 = vpack.c.b16 %v1594, %v1590
    %v2491 = vpack.c.b16 %v1595, %v1591
    %v2492 = vpack.c.b16 %v1596, %v1592
    %v2493 = vpack.c.b16 %v1597, %v1593
    %v2494 = vpack.c.b16 %v1602, %v1598
    %v2495 = vpack.c.b16 %v1603, %v1599
    %v2496 = vpack.c.b16 %v1604, %v1600
    %v2497 = vpack.c.b16 %v1605, %v1601
    %v2498 = vpack.c.b16 %v1610, %v1606
    %v2499 = vpack.c.b16 %v1611, %v1607
    %v2500 = vpack.c.b16 %v1612, %v1608
    %v2501 = vpack.c.b16 %v1613, %v1609
    %v2502 = vpack.c.b16 %v1618, %v1614
    %v2503 = vpack.c.b16 %v1619, %v1615
    %v2504 = vpack.c.b16 %v1620, %v1616
    %v2505 = vpack.c.b16 %v1621, %v1617
    %v2506 = vpack.c.b16 %v1626, %v1622
    %v2507 = vpack.c.b16 %v1627, %v1623
    %v2508 = vpack.c.b16 %v1628, %v1624
    %v2509 = vpack.c.b16 %v1629, %v1625
    %v2510 = vpack.c.b16 %v1634, %v1630
    %v2511 = vpack.c.b16 %v1635, %v1631
    %v2512 = vpack.c.b16 %v1636, %v1632
    %v2513 = vpack.c.b16 %v1637, %v1633
    %v2514 = vpack.c.b16 %v1642, %v1638
    %v2515 = vpack.c.b16 %v1643, %v1639
    %v2516 = vpack.c.b16 %v1644, %v1640
    %v2517 = vpack.c.b16 %v1645, %v1641
    %v2518 = vpack.c.b16 %v1650, %v1646
    %v2519 = vpack.c.b16 %v1651, %v1647
    %v2520 = vpack.c.b16 %v1652, %v1648
    %v2521 = vpack.c.b16 %v1653, %v1649
    %v2522 = vpack.c.b16 %v1658, %v1654
    %v2523 = vpack.c.b16 %v1659, %v1655
    %v2524 = vpack.c.b16 %v1660, %v1656
    %v2525 = vpack.c.b16 %v1661, %v1657
    %v2526 = vpack.c.b16 %v1666, %v1662
    %v2527 = vpack.c.b16 %v1667, %v1663
    %v2528 = vpack.c.b16 %v1668, %v1664
    %v2529 = vpack.c.b16 %v1669, %v1665
    %v2530 = vpack.c.b16 %v1674, %v1670
    %v2531 = vpack.c.b16 %v1675, %v1671
    %v2532 = vpack.c.b16 %v1676, %v1672
    %v2533 = vpack.c.b16 %v1677, %v1673
    %v2534 = vpack.c.b16 %v1682, %v1678
    %v2535 = vpack.c.b16 %v1683, %v1679
    %v2536 = vpack.c.b16 %v1684, %v1680
    %v2537 = vpack.c.b16 %v1685, %v1681
    %v2538 = vpack.c.b16 %v1690, %v1686
    %v2539 = vpack.c.b16 %v1691, %v1687
    %v2540 = vpack.c.b16 %v1692, %v1688
    %v2541 = vpack.c.b16 %v1693, %v1689
    %v2542 = vpack.c.b16 %v1698, %v1694
    %v2543 = vpack.c.b16 %v1699, %v1695
    %v2544 = vpack.c.b16 %v1700, %v1696
    %v2545 = vpack.c.b16 %v1701, %v1697
    %v2546 = vpack.c.b16 %v1706, %v1702
    %v2547 = vpack.c.b16 %v1707, %v1703
    %v2548 = vpack.c.b16 %v1708, %v1704
    %v2549 = vpack.c.b16 %v1709, %v1705
    %v2550 = vpack.c.b16 %v1714, %v1710
    %v2551 = vpack.c.b16 %v1715, %v1711
    %v2552 = vpack.c.b16 %v1716, %v1712
    %v2553 = vpack.c.b16 %v1717, %v1713
    %v2554 = vpack.c.b16 %v1722, %v1718
    %v2555 = vpack.c.b16 %v1723, %v1719
    %v2556 = vpack.c.b16 %v1724, %v1720
    %v2557 = vpack.c.b16 %v1725, %v1721
    %v2558 = vpack.c.b16 %v1730, %v1726
    %v2559 = vpack.c.b16 %v1731, %v1727
    %v2560 = vpack.c.b16 %v1732, %v1728
    %v2561 = vpack.c.b16 %v1733, %v1729
    %v2562 = vpack.c.b16 %v1738, %v1734
    %v2563 = vpack.c.b16 %v1739, %v1735
    %v2564 = vpack.c.b16 %v1740, %v1736
    %v2565 = vpack.c.b16 %v1741, %v1737
    %v2566 = vpack.c.b16 %v1746, %v1742
    %v2567 = vpack.c.b16 %v1747, %v1743
    %v2568 = vpack.c.b16 %v1748, %v1744
    %v2569 = vpack.c.b16 %v1749, %v1745
    %v2570 = vpack.c.b16 %v1754, %v1750
    %v2571 = vpack.c.b16 %v1755, %v1751
    %v2572 = vpack.c.b16 %v1756, %v1752
    %v2573 = vpack.c.b16 %v1757, %v1753
    %v2574 = vpack.c.b16 %v1762, %v1758
    %v2575 = vpack.c.b16 %v1763, %v1759
    %v2576 = vpack.c.b16 %v1764, %v1760
    %v2577 = vpack.c.b16 %v1765, %v1761
    %v2578 = vpack.c.b16 %v1770, %v1766
    %v2579 = vpack.c.b16 %v1771, %v1767
    %v2580 = vpack.c.b16 %v1772, %v1768
    %v2581 = vpack.c.b16 %v1773, %v1769
    %v2582 = vpack.c.b16 %v1778, %v1774
    %v2583 = vpack.c.b16 %v1779, %v1775
    %v2584 = vpack.c.b16 %v1780, %v1776
    %v2585 = vpack.c.b16 %v1781, %v1777
    %v2586 = vpack.c.b16 %v1786, %v1782
    %v2587 = vpack.c.b16 %v1787, %v1783
    %v2588 = vpack.c.b16 %v1788, %v1784
    %v2589 = vpack.c.b16 %v1789, %v1785
    %v2590 = vpack.c.b16 %v1794, %v1790
    %v2591 = vpack.c.b16 %v1795, %v1791
    %v2592 = vpack.c.b16 %v1796, %v1792
    %v2593 = vpack.c.b16 %v1797, %v1793
    %v2594 = vpack.c.b16 %v1802, %v1798
    %v2595 = vpack.c.b16 %v1803, %v1799
    %v2596 = vpack.c.b16 %v1804, %v1800
    %v2597 = vpack.c.b16 %v1805, %v1801
    %v2598 = vpack.c.b16 %v1810, %v1806
    %v2599 = vpack.c.b16 %v1811, %v1807
    %v2600 = vpack.c.b16 %v1812, %v1808
    %v2601 = vpack.c.b16 %v1813, %v1809
    %v2602 = vpack.c.b16 %v1818, %v1814
    %v2603 = vpack.c.b16 %v1819, %v1815
    %v2604 = vpack.c.b16 %v1820, %v1816
    %v2605 = vpack.c.b16 %v1821, %v1817
    %v2606 = vpack.c.b16 %v1826, %v1822
    %v2607 = vpack.c.b16 %v1827, %v1823
    %v2608 = vpack.c.b16 %v1828, %v1824
    %v2609 = vpack.c.b16 %v1829, %v1825
    %v2610 = vpack.c.b16 %v1834, %v1830
    %v2611 = vpack.c.b16 %v1835, %v1831
    %v2612 = vpack.c.b16 %v1836, %v1832
    %v2613 = vpack.c.b16 %v1837, %v1833
    %v2614 = vpack.c.b16 %v1842, %v1838
    %v2615 = vpack.c.b16 %v1843, %v1839
    %v2616 = vpack.c.b16 %v1844, %v1840
    %v2617 = vpack.c.b16 %v1845, %v1841
    %v2618 = vpack.c.b16 %v1850, %v1846
    %v2619 = vpack.c.b16 %v1851, %v1847
    %v2620 = vpack.c.b16 %v1852, %v1848
    %v2621 = vpack.c.b16 %v1853, %v1849
    %v2622 = vpack.c.b16 %v1858, %v1854
    %v2623 = vpack.c.b16 %v1859, %v1855
    %v2624 = vpack.c.b16 %v1860, %v1856
    %v2625 = vpack.c.b16 %v1861, %v1857
    %v2626 = vpack.c.b16 %v1866, %v1862
    %v2627 = vpack.c.b16 %v1867, %v1863
    %v2628 = vpack.c.b16 %v1868, %v1864
    %v2629 = vpack.c.b16 %v1869, %v1865
    %v2630 = vpack.c.b16 %v1874, %v1870
    %v2631 = vpack.c.b16 %v1875, %v1871
    %v2632 = vpack.c.b16 %v1876, %v1872
    %v2633 = vpack.c.b16 %v1877, %v1873
    %v2634 = vpack.c.b16 %v1882, %v1878
    %v2635 = vpack.c.b16 %v1883, %v1879
    %v2636 = vpack.c.b16 %v1884, %v1880
    %v2637 = vpack.c.b16 %v1885, %v1881
    %v2638 = vpack.c.b16 %v1890, %v1886
    %v2639 = vpack.c.b16 %v1891, %v1887
    %v2640 = vpack.c.b16 %v1892, %v1888
    %v2641 = vpack.c.b16 %v1893, %v1889
    %v2642 = vpack.c.b16 %v1898, %v1894
    %v2643 = vpack.c.b16 %v1899, %v1895
    %v2644 = vpack.c.b16 %v1900, %v1896
    %v2645 = vpack.c.b16 %v1901, %v1897
    %v2646 = vpack.c.b16 %v1906, %v1902
    %v2647 = vpack.c.b16 %v1907, %v1903
    %v2648 = vpack.c.b16 %v1908, %v1904
    %v2649 = vpack.c.b16 %v1909, %v1905
    %v2650 = vpack.c.b16 %v1914, %v1910
    %v2651 = vpack.c.b16 %v1915, %v1911
    %v2652 = vpack.c.b16 %v1916, %v1912
    %v2653 = vpack.c.b16 %v1917, %v1913
    %v2654 = vpack.c.b16 %v1922, %v1918
    %v2655 = vpack.c.b16 %v1923, %v1919
    %v2656 = vpack.c.b16 %v1924, %v1920
    %v2657 = vpack.c.b16 %v1925, %v1921
    %v2658 = vpack.c.b16 %v1930, %v1926
    %v2659 = vpack.c.b16 %v1931, %v1927
    %v2660 = vpack.c.b16 %v1932, %v1928
    %v2661 = vpack.c.b16 %v1933, %v1929
    %v2662 = vpack.c.b16 %v1938, %v1934
    %v2663 = vpack.c.b16 %v1939, %v1935
    %v2664 = vpack.c.b16 %v1940, %v1936
    %v2665 = vpack.c.b16 %v1941, %v1937
    %v2666 = vpack.c.b16 %v1946, %v1942
    %v2667 = vpack.c.b16 %v1947, %v1943
    %v2668 = vpack.c.b16 %v1948, %v1944
    %v2669 = vpack.c.b16 %v1949, %v1945
    %v2670 = vpack.c.b16 %v1954, %v1950
    %v2671 = vpack.c.b16 %v1955, %v1951
    %v2672 = vpack.c.b16 %v1956, %v1952
    %v2673 = vpack.c.b16 %v1957, %v1953
    %v2674 = vpack.c.b16 %v1962, %v1958
    %v2675 = vpack.c.b16 %v1963, %v1959
    %v2676 = vpack.c.b16 %v1964, %v1960
    %v2677 = vpack.c.b16 %v1965, %v1961
    %v2678 = vpack.c.b16 %v1970, %v1966
    %v2679 = vpack.c.b16 %v1971, %v1967
    %v2680 = vpack.c.b16 %v1972, %v1968
    %v2681 = vpack.c.b16 %v1973, %v1969
    %v2682 = vpack.c.b16 %v1978, %v1974
    %v2683 = vpack.c.b16 %v1979, %v1975
    %v2684 = vpack.c.b16 %v1980, %v1976
    %v2685 = vpack.c.b16 %v1981, %v1977
    %v2686 = vpack.c.b16 %v1986, %v1982
    %v2687 = vpack.c.b16 %v1987, %v1983
    %v2688 = vpack.c.b16 %v1988, %v1984
    %v2689 = vpack.c.b16 %v1989, %v1985
    %v2690 = vpack.c.b16 %v1994, %v1990
    %v2691 = vpack.c.b16 %v1995, %v1991
    %v2692 = vpack.c.b16 %v1996, %v1992
    %v2693 = vpack.c.b16 %v1997, %v1993
    %v2694 = vpack.c.b16 %v2002, %v1998
    %v2695 = vpack.c.b16 %v2003, %v1999
    %v2696 = vpack.c.b16 %v2004, %v2000
    %v2697 = vpack.c.b16 %v2005, %v2001
    %v2698 = vpack.c.b16 %v2010, %v2006
    %v2699 = vpack.c.b16 %v2011, %v2007
    %v2700 = vpack.c.b16 %v2012, %v2008
    %v2701 = vpack.c.b16 %v2013, %v2009
    %v2702 = vpack.c.b16 %v2018, %v2014
    %v2703 = vpack.c.b16 %v2019, %v2015
    %v2704 = vpack.c.b16 %v2020, %v2016
    %v2705 = vpack.c.b16 %v2021, %v2017
    %v2706 = vpack.c.b16 %v2026, %v2022
    %v2707 = vpack.c.b16 %v2027, %v2023
    %v2708 = vpack.c.b16 %v2028, %v2024
    %v2709 = vpack.c.b16 %v2029, %v2025
    %v2710 = vpack.c.b16 %v2034, %v2030
    %v2711 = vpack.c.b16 %v2035, %v2031
    %v2712 = vpack.c.b16 %v2036, %v2032
    %v2713 = vpack.c.b16 %v2037, %v2033
    %v2714 = vpack.c.b16 %v2042, %v2038
    %v2715 = vpack.c.b16 %v2043, %v2039
    %v2716 = vpack.c.b16 %v2044, %v2040
    %v2717 = vpack.c.b16 %v2045, %v2041
    %v2718 = vpack.c.b16 %v2050, %v2046
    %v2719 = vpack.c.b16 %v2051, %v2047
    %v2720 = vpack.c.b16 %v2052, %v2048
    %v2721 = vpack.c.b16 %v2053, %v2049
    %v2722 = vpack.c.b16 %v2058, %v2054
    %v2723 = vpack.c.b16 %v2059, %v2055
    %v2724 = vpack.c.b16 %v2060, %v2056
    %v2725 = vpack.c.b16 %v2061, %v2057
    %v2726 = vpack.c.b16 %v2066, %v2062
    %v2727 = vpack.c.b16 %v2067, %v2063
    %v2728 = vpack.c.b16 %v2068, %v2064
    %v2729 = vpack.c.b16 %v2069, %v2065
    %v2730 = vpack.c.b16 %v2074, %v2070
    %v2731 = vpack.c.b16 %v2075, %v2071
    %v2732 = vpack.c.b16 %v2076, %v2072
    %v2733 = vpack.c.b16 %v2077, %v2073
    %v2734 = vpack.c.b16 %v2082, %v2078
    %v2735 = vpack.c.b16 %v2083, %v2079
    %v2736 = vpack.c.b16 %v2084, %v2080
    %v2737 = vpack.c.b16 %v2085, %v2081
    %v2738 = vpack.c.b16 %v2090, %v2086
    %v2739 = vpack.c.b16 %v2091, %v2087
    %v2740 = vpack.c.b16 %v2092, %v2088
    %v2741 = vpack.c.b16 %v2093, %v2089
    %v2742 = vpack.c.b16 %v2098, %v2094
    %v2743 = vpack.c.b16 %v2099, %v2095
    %v2744 = vpack.c.b16 %v2100, %v2096
    %v2745 = vpack.c.b16 %v2101, %v2097
    %v2746 = vpack.c.b16 %v2106, %v2102
    %v2747 = vpack.c.b16 %v2107, %v2103
    %v2748 = vpack.c.b16 %v2108, %v2104
    %v2749 = vpack.c.b16 %v2109, %v2105
    %v2750 = vpack.c.b16 %v2114, %v2110
    %v2751 = vpack.c.b16 %v2115, %v2111
    %v2752 = vpack.c.b16 %v2116, %v2112
    %v2753 = vpack.c.b16 %v2117, %v2113
    %v2754 = vpack.c.b16 %v2122, %v2118
    %v2755 = vpack.c.b16 %v2123, %v2119
    %v2756 = vpack.c.b16 %v2124, %v2120
    %v2757 = vpack.c.b16 %v2125, %v2121
    %v2758 = vpack.c.b16 %v2130, %v2126
    %v2759 = vpack.c.b16 %v2131, %v2127
    %v2760 = vpack.c.b16 %v2132, %v2128
    %v2761 = vpack.c.b16 %v2133, %v2129
    %v2762 = vpack.c.b16 %v2138, %v2134
    %v2763 = vpack.c.b16 %v2139, %v2135
    %v2764 = vpack.c.b16 %v2140, %v2136
    %v2765 = vpack.c.b16 %v2141, %v2137
    %v2766 = vpack.c.b16 %v2146, %v2142
    %v2767 = vpack.c.b16 %v2147, %v2143
    %v2768 = vpack.c.b16 %v2148, %v2144
    %v2769 = vpack.c.b16 %v2149, %v2145
    %v2770 = vpack.c.b16 %v2154, %v2150
    %v2771 = vpack.c.b16 %v2155, %v2151
    %v2772 = vpack.c.b16 %v2156, %v2152
    %v2773 = vpack.c.b16 %v2157, %v2153
    %v2774 = vpack.c.b16 %v2162, %v2158
    %v2775 = vpack.c.b16 %v2163, %v2159
    %v2776 = vpack.c.b16 %v2164, %v2160
    %v2777 = vpack.c.b16 %v2165, %v2161
    %v2778 = vpack.c.b16 %v2170, %v2166
    %v2779 = vpack.c.b16 %v2171, %v2167
    %v2780 = vpack.c.b16 %v2172, %v2168
    %v2781 = vpack.c.b16 %v2173, %v2169
    %v2782 = vpack.c.b16 %v2178, %v2174
    %v2783 = vpack.c.b16 %v2179, %v2175
    %v2784 = vpack.c.b16 %v2180, %v2176
    %v2785 = vpack.c.b16 %v2181, %v2177
    %v2786 = vpack.c.b16 %v2186, %v2182
    %v2787 = vpack.c.b16 %v2187, %v2183
    %v2788 = vpack.c.b16 %v2188, %v2184
    %v2789 = vpack.c.b16 %v2189, %v2185
    %v2790 = vpack.c.b16 %v2194, %v2190
    %v2791 = vpack.c.b16 %v2195, %v2191
    %v2792 = vpack.c.b16 %v2196, %v2192
    %v2793 = vpack.c.b16 %v2197, %v2193
    %v2794 = vpack.c.b16 %v2202, %v2198
    %v2795 = vpack.c.b16 %v2203, %v2199
    %v2796 = vpack.c.b16 %v2204, %v2200
    %v2797 = vpack.c.b16 %v2205, %v2201
    %v2798 = vpack.c.b16 %v2210, %v2206
    %v2799 = vpack.c.b16 %v2211, %v2207
    %v2800 = vpack.c.b16 %v2212, %v2208
    %v2801 = vpack.c.b16 %v2213, %v2209
    %v2802 = vpack.c.b16 %v2218, %v2214
    %v2803 = vpack.c.b16 %v2219, %v2215
    %v2804 = vpack.c.b16 %v2220, %v2216
    %v2805 = vpack.c.b16 %v2221, %v2217
    %v2806 = vpack.c.b16 %v2226, %v2222
    %v2807 = vpack.c.b16 %v2227, %v2223
    %v2808 = vpack.c.b16 %v2228, %v2224
    %v2809 = vpack.c.b16 %v2229, %v2225
    %v2810 = vpack.c.b16 %v2234, %v2230
    %v2811 = vpack.c.b16 %v2235, %v2231
    %v2812 = vpack.c.b16 %v2236, %v2232
    %v2813 = vpack.c.b16 %v2237, %v2233
    %v2814 = vpack.c.b16 %v2242, %v2238
    %v2815 = vpack.c.b16 %v2243, %v2239
    %v2816 = vpack.c.b16 %v2244, %v2240
    %v2817 = vpack.c.b16 %v2245, %v2241
    %v2818 = vpack.c.b16 %v2250, %v2246
    %v2819 = vpack.c.b16 %v2251, %v2247
    %v2820 = vpack.c.b16 %v2252, %v2248
    %v2821 = vpack.c.b16 %v2253, %v2249
    %v2822 = vpack.c.b16 %v2258, %v2254
    %v2823 = vpack.c.b16 %v2259, %v2255
    %v2824 = vpack.c.b16 %v2260, %v2256
    %v2825 = vpack.c.b16 %v2261, %v2257
    %v2826 = vpack.c.b16 %v2266, %v2262
    %v2827 = vpack.c.b16 %v2267, %v2263
    %v2828 = vpack.c.b16 %v2268, %v2264
    %v2829 = vpack.c.b16 %v2269, %v2265
    %v2830 = vpack.c.b16 %v2274, %v2270
    %v2831 = vpack.c.b16 %v2275, %v2271
    %v2832 = vpack.c.b16 %v2276, %v2272
    %v2833 = vpack.c.b16 %v2277, %v2273
    %v2834 = vpack.c.b16 %v2282, %v2278
    %v2835 = vpack.c.b16 %v2283, %v2279
    %v2836 = vpack.c.b16 %v2284, %v2280
    %v2837 = vpack.c.b16 %v2285, %v2281
    %v2838 = vpack.c.b16 %v2290, %v2286
    %v2839 = vpack.c.b16 %v2291, %v2287
    %v2840 = vpack.c.b16 %v2292, %v2288
    %v2841 = vpack.c.b16 %v2293, %v2289
    %v2842 = vpack.c.b16 %v2298, %v2294
    %v2843 = vpack.c.b16 %v2299, %v2295
    %v2844 = vpack.c.b16 %v2300, %v2296
    %v2845 = vpack.c.b16 %v2301, %v2297
    %v2846 = vpack.c.b16 %v2306, %v2302
    %v2847 = vpack.c.b16 %v2307, %v2303
    %v2848 = vpack.c.b16 %v2308, %v2304
    %v2849 = vpack.c.b16 %v2309, %v2305
    %v2850 = vpack.c.b16 %v2314, %v2310
    %v2851 = vpack.c.b16 %v2315, %v2311
    %v2852 = vpack.c.b16 %v2316, %v2312
    %v2853 = vpack.c.b16 %v2317, %v2313
    %v2854 = vpack.c.b16 %v2322, %v2318
    %v2855 = vpack.c.b16 %v2323, %v2319
    %v2856 = vpack.c.b16 %v2324, %v2320
    %v2857 = vpack.c.b16 %v2325, %v2321
    %v2858 = vpack.c.b16 %v2330, %v2326
    %v2859 = vpack.c.b16 %v2331, %v2327
    %v2860 = vpack.c.b16 %v2332, %v2328
    %v2861 = vpack.c.b16 %v2333, %v2329
    %v2862 = vpack.c.b16 %v2338, %v2334
    %v2863 = vpack.c.b16 %v2339, %v2335
    %v2864 = vpack.c.b16 %v2340, %v2336
    %v2865 = vpack.c.b16 %v2341, %v2337
    %v2866 = vpack.c.b16 %v2346, %v2342
    %v2867 = vpack.c.b16 %v2347, %v2343
    %v2868 = vpack.c.b16 %v2348, %v2344
    %v2869 = vpack.c.b16 %v2349, %v2345
    %v2870 = vpack.c.b16 %v2354, %v2350
    %v2871 = vpack.c.b16 %v2355, %v2351
    %v2872 = vpack.c.b16 %v2356, %v2352
    %v2873 = vpack.c.b16 %v2357, %v2353
    %v2874 = vpack.c.b16 %v2362, %v2358
    %v2875 = vpack.c.b16 %v2363, %v2359
    %v2876 = vpack.c.b16 %v2364, %v2360
    %v2877 = vpack.c.b16 %v2365, %v2361
    %3390 = vmatpush.bf16.msra.mxu0 %v2394
    %3391 = vmatpush.bf16.msra.mxu0 %v2390
    %3392 = vmatpush.bf16.msra.mxu0 %v2386
    %3393 = vmatpush.bf16.msra.mxu0 %v2382
    %3394 = vmatpush.bf16.msra.mxu0 %v2378
    %3395 = vmatpush.bf16.msra.mxu0 %v2374
    %3396 = vmatpush.bf16.msra.mxu0 %v2370
    %3397 = vmatpush.bf16.msra.mxu0 %v2366
    %3398 = vmatmul.bf16.gmra.mxu0 %v292
    %v3399 = vpop.f32.mrf.mxu0
    %v3400 = vadd.f32 %v822, %v3399
    %v3401 = vpop.f32.mrf.mxu0
    %3402 = vdwg.mxu0
    %3403 = vmatpush.bf16.msra.mxu0 %v2426
    %3404 = vmatpush.bf16.msra.mxu0 %v2422
    %3405 = vmatpush.bf16.msra.mxu0 %v2418
    %3406 = vmatpush.bf16.msra.mxu0 %v2414
    %3407 = vmatpush.bf16.msra.mxu0 %v2410
    %3408 = vmatpush.bf16.msra.mxu0 %v2406
    %3409 = vmatpush.bf16.msra.mxu0 %v2402
    %3410 = vmatpush.bf16.msra.mxu0 %v2398
    %3411 = vmatmul.bf16.gmra.mxu0 %v293
    %v3412 = vpop.f32.mrf.mxu0
    %v3413 = vadd.f32 %v3400, %v3412
    %v3414 = vpop.f32.mrf.mxu0
    %3415 = vdwg.mxu0
    %3416 = vmatpush.bf16.msra.mxu0 %v2458
    %3417 = vmatpush.bf16.msra.mxu0 %v2454
    %3418 = vmatpush.bf16.msra.mxu0 %v2450
    %3419 = vmatpush.bf16.msra.mxu0 %v2446
    %3420 = vmatpush.bf16.msra.mxu0 %v2442
    %3421 = vmatpush.bf16.msra.mxu0 %v2438
    %3422 = vmatpush.bf16.msra.mxu0 %v2434
    %3423 = vmatpush.bf16.msra.mxu0 %v2430
    %3424 = vmatmul.bf16.gmra.mxu0 %v294
    %v3425 = vpop.f32.mrf.mxu0
    %v3426 = vadd.f32 %v3413, %v3425
    %v3427 = vpop.f32.mrf.mxu0
    %3428 = vdwg.mxu0
    %3429 = vmatpush.bf16.msra.mxu0 %v2490
    %3430 = vmatpush.bf16.msra.mxu0 %v2486
    %3431 = vmatpush.bf16.msra.mxu0 %v2482
    %3432 = vmatpush.bf16.msra.mxu0 %v2478
    %3433 = vmatpush.bf16.msra.mxu0 %v2474
    %3434 = vmatpush.bf16.msra.mxu0 %v2470
    %3435 = vmatpush.bf16.msra.mxu0 %v2466
    %3436 = vmatpush.bf16.msra.mxu0 %v2462
    %3437 = vmatmul.bf16.gmra.mxu0 %v295
    %v3438 = vpop.f32.mrf.mxu0
    %v3439 = vadd.f32 %v3426, %v3438
    %v3440 = vpop.f32.mrf.mxu0
    %3441 = vdwg.mxu0
    %3442 = vmatpush.bf16.msra.mxu0 %v2522
    %3443 = vmatpush.bf16.msra.mxu0 %v2518
    %3444 = vmatpush.bf16.msra.mxu0 %v2514
    %3445 = vmatpush.bf16.msra.mxu0 %v2510
    %3446 = vmatpush.bf16.msra.mxu0 %v2506
    %3447 = vmatpush.bf16.msra.mxu0 %v2502
    %3448 = vmatpush.bf16.msra.mxu0 %v2498
    %3449 = vmatpush.bf16.msra.mxu0 %v2494
    %3450 = vmatmul.bf16.gmra.mxu0 %v296
    %v3451 = vpop.f32.mrf.mxu0
    %v3452 = vadd.f32 %v3439, %v3451
    %v3453 = vpop.f32.mrf.mxu0
    %3454 = vdwg.mxu0
    %3455 = vmatpush.bf16.msra.mxu0 %v2554
    %3456 = vmatpush.bf16.msra.mxu0 %v2550
    %3457 = vmatpush.bf16.msra.mxu0 %v2546
    %3458 = vmatpush.bf16.msra.mxu0 %v2542
    %3459 = vmatpush.bf16.msra.mxu0 %v2538
    %3460 = vmatpush.bf16.msra.mxu0 %v2534
    %3461 = vmatpush.bf16.msra.mxu0 %v2530
    %3462 = vmatpush.bf16.msra.mxu0 %v2526
    %3463 = vmatmul.bf16.gmra.mxu0 %v297
    %v3464 = vpop.f32.mrf.mxu0
    %v3465 = vadd.f32 %v3452, %v3464
    %v3466 = vpop.f32.mrf.mxu0
    %3467 = vdwg.mxu0
    %3468 = vmatpush.bf16.msra.mxu0 %v2586
    %3469 = vmatpush.bf16.msra.mxu0 %v2582
    %3470 = vmatpush.bf16.msra.mxu0 %v2578
    %3471 = vmatpush.bf16.msra.mxu0 %v2574
    %3472 = vmatpush.bf16.msra.mxu0 %v2570
    %3473 = vmatpush.bf16.msra.mxu0 %v2566
    %3474 = vmatpush.bf16.msra.mxu0 %v2562
    %3475 = vmatpush.bf16.msra.mxu0 %v2558
    %3476 = vmatmul.bf16.gmra.mxu0 %v298
    %v3477 = vpop.f32.mrf.mxu0
    %v3478 = vadd.f32 %v3465, %v3477
    %v3479 = vpop.f32.mrf.mxu0
    %3480 = vdwg.mxu0
    %3481 = vmatpush.bf16.msra.mxu0 %v2618
    %3482 = vmatpush.bf16.msra.mxu0 %v2614
    %3483 = vmatpush.bf16.msra.mxu0 %v2610
    %3484 = vmatpush.bf16.msra.mxu0 %v2606
    %3485 = vmatpush.bf16.msra.mxu0 %v2602
    %3486 = vmatpush.bf16.msra.mxu0 %v2598
    %3487 = vmatpush.bf16.msra.mxu0 %v2594
    %3488 = vmatpush.bf16.msra.mxu0 %v2590
    %3489 = vmatmul.bf16.gmra.mxu0 %v299
    %v3490 = vpop.f32.mrf.mxu0
    %v3491 = vadd.f32 %v3478, %v3490
    %v3492 = vpop.f32.mrf.mxu0
    %3493 = vdwg.mxu0
    %3494 = vmatpush.bf16.msra.mxu0 %v2650
    %3495 = vmatpush.bf16.msra.mxu0 %v2646
    %3496 = vmatpush.bf16.msra.mxu0 %v2642
    %3497 = vmatpush.bf16.msra.mxu0 %v2638
    %3498 = vmatpush.bf16.msra.mxu0 %v2634
    %3499 = vmatpush.bf16.msra.mxu0 %v2630
    %3500 = vmatpush.bf16.msra.mxu0 %v2626
    %3501 = vmatpush.bf16.msra.mxu0 %v2622
    %3502 = vmatmul.bf16.gmra.mxu0 %v300
    %v3503 = vpop.f32.mrf.mxu0
    %v3504 = vadd.f32 %v3491, %v3503
    %v3505 = vpop.f32.mrf.mxu0
    %3506 = vdwg.mxu0
    %3507 = vmatpush.bf16.msra.mxu0 %v2682
    %3508 = vmatpush.bf16.msra.mxu0 %v2678
    %3509 = vmatpush.bf16.msra.mxu0 %v2674
    %3510 = vmatpush.bf16.msra.mxu0 %v2670
    %3511 = vmatpush.bf16.msra.mxu0 %v2666
    %3512 = vmatpush.bf16.msra.mxu0 %v2662
    %3513 = vmatpush.bf16.msra.mxu0 %v2658
    %3514 = vmatpush.bf16.msra.mxu0 %v2654
    %3515 = vmatmul.bf16.gmra.mxu0 %v301
    %v3516 = vpop.f32.mrf.mxu0
    %v3517 = vadd.f32 %v3504, %v3516
    %v3518 = vpop.f32.mrf.mxu0
    %3519 = vdwg.mxu0
    %3520 = vmatpush.bf16.msra.mxu0 %v2714
    %3521 = vmatpush.bf16.msra.mxu0 %v2710
    %3522 = vmatpush.bf16.msra.mxu0 %v2706
    %3523 = vmatpush.bf16.msra.mxu0 %v2702
    %3524 = vmatpush.bf16.msra.mxu0 %v2698
    %3525 = vmatpush.bf16.msra.mxu0 %v2694
    %3526 = vmatpush.bf16.msra.mxu0 %v2690
    %3527 = vmatpush.bf16.msra.mxu0 %v2686
    %3528 = vmatmul.bf16.gmra.mxu0 %v302
    %v3529 = vpop.f32.mrf.mxu0
    %v3530 = vadd.f32 %v3517, %v3529
    %v3531 = vpop.f32.mrf.mxu0
    %3532 = vdwg.mxu0
    %3533 = vmatpush.bf16.msra.mxu0 %v2746
    %3534 = vmatpush.bf16.msra.mxu0 %v2742
    %3535 = vmatpush.bf16.msra.mxu0 %v2738
    %3536 = vmatpush.bf16.msra.mxu0 %v2734
    %3537 = vmatpush.bf16.msra.mxu0 %v2730
    %3538 = vmatpush.bf16.msra.mxu0 %v2726
    %3539 = vmatpush.bf16.msra.mxu0 %v2722
    %3540 = vmatpush.bf16.msra.mxu0 %v2718
    %3541 = vmatmul.bf16.gmra.mxu0 %v303
    %v3542 = vpop.f32.mrf.mxu0
    %v3543 = vadd.f32 %v3530, %v3542
    %v3544 = vpop.f32.mrf.mxu0
    %3545 = vdwg.mxu0
    %3546 = vmatpush.bf16.msra.mxu0 %v2778
    %3547 = vmatpush.bf16.msra.mxu0 %v2774
    %3548 = vmatpush.bf16.msra.mxu0 %v2770
    %3549 = vmatpush.bf16.msra.mxu0 %v2766
    %3550 = vmatpush.bf16.msra.mxu0 %v2762
    %3551 = vmatpush.bf16.msra.mxu0 %v2758
    %3552 = vmatpush.bf16.msra.mxu0 %v2754
    %3553 = vmatpush.bf16.msra.mxu0 %v2750
    %3554 = vmatmul.bf16.gmra.mxu0 %v304
    %v3555 = vpop.f32.mrf.mxu0
    %v3556 = vadd.f32 %v3543, %v3555
    %v3557 = vpop.f32.mrf.mxu0
    %3558 = vdwg.mxu0
    %3559 = vmatpush.bf16.msra.mxu0 %v2810
    %3560 = vmatpush.bf16.msra.mxu0 %v2806
    %3561 = vmatpush.bf16.msra.mxu0 %v2802
    %3562 = vmatpush.bf16.msra.mxu0 %v2798
    %3563 = vmatpush.bf16.msra.mxu0 %v2794
    %3564 = vmatpush.bf16.msra.mxu0 %v2790
    %3565 = vmatpush.bf16.msra.mxu0 %v2786
    %3566 = vmatpush.bf16.msra.mxu0 %v2782
    %3567 = vmatmul.bf16.gmra.mxu0 %v305
    %v3568 = vpop.f32.mrf.mxu0
    %v3569 = vadd.f32 %v3556, %v3568
    %v3570 = vpop.f32.mrf.mxu0
    %3571 = vdwg.mxu0
    %3572 = vmatpush.bf16.msra.mxu0 %v2842
    %3573 = vmatpush.bf16.msra.mxu0 %v2838
    %3574 = vmatpush.bf16.msra.mxu0 %v2834
    %3575 = vmatpush.bf16.msra.mxu0 %v2830
    %3576 = vmatpush.bf16.msra.mxu0 %v2826
    %3577 = vmatpush.bf16.msra.mxu0 %v2822
    %3578 = vmatpush.bf16.msra.mxu0 %v2818
    %3579 = vmatpush.bf16.msra.mxu0 %v2814
    %3580 = vmatmul.bf16.gmra.mxu0 %v306
    %v3581 = vpop.f32.mrf.mxu0
    %v3582 = vadd.f32 %v3569, %v3581
    %v3583 = vpop.f32.mrf.mxu0
    %3584 = vdwg.mxu0
    %3585 = vmatpush.bf16.msra.mxu0 %v2874
    %3586 = vmatpush.bf16.msra.mxu0 %v2870
    %3587 = vmatpush.bf16.msra.mxu0 %v2866
    %3588 = vmatpush.bf16.msra.mxu0 %v2862
    %3589 = vmatpush.bf16.msra.mxu0 %v2858
    %3590 = vmatpush.bf16.msra.mxu0 %v2854
    %3591 = vmatpush.bf16.msra.mxu0 %v2850
    %3592 = vmatpush.bf16.msra.mxu0 %v2846
    %3593 = vmatmul.bf16.gmra.mxu0 %v307
    %v3594 = vpop.f32.mrf.mxu0
    %v3595 = vadd.f32 %v3582, %v3594
    %v3596 = vpop.f32.mrf.mxu0
    %3597 = vdwg.mxu0
    %3598 = vmatpush.bf16.msra.mxu0 %v2395
    %3599 = vmatpush.bf16.msra.mxu0 %v2391
    %3600 = vmatpush.bf16.msra.mxu0 %v2387
    %3601 = vmatpush.bf16.msra.mxu0 %v2383
    %3602 = vmatpush.bf16.msra.mxu0 %v2379
    %3603 = vmatpush.bf16.msra.mxu0 %v2375
    %3604 = vmatpush.bf16.msra.mxu0 %v2371
    %3605 = vmatpush.bf16.msra.mxu0 %v2367
    %3606 = vmatmul.bf16.gmra.mxu0 %v292
    %v3607 = vpop.f32.mrf.mxu0
    %v3608 = vadd.f32 %v823, %v3607
    %v3609 = vpop.f32.mrf.mxu0
    %3610 = vdwg.mxu0
    %3611 = vmatpush.bf16.msra.mxu0 %v2427
    %3612 = vmatpush.bf16.msra.mxu0 %v2423
    %3613 = vmatpush.bf16.msra.mxu0 %v2419
    %3614 = vmatpush.bf16.msra.mxu0 %v2415
    %3615 = vmatpush.bf16.msra.mxu0 %v2411
    %3616 = vmatpush.bf16.msra.mxu0 %v2407
    %3617 = vmatpush.bf16.msra.mxu0 %v2403
    %3618 = vmatpush.bf16.msra.mxu0 %v2399
    %3619 = vmatmul.bf16.gmra.mxu0 %v293
    %v3620 = vpop.f32.mrf.mxu0
    %v3621 = vadd.f32 %v3608, %v3620
    %v3622 = vpop.f32.mrf.mxu0
    %3623 = vdwg.mxu0
    %3624 = vmatpush.bf16.msra.mxu0 %v2459
    %3625 = vmatpush.bf16.msra.mxu0 %v2455
    %3626 = vmatpush.bf16.msra.mxu0 %v2451
    %3627 = vmatpush.bf16.msra.mxu0 %v2447
    %3628 = vmatpush.bf16.msra.mxu0 %v2443
    %3629 = vmatpush.bf16.msra.mxu0 %v2439
    %3630 = vmatpush.bf16.msra.mxu0 %v2435
    %3631 = vmatpush.bf16.msra.mxu0 %v2431
    %3632 = vmatmul.bf16.gmra.mxu0 %v294
    %v3633 = vpop.f32.mrf.mxu0
    %v3634 = vadd.f32 %v3621, %v3633
    %v3635 = vpop.f32.mrf.mxu0
    %3636 = vdwg.mxu0
    %3637 = vmatpush.bf16.msra.mxu0 %v2491
    %3638 = vmatpush.bf16.msra.mxu0 %v2487
    %3639 = vmatpush.bf16.msra.mxu0 %v2483
    %3640 = vmatpush.bf16.msra.mxu0 %v2479
    %3641 = vmatpush.bf16.msra.mxu0 %v2475
    %3642 = vmatpush.bf16.msra.mxu0 %v2471
    %3643 = vmatpush.bf16.msra.mxu0 %v2467
    %3644 = vmatpush.bf16.msra.mxu0 %v2463
    %3645 = vmatmul.bf16.gmra.mxu0 %v295
    %v3646 = vpop.f32.mrf.mxu0
    %v3647 = vadd.f32 %v3634, %v3646
    %v3648 = vpop.f32.mrf.mxu0
    %3649 = vdwg.mxu0
    %3650 = vmatpush.bf16.msra.mxu0 %v2523
    %3651 = vmatpush.bf16.msra.mxu0 %v2519
    %3652 = vmatpush.bf16.msra.mxu0 %v2515
    %3653 = vmatpush.bf16.msra.mxu0 %v2511
    %3654 = vmatpush.bf16.msra.mxu0 %v2507
    %3655 = vmatpush.bf16.msra.mxu0 %v2503
    %3656 = vmatpush.bf16.msra.mxu0 %v2499
    %3657 = vmatpush.bf16.msra.mxu0 %v2495
    %3658 = vmatmul.bf16.gmra.mxu0 %v296
    %v3659 = vpop.f32.mrf.mxu0
    %v3660 = vadd.f32 %v3647, %v3659
    %v3661 = vpop.f32.mrf.mxu0
    %3662 = vdwg.mxu0
    %3663 = vmatpush.bf16.msra.mxu0 %v2555
    %3664 = vmatpush.bf16.msra.mxu0 %v2551
    %3665 = vmatpush.bf16.msra.mxu0 %v2547
    %3666 = vmatpush.bf16.msra.mxu0 %v2543
    %3667 = vmatpush.bf16.msra.mxu0 %v2539
    %3668 = vmatpush.bf16.msra.mxu0 %v2535
    %3669 = vmatpush.bf16.msra.mxu0 %v2531
    %3670 = vmatpush.bf16.msra.mxu0 %v2527
    %3671 = vmatmul.bf16.gmra.mxu0 %v297
    %v3672 = vpop.f32.mrf.mxu0
    %v3673 = vadd.f32 %v3660, %v3672
    %v3674 = vpop.f32.mrf.mxu0
    %3675 = vdwg.mxu0
    %3676 = vmatpush.bf16.msra.mxu0 %v2587
    %3677 = vmatpush.bf16.msra.mxu0 %v2583
    %3678 = vmatpush.bf16.msra.mxu0 %v2579
    %3679 = vmatpush.bf16.msra.mxu0 %v2575
    %3680 = vmatpush.bf16.msra.mxu0 %v2571
    %3681 = vmatpush.bf16.msra.mxu0 %v2567
    %3682 = vmatpush.bf16.msra.mxu0 %v2563
    %3683 = vmatpush.bf16.msra.mxu0 %v2559
    %3684 = vmatmul.bf16.gmra.mxu0 %v298
    %v3685 = vpop.f32.mrf.mxu0
    %v3686 = vadd.f32 %v3673, %v3685
    %v3687 = vpop.f32.mrf.mxu0
    %3688 = vdwg.mxu0
    %3689 = vmatpush.bf16.msra.mxu0 %v2619
    %3690 = vmatpush.bf16.msra.mxu0 %v2615
    %3691 = vmatpush.bf16.msra.mxu0 %v2611
    %3692 = vmatpush.bf16.msra.mxu0 %v2607
    %3693 = vmatpush.bf16.msra.mxu0 %v2603
    %3694 = vmatpush.bf16.msra.mxu0 %v2599
    %3695 = vmatpush.bf16.msra.mxu0 %v2595
    %3696 = vmatpush.bf16.msra.mxu0 %v2591
    %3697 = vmatmul.bf16.gmra.mxu0 %v299
    %v3698 = vpop.f32.mrf.mxu0
    %v3699 = vadd.f32 %v3686, %v3698
    %v3700 = vpop.f32.mrf.mxu0
    %3701 = vdwg.mxu0
    %3702 = vmatpush.bf16.msra.mxu0 %v2651
    %3703 = vmatpush.bf16.msra.mxu0 %v2647
    %3704 = vmatpush.bf16.msra.mxu0 %v2643
    %3705 = vmatpush.bf16.msra.mxu0 %v2639
    %3706 = vmatpush.bf16.msra.mxu0 %v2635
    %3707 = vmatpush.bf16.msra.mxu0 %v2631
    %3708 = vmatpush.bf16.msra.mxu0 %v2627
    %3709 = vmatpush.bf16.msra.mxu0 %v2623
    %3710 = vmatmul.bf16.gmra.mxu0 %v300
    %v3711 = vpop.f32.mrf.mxu0
    %v3712 = vadd.f32 %v3699, %v3711
    %v3713 = vpop.f32.mrf.mxu0
    %3714 = vdwg.mxu0
    %3715 = vmatpush.bf16.msra.mxu0 %v2683
    %3716 = vmatpush.bf16.msra.mxu0 %v2679
    %3717 = vmatpush.bf16.msra.mxu0 %v2675
    %3718 = vmatpush.bf16.msra.mxu0 %v2671
    %3719 = vmatpush.bf16.msra.mxu0 %v2667
    %3720 = vmatpush.bf16.msra.mxu0 %v2663
    %3721 = vmatpush.bf16.msra.mxu0 %v2659
    %3722 = vmatpush.bf16.msra.mxu0 %v2655
    %3723 = vmatmul.bf16.gmra.mxu0 %v301
    %v3724 = vpop.f32.mrf.mxu0
    %v3725 = vadd.f32 %v3712, %v3724
    %v3726 = vpop.f32.mrf.mxu0
    %3727 = vdwg.mxu0
    %3728 = vmatpush.bf16.msra.mxu0 %v2715
    %3729 = vmatpush.bf16.msra.mxu0 %v2711
    %3730 = vmatpush.bf16.msra.mxu0 %v2707
    %3731 = vmatpush.bf16.msra.mxu0 %v2703
    %3732 = vmatpush.bf16.msra.mxu0 %v2699
    %3733 = vmatpush.bf16.msra.mxu0 %v2695
    %3734 = vmatpush.bf16.msra.mxu0 %v2691
    %3735 = vmatpush.bf16.msra.mxu0 %v2687
    %3736 = vmatmul.bf16.gmra.mxu0 %v302
    %v3737 = vpop.f32.mrf.mxu0
    %v3738 = vadd.f32 %v3725, %v3737
    %v3739 = vpop.f32.mrf.mxu0
    %3740 = vdwg.mxu0
    %3741 = vmatpush.bf16.msra.mxu0 %v2747
    %3742 = vmatpush.bf16.msra.mxu0 %v2743
    %3743 = vmatpush.bf16.msra.mxu0 %v2739
    %3744 = vmatpush.bf16.msra.mxu0 %v2735
    %3745 = vmatpush.bf16.msra.mxu0 %v2731
    %3746 = vmatpush.bf16.msra.mxu0 %v2727
    %3747 = vmatpush.bf16.msra.mxu0 %v2723
    %3748 = vmatpush.bf16.msra.mxu0 %v2719
    %3749 = vmatmul.bf16.gmra.mxu0 %v303
    %v3750 = vpop.f32.mrf.mxu0
    %v3751 = vadd.f32 %v3738, %v3750
    %v3752 = vpop.f32.mrf.mxu0
    %3753 = vdwg.mxu0
    %3754 = vmatpush.bf16.msra.mxu0 %v2779
    %3755 = vmatpush.bf16.msra.mxu0 %v2775
    %3756 = vmatpush.bf16.msra.mxu0 %v2771
    %3757 = vmatpush.bf16.msra.mxu0 %v2767
    %3758 = vmatpush.bf16.msra.mxu0 %v2763
    %3759 = vmatpush.bf16.msra.mxu0 %v2759
    %3760 = vmatpush.bf16.msra.mxu0 %v2755
    %3761 = vmatpush.bf16.msra.mxu0 %v2751
    %3762 = vmatmul.bf16.gmra.mxu0 %v304
    %v3763 = vpop.f32.mrf.mxu0
    %v3764 = vadd.f32 %v3751, %v3763
    %v3765 = vpop.f32.mrf.mxu0
    %3766 = vdwg.mxu0
    %3767 = vmatpush.bf16.msra.mxu0 %v2811
    %3768 = vmatpush.bf16.msra.mxu0 %v2807
    %3769 = vmatpush.bf16.msra.mxu0 %v2803
    %3770 = vmatpush.bf16.msra.mxu0 %v2799
    %3771 = vmatpush.bf16.msra.mxu0 %v2795
    %3772 = vmatpush.bf16.msra.mxu0 %v2791
    %3773 = vmatpush.bf16.msra.mxu0 %v2787
    %3774 = vmatpush.bf16.msra.mxu0 %v2783
    %3775 = vmatmul.bf16.gmra.mxu0 %v305
    %v3776 = vpop.f32.mrf.mxu0
    %v3777 = vadd.f32 %v3764, %v3776
    %v3778 = vpop.f32.mrf.mxu0
    %3779 = vdwg.mxu0
    %3780 = vmatpush.bf16.msra.mxu0 %v2843
    %3781 = vmatpush.bf16.msra.mxu0 %v2839
    %3782 = vmatpush.bf16.msra.mxu0 %v2835
    %3783 = vmatpush.bf16.msra.mxu0 %v2831
    %3784 = vmatpush.bf16.msra.mxu0 %v2827
    %3785 = vmatpush.bf16.msra.mxu0 %v2823
    %3786 = vmatpush.bf16.msra.mxu0 %v2819
    %3787 = vmatpush.bf16.msra.mxu0 %v2815
    %3788 = vmatmul.bf16.gmra.mxu0 %v306
    %v3789 = vpop.f32.mrf.mxu0
    %v3790 = vadd.f32 %v3777, %v3789
    %v3791 = vpop.f32.mrf.mxu0
    %3792 = vdwg.mxu0
    %3793 = vmatpush.bf16.msra.mxu0 %v2875
    %3794 = vmatpush.bf16.msra.mxu0 %v2871
    %3795 = vmatpush.bf16.msra.mxu0 %v2867
    %3796 = vmatpush.bf16.msra.mxu0 %v2863
    %3797 = vmatpush.bf16.msra.mxu0 %v2859
    %3798 = vmatpush.bf16.msra.mxu0 %v2855
    %3799 = vmatpush.bf16.msra.mxu0 %v2851
    %3800 = vmatpush.bf16.msra.mxu0 %v2847
    %3801 = vmatmul.bf16.gmra.mxu0 %v307
    %v3802 = vpop.f32.mrf.mxu0
    %v3803 = vadd.f32 %v3790, %v3802
    %v3804 = vpop.f32.mrf.mxu0
    %3805 = vdwg.mxu0
    %3806 = vmatpush.bf16.msra.mxu0 %v2396
    %3807 = vmatpush.bf16.msra.mxu0 %v2392
    %3808 = vmatpush.bf16.msra.mxu0 %v2388
    %3809 = vmatpush.bf16.msra.mxu0 %v2384
    %3810 = vmatpush.bf16.msra.mxu0 %v2380
    %3811 = vmatpush.bf16.msra.mxu0 %v2376
    %3812 = vmatpush.bf16.msra.mxu0 %v2372
    %3813 = vmatpush.bf16.msra.mxu0 %v2368
    %3814 = vmatmul.bf16.gmra.mxu0 %v292
    %v3815 = vpop.f32.mrf.mxu0
    %v3816 = vadd.f32 %v824, %v3815
    %v3817 = vpop.f32.mrf.mxu0
    %3818 = vdwg.mxu0
    %3819 = vmatpush.bf16.msra.mxu0 %v2428
    %3820 = vmatpush.bf16.msra.mxu0 %v2424
    %3821 = vmatpush.bf16.msra.mxu0 %v2420
    %3822 = vmatpush.bf16.msra.mxu0 %v2416
    %3823 = vmatpush.bf16.msra.mxu0 %v2412
    %3824 = vmatpush.bf16.msra.mxu0 %v2408
    %3825 = vmatpush.bf16.msra.mxu0 %v2404
    %3826 = vmatpush.bf16.msra.mxu0 %v2400
    %3827 = vmatmul.bf16.gmra.mxu0 %v293
    %v3828 = vpop.f32.mrf.mxu0
    %v3829 = vadd.f32 %v3816, %v3828
    %v3830 = vpop.f32.mrf.mxu0
    %3831 = vdwg.mxu0
    %3832 = vmatpush.bf16.msra.mxu0 %v2460
    %3833 = vmatpush.bf16.msra.mxu0 %v2456
    %3834 = vmatpush.bf16.msra.mxu0 %v2452
    %3835 = vmatpush.bf16.msra.mxu0 %v2448
    %3836 = vmatpush.bf16.msra.mxu0 %v2444
    %3837 = vmatpush.bf16.msra.mxu0 %v2440
    %3838 = vmatpush.bf16.msra.mxu0 %v2436
    %3839 = vmatpush.bf16.msra.mxu0 %v2432
    %3840 = vmatmul.bf16.gmra.mxu0 %v294
    %v3841 = vpop.f32.mrf.mxu0
    %v3842 = vadd.f32 %v3829, %v3841
    %v3843 = vpop.f32.mrf.mxu0
    %3844 = vdwg.mxu0
    %3845 = vmatpush.bf16.msra.mxu0 %v2492
    %3846 = vmatpush.bf16.msra.mxu0 %v2488
    %3847 = vmatpush.bf16.msra.mxu0 %v2484
    %3848 = vmatpush.bf16.msra.mxu0 %v2480
    %3849 = vmatpush.bf16.msra.mxu0 %v2476
    %3850 = vmatpush.bf16.msra.mxu0 %v2472
    %3851 = vmatpush.bf16.msra.mxu0 %v2468
    %3852 = vmatpush.bf16.msra.mxu0 %v2464
    %3853 = vmatmul.bf16.gmra.mxu0 %v295
    %v3854 = vpop.f32.mrf.mxu0
    %v3855 = vadd.f32 %v3842, %v3854
    %v3856 = vpop.f32.mrf.mxu0
    %3857 = vdwg.mxu0
    %3858 = vmatpush.bf16.msra.mxu0 %v2524
    %3859 = vmatpush.bf16.msra.mxu0 %v2520
    %3860 = vmatpush.bf16.msra.mxu0 %v2516
    %3861 = vmatpush.bf16.msra.mxu0 %v2512
    %3862 = vmatpush.bf16.msra.mxu0 %v2508
    %3863 = vmatpush.bf16.msra.mxu0 %v2504
    %3864 = vmatpush.bf16.msra.mxu0 %v2500
    %3865 = vmatpush.bf16.msra.mxu0 %v2496
    %3866 = vmatmul.bf16.gmra.mxu0 %v296
    %v3867 = vpop.f32.mrf.mxu0
    %v3868 = vadd.f32 %v3855, %v3867
    %v3869 = vpop.f32.mrf.mxu0
    %3870 = vdwg.mxu0
    %3871 = vmatpush.bf16.msra.mxu0 %v2556
    %3872 = vmatpush.bf16.msra.mxu0 %v2552
    %3873 = vmatpush.bf16.msra.mxu0 %v2548
    %3874 = vmatpush.bf16.msra.mxu0 %v2544
    %3875 = vmatpush.bf16.msra.mxu0 %v2540
    %3876 = vmatpush.bf16.msra.mxu0 %v2536
    %3877 = vmatpush.bf16.msra.mxu0 %v2532
    %3878 = vmatpush.bf16.msra.mxu0 %v2528
    %3879 = vmatmul.bf16.gmra.mxu0 %v297
    %v3880 = vpop.f32.mrf.mxu0
    %v3881 = vadd.f32 %v3868, %v3880
    %v3882 = vpop.f32.mrf.mxu0
    %3883 = vdwg.mxu0
    %3884 = vmatpush.bf16.msra.mxu0 %v2588
    %3885 = vmatpush.bf16.msra.mxu0 %v2584
    %3886 = vmatpush.bf16.msra.mxu0 %v2580
    %3887 = vmatpush.bf16.msra.mxu0 %v2576
    %3888 = vmatpush.bf16.msra.mxu0 %v2572
    %3889 = vmatpush.bf16.msra.mxu0 %v2568
    %3890 = vmatpush.bf16.msra.mxu0 %v2564
    %3891 = vmatpush.bf16.msra.mxu0 %v2560
    %3892 = vmatmul.bf16.gmra.mxu0 %v298
    %v3893 = vpop.f32.mrf.mxu0
    %v3894 = vadd.f32 %v3881, %v3893
    %v3895 = vpop.f32.mrf.mxu0
    %3896 = vdwg.mxu0
    %3897 = vmatpush.bf16.msra.mxu0 %v2620
    %3898 = vmatpush.bf16.msra.mxu0 %v2616
    %3899 = vmatpush.bf16.msra.mxu0 %v2612
    %3900 = vmatpush.bf16.msra.mxu0 %v2608
    %3901 = vmatpush.bf16.msra.mxu0 %v2604
    %3902 = vmatpush.bf16.msra.mxu0 %v2600
    %3903 = vmatpush.bf16.msra.mxu0 %v2596
    %3904 = vmatpush.bf16.msra.mxu0 %v2592
    %3905 = vmatmul.bf16.gmra.mxu0 %v299
    %v3906 = vpop.f32.mrf.mxu0
    %v3907 = vadd.f32 %v3894, %v3906
    %v3908 = vpop.f32.mrf.mxu0
    %3909 = vdwg.mxu0
    %3910 = vmatpush.bf16.msra.mxu0 %v2652
    %3911 = vmatpush.bf16.msra.mxu0 %v2648
    %3912 = vmatpush.bf16.msra.mxu0 %v2644
    %3913 = vmatpush.bf16.msra.mxu0 %v2640
    %3914 = vmatpush.bf16.msra.mxu0 %v2636
    %3915 = vmatpush.bf16.msra.mxu0 %v2632
    %3916 = vmatpush.bf16.msra.mxu0 %v2628
    %3917 = vmatpush.bf16.msra.mxu0 %v2624
    %3918 = vmatmul.bf16.gmra.mxu0 %v300
    %v3919 = vpop.f32.mrf.mxu0
    %v3920 = vadd.f32 %v3907, %v3919
    %v3921 = vpop.f32.mrf.mxu0
    %3922 = vdwg.mxu0
    %3923 = vmatpush.bf16.msra.mxu0 %v2684
    %3924 = vmatpush.bf16.msra.mxu0 %v2680
    %3925 = vmatpush.bf16.msra.mxu0 %v2676
    %3926 = vmatpush.bf16.msra.mxu0 %v2672
    %3927 = vmatpush.bf16.msra.mxu0 %v2668
    %3928 = vmatpush.bf16.msra.mxu0 %v2664
    %3929 = vmatpush.bf16.msra.mxu0 %v2660
    %3930 = vmatpush.bf16.msra.mxu0 %v2656
    %3931 = vmatmul.bf16.gmra.mxu0 %v301
    %v3932 = vpop.f32.mrf.mxu0
    %v3933 = vadd.f32 %v3920, %v3932
    %v3934 = vpop.f32.mrf.mxu0
    %3935 = vdwg.mxu0
    %3936 = vmatpush.bf16.msra.mxu0 %v2716
    %3937 = vmatpush.bf16.msra.mxu0 %v2712
    %3938 = vmatpush.bf16.msra.mxu0 %v2708
    %3939 = vmatpush.bf16.msra.mxu0 %v2704
    %3940 = vmatpush.bf16.msra.mxu0 %v2700
    %3941 = vmatpush.bf16.msra.mxu0 %v2696
    %3942 = vmatpush.bf16.msra.mxu0 %v2692
    %3943 = vmatpush.bf16.msra.mxu0 %v2688
    %3944 = vmatmul.bf16.gmra.mxu0 %v302
    %v3945 = vpop.f32.mrf.mxu0
    %v3946 = vadd.f32 %v3933, %v3945
    %v3947 = vpop.f32.mrf.mxu0
    %3948 = vdwg.mxu0
    %3949 = vmatpush.bf16.msra.mxu0 %v2748
    %3950 = vmatpush.bf16.msra.mxu0 %v2744
    %3951 = vmatpush.bf16.msra.mxu0 %v2740
    %3952 = vmatpush.bf16.msra.mxu0 %v2736
    %3953 = vmatpush.bf16.msra.mxu0 %v2732
    %3954 = vmatpush.bf16.msra.mxu0 %v2728
    %3955 = vmatpush.bf16.msra.mxu0 %v2724
    %3956 = vmatpush.bf16.msra.mxu0 %v2720
    %3957 = vmatmul.bf16.gmra.mxu0 %v303
    %v3958 = vpop.f32.mrf.mxu0
    %v3959 = vadd.f32 %v3946, %v3958
    %v3960 = vpop.f32.mrf.mxu0
    %3961 = vdwg.mxu0
    %3962 = vmatpush.bf16.msra.mxu0 %v2780
    %3963 = vmatpush.bf16.msra.mxu0 %v2776
    %3964 = vmatpush.bf16.msra.mxu0 %v2772
    %3965 = vmatpush.bf16.msra.mxu0 %v2768
    %3966 = vmatpush.bf16.msra.mxu0 %v2764
    %3967 = vmatpush.bf16.msra.mxu0 %v2760
    %3968 = vmatpush.bf16.msra.mxu0 %v2756
    %3969 = vmatpush.bf16.msra.mxu0 %v2752
    %3970 = vmatmul.bf16.gmra.mxu0 %v304
    %v3971 = vpop.f32.mrf.mxu0
    %v3972 = vadd.f32 %v3959, %v3971
    %v3973 = vpop.f32.mrf.mxu0
    %3974 = vdwg.mxu0
    %3975 = vmatpush.bf16.msra.mxu0 %v2812
    %3976 = vmatpush.bf16.msra.mxu0 %v2808
    %3977 = vmatpush.bf16.msra.mxu0 %v2804
    %3978 = vmatpush.bf16.msra.mxu0 %v2800
    %3979 = vmatpush.bf16.msra.mxu0 %v2796
    %3980 = vmatpush.bf16.msra.mxu0 %v2792
    %3981 = vmatpush.bf16.msra.mxu0 %v2788
    %3982 = vmatpush.bf16.msra.mxu0 %v2784
    %3983 = vmatmul.bf16.gmra.mxu0 %v305
    %v3984 = vpop.f32.mrf.mxu0
    %v3985 = vadd.f32 %v3972, %v3984
    %v3986 = vpop.f32.mrf.mxu0
    %3987 = vdwg.mxu0
    %3988 = vmatpush.bf16.msra.mxu0 %v2844
    %3989 = vmatpush.bf16.msra.mxu0 %v2840
    %3990 = vmatpush.bf16.msra.mxu0 %v2836
    %3991 = vmatpush.bf16.msra.mxu0 %v2832
    %3992 = vmatpush.bf16.msra.mxu0 %v2828
    %3993 = vmatpush.bf16.msra.mxu0 %v2824
    %3994 = vmatpush.bf16.msra.mxu0 %v2820
    %3995 = vmatpush.bf16.msra.mxu0 %v2816
    %3996 = vmatmul.bf16.gmra.mxu0 %v306
    %v3997 = vpop.f32.mrf.mxu0
    %v3998 = vadd.f32 %v3985, %v3997
    %v3999 = vpop.f32.mrf.mxu0
    %4000 = vdwg.mxu0
    %4001 = vmatpush.bf16.msra.mxu0 %v2876
    %4002 = vmatpush.bf16.msra.mxu0 %v2872
    %4003 = vmatpush.bf16.msra.mxu0 %v2868
    %4004 = vmatpush.bf16.msra.mxu0 %v2864
    %4005 = vmatpush.bf16.msra.mxu0 %v2860
    %4006 = vmatpush.bf16.msra.mxu0 %v2856
    %4007 = vmatpush.bf16.msra.mxu0 %v2852
    %4008 = vmatpush.bf16.msra.mxu0 %v2848
    %4009 = vmatmul.bf16.gmra.mxu0 %v307
    %v4010 = vpop.f32.mrf.mxu0
    %v4011 = vadd.f32 %v3998, %v4010
    %v4012 = vpop.f32.mrf.mxu0
    %4013 = vdwg.mxu0
    %4014 = vmatpush.bf16.msra.mxu0 %v2397
    %4015 = vmatpush.bf16.msra.mxu0 %v2393
    %4016 = vmatpush.bf16.msra.mxu0 %v2389
    %4017 = vmatpush.bf16.msra.mxu0 %v2385
    %4018 = vmatpush.bf16.msra.mxu0 %v2381
    %4019 = vmatpush.bf16.msra.mxu0 %v2377
    %4020 = vmatpush.bf16.msra.mxu0 %v2373
    %4021 = vmatpush.bf16.msra.mxu0 %v2369
    %4022 = vmatmul.bf16.gmra.mxu0 %v292
    %v4023 = vpop.f32.mrf.mxu0
    %v4024 = vadd.f32 %v825, %v4023
    %v4025 = vpop.f32.mrf.mxu0
    %4026 = vdwg.mxu0
    %4027 = vmatpush.bf16.msra.mxu0 %v2429
    %4028 = vmatpush.bf16.msra.mxu0 %v2425
    %4029 = vmatpush.bf16.msra.mxu0 %v2421
    %4030 = vmatpush.bf16.msra.mxu0 %v2417
    %4031 = vmatpush.bf16.msra.mxu0 %v2413
    %4032 = vmatpush.bf16.msra.mxu0 %v2409
    %4033 = vmatpush.bf16.msra.mxu0 %v2405
    %4034 = vmatpush.bf16.msra.mxu0 %v2401
    %4035 = vmatmul.bf16.gmra.mxu0 %v293
    %v4036 = vpop.f32.mrf.mxu0
    %v4037 = vadd.f32 %v4024, %v4036
    %v4038 = vpop.f32.mrf.mxu0
    %4039 = vdwg.mxu0
    %4040 = vmatpush.bf16.msra.mxu0 %v2461
    %4041 = vmatpush.bf16.msra.mxu0 %v2457
    %4042 = vmatpush.bf16.msra.mxu0 %v2453
    %4043 = vmatpush.bf16.msra.mxu0 %v2449
    %4044 = vmatpush.bf16.msra.mxu0 %v2445
    %4045 = vmatpush.bf16.msra.mxu0 %v2441
    %4046 = vmatpush.bf16.msra.mxu0 %v2437
    %4047 = vmatpush.bf16.msra.mxu0 %v2433
    %4048 = vmatmul.bf16.gmra.mxu0 %v294
    %v4049 = vpop.f32.mrf.mxu0
    %v4050 = vadd.f32 %v4037, %v4049
    %v4051 = vpop.f32.mrf.mxu0
    %4052 = vdwg.mxu0
    %4053 = vmatpush.bf16.msra.mxu0 %v2493
    %4054 = vmatpush.bf16.msra.mxu0 %v2489
    %4055 = vmatpush.bf16.msra.mxu0 %v2485
    %4056 = vmatpush.bf16.msra.mxu0 %v2481
    %4057 = vmatpush.bf16.msra.mxu0 %v2477
    %4058 = vmatpush.bf16.msra.mxu0 %v2473
    %4059 = vmatpush.bf16.msra.mxu0 %v2469
    %4060 = vmatpush.bf16.msra.mxu0 %v2465
    %4061 = vmatmul.bf16.gmra.mxu0 %v295
    %v4062 = vpop.f32.mrf.mxu0
    %v4063 = vadd.f32 %v4050, %v4062
    %v4064 = vpop.f32.mrf.mxu0
    %4065 = vdwg.mxu0
    %4066 = vmatpush.bf16.msra.mxu0 %v2525
    %4067 = vmatpush.bf16.msra.mxu0 %v2521
    %4068 = vmatpush.bf16.msra.mxu0 %v2517
    %4069 = vmatpush.bf16.msra.mxu0 %v2513
    %4070 = vmatpush.bf16.msra.mxu0 %v2509
    %4071 = vmatpush.bf16.msra.mxu0 %v2505
    %4072 = vmatpush.bf16.msra.mxu0 %v2501
    %4073 = vmatpush.bf16.msra.mxu0 %v2497
    %4074 = vmatmul.bf16.gmra.mxu0 %v296
    %v4075 = vpop.f32.mrf.mxu0
    %v4076 = vadd.f32 %v4063, %v4075
    %v4077 = vpop.f32.mrf.mxu0
    %4078 = vdwg.mxu0
    %4079 = vmatpush.bf16.msra.mxu0 %v2557
    %4080 = vmatpush.bf16.msra.mxu0 %v2553
    %4081 = vmatpush.bf16.msra.mxu0 %v2549
    %4082 = vmatpush.bf16.msra.mxu0 %v2545
    %4083 = vmatpush.bf16.msra.mxu0 %v2541
    %4084 = vmatpush.bf16.msra.mxu0 %v2537
    %4085 = vmatpush.bf16.msra.mxu0 %v2533
    %4086 = vmatpush.bf16.msra.mxu0 %v2529
    %4087 = vmatmul.bf16.gmra.mxu0 %v297
    %v4088 = vpop.f32.mrf.mxu0
    %v4089 = vadd.f32 %v4076, %v4088
    %v4090 = vpop.f32.mrf.mxu0
    %4091 = vdwg.mxu0
    %4092 = vmatpush.bf16.msra.mxu0 %v2589
    %4093 = vmatpush.bf16.msra.mxu0 %v2585
    %4094 = vmatpush.bf16.msra.mxu0 %v2581
    %4095 = vmatpush.bf16.msra.mxu0 %v2577
    %4096 = vmatpush.bf16.msra.mxu0 %v2573
    %4097 = vmatpush.bf16.msra.mxu0 %v2569
    %4098 = vmatpush.bf16.msra.mxu0 %v2565
    %4099 = vmatpush.bf16.msra.mxu0 %v2561
    %4100 = vmatmul.bf16.gmra.mxu0 %v298
    %v4101 = vpop.f32.mrf.mxu0
    %v4102 = vadd.f32 %v4089, %v4101
    %v4103 = vpop.f32.mrf.mxu0
    %4104 = vdwg.mxu0
    %4105 = vmatpush.bf16.msra.mxu0 %v2621
    %4106 = vmatpush.bf16.msra.mxu0 %v2617
    %4107 = vmatpush.bf16.msra.mxu0 %v2613
    %4108 = vmatpush.bf16.msra.mxu0 %v2609
    %4109 = vmatpush.bf16.msra.mxu0 %v2605
    %4110 = vmatpush.bf16.msra.mxu0 %v2601
    %4111 = vmatpush.bf16.msra.mxu0 %v2597
    %4112 = vmatpush.bf16.msra.mxu0 %v2593
    %4113 = vmatmul.bf16.gmra.mxu0 %v299
    %v4114 = vpop.f32.mrf.mxu0
    %v4115 = vadd.f32 %v4102, %v4114
    %v4116 = vpop.f32.mrf.mxu0
    %4117 = vdwg.mxu0
    %4118 = vmatpush.bf16.msra.mxu0 %v2653
    %4119 = vmatpush.bf16.msra.mxu0 %v2649
    %4120 = vmatpush.bf16.msra.mxu0 %v2645
    %4121 = vmatpush.bf16.msra.mxu0 %v2641
    %4122 = vmatpush.bf16.msra.mxu0 %v2637
    %4123 = vmatpush.bf16.msra.mxu0 %v2633
    %4124 = vmatpush.bf16.msra.mxu0 %v2629
    %4125 = vmatpush.bf16.msra.mxu0 %v2625
    %4126 = vmatmul.bf16.gmra.mxu0 %v300
    %v4127 = vpop.f32.mrf.mxu0
    %v4128 = vadd.f32 %v4115, %v4127
    %v4129 = vpop.f32.mrf.mxu0
    %4130 = vdwg.mxu0
    %4131 = vmatpush.bf16.msra.mxu0 %v2685
    %4132 = vmatpush.bf16.msra.mxu0 %v2681
    %4133 = vmatpush.bf16.msra.mxu0 %v2677
    %4134 = vmatpush.bf16.msra.mxu0 %v2673
    %4135 = vmatpush.bf16.msra.mxu0 %v2669
    %4136 = vmatpush.bf16.msra.mxu0 %v2665
    %4137 = vmatpush.bf16.msra.mxu0 %v2661
    %4138 = vmatpush.bf16.msra.mxu0 %v2657
    %4139 = vmatmul.bf16.gmra.mxu0 %v301
    %v4140 = vpop.f32.mrf.mxu0
    %v4141 = vadd.f32 %v4128, %v4140
    %v4142 = vpop.f32.mrf.mxu0
    %4143 = vdwg.mxu0
    %4144 = vmatpush.bf16.msra.mxu0 %v2717
    %4145 = vmatpush.bf16.msra.mxu0 %v2713
    %4146 = vmatpush.bf16.msra.mxu0 %v2709
    %4147 = vmatpush.bf16.msra.mxu0 %v2705
    %4148 = vmatpush.bf16.msra.mxu0 %v2701
    %4149 = vmatpush.bf16.msra.mxu0 %v2697
    %4150 = vmatpush.bf16.msra.mxu0 %v2693
    %4151 = vmatpush.bf16.msra.mxu0 %v2689
    %4152 = vmatmul.bf16.gmra.mxu0 %v302
    %v4153 = vpop.f32.mrf.mxu0
    %v4154 = vadd.f32 %v4141, %v4153
    %v4155 = vpop.f32.mrf.mxu0
    %4156 = vdwg.mxu0
    %4157 = vmatpush.bf16.msra.mxu0 %v2749
    %4158 = vmatpush.bf16.msra.mxu0 %v2745
    %4159 = vmatpush.bf16.msra.mxu0 %v2741
    %4160 = vmatpush.bf16.msra.mxu0 %v2737
    %4161 = vmatpush.bf16.msra.mxu0 %v2733
    %4162 = vmatpush.bf16.msra.mxu0 %v2729
    %4163 = vmatpush.bf16.msra.mxu0 %v2725
    %4164 = vmatpush.bf16.msra.mxu0 %v2721
    %4165 = vmatmul.bf16.gmra.mxu0 %v303
    %v4166 = vpop.f32.mrf.mxu0
    %v4167 = vadd.f32 %v4154, %v4166
    %v4168 = vpop.f32.mrf.mxu0
    %4169 = vdwg.mxu0
    %4170 = vmatpush.bf16.msra.mxu0 %v2781
    %4171 = vmatpush.bf16.msra.mxu0 %v2777
    %4172 = vmatpush.bf16.msra.mxu0 %v2773
    %4173 = vmatpush.bf16.msra.mxu0 %v2769
    %4174 = vmatpush.bf16.msra.mxu0 %v2765
    %4175 = vmatpush.bf16.msra.mxu0 %v2761
    %4176 = vmatpush.bf16.msra.mxu0 %v2757
    %4177 = vmatpush.bf16.msra.mxu0 %v2753
    %4178 = vmatmul.bf16.gmra.mxu0 %v304
    %v4179 = vpop.f32.mrf.mxu0
    %v4180 = vadd.f32 %v4167, %v4179
    %v4181 = vpop.f32.mrf.mxu0
    %4182 = vdwg.mxu0
    %4183 = vmatpush.bf16.msra.mxu0 %v2813
    %4184 = vmatpush.bf16.msra.mxu0 %v2809
    %4185 = vmatpush.bf16.msra.mxu0 %v2805
    %4186 = vmatpush.bf16.msra.mxu0 %v2801
    %4187 = vmatpush.bf16.msra.mxu0 %v2797
    %4188 = vmatpush.bf16.msra.mxu0 %v2793
    %4189 = vmatpush.bf16.msra.mxu0 %v2789
    %4190 = vmatpush.bf16.msra.mxu0 %v2785
    %4191 = vmatmul.bf16.gmra.mxu0 %v305
    %v4192 = vpop.f32.mrf.mxu0
    %v4193 = vadd.f32 %v4180, %v4192
    %v4194 = vpop.f32.mrf.mxu0
    %4195 = vdwg.mxu0
    %4196 = vmatpush.bf16.msra.mxu0 %v2845
    %4197 = vmatpush.bf16.msra.mxu0 %v2841
    %4198 = vmatpush.bf16.msra.mxu0 %v2837
    %4199 = vmatpush.bf16.msra.mxu0 %v2833
    %4200 = vmatpush.bf16.msra.mxu0 %v2829
    %4201 = vmatpush.bf16.msra.mxu0 %v2825
    %4202 = vmatpush.bf16.msra.mxu0 %v2821
    %4203 = vmatpush.bf16.msra.mxu0 %v2817
    %4204 = vmatmul.bf16.gmra.mxu0 %v306
    %v4205 = vpop.f32.mrf.mxu0
    %v4206 = vadd.f32 %v4193, %v4205
    %v4207 = vpop.f32.mrf.mxu0
    %4208 = vdwg.mxu0
    %4209 = vmatpush.bf16.msra.mxu0 %v2877
    %4210 = vmatpush.bf16.msra.mxu0 %v2873
    %4211 = vmatpush.bf16.msra.mxu0 %v2869
    %4212 = vmatpush.bf16.msra.mxu0 %v2865
    %4213 = vmatpush.bf16.msra.mxu0 %v2861
    %4214 = vmatpush.bf16.msra.mxu0 %v2857
    %4215 = vmatpush.bf16.msra.mxu0 %v2853
    %4216 = vmatpush.bf16.msra.mxu0 %v2849
    %4217 = vmatmul.bf16.gmra.mxu0 %v307
    %v4218 = vpop.f32.mrf.mxu0
    %v4219 = vadd.f32 %v4206, %v4218
    %v4220 = vpop.f32.mrf.mxu0
    %4221 = vdwg.mxu0
    %v4222 = vmax.f32 %v3595, 0.0
    %v4223 = vmax.f32 %v3803, 0.0
    %v4224 = vmax.f32 %v4011, 0.0
    %v4225 = vmax.f32 %v4219, 0.0
    %v4226 = vld [vmem:[#allocation9] sm:$0xff]
    %v4227 = vld [vmem:[#allocation9 + $0x8] sm:$0xff]
    %v4228 = vld [vmem:[#allocation9 + $0x10] sm:$0xff]
    %v4229 = vld [vmem:[#allocation9 + $0x18] sm:$0xff]
    %v4230 = vld [vmem:[#allocation9 + $0x20] sm:$0xff]
    %v4231 = vld [vmem:[#allocation9 + $0x28] sm:$0xff]
    %v4232 = vpack.c.bf16 %v4226, %v4226
    %v4233 = vpack.c.bf16 %v4227, %v4227
    %v4234 = vpack.c.bf16 %v4228, %v4228
    %v4235 = vpack.c.bf16 %v4229, %v4229
    %v4236 = vpack.c.bf16 %v4230, %v4230
    %v4237 = vpack.c.bf16 %v4231, %v4231
    %v4238 = vld [vmem:[#allocation15] sm:$0xff]
    %v4239 = vld [vmem:[#allocation15 + $0x8] sm:$0xff]
    %v4240 = vld [vmem:[#allocation15 + $0x10] sm:$0xff]
    %v4241 = vld [vmem:[#allocation15 + $0x18] sm:$0xff]
    %v4242 = vld [vmem:[#allocation15 + $0x20] sm:$0xff]
    %v4243 = vld [vmem:[#allocation15 + $0x28] sm:$0xff]
    %v4244 = vld [vmem:[#allocation15 + $0x30] sm:$0xff]
    %v4245 = vld [vmem:[#allocation15 + $0x38] sm:$0xff]
    %v4246 = vld [vmem:[#allocation15 + $0x40] sm:$0xff]
    %v4247 = vld [vmem:[#allocation15 + $0x48] sm:$0xff]
    %v4248 = vld [vmem:[#allocation15 + $0x50] sm:$0xff]
    %v4249 = vld [vmem:[#allocation15 + $0x58] sm:$0xff]
    %v4250 = vld [vmem:[#allocation15 + $0x60] sm:$0xff]
    %v4251 = vld [vmem:[#allocation15 + $0x68] sm:$0xff]
    %v4252 = vld [vmem:[#allocation15 + $0x70] sm:$0xff]
    %v4253 = vld [vmem:[#allocation15 + $0x78] sm:$0xff]
    %v4254 = vld [vmem:[#allocation15 + $0x80] sm:$0xff]
    %v4255 = vld [vmem:[#allocation15 + $0x88] sm:$0xff]
    %v4256 = vld [vmem:[#allocation15 + $0x90] sm:$0xff]
    %v4257 = vld [vmem:[#allocation15 + $0x98] sm:$0xff]
    %v4258 = vld [vmem:[#allocation15 + $0xa0] sm:$0xff]
    %v4259 = vld [vmem:[#allocation15 + $0xa8] sm:$0xff]
    %v4260 = vld [vmem:[#allocation15 + $0xb0] sm:$0xff]
    %v4261 = vld [vmem:[#allocation15 + $0xb8] sm:$0xff]
    %v4262 = vld [vmem:[#allocation15 + $0xc0] sm:$0xff]
    %v4263 = vld [vmem:[#allocation15 + $0xc8] sm:$0xff]
    %v4264 = vld [vmem:[#allocation15 + $0xd0] sm:$0xff]
    %v4265 = vld [vmem:[#allocation15 + $0xd8] sm:$0xff]
    %v4266 = vld [vmem:[#allocation15 + $0xe0] sm:$0xff]
    %v4267 = vld [vmem:[#allocation15 + $0xe8] sm:$0xff]
    %v4268 = vld [vmem:[#allocation15 + $0xf0] sm:$0xff]
    %v4269 = vld [vmem:[#allocation15 + $0xf8] sm:$0xff]
    %v4270 = vld [vmem:[#allocation15 + $0x100] sm:$0xff]
    %v4271 = vld [vmem:[#allocation15 + $0x108] sm:$0xff]
    %v4272 = vld [vmem:[#allocation15 + $0x110] sm:$0xff]
    %v4273 = vld [vmem:[#allocation15 + $0x118] sm:$0xff]
    %v4274 = vld [vmem:[#allocation15 + $0x120] sm:$0xff]
    %v4275 = vld [vmem:[#allocation15 + $0x128] sm:$0xff]
    %v4276 = vld [vmem:[#allocation15 + $0x130] sm:$0xff]
    %v4277 = vld [vmem:[#allocation15 + $0x138] sm:$0xff]
    %v4278 = vld [vmem:[#allocation15 + $0x140] sm:$0xff]
    %v4279 = vld [vmem:[#allocation15 + $0x148] sm:$0xff]
    %v4280 = vld [vmem:[#allocation15 + $0x150] sm:$0xff]
    %v4281 = vld [vmem:[#allocation15 + $0x158] sm:$0xff]
    %v4282 = vld [vmem:[#allocation15 + $0x160] sm:$0xff]
    %v4283 = vld [vmem:[#allocation15 + $0x168] sm:$0xff]
    %v4284 = vld [vmem:[#allocation15 + $0x170] sm:$0xff]
    %v4285 = vld [vmem:[#allocation15 + $0x178] sm:$0xff]
    %v4286 = vld [vmem:[#allocation15 + $0x180] sm:$0xff]
    %v4287 = vld [vmem:[#allocation15 + $0x188] sm:$0xff]
    %v4288 = vld [vmem:[#allocation15 + $0x190] sm:$0xff]
    %v4289 = vld [vmem:[#allocation15 + $0x198] sm:$0xff]
    %v4290 = vld [vmem:[#allocation15 + $0x1a0] sm:$0xff]
    %v4291 = vld [vmem:[#allocation15 + $0x1a8] sm:$0xff]
    %v4292 = vld [vmem:[#allocation15 + $0x1b0] sm:$0xff]
    %v4293 = vld [vmem:[#allocation15 + $0x1b8] sm:$0xff]
    %v4294 = vld [vmem:[#allocation15 + $0x1c0] sm:$0xff]
    %v4295 = vld [vmem:[#allocation15 + $0x1c8] sm:$0xff]
    %v4296 = vld [vmem:[#allocation15 + $0x1d0] sm:$0xff]
    %v4297 = vld [vmem:[#allocation15 + $0x1d8] sm:$0xff]
    %v4298 = vld [vmem:[#allocation15 + $0x1e0] sm:$0xff]
    %v4299 = vld [vmem:[#allocation15 + $0x1e8] sm:$0xff]
    %v4300 = vld [vmem:[#allocation15 + $0x1f0] sm:$0xff]
    %v4301 = vld [vmem:[#allocation15 + $0x1f8] sm:$0xff]
    %v4302 = vld [vmem:[#allocation15 + $0x200] sm:$0xff]
    %v4303 = vld [vmem:[#allocation15 + $0x208] sm:$0xff]
    %v4304 = vld [vmem:[#allocation15 + $0x210] sm:$0xff]
    %v4305 = vld [vmem:[#allocation15 + $0x218] sm:$0xff]
    %v4306 = vld [vmem:[#allocation15 + $0x220] sm:$0xff]
    %v4307 = vld [vmem:[#allocation15 + $0x228] sm:$0xff]
    %v4308 = vld [vmem:[#allocation15 + $0x230] sm:$0xff]
    %v4309 = vld [vmem:[#allocation15 + $0x238] sm:$0xff]
    %v4310 = vld [vmem:[#allocation15 + $0x240] sm:$0xff]
    %v4311 = vld [vmem:[#allocation15 + $0x248] sm:$0xff]
    %v4312 = vld [vmem:[#allocation15 + $0x250] sm:$0xff]
    %v4313 = vld [vmem:[#allocation15 + $0x258] sm:$0xff]
    %v4314 = vld [vmem:[#allocation15 + $0x260] sm:$0xff]
    %v4315 = vld [vmem:[#allocation15 + $0x268] sm:$0xff]
    %v4316 = vld [vmem:[#allocation15 + $0x270] sm:$0xff]
    %v4317 = vld [vmem:[#allocation15 + $0x278] sm:$0xff]
    %v4318 = vld [vmem:[#allocation15 + $0x280] sm:$0xff]
    %v4319 = vld [vmem:[#allocation15 + $0x288] sm:$0xff]
    %v4320 = vld [vmem:[#allocation15 + $0x290] sm:$0xff]
    %v4321 = vld [vmem:[#allocation15 + $0x298] sm:$0xff]
    %v4322 = vld [vmem:[#allocation15 + $0x2a0] sm:$0xff]
    %v4323 = vld [vmem:[#allocation15 + $0x2a8] sm:$0xff]
    %v4324 = vld [vmem:[#allocation15 + $0x2b0] sm:$0xff]
    %v4325 = vld [vmem:[#allocation15 + $0x2b8] sm:$0xff]
    %v4326 = vld [vmem:[#allocation15 + $0x2c0] sm:$0xff]
    %v4327 = vld [vmem:[#allocation15 + $0x2c8] sm:$0xff]
    %v4328 = vld [vmem:[#allocation15 + $0x2d0] sm:$0xff]
    %v4329 = vld [vmem:[#allocation15 + $0x2d8] sm:$0xff]
    %v4330 = vld [vmem:[#allocation15 + $0x2e0] sm:$0xff]
    %v4331 = vld [vmem:[#allocation15 + $0x2e8] sm:$0xff]
    %v4332 = vld [vmem:[#allocation15 + $0x2f0] sm:$0xff]
    %v4333 = vld [vmem:[#allocation15 + $0x2f8] sm:$0xff]
    %v4334 = vld [vmem:[#allocation15 + $0x300] sm:$0xff]
    %v4335 = vld [vmem:[#allocation15 + $0x308] sm:$0xff]
    %v4336 = vld [vmem:[#allocation15 + $0x310] sm:$0xff]
    %v4337 = vld [vmem:[#allocation15 + $0x318] sm:$0xff]
    %v4338 = vld [vmem:[#allocation15 + $0x320] sm:$0xff]
    %v4339 = vld [vmem:[#allocation15 + $0x328] sm:$0xff]
    %v4340 = vld [vmem:[#allocation15 + $0x330] sm:$0xff]
    %v4341 = vld [vmem:[#allocation15 + $0x338] sm:$0xff]
    %v4342 = vld [vmem:[#allocation15 + $0x340] sm:$0xff]
    %v4343 = vld [vmem:[#allocation15 + $0x348] sm:$0xff]
    %v4344 = vld [vmem:[#allocation15 + $0x350] sm:$0xff]
    %v4345 = vld [vmem:[#allocation15 + $0x358] sm:$0xff]
    %v4346 = vld [vmem:[#allocation15 + $0x360] sm:$0xff]
    %v4347 = vld [vmem:[#allocation15 + $0x368] sm:$0xff]
    %v4348 = vld [vmem:[#allocation15 + $0x370] sm:$0xff]
    %v4349 = vld [vmem:[#allocation15 + $0x378] sm:$0xff]
    %v4350 = vld [vmem:[#allocation15 + $0x380] sm:$0xff]
    %v4351 = vld [vmem:[#allocation15 + $0x388] sm:$0xff]
    %v4352 = vld [vmem:[#allocation15 + $0x390] sm:$0xff]
    %v4353 = vld [vmem:[#allocation15 + $0x398] sm:$0xff]
    %v4354 = vld [vmem:[#allocation15 + $0x3a0] sm:$0xff]
    %v4355 = vld [vmem:[#allocation15 + $0x3a8] sm:$0xff]
    %v4356 = vld [vmem:[#allocation15 + $0x3b0] sm:$0xff]
    %v4357 = vld [vmem:[#allocation15 + $0x3b8] sm:$0xff]
    %v4358 = vld [vmem:[#allocation15 + $0x3c0] sm:$0xff]
    %v4359 = vld [vmem:[#allocation15 + $0x3c8] sm:$0xff]
    %v4360 = vld [vmem:[#allocation15 + $0x3d0] sm:$0xff]
    %v4361 = vld [vmem:[#allocation15 + $0x3d8] sm:$0xff]
    %v4362 = vld [vmem:[#allocation15 + $0x3e0] sm:$0xff]
    %v4363 = vld [vmem:[#allocation15 + $0x3e8] sm:$0xff]
    %v4364 = vld [vmem:[#allocation15 + $0x3f0] sm:$0xff]
    %v4365 = vld [vmem:[#allocation15 + $0x3f8] sm:$0xff]
    %v4366 = vld [vmem:[#allocation15 + $0x400] sm:$0xff]
    %v4367 = vld [vmem:[#allocation15 + $0x408] sm:$0xff]
    %v4368 = vld [vmem:[#allocation15 + $0x410] sm:$0xff]
    %v4369 = vld [vmem:[#allocation15 + $0x418] sm:$0xff]
    %v4370 = vld [vmem:[#allocation15 + $0x420] sm:$0xff]
    %v4371 = vld [vmem:[#allocation15 + $0x428] sm:$0xff]
    %v4372 = vld [vmem:[#allocation15 + $0x430] sm:$0xff]
    %v4373 = vld [vmem:[#allocation15 + $0x438] sm:$0xff]
    %v4374 = vld [vmem:[#allocation15 + $0x440] sm:$0xff]
    %v4375 = vld [vmem:[#allocation15 + $0x448] sm:$0xff]
    %v4376 = vld [vmem:[#allocation15 + $0x450] sm:$0xff]
    %v4377 = vld [vmem:[#allocation15 + $0x458] sm:$0xff]
    %v4378 = vld [vmem:[#allocation15 + $0x460] sm:$0xff]
    %v4379 = vld [vmem:[#allocation15 + $0x468] sm:$0xff]
    %v4380 = vld [vmem:[#allocation15 + $0x470] sm:$0xff]
    %v4381 = vld [vmem:[#allocation15 + $0x478] sm:$0xff]
    %v4382 = vld [vmem:[#allocation15 + $0x480] sm:$0xff]
    %v4383 = vld [vmem:[#allocation15 + $0x488] sm:$0xff]
    %v4384 = vld [vmem:[#allocation15 + $0x490] sm:$0xff]
    %v4385 = vld [vmem:[#allocation15 + $0x498] sm:$0xff]
    %v4386 = vld [vmem:[#allocation15 + $0x4a0] sm:$0xff]
    %v4387 = vld [vmem:[#allocation15 + $0x4a8] sm:$0xff]
    %v4388 = vld [vmem:[#allocation15 + $0x4b0] sm:$0xff]
    %v4389 = vld [vmem:[#allocation15 + $0x4b8] sm:$0xff]
    %v4390 = vld [vmem:[#allocation15 + $0x4c0] sm:$0xff]
    %v4391 = vld [vmem:[#allocation15 + $0x4c8] sm:$0xff]
    %v4392 = vld [vmem:[#allocation15 + $0x4d0] sm:$0xff]
    %v4393 = vld [vmem:[#allocation15 + $0x4d8] sm:$0xff]
    %v4394 = vld [vmem:[#allocation15 + $0x4e0] sm:$0xff]
    %v4395 = vld [vmem:[#allocation15 + $0x4e8] sm:$0xff]
    %v4396 = vld [vmem:[#allocation15 + $0x4f0] sm:$0xff]
    %v4397 = vld [vmem:[#allocation15 + $0x4f8] sm:$0xff]
    %v4398 = vld [vmem:[#allocation15 + $0x500] sm:$0xff]
    %v4399 = vld [vmem:[#allocation15 + $0x508] sm:$0xff]
    %v4400 = vld [vmem:[#allocation15 + $0x510] sm:$0xff]
    %v4401 = vld [vmem:[#allocation15 + $0x518] sm:$0xff]
    %v4402 = vld [vmem:[#allocation15 + $0x520] sm:$0xff]
    %v4403 = vld [vmem:[#allocation15 + $0x528] sm:$0xff]
    %v4404 = vld [vmem:[#allocation15 + $0x530] sm:$0xff]
    %v4405 = vld [vmem:[#allocation15 + $0x538] sm:$0xff]
    %v4406 = vld [vmem:[#allocation15 + $0x540] sm:$0xff]
    %v4407 = vld [vmem:[#allocation15 + $0x548] sm:$0xff]
    %v4408 = vld [vmem:[#allocation15 + $0x550] sm:$0xff]
    %v4409 = vld [vmem:[#allocation15 + $0x558] sm:$0xff]
    %v4410 = vld [vmem:[#allocation15 + $0x560] sm:$0xff]
    %v4411 = vld [vmem:[#allocation15 + $0x568] sm:$0xff]
    %v4412 = vld [vmem:[#allocation15 + $0x570] sm:$0xff]
    %v4413 = vld [vmem:[#allocation15 + $0x578] sm:$0xff]
    %v4414 = vld [vmem:[#allocation15 + $0x580] sm:$0xff]
    %v4415 = vld [vmem:[#allocation15 + $0x588] sm:$0xff]
    %v4416 = vld [vmem:[#allocation15 + $0x590] sm:$0xff]
    %v4417 = vld [vmem:[#allocation15 + $0x598] sm:$0xff]
    %v4418 = vld [vmem:[#allocation15 + $0x5a0] sm:$0xff]
    %v4419 = vld [vmem:[#allocation15 + $0x5a8] sm:$0xff]
    %v4420 = vld [vmem:[#allocation15 + $0x5b0] sm:$0xff]
    %v4421 = vld [vmem:[#allocation15 + $0x5b8] sm:$0xff]
    %v4422 = vld [vmem:[#allocation15 + $0x5c0] sm:$0xff]
    %v4423 = vld [vmem:[#allocation15 + $0x5c8] sm:$0xff]
    %v4424 = vld [vmem:[#allocation15 + $0x5d0] sm:$0xff]
    %v4425 = vld [vmem:[#allocation15 + $0x5d8] sm:$0xff]
    %v4426 = vld [vmem:[#allocation15 + $0x5e0] sm:$0xff]
    %v4427 = vld [vmem:[#allocation15 + $0x5e8] sm:$0xff]
    %v4428 = vld [vmem:[#allocation15 + $0x5f0] sm:$0xff]
    %v4429 = vld [vmem:[#allocation15 + $0x5f8] sm:$0xff]
    %v4430 = vld [vmem:[#allocation17] sm:$0xf]
    %v4432 = vperm.slane %v4430, 0
    %v4433 = vperm.slane %v4430, 1
    %v4434 = vperm.slane %v4430, 2
    %v4435 = vperm.slane %v4430, 3
    %v4632 = vunpack.c.l.b16 %v4238
    %v4633 = vunpack.c.h.b16 %v4238
    %v4634 = vunpack.c.l.b16 %v4239
    %v4635 = vunpack.c.h.b16 %v4239
    %v4636 = vunpack.c.l.b16 %v4240
    %v4637 = vunpack.c.h.b16 %v4240
    %v4638 = vunpack.c.l.b16 %v4241
    %v4639 = vunpack.c.h.b16 %v4241
    %v4640 = vunpack.c.l.b16 %v4242
    %v4641 = vunpack.c.h.b16 %v4242
    %v4642 = vunpack.c.l.b16 %v4243
    %v4643 = vunpack.c.h.b16 %v4243
    %v4644 = vunpack.c.l.b16 %v4244
    %v4645 = vunpack.c.h.b16 %v4244
    %v4646 = vunpack.c.l.b16 %v4245
    %v4647 = vunpack.c.h.b16 %v4245
    %v4648 = vunpack.c.l.b16 %v4246
    %v4649 = vunpack.c.h.b16 %v4246
    %v4650 = vunpack.c.l.b16 %v4247
    %v4651 = vunpack.c.h.b16 %v4247
    %v4652 = vunpack.c.l.b16 %v4248
    %v4653 = vunpack.c.h.b16 %v4248
    %v4654 = vunpack.c.l.b16 %v4249
    %v4655 = vunpack.c.h.b16 %v4249
    %v4656 = vunpack.c.l.b16 %v4250
    %v4657 = vunpack.c.h.b16 %v4250
    %v4658 = vunpack.c.l.b16 %v4251
    %v4659 = vunpack.c.h.b16 %v4251
    %v4660 = vunpack.c.l.b16 %v4252
    %v4661 = vunpack.c.h.b16 %v4252
    %v4662 = vunpack.c.l.b16 %v4253
    %v4663 = vunpack.c.h.b16 %v4253
    %v4664 = vunpack.c.l.b16 %v4254
    %v4665 = vunpack.c.h.b16 %v4254
    %v4666 = vunpack.c.l.b16 %v4255
    %v4667 = vunpack.c.h.b16 %v4255
    %v4668 = vunpack.c.l.b16 %v4256
    %v4669 = vunpack.c.h.b16 %v4256
    %v4670 = vunpack.c.l.b16 %v4257
    %v4671 = vunpack.c.h.b16 %v4257
    %v4672 = vunpack.c.l.b16 %v4258
    %v4673 = vunpack.c.h.b16 %v4258
    %v4674 = vunpack.c.l.b16 %v4259
    %v4675 = vunpack.c.h.b16 %v4259
    %v4676 = vunpack.c.l.b16 %v4260
    %v4677 = vunpack.c.h.b16 %v4260
    %v4678 = vunpack.c.l.b16 %v4261
    %v4679 = vunpack.c.h.b16 %v4261
    %v4680 = vunpack.c.l.b16 %v4262
    %v4681 = vunpack.c.h.b16 %v4262
    %v4682 = vunpack.c.l.b16 %v4263
    %v4683 = vunpack.c.h.b16 %v4263
    %v4684 = vunpack.c.l.b16 %v4264
    %v4685 = vunpack.c.h.b16 %v4264
    %v4686 = vunpack.c.l.b16 %v4265
    %v4687 = vunpack.c.h.b16 %v4265
    %v4688 = vunpack.c.l.b16 %v4266
    %v4689 = vunpack.c.h.b16 %v4266
    %v4690 = vunpack.c.l.b16 %v4267
    %v4691 = vunpack.c.h.b16 %v4267
    %v4692 = vunpack.c.l.b16 %v4268
    %v4693 = vunpack.c.h.b16 %v4268
    %v4694 = vunpack.c.l.b16 %v4269
    %v4695 = vunpack.c.h.b16 %v4269
    %v4696 = vunpack.c.l.b16 %v4270
    %v4697 = vunpack.c.h.b16 %v4270
    %v4698 = vunpack.c.l.b16 %v4271
    %v4699 = vunpack.c.h.b16 %v4271
    %v4700 = vunpack.c.l.b16 %v4272
    %v4701 = vunpack.c.h.b16 %v4272
    %v4702 = vunpack.c.l.b16 %v4273
    %v4703 = vunpack.c.h.b16 %v4273
    %v4704 = vunpack.c.l.b16 %v4274
    %v4705 = vunpack.c.h.b16 %v4274
    %v4706 = vunpack.c.l.b16 %v4275
    %v4707 = vunpack.c.h.b16 %v4275
    %v4708 = vunpack.c.l.b16 %v4276
    %v4709 = vunpack.c.h.b16 %v4276
    %v4710 = vunpack.c.l.b16 %v4277
    %v4711 = vunpack.c.h.b16 %v4277
    %v4712 = vunpack.c.l.b16 %v4278
    %v4713 = vunpack.c.h.b16 %v4278
    %v4714 = vunpack.c.l.b16 %v4279
    %v4715 = vunpack.c.h.b16 %v4279
    %v4716 = vunpack.c.l.b16 %v4280
    %v4717 = vunpack.c.h.b16 %v4280
    %v4718 = vunpack.c.l.b16 %v4281
    %v4719 = vunpack.c.h.b16 %v4281
    %v4720 = vunpack.c.l.b16 %v4282
    %v4721 = vunpack.c.h.b16 %v4282
    %v4722 = vunpack.c.l.b16 %v4283
    %v4723 = vunpack.c.h.b16 %v4283
    %v4724 = vunpack.c.l.b16 %v4284
    %v4725 = vunpack.c.h.b16 %v4284
    %v4726 = vunpack.c.l.b16 %v4285
    %v4727 = vunpack.c.h.b16 %v4285
    %v4728 = vunpack.c.l.b16 %v4286
    %v4729 = vunpack.c.h.b16 %v4286
    %v4730 = vunpack.c.l.b16 %v4287
    %v4731 = vunpack.c.h.b16 %v4287
    %v4732 = vunpack.c.l.b16 %v4288
    %v4733 = vunpack.c.h.b16 %v4288
    %v4734 = vunpack.c.l.b16 %v4289
    %v4735 = vunpack.c.h.b16 %v4289
    %v4736 = vunpack.c.l.b16 %v4290
    %v4737 = vunpack.c.h.b16 %v4290
    %v4738 = vunpack.c.l.b16 %v4291
    %v4739 = vunpack.c.h.b16 %v4291
    %v4740 = vunpack.c.l.b16 %v4292
    %v4741 = vunpack.c.h.b16 %v4292
    %v4742 = vunpack.c.l.b16 %v4293
    %v4743 = vunpack.c.h.b16 %v4293
    %v4744 = vunpack.c.l.b16 %v4294
    %v4745 = vunpack.c.h.b16 %v4294
    %v4746 = vunpack.c.l.b16 %v4295
    %v4747 = vunpack.c.h.b16 %v4295
    %v4748 = vunpack.c.l.b16 %v4296
    %v4749 = vunpack.c.h.b16 %v4296
    %v4750 = vunpack.c.l.b16 %v4297
    %v4751 = vunpack.c.h.b16 %v4297
    %v4752 = vunpack.c.l.b16 %v4298
    %v4753 = vunpack.c.h.b16 %v4298
    %v4754 = vunpack.c.l.b16 %v4299
    %v4755 = vunpack.c.h.b16 %v4299
    %v4756 = vunpack.c.l.b16 %v4300
    %v4757 = vunpack.c.h.b16 %v4300
    %v4758 = vunpack.c.l.b16 %v4301
    %v4759 = vunpack.c.h.b16 %v4301
    %v4760 = vunpack.c.l.b16 %v4302
    %v4761 = vunpack.c.h.b16 %v4302
    %v4762 = vunpack.c.l.b16 %v4303
    %v4763 = vunpack.c.h.b16 %v4303
    %v4764 = vunpack.c.l.b16 %v4304
    %v4765 = vunpack.c.h.b16 %v4304
    %v4766 = vunpack.c.l.b16 %v4305
    %v4767 = vunpack.c.h.b16 %v4305
    %v4768 = vunpack.c.l.b16 %v4306
    %v4769 = vunpack.c.h.b16 %v4306
    %v4770 = vunpack.c.l.b16 %v4307
    %v4771 = vunpack.c.h.b16 %v4307
    %v4772 = vunpack.c.l.b16 %v4308
    %v4773 = vunpack.c.h.b16 %v4308
    %v4774 = vunpack.c.l.b16 %v4309
    %v4775 = vunpack.c.h.b16 %v4309
    %v4776 = vunpack.c.l.b16 %v4310
    %v4777 = vunpack.c.h.b16 %v4310
    %v4778 = vunpack.c.l.b16 %v4311
    %v4779 = vunpack.c.h.b16 %v4311
    %v4780 = vunpack.c.l.b16 %v4312
    %v4781 = vunpack.c.h.b16 %v4312
    %v4782 = vunpack.c.l.b16 %v4313
    %v4783 = vunpack.c.h.b16 %v4313
    %v4784 = vunpack.c.l.b16 %v4314
    %v4785 = vunpack.c.h.b16 %v4314
    %v4786 = vunpack.c.l.b16 %v4315
    %v4787 = vunpack.c.h.b16 %v4315
    %v4788 = vunpack.c.l.b16 %v4316
    %v4789 = vunpack.c.h.b16 %v4316
    %v4790 = vunpack.c.l.b16 %v4317
    %v4791 = vunpack.c.h.b16 %v4317
    %v4792 = vunpack.c.l.b16 %v4318
    %v4793 = vunpack.c.h.b16 %v4318
    %v4794 = vunpack.c.l.b16 %v4319
    %v4795 = vunpack.c.h.b16 %v4319
    %v4796 = vunpack.c.l.b16 %v4320
    %v4797 = vunpack.c.h.b16 %v4320
    %v4798 = vunpack.c.l.b16 %v4321
    %v4799 = vunpack.c.h.b16 %v4321
    %v4800 = vunpack.c.l.b16 %v4322
    %v4801 = vunpack.c.h.b16 %v4322
    %v4802 = vunpack.c.l.b16 %v4323
    %v4803 = vunpack.c.h.b16 %v4323
    %v4804 = vunpack.c.l.b16 %v4324
    %v4805 = vunpack.c.h.b16 %v4324
    %v4806 = vunpack.c.l.b16 %v4325
    %v4807 = vunpack.c.h.b16 %v4325
    %v4808 = vunpack.c.l.b16 %v4326
    %v4809 = vunpack.c.h.b16 %v4326
    %v4810 = vunpack.c.l.b16 %v4327
    %v4811 = vunpack.c.h.b16 %v4327
    %v4812 = vunpack.c.l.b16 %v4328
    %v4813 = vunpack.c.h.b16 %v4328
    %v4814 = vunpack.c.l.b16 %v4329
    %v4815 = vunpack.c.h.b16 %v4329
    %v4816 = vunpack.c.l.b16 %v4330
    %v4817 = vunpack.c.h.b16 %v4330
    %v4818 = vunpack.c.l.b16 %v4331
    %v4819 = vunpack.c.h.b16 %v4331
    %v4820 = vunpack.c.l.b16 %v4332
    %v4821 = vunpack.c.h.b16 %v4332
    %v4822 = vunpack.c.l.b16 %v4333
    %v4823 = vunpack.c.h.b16 %v4333
    %v4824 = vunpack.c.l.b16 %v4334
    %v4825 = vunpack.c.h.b16 %v4334
    %v4826 = vunpack.c.l.b16 %v4335
    %v4827 = vunpack.c.h.b16 %v4335
    %v4828 = vunpack.c.l.b16 %v4336
    %v4829 = vunpack.c.h.b16 %v4336
    %v4830 = vunpack.c.l.b16 %v4337
    %v4831 = vunpack.c.h.b16 %v4337
    %v4832 = vunpack.c.l.b16 %v4338
    %v4833 = vunpack.c.h.b16 %v4338
    %v4834 = vunpack.c.l.b16 %v4339
    %v4835 = vunpack.c.h.b16 %v4339
    %v4836 = vunpack.c.l.b16 %v4340
    %v4837 = vunpack.c.h.b16 %v4340
    %v4838 = vunpack.c.l.b16 %v4341
    %v4839 = vunpack.c.h.b16 %v4341
    %v4840 = vunpack.c.l.b16 %v4342
    %v4841 = vunpack.c.h.b16 %v4342
    %v4842 = vunpack.c.l.b16 %v4343
    %v4843 = vunpack.c.h.b16 %v4343
    %v4844 = vunpack.c.l.b16 %v4344
    %v4845 = vunpack.c.h.b16 %v4344
    %v4846 = vunpack.c.l.b16 %v4345
    %v4847 = vunpack.c.h.b16 %v4345
    %v4848 = vunpack.c.l.b16 %v4346
    %v4849 = vunpack.c.h.b16 %v4346
    %v4850 = vunpack.c.l.b16 %v4347
    %v4851 = vunpack.c.h.b16 %v4347
    %v4852 = vunpack.c.l.b16 %v4348
    %v4853 = vunpack.c.h.b16 %v4348
    %v4854 = vunpack.c.l.b16 %v4349
    %v4855 = vunpack.c.h.b16 %v4349
    %v4856 = vunpack.c.l.b16 %v4350
    %v4857 = vunpack.c.h.b16 %v4350
    %v4858 = vunpack.c.l.b16 %v4351
    %v4859 = vunpack.c.h.b16 %v4351
    %v4860 = vunpack.c.l.b16 %v4352
    %v4861 = vunpack.c.h.b16 %v4352
    %v4862 = vunpack.c.l.b16 %v4353
    %v4863 = vunpack.c.h.b16 %v4353
    %v4864 = vunpack.c.l.b16 %v4354
    %v4865 = vunpack.c.h.b16 %v4354
    %v4866 = vunpack.c.l.b16 %v4355
    %v4867 = vunpack.c.h.b16 %v4355
    %v4868 = vunpack.c.l.b16 %v4356
    %v4869 = vunpack.c.h.b16 %v4356
    %v4870 = vunpack.c.l.b16 %v4357
    %v4871 = vunpack.c.h.b16 %v4357
    %v4872 = vunpack.c.l.b16 %v4358
    %v4873 = vunpack.c.h.b16 %v4358
    %v4874 = vunpack.c.l.b16 %v4359
    %v4875 = vunpack.c.h.b16 %v4359
    %v4876 = vunpack.c.l.b16 %v4360
    %v4877 = vunpack.c.h.b16 %v4360
    %v4878 = vunpack.c.l.b16 %v4361
    %v4879 = vunpack.c.h.b16 %v4361
    %v4880 = vunpack.c.l.b16 %v4362
    %v4881 = vunpack.c.h.b16 %v4362
    %v4882 = vunpack.c.l.b16 %v4363
    %v4883 = vunpack.c.h.b16 %v4363
    %v4884 = vunpack.c.l.b16 %v4364
    %v4885 = vunpack.c.h.b16 %v4364
    %v4886 = vunpack.c.l.b16 %v4365
    %v4887 = vunpack.c.h.b16 %v4365
    %v4888 = vunpack.c.l.b16 %v4366
    %v4889 = vunpack.c.h.b16 %v4366
    %v4890 = vunpack.c.l.b16 %v4367
    %v4891 = vunpack.c.h.b16 %v4367
    %v4892 = vunpack.c.l.b16 %v4368
    %v4893 = vunpack.c.h.b16 %v4368
    %v4894 = vunpack.c.l.b16 %v4369
    %v4895 = vunpack.c.h.b16 %v4369
    %v4896 = vunpack.c.l.b16 %v4370
    %v4897 = vunpack.c.h.b16 %v4370
    %v4898 = vunpack.c.l.b16 %v4371
    %v4899 = vunpack.c.h.b16 %v4371
    %v4900 = vunpack.c.l.b16 %v4372
    %v4901 = vunpack.c.h.b16 %v4372
    %v4902 = vunpack.c.l.b16 %v4373
    %v4903 = vunpack.c.h.b16 %v4373
    %v4904 = vunpack.c.l.b16 %v4374
    %v4905 = vunpack.c.h.b16 %v4374
    %v4906 = vunpack.c.l.b16 %v4375
    %v4907 = vunpack.c.h.b16 %v4375
    %v4908 = vunpack.c.l.b16 %v4376
    %v4909 = vunpack.c.h.b16 %v4376
    %v4910 = vunpack.c.l.b16 %v4377
    %v4911 = vunpack.c.h.b16 %v4377
    %v4912 = vunpack.c.l.b16 %v4378
    %v4913 = vunpack.c.h.b16 %v4378
    %v4914 = vunpack.c.l.b16 %v4379
    %v4915 = vunpack.c.h.b16 %v4379
    %v4916 = vunpack.c.l.b16 %v4380
    %v4917 = vunpack.c.h.b16 %v4380
    %v4918 = vunpack.c.l.b16 %v4381
    %v4919 = vunpack.c.h.b16 %v4381
    %v4920 = vunpack.c.l.b16 %v4382
    %v4921 = vunpack.c.h.b16 %v4382
    %v4922 = vunpack.c.l.b16 %v4383
    %v4923 = vunpack.c.h.b16 %v4383
    %v4924 = vunpack.c.l.b16 %v4384
    %v4925 = vunpack.c.h.b16 %v4384
    %v4926 = vunpack.c.l.b16 %v4385
    %v4927 = vunpack.c.h.b16 %v4385
    %v4928 = vunpack.c.l.b16 %v4386
    %v4929 = vunpack.c.h.b16 %v4386
    %v4930 = vunpack.c.l.b16 %v4387
    %v4931 = vunpack.c.h.b16 %v4387
    %v4932 = vunpack.c.l.b16 %v4388
    %v4933 = vunpack.c.h.b16 %v4388
    %v4934 = vunpack.c.l.b16 %v4389
    %v4935 = vunpack.c.h.b16 %v4389
    %v4936 = vunpack.c.l.b16 %v4390
    %v4937 = vunpack.c.h.b16 %v4390
    %v4938 = vunpack.c.l.b16 %v4391
    %v4939 = vunpack.c.h.b16 %v4391
    %v4940 = vunpack.c.l.b16 %v4392
    %v4941 = vunpack.c.h.b16 %v4392
    %v4942 = vunpack.c.l.b16 %v4393
    %v4943 = vunpack.c.h.b16 %v4393
    %v4944 = vunpack.c.l.b16 %v4394
    %v4945 = vunpack.c.h.b16 %v4394
    %v4946 = vunpack.c.l.b16 %v4395
    %v4947 = vunpack.c.h.b16 %v4395
    %v4948 = vunpack.c.l.b16 %v4396
    %v4949 = vunpack.c.h.b16 %v4396
    %v4950 = vunpack.c.l.b16 %v4397
    %v4951 = vunpack.c.h.b16 %v4397
    %v4952 = vunpack.c.l.b16 %v4398
    %v4953 = vunpack.c.h.b16 %v4398
    %v4954 = vunpack.c.l.b16 %v4399
    %v4955 = vunpack.c.h.b16 %v4399
    %v4956 = vunpack.c.l.b16 %v4400
    %v4957 = vunpack.c.h.b16 %v4400
    %v4958 = vunpack.c.l.b16 %v4401
    %v4959 = vunpack.c.h.b16 %v4401
    %v4960 = vunpack.c.l.b16 %v4402
    %v4961 = vunpack.c.h.b16 %v4402
    %v4962 = vunpack.c.l.b16 %v4403
    %v4963 = vunpack.c.h.b16 %v4403
    %v4964 = vunpack.c.l.b16 %v4404
    %v4965 = vunpack.c.h.b16 %v4404
    %v4966 = vunpack.c.l.b16 %v4405
    %v4967 = vunpack.c.h.b16 %v4405
    %v4968 = vunpack.c.l.b16 %v4406
    %v4969 = vunpack.c.h.b16 %v4406
    %v4970 = vunpack.c.l.b16 %v4407
    %v4971 = vunpack.c.h.b16 %v4407
    %v4972 = vunpack.c.l.b16 %v4408
    %v4973 = vunpack.c.h.b16 %v4408
    %v4974 = vunpack.c.l.b16 %v4409
    %v4975 = vunpack.c.h.b16 %v4409
    %v4976 = vunpack.c.l.b16 %v4410
    %v4977 = vunpack.c.h.b16 %v4410
    %v4978 = vunpack.c.l.b16 %v4411
    %v4979 = vunpack.c.h.b16 %v4411
    %v4980 = vunpack.c.l.b16 %v4412
    %v4981 = vunpack.c.h.b16 %v4412
    %v4982 = vunpack.c.l.b16 %v4413
    %v4983 = vunpack.c.h.b16 %v4413
    %v4984 = vunpack.c.l.b16 %v4414
    %v4985 = vunpack.c.h.b16 %v4414
    %v4986 = vunpack.c.l.b16 %v4415
    %v4987 = vunpack.c.h.b16 %v4415
    %v4988 = vunpack.c.l.b16 %v4416
    %v4989 = vunpack.c.h.b16 %v4416
    %v4990 = vunpack.c.l.b16 %v4417
    %v4991 = vunpack.c.h.b16 %v4417
    %v4992 = vunpack.c.l.b16 %v4418
    %v4993 = vunpack.c.h.b16 %v4418
    %v4994 = vunpack.c.l.b16 %v4419
    %v4995 = vunpack.c.h.b16 %v4419
    %v4996 = vunpack.c.l.b16 %v4420
    %v4997 = vunpack.c.h.b16 %v4420
    %v4998 = vunpack.c.l.b16 %v4421
    %v4999 = vunpack.c.h.b16 %v4421
    %v5000 = vunpack.c.l.b16 %v4422
    %v5001 = vunpack.c.h.b16 %v4422
    %v5002 = vunpack.c.l.b16 %v4423
    %v5003 = vunpack.c.h.b16 %v4423
    %v5004 = vunpack.c.l.b16 %v4424
    %v5005 = vunpack.c.h.b16 %v4424
    %v5006 = vunpack.c.l.b16 %v4425
    %v5007 = vunpack.c.h.b16 %v4425
    %v5008 = vunpack.c.l.b16 %v4426
    %v5009 = vunpack.c.h.b16 %v4426
    %v5010 = vunpack.c.l.b16 %v4427
    %v5011 = vunpack.c.h.b16 %v4427
    %v5012 = vunpack.c.l.b16 %v4428
    %v5013 = vunpack.c.h.b16 %v4428
    %v5014 = vunpack.c.l.b16 %v4429
    %v5015 = vunpack.c.h.b16 %v4429
    %v5016 = vpack.c.b16 %v4636, %v4632
    %v5017 = vpack.c.b16 %v4637, %v4633
    %v5018 = vpack.c.b16 %v4638, %v4634
    %v5019 = vpack.c.b16 %v4639, %v4635
    %v5020 = vpack.c.b16 %v4644, %v4640
    %v5021 = vpack.c.b16 %v4645, %v4641
    %v5022 = vpack.c.b16 %v4646, %v4642
    %v5023 = vpack.c.b16 %v4647, %v4643
    %v5024 = vpack.c.b16 %v4652, %v4648
    %v5025 = vpack.c.b16 %v4653, %v4649
    %v5026 = vpack.c.b16 %v4654, %v4650
    %v5027 = vpack.c.b16 %v4655, %v4651
    %v5028 = vpack.c.b16 %v4660, %v4656
    %v5029 = vpack.c.b16 %v4661, %v4657
    %v5030 = vpack.c.b16 %v4662, %v4658
    %v5031 = vpack.c.b16 %v4663, %v4659
    %v5032 = vpack.c.b16 %v4668, %v4664
    %v5033 = vpack.c.b16 %v4669, %v4665
    %v5034 = vpack.c.b16 %v4670, %v4666
    %v5035 = vpack.c.b16 %v4671, %v4667
    %v5036 = vpack.c.b16 %v4676, %v4672
    %v5037 = vpack.c.b16 %v4677, %v4673
    %v5038 = vpack.c.b16 %v4678, %v4674
    %v5039 = vpack.c.b16 %v4679, %v4675
    %v5040 = vpack.c.b16 %v4684, %v4680
    %v5041 = vpack.c.b16 %v4685, %v4681
    %v5042 = vpack.c.b16 %v4686, %v4682
    %v5043 = vpack.c.b16 %v4687, %v4683
    %v5044 = vpack.c.b16 %v4692, %v4688
    %v5045 = vpack.c.b16 %v4693, %v4689
    %v5046 = vpack.c.b16 %v4694, %v4690
    %v5047 = vpack.c.b16 %v4695, %v4691
    %v5048 = vpack.c.b16 %v4700, %v4696
    %v5049 = vpack.c.b16 %v4701, %v4697
    %v5050 = vpack.c.b16 %v4702, %v4698
    %v5051 = vpack.c.b16 %v4703, %v4699
    %v5052 = vpack.c.b16 %v4708, %v4704
    %v5053 = vpack.c.b16 %v4709, %v4705
    %v5054 = vpack.c.b16 %v4710, %v4706
    %v5055 = vpack.c.b16 %v4711, %v4707
    %v5056 = vpack.c.b16 %v4716, %v4712
    %v5057 = vpack.c.b16 %v4717, %v4713
    %v5058 = vpack.c.b16 %v4718, %v4714
    %v5059 = vpack.c.b16 %v4719, %v4715
    %v5060 = vpack.c.b16 %v4724, %v4720
    %v5061 = vpack.c.b16 %v4725, %v4721
    %v5062 = vpack.c.b16 %v4726, %v4722
    %v5063 = vpack.c.b16 %v4727, %v4723
    %v5064 = vpack.c.b16 %v4732, %v4728
    %v5065 = vpack.c.b16 %v4733, %v4729
    %v5066 = vpack.c.b16 %v4734, %v4730
    %v5067 = vpack.c.b16 %v4735, %v4731
    %v5068 = vpack.c.b16 %v4740, %v4736
    %v5069 = vpack.c.b16 %v4741, %v4737
    %v5070 = vpack.c.b16 %v4742, %v4738
    %v5071 = vpack.c.b16 %v4743, %v4739
    %v5072 = vpack.c.b16 %v4748, %v4744
    %v5073 = vpack.c.b16 %v4749, %v4745
    %v5074 = vpack.c.b16 %v4750, %v4746
    %v5075 = vpack.c.b16 %v4751, %v4747
    %v5076 = vpack.c.b16 %v4756, %v4752
    %v5077 = vpack.c.b16 %v4757, %v4753
    %v5078 = vpack.c.b16 %v4758, %v4754
    %v5079 = vpack.c.b16 %v4759, %v4755
    %v5080 = vpack.c.b16 %v4764, %v4760
    %v5081 = vpack.c.b16 %v4765, %v4761
    %v5082 = vpack.c.b16 %v4766, %v4762
    %v5083 = vpack.c.b16 %v4767, %v4763
    %v5084 = vpack.c.b16 %v4772, %v4768
    %v5085 = vpack.c.b16 %v4773, %v4769
    %v5086 = vpack.c.b16 %v4774, %v4770
    %v5087 = vpack.c.b16 %v4775, %v4771
    %v5088 = vpack.c.b16 %v4780, %v4776
    %v5089 = vpack.c.b16 %v4781, %v4777
    %v5090 = vpack.c.b16 %v4782, %v4778
    %v5091 = vpack.c.b16 %v4783, %v4779
    %v5092 = vpack.c.b16 %v4788, %v4784
    %v5093 = vpack.c.b16 %v4789, %v4785
    %v5094 = vpack.c.b16 %v4790, %v4786
    %v5095 = vpack.c.b16 %v4791, %v4787
    %v5096 = vpack.c.b16 %v4796, %v4792
    %v5097 = vpack.c.b16 %v4797, %v4793
    %v5098 = vpack.c.b16 %v4798, %v4794
    %v5099 = vpack.c.b16 %v4799, %v4795
    %v5100 = vpack.c.b16 %v4804, %v4800
    %v5101 = vpack.c.b16 %v4805, %v4801
    %v5102 = vpack.c.b16 %v4806, %v4802
    %v5103 = vpack.c.b16 %v4807, %v4803
    %v5104 = vpack.c.b16 %v4812, %v4808
    %v5105 = vpack.c.b16 %v4813, %v4809
    %v5106 = vpack.c.b16 %v4814, %v4810
    %v5107 = vpack.c.b16 %v4815, %v4811
    %v5108 = vpack.c.b16 %v4820, %v4816
    %v5109 = vpack.c.b16 %v4821, %v4817
    %v5110 = vpack.c.b16 %v4822, %v4818
    %v5111 = vpack.c.b16 %v4823, %v4819
    %v5112 = vpack.c.b16 %v4828, %v4824
    %v5113 = vpack.c.b16 %v4829, %v4825
    %v5114 = vpack.c.b16 %v4830, %v4826
    %v5115 = vpack.c.b16 %v4831, %v4827
    %v5116 = vpack.c.b16 %v4836, %v4832
    %v5117 = vpack.c.b16 %v4837, %v4833
    %v5118 = vpack.c.b16 %v4838, %v4834
    %v5119 = vpack.c.b16 %v4839, %v4835
    %v5120 = vpack.c.b16 %v4844, %v4840
    %v5121 = vpack.c.b16 %v4845, %v4841
    %v5122 = vpack.c.b16 %v4846, %v4842
    %v5123 = vpack.c.b16 %v4847, %v4843
    %v5124 = vpack.c.b16 %v4852, %v4848
    %v5125 = vpack.c.b16 %v4853, %v4849
    %v5126 = vpack.c.b16 %v4854, %v4850
    %v5127 = vpack.c.b16 %v4855, %v4851
    %v5128 = vpack.c.b16 %v4860, %v4856
    %v5129 = vpack.c.b16 %v4861, %v4857
    %v5130 = vpack.c.b16 %v4862, %v4858
    %v5131 = vpack.c.b16 %v4863, %v4859
    %v5132 = vpack.c.b16 %v4868, %v4864
    %v5133 = vpack.c.b16 %v4869, %v4865
    %v5134 = vpack.c.b16 %v4870, %v4866
    %v5135 = vpack.c.b16 %v4871, %v4867
    %v5136 = vpack.c.b16 %v4876, %v4872
    %v5137 = vpack.c.b16 %v4877, %v4873
    %v5138 = vpack.c.b16 %v4878, %v4874
    %v5139 = vpack.c.b16 %v4879, %v4875
    %v5140 = vpack.c.b16 %v4884, %v4880
    %v5141 = vpack.c.b16 %v4885, %v4881
    %v5142 = vpack.c.b16 %v4886, %v4882
    %v5143 = vpack.c.b16 %v4887, %v4883
    %v5144 = vpack.c.b16 %v4892, %v4888
    %v5145 = vpack.c.b16 %v4893, %v4889
    %v5146 = vpack.c.b16 %v4894, %v4890
    %v5147 = vpack.c.b16 %v4895, %v4891
    %v5148 = vpack.c.b16 %v4900, %v4896
    %v5149 = vpack.c.b16 %v4901, %v4897
    %v5150 = vpack.c.b16 %v4902, %v4898
    %v5151 = vpack.c.b16 %v4903, %v4899
    %v5152 = vpack.c.b16 %v4908, %v4904
    %v5153 = vpack.c.b16 %v4909, %v4905
    %v5154 = vpack.c.b16 %v4910, %v4906
    %v5155 = vpack.c.b16 %v4911, %v4907
    %v5156 = vpack.c.b16 %v4916, %v4912
    %v5157 = vpack.c.b16 %v4917, %v4913
    %v5158 = vpack.c.b16 %v4918, %v4914
    %v5159 = vpack.c.b16 %v4919, %v4915
    %v5160 = vpack.c.b16 %v4924, %v4920
    %v5161 = vpack.c.b16 %v4925, %v4921
    %v5162 = vpack.c.b16 %v4926, %v4922
    %v5163 = vpack.c.b16 %v4927, %v4923
    %v5164 = vpack.c.b16 %v4932, %v4928
    %v5165 = vpack.c.b16 %v4933, %v4929
    %v5166 = vpack.c.b16 %v4934, %v4930
    %v5167 = vpack.c.b16 %v4935, %v4931
    %v5168 = vpack.c.b16 %v4940, %v4936
    %v5169 = vpack.c.b16 %v4941, %v4937
    %v5170 = vpack.c.b16 %v4942, %v4938
    %v5171 = vpack.c.b16 %v4943, %v4939
    %v5172 = vpack.c.b16 %v4948, %v4944
    %v5173 = vpack.c.b16 %v4949, %v4945
    %v5174 = vpack.c.b16 %v4950, %v4946
    %v5175 = vpack.c.b16 %v4951, %v4947
    %v5176 = vpack.c.b16 %v4956, %v4952
    %v5177 = vpack.c.b16 %v4957, %v4953
    %v5178 = vpack.c.b16 %v4958, %v4954
    %v5179 = vpack.c.b16 %v4959, %v4955
    %v5180 = vpack.c.b16 %v4964, %v4960
    %v5181 = vpack.c.b16 %v4965, %v4961
    %v5182 = vpack.c.b16 %v4966, %v4962
    %v5183 = vpack.c.b16 %v4967, %v4963
    %v5184 = vpack.c.b16 %v4972, %v4968
    %v5185 = vpack.c.b16 %v4973, %v4969
    %v5186 = vpack.c.b16 %v4974, %v4970
    %v5187 = vpack.c.b16 %v4975, %v4971
    %v5188 = vpack.c.b16 %v4980, %v4976
    %v5189 = vpack.c.b16 %v4981, %v4977
    %v5190 = vpack.c.b16 %v4982, %v4978
    %v5191 = vpack.c.b16 %v4983, %v4979
    %v5192 = vpack.c.b16 %v4988, %v4984
    %v5193 = vpack.c.b16 %v4989, %v4985
    %v5194 = vpack.c.b16 %v4990, %v4986
    %v5195 = vpack.c.b16 %v4991, %v4987
    %v5196 = vpack.c.b16 %v4996, %v4992
    %v5197 = vpack.c.b16 %v4997, %v4993
    %v5198 = vpack.c.b16 %v4998, %v4994
    %v5199 = vpack.c.b16 %v4999, %v4995
    %v5200 = vpack.c.b16 %v5004, %v5000
    %v5201 = vpack.c.b16 %v5005, %v5001
    %v5202 = vpack.c.b16 %v5006, %v5002
    %v5203 = vpack.c.b16 %v5007, %v5003
    %v5204 = vpack.c.b16 %v5012, %v5008
    %v5205 = vpack.c.b16 %v5013, %v5009
    %v5206 = vpack.c.b16 %v5014, %v5010
    %v5207 = vpack.c.b16 %v5015, %v5011
    %5400 = vmatpush.bf16.msra.mxu0 %v5044
    %5401 = vmatpush.bf16.msra.mxu0 %v5040
    %5402 = vmatpush.bf16.msra.mxu0 %v5036
    %5403 = vmatpush.bf16.msra.mxu0 %v5032
    %5404 = vmatpush.bf16.msra.mxu0 %v5028
    %5405 = vmatpush.bf16.msra.mxu0 %v5024
    %5406 = vmatpush.bf16.msra.mxu0 %v5020
    %5407 = vmatpush.bf16.msra.mxu0 %v5016
    %5408 = vmatmul.bf16.gmra.mxu0 %v4232
    %v5409 = vpop.f32.mrf.mxu0
    %v5410 = vadd.f32 %v4432, %v5409
    %v5411 = vpop.f32.mrf.mxu0
    %5412 = vdwg.mxu0
    %5413 = vmatpush.bf16.msra.mxu0 %v5076
    %5414 = vmatpush.bf16.msra.mxu0 %v5072
    %5415 = vmatpush.bf16.msra.mxu0 %v5068
    %5416 = vmatpush.bf16.msra.mxu0 %v5064
    %5417 = vmatpush.bf16.msra.mxu0 %v5060
    %5418 = vmatpush.bf16.msra.mxu0 %v5056
    %5419 = vmatpush.bf16.msra.mxu0 %v5052
    %5420 = vmatpush.bf16.msra.mxu0 %v5048
    %5421 = vmatmul.bf16.gmra.mxu0 %v4233
    %v5422 = vpop.f32.mrf.mxu0
    %v5423 = vadd.f32 %v5410, %v5422
    %v5424 = vpop.f32.mrf.mxu0
    %5425 = vdwg.mxu0
    %5426 = vmatpush.bf16.msra.mxu0 %v5108
    %5427 = vmatpush.bf16.msra.mxu0 %v5104
    %5428 = vmatpush.bf16.msra.mxu0 %v5100
    %5429 = vmatpush.bf16.msra.mxu0 %v5096
    %5430 = vmatpush.bf16.msra.mxu0 %v5092
    %5431 = vmatpush.bf16.msra.mxu0 %v5088
    %5432 = vmatpush.bf16.msra.mxu0 %v5084
    %5433 = vmatpush.bf16.msra.mxu0 %v5080
    %5434 = vmatmul.bf16.gmra.mxu0 %v4234
    %v5435 = vpop.f32.mrf.mxu0
    %v5436 = vadd.f32 %v5423, %v5435
    %v5437 = vpop.f32.mrf.mxu0
    %5438 = vdwg.mxu0
    %5439 = vmatpush.bf16.msra.mxu0 %v5140
    %5440 = vmatpush.bf16.msra.mxu0 %v5136
    %5441 = vmatpush.bf16.msra.mxu0 %v5132
    %5442 = vmatpush.bf16.msra.mxu0 %v5128
    %5443 = vmatpush.bf16.msra.mxu0 %v5124
    %5444 = vmatpush.bf16.msra.mxu0 %v5120
    %5445 = vmatpush.bf16.msra.mxu0 %v5116
    %5446 = vmatpush.bf16.msra.mxu0 %v5112
    %5447 = vmatmul.bf16.gmra.mxu0 %v4235
    %v5448 = vpop.f32.mrf.mxu0
    %v5449 = vadd.f32 %v5436, %v5448
    %v5450 = vpop.f32.mrf.mxu0
    %5451 = vdwg.mxu0
    %5452 = vmatpush.bf16.msra.mxu0 %v5172
    %5453 = vmatpush.bf16.msra.mxu0 %v5168
    %5454 = vmatpush.bf16.msra.mxu0 %v5164
    %5455 = vmatpush.bf16.msra.mxu0 %v5160
    %5456 = vmatpush.bf16.msra.mxu0 %v5156
    %5457 = vmatpush.bf16.msra.mxu0 %v5152
    %5458 = vmatpush.bf16.msra.mxu0 %v5148
    %5459 = vmatpush.bf16.msra.mxu0 %v5144
    %5460 = vmatmul.bf16.gmra.mxu0 %v4236
    %v5461 = vpop.f32.mrf.mxu0
    %v5462 = vadd.f32 %v5449, %v5461
    %v5463 = vpop.f32.mrf.mxu0
    %5464 = vdwg.mxu0
    %5465 = vmatpush.bf16.msra.mxu0 %v5204
    %5466 = vmatpush.bf16.msra.mxu0 %v5200
    %5467 = vmatpush.bf16.msra.mxu0 %v5196
    %5468 = vmatpush.bf16.msra.mxu0 %v5192
    %5469 = vmatpush.bf16.msra.mxu0 %v5188
    %5470 = vmatpush.bf16.msra.mxu0 %v5184
    %5471 = vmatpush.bf16.msra.mxu0 %v5180
    %5472 = vmatpush.bf16.msra.mxu0 %v5176
    %5473 = vmatmul.bf16.gmra.mxu0 %v4237
    %v5474 = vpop.f32.mrf.mxu0
    %v5475 = vadd.f32 %v5462, %v5474
    %v5476 = vpop.f32.mrf.mxu0
    %5477 = vdwg.mxu0
    %5478 = vmatpush.bf16.msra.mxu0 %v5045
    %5479 = vmatpush.bf16.msra.mxu0 %v5041
    %5480 = vmatpush.bf16.msra.mxu0 %v5037
    %5481 = vmatpush.bf16.msra.mxu0 %v5033
    %5482 = vmatpush.bf16.msra.mxu0 %v5029
    %5483 = vmatpush.bf16.msra.mxu0 %v5025
    %5484 = vmatpush.bf16.msra.mxu0 %v5021
    %5485 = vmatpush.bf16.msra.mxu0 %v5017
    %5486 = vmatmul.bf16.gmra.mxu0 %v4232
    %v5487 = vpop.f32.mrf.mxu0
    %v5488 = vadd.f32 %v4433, %v5487
    %v5489 = vpop.f32.mrf.mxu0
    %5490 = vdwg.mxu0
    %5491 = vmatpush.bf16.msra.mxu0 %v5077
    %5492 = vmatpush.bf16.msra.mxu0 %v5073
    %5493 = vmatpush.bf16.msra.mxu0 %v5069
    %5494 = vmatpush.bf16.msra.mxu0 %v5065
    %5495 = vmatpush.bf16.msra.mxu0 %v5061
    %5496 = vmatpush.bf16.msra.mxu0 %v5057
    %5497 = vmatpush.bf16.msra.mxu0 %v5053
    %5498 = vmatpush.bf16.msra.mxu0 %v5049
    %5499 = vmatmul.bf16.gmra.mxu0 %v4233
    %v5500 = vpop.f32.mrf.mxu0
    %v5501 = vadd.f32 %v5488, %v5500
    %v5502 = vpop.f32.mrf.mxu0
    %5503 = vdwg.mxu0
    %5504 = vmatpush.bf16.msra.mxu0 %v5109
    %5505 = vmatpush.bf16.msra.mxu0 %v5105
    %5506 = vmatpush.bf16.msra.mxu0 %v5101
    %5507 = vmatpush.bf16.msra.mxu0 %v5097
    %5508 = vmatpush.bf16.msra.mxu0 %v5093
    %5509 = vmatpush.bf16.msra.mxu0 %v5089
    %5510 = vmatpush.bf16.msra.mxu0 %v5085
    %5511 = vmatpush.bf16.msra.mxu0 %v5081
    %5512 = vmatmul.bf16.gmra.mxu0 %v4234
    %v5513 = vpop.f32.mrf.mxu0
    %v5514 = vadd.f32 %v5501, %v5513
    %v5515 = vpop.f32.mrf.mxu0
    %5516 = vdwg.mxu0
    %5517 = vmatpush.bf16.msra.mxu0 %v5141
    %5518 = vmatpush.bf16.msra.mxu0 %v5137
    %5519 = vmatpush.bf16.msra.mxu0 %v5133
    %5520 = vmatpush.bf16.msra.mxu0 %v5129
    %5521 = vmatpush.bf16.msra.mxu0 %v5125
    %5522 = vmatpush.bf16.msra.mxu0 %v5121
    %5523 = vmatpush.bf16.msra.mxu0 %v5117
    %5524 = vmatpush.bf16.msra.mxu0 %v5113
    %5525 = vmatmul.bf16.gmra.mxu0 %v4235
    %v5526 = vpop.f32.mrf.mxu0
    %v5527 = vadd.f32 %v5514, %v5526
    %v5528 = vpop.f32.mrf.mxu0
    %5529 = vdwg.mxu0
    %5530 = vmatpush.bf16.msra.mxu0 %v5173
    %5531 = vmatpush.bf16.msra.mxu0 %v5169
    %5532 = vmatpush.bf16.msra.mxu0 %v5165
    %5533 = vmatpush.bf16.msra.mxu0 %v5161
    %5534 = vmatpush.bf16.msra.mxu0 %v5157
    %5535 = vmatpush.bf16.msra.mxu0 %v5153
    %5536 = vmatpush.bf16.msra.mxu0 %v5149
    %5537 = vmatpush.bf16.msra.mxu0 %v5145
    %5538 = vmatmul.bf16.gmra.mxu0 %v4236
    %v5539 = vpop.f32.mrf.mxu0
    %v5540 = vadd.f32 %v5527, %v5539
    %v5541 = vpop.f32.mrf.mxu0
    %5542 = vdwg.mxu0
    %5543 = vmatpush.bf16.msra.mxu0 %v5205
    %5544 = vmatpush.bf16.msra.mxu0 %v5201
    %5545 = vmatpush.bf16.msra.mxu0 %v5197
    %5546 = vmatpush.bf16.msra.mxu0 %v5193
    %5547 = vmatpush.bf16.msra.mxu0 %v5189
    %5548 = vmatpush.bf16.msra.mxu0 %v5185
    %5549 = vmatpush.bf16.msra.mxu0 %v5181
    %5550 = vmatpush.bf16.msra.mxu0 %v5177
    %5551 = vmatmul.bf16.gmra.mxu0 %v4237
    %v5552 = vpop.f32.mrf.mxu0
    %v5553 = vadd.f32 %v5540, %v5552
    %v5554 = vpop.f32.mrf.mxu0
    %5555 = vdwg.mxu0
    %5556 = vmatpush.bf16.msra.mxu0 %v5046
    %5557 = vmatpush.bf16.msra.mxu0 %v5042
    %5558 = vmatpush.bf16.msra.mxu0 %v5038
    %5559 = vmatpush.bf16.msra.mxu0 %v5034
    %5560 = vmatpush.bf16.msra.mxu0 %v5030
    %5561 = vmatpush.bf16.msra.mxu0 %v5026
    %5562 = vmatpush.bf16.msra.mxu0 %v5022
    %5563 = vmatpush.bf16.msra.mxu0 %v5018
    %5564 = vmatmul.bf16.gmra.mxu0 %v4232
    %v5565 = vpop.f32.mrf.mxu0
    %v5566 = vadd.f32 %v4434, %v5565
    %v5567 = vpop.f32.mrf.mxu0
    %5568 = vdwg.mxu0
    %5569 = vmatpush.bf16.msra.mxu0 %v5078
    %5570 = vmatpush.bf16.msra.mxu0 %v5074
    %5571 = vmatpush.bf16.msra.mxu0 %v5070
    %5572 = vmatpush.bf16.msra.mxu0 %v5066
    %5573 = vmatpush.bf16.msra.mxu0 %v5062
    %5574 = vmatpush.bf16.msra.mxu0 %v5058
    %5575 = vmatpush.bf16.msra.mxu0 %v5054
    %5576 = vmatpush.bf16.msra.mxu0 %v5050
    %5577 = vmatmul.bf16.gmra.mxu0 %v4233
    %v5578 = vpop.f32.mrf.mxu0
    %v5579 = vadd.f32 %v5566, %v5578
    %v5580 = vpop.f32.mrf.mxu0
    %5581 = vdwg.mxu0
    %5582 = vmatpush.bf16.msra.mxu0 %v5110
    %5583 = vmatpush.bf16.msra.mxu0 %v5106
    %5584 = vmatpush.bf16.msra.mxu0 %v5102
    %5585 = vmatpush.bf16.msra.mxu0 %v5098
    %5586 = vmatpush.bf16.msra.mxu0 %v5094
    %5587 = vmatpush.bf16.msra.mxu0 %v5090
    %5588 = vmatpush.bf16.msra.mxu0 %v5086
    %5589 = vmatpush.bf16.msra.mxu0 %v5082
    %5590 = vmatmul.bf16.gmra.mxu0 %v4234
    %v5591 = vpop.f32.mrf.mxu0
    %v5592 = vadd.f32 %v5579, %v5591
    %v5593 = vpop.f32.mrf.mxu0
    %5594 = vdwg.mxu0
    %5595 = vmatpush.bf16.msra.mxu0 %v5142
    %5596 = vmatpush.bf16.msra.mxu0 %v5138
    %5597 = vmatpush.bf16.msra.mxu0 %v5134
    %5598 = vmatpush.bf16.msra.mxu0 %v5130
    %5599 = vmatpush.bf16.msra.mxu0 %v5126
    %5600 = vmatpush.bf16.msra.mxu0 %v5122
    %5601 = vmatpush.bf16.msra.mxu0 %v5118
    %5602 = vmatpush.bf16.msra.mxu0 %v5114
    %5603 = vmatmul.bf16.gmra.mxu0 %v4235
    %v5604 = vpop.f32.mrf.mxu0
    %v5605 = vadd.f32 %v5592, %v5604
    %v5606 = vpop.f32.mrf.mxu0
    %5607 = vdwg.mxu0
    %5608 = vmatpush.bf16.msra.mxu0 %v5174
    %5609 = vmatpush.bf16.msra.mxu0 %v5170
    %5610 = vmatpush.bf16.msra.mxu0 %v5166
    %5611 = vmatpush.bf16.msra.mxu0 %v5162
    %5612 = vmatpush.bf16.msra.mxu0 %v5158
    %5613 = vmatpush.bf16.msra.mxu0 %v5154
    %5614 = vmatpush.bf16.msra.mxu0 %v5150
    %5615 = vmatpush.bf16.msra.mxu0 %v5146
    %5616 = vmatmul.bf16.gmra.mxu0 %v4236
    %v5617 = vpop.f32.mrf.mxu0
    %v5618 = vadd.f32 %v5605, %v5617
    %v5619 = vpop.f32.mrf.mxu0
    %5620 = vdwg.mxu0
    %5621 = vmatpush.bf16.msra.mxu0 %v5206
    %5622 = vmatpush.bf16.msra.mxu0 %v5202
    %5623 = vmatpush.bf16.msra.mxu0 %v5198
    %5624 = vmatpush.bf16.msra.mxu0 %v5194
    %5625 = vmatpush.bf16.msra.mxu0 %v5190
    %5626 = vmatpush.bf16.msra.mxu0 %v5186
    %5627 = vmatpush.bf16.msra.mxu0 %v5182
    %5628 = vmatpush.bf16.msra.mxu0 %v5178
    %5629 = vmatmul.bf16.gmra.mxu0 %v4237
    %v5630 = vpop.f32.mrf.mxu0
    %v5631 = vadd.f32 %v5618, %v5630
    %v5632 = vpop.f32.mrf.mxu0
    %5633 = vdwg.mxu0
    %5634 = vmatpush.bf16.msra.mxu0 %v5047
    %5635 = vmatpush.bf16.msra.mxu0 %v5043
    %5636 = vmatpush.bf16.msra.mxu0 %v5039
    %5637 = vmatpush.bf16.msra.mxu0 %v5035
    %5638 = vmatpush.bf16.msra.mxu0 %v5031
    %5639 = vmatpush.bf16.msra.mxu0 %v5027
    %5640 = vmatpush.bf16.msra.mxu0 %v5023
    %5641 = vmatpush.bf16.msra.mxu0 %v5019
    %5642 = vmatmul.bf16.gmra.mxu0 %v4232
    %v5643 = vpop.f32.mrf.mxu0
    %v5644 = vadd.f32 %v4435, %v5643
    %v5645 = vpop.f32.mrf.mxu0
    %5646 = vdwg.mxu0
    %5647 = vmatpush.bf16.msra.mxu0 %v5079
    %5648 = vmatpush.bf16.msra.mxu0 %v5075
    %5649 = vmatpush.bf16.msra.mxu0 %v5071
    %5650 = vmatpush.bf16.msra.mxu0 %v5067
    %5651 = vmatpush.bf16.msra.mxu0 %v5063
    %5652 = vmatpush.bf16.msra.mxu0 %v5059
    %5653 = vmatpush.bf16.msra.mxu0 %v5055
    %5654 = vmatpush.bf16.msra.mxu0 %v5051
    %5655 = vmatmul.bf16.gmra.mxu0 %v4233
    %v5656 = vpop.f32.mrf.mxu0
    %v5657 = vadd.f32 %v5644, %v5656
    %v5658 = vpop.f32.mrf.mxu0
    %5659 = vdwg.mxu0
    %5660 = vmatpush.bf16.msra.mxu0 %v5111
    %5661 = vmatpush.bf16.msra.mxu0 %v5107
    %5662 = vmatpush.bf16.msra.mxu0 %v5103
    %5663 = vmatpush.bf16.msra.mxu0 %v5099
    %5664 = vmatpush.bf16.msra.mxu0 %v5095
    %5665 = vmatpush.bf16.msra.mxu0 %v5091
    %5666 = vmatpush.bf16.msra.mxu0 %v5087
    %5667 = vmatpush.bf16.msra.mxu0 %v5083
    %5668 = vmatmul.bf16.gmra.mxu0 %v4234
    %v5669 = vpop.f32.mrf.mxu0
    %v5670 = vadd.f32 %v5657, %v5669
    %v5671 = vpop.f32.mrf.mxu0
    %5672 = vdwg.mxu0
    %5673 = vmatpush.bf16.msra.mxu0 %v5143
    %5674 = vmatpush.bf16.msra.mxu0 %v5139
    %5675 = vmatpush.bf16.msra.mxu0 %v5135
    %5676 = vmatpush.bf16.msra.mxu0 %v5131
    %5677 = vmatpush.bf16.msra.mxu0 %v5127
    %5678 = vmatpush.bf16.msra.mxu0 %v5123
    %5679 = vmatpush.bf16.msra.mxu0 %v5119
    %5680 = vmatpush.bf16.msra.mxu0 %v5115
    %5681 = vmatmul.bf16.gmra.mxu0 %v4235
    %v5682 = vpop.f32.mrf.mxu0
    %v5683 = vadd.f32 %v5670, %v5682
    %v5684 = vpop.f32.mrf.mxu0
    %5685 = vdwg.mxu0
    %5686 = vmatpush.bf16.msra.mxu0 %v5175
    %5687 = vmatpush.bf16.msra.mxu0 %v5171
    %5688 = vmatpush.bf16.msra.mxu0 %v5167
    %5689 = vmatpush.bf16.msra.mxu0 %v5163
    %5690 = vmatpush.bf16.msra.mxu0 %v5159
    %5691 = vmatpush.bf16.msra.mxu0 %v5155
    %5692 = vmatpush.bf16.msra.mxu0 %v5151
    %5693 = vmatpush.bf16.msra.mxu0 %v5147
    %5694 = vmatmul.bf16.gmra.mxu0 %v4236
    %v5695 = vpop.f32.mrf.mxu0
    %v5696 = vadd.f32 %v5683, %v5695
    %v5697 = vpop.f32.mrf.mxu0
    %5698 = vdwg.mxu0
    %5699 = vmatpush.bf16.msra.mxu0 %v5207
    %5700 = vmatpush.bf16.msra.mxu0 %v5203
    %5701 = vmatpush.bf16.msra.mxu0 %v5199
    %5702 = vmatpush.bf16.msra.mxu0 %v5195
    %5703 = vmatpush.bf16.msra.mxu0 %v5191
    %5704 = vmatpush.bf16.msra.mxu0 %v5187
    %5705 = vmatpush.bf16.msra.mxu0 %v5183
    %5706 = vmatpush.bf16.msra.mxu0 %v5179
    %5707 = vmatmul.bf16.gmra.mxu0 %v4237
    %v5708 = vpop.f32.mrf.mxu0
    %v5709 = vadd.f32 %v5696, %v5708
    %v5710 = vpop.f32.mrf.mxu0
    %5711 = vdwg.mxu0
    %v5712 = vmax.f32 %v5475, 0.0
    %v5713 = vmax.f32 %v5553, 0.0
    %v5714 = vmax.f32 %v5631, 0.0
    %v5715 = vmax.f32 %v5709, 0.0
    %v5716 = vld [vmem:[#allocation11] sm:$0xff]
    %v5717 = vpack.c.bf16 %v5716, %v5716
    %v5718 = vld [vmem:[#allocation18] sm:$0xff]
    %v5719 = vld [vmem:[#allocation18 + $0x8] sm:$0xff]
    %v5720 = vld [vmem:[#allocation18 + $0x10] sm:$0xff]
    %v5721 = vld [vmem:[#allocation18 + $0x18] sm:$0xff]
    %v5722 = vld [vmem:[#allocation20] sm:$0x3]
    %v5724 = vperm.slane %v5722, 0
    %v5725 = vperm.slane %v5722, 1
    %v5732 = vunpack.c.l.b16 %v5718
    %v5733 = vunpack.c.h.b16 %v5718
    %v5734 = vunpack.c.l.b16 %v5719
    %v5735 = vunpack.c.h.b16 %v5719
    %v5736 = vunpack.c.l.b16 %v5720
    %v5737 = vunpack.c.h.b16 %v5720
    %v5738 = vunpack.c.l.b16 %v5721
    %v5739 = vunpack.c.h.b16 %v5721
    %v5740 = vpack.c.b16 %v5734, %v5732
    %v5741 = vpack.c.b16 %v5735, %v5733
    %v5742 = vpack.c.b16 %v5738, %v5736
    %v5743 = vpack.c.b16 %v5739, %v5737
    %vm5748 = vcmask 261120
    %v5750 = vsel %vm5748, %v5717, 0
    %5752 = vmatpush.bf16.msra.mxu0 0
    %5753 = vmatpush.bf16.msra.mxu0 0
    %5754 = vmatpush.bf16.msra.mxu0 0
    %5755 = vmatpush.bf16.msra.mxu0 0
    %5756 = vmatpush.bf16.msra.mxu0 0
    %5757 = vmatpush.bf16.msra.mxu0 0
    %5758 = vmatpush.bf16.msra.mxu0 %v5742
    %5759 = vmatpush.bf16.msra.mxu0 %v5740
    %5760 = vmatmul.bf16.gmra.mxu0 %v5750
    %v5761 = vpop.f32.mrf.mxu0
    %v5762 = vadd.f32 %v5724, %v5761
    %v5763 = vpop.f32.mrf.mxu0
    %5764 = vdwg.mxu0
    %5765 = vmatpush.bf16.msra.mxu0 0
    %5766 = vmatpush.bf16.msra.mxu0 0
    %5767 = vmatpush.bf16.msra.mxu0 0
    %5768 = vmatpush.bf16.msra.mxu0 0
    %5769 = vmatpush.bf16.msra.mxu0 0
    %5770 = vmatpush.bf16.msra.mxu0 0
    %5771 = vmatpush.bf16.msra.mxu0 %v5743
    %5772 = vmatpush.bf16.msra.mxu0 %v5741
    %5773 = vmatmul.bf16.gmra.mxu0 %v5750
    %v5774 = vpop.f32.mrf.mxu0
    %v5775 = vadd.f32 %v5725, %v5774
    %v5776 = vpop.f32.mrf.mxu0
    %5777 = vdwg.mxu0
    %v5778 = vmax.f32 %v5762, 0.0
    %v5779 = vmax.f32 %v5775, 0.0
    %s5780 = smul.u32 4, 160
    %s5781 = smul.u32 %s5780, 4
    %s5782 = sshll.u32 %s5781, 4
    %5783 = dma.done [#allocation5], %s5782
    %v5784 = vpack.c.bf16 %v4222, %v4222
    %v5785 = vpack.c.bf16 %v4223, %v4223
    %v5786 = vpack.c.bf16 %v4224, %v4224
    %v5787 = vpack.c.bf16 %v4225, %v4225
    %v5788 = vld [vmem:[#allocation2] sm:$0xff]
    %v5789 = vld [vmem:[#allocation2 + $0x8] sm:$0xff]
    %v5790 = vld [vmem:[#allocation2 + $0x10] sm:$0xff]
    %v5791 = vld [vmem:[#allocation2 + $0x18] sm:$0xff]
    %v5792 = vld [vmem:[#allocation2 + $0x20] sm:$0xff]
    %v5793 = vld [vmem:[#allocation2 + $0x28] sm:$0xff]
    %v5794 = vld [vmem:[#allocation2 + $0x30] sm:$0xff]
    %v5795 = vld [vmem:[#allocation2 + $0x38] sm:$0xff]
    %v5796 = vld [vmem:[#allocation2 + $0x40] sm:$0xff]
    %v5797 = vld [vmem:[#allocation2 + $0x48] sm:$0xff]
    %v5798 = vld [vmem:[#allocation2 + $0x50] sm:$0xff]
    %v5799 = vld [vmem:[#allocation2 + $0x58] sm:$0xff]
    %v5800 = vld [vmem:[#allocation2 + $0x60] sm:$0xff]
    %v5801 = vld [vmem:[#allocation2 + $0x68] sm:$0xff]
    %v5802 = vld [vmem:[#allocation2 + $0x70] sm:$0xff]
    %v5803 = vld [vmem:[#allocation2 + $0x78] sm:$0xff]
    %v5804 = vld [vmem:[#allocation2 + $0x80] sm:$0xff]
    %v5805 = vld [vmem:[#allocation2 + $0x88] sm:$0xff]
    %v5806 = vld [vmem:[#allocation2 + $0x90] sm:$0xff]
    %v5807 = vld [vmem:[#allocation2 + $0x98] sm:$0xff]
    %v5808 = vld [vmem:[#allocation2 + $0xa0] sm:$0xff]
    %v5809 = vld [vmem:[#allocation2 + $0xa8] sm:$0xff]
    %v5810 = vld [vmem:[#allocation2 + $0xb0] sm:$0xff]
    %v5811 = vld [vmem:[#allocation2 + $0xb8] sm:$0xff]
    %v5812 = vld [vmem:[#allocation2 + $0xc0] sm:$0xff]
    %v5813 = vld [vmem:[#allocation2 + $0xc8] sm:$0xff]
    %v5814 = vld [vmem:[#allocation2 + $0xd0] sm:$0xff]
    %v5815 = vld [vmem:[#allocation2 + $0xd8] sm:$0xff]
    %v5816 = vld [vmem:[#allocation2 + $0xe0] sm:$0xff]
    %v5817 = vld [vmem:[#allocation2 + $0xe8] sm:$0xff]
    %v5818 = vld [vmem:[#allocation2 + $0xf0] sm:$0xff]
    %v5819 = vld [vmem:[#allocation2 + $0xf8] sm:$0xff]
    %v5820 = vld [vmem:[#allocation2 + $0x100] sm:$0xff]
    %v5821 = vld [vmem:[#allocation2 + $0x108] sm:$0xff]
    %v5822 = vld [vmem:[#allocation2 + $0x110] sm:$0xff]
    %v5823 = vld [vmem:[#allocation2 + $0x118] sm:$0xff]
    %v5824 = vld [vmem:[#allocation2 + $0x120] sm:$0xff]
    %v5825 = vld [vmem:[#allocation2 + $0x128] sm:$0xff]
    %v5826 = vld [vmem:[#allocation2 + $0x130] sm:$0xff]
    %v5827 = vld [vmem:[#allocation2 + $0x138] sm:$0xff]
    %v5828 = vld [vmem:[#allocation2 + $0x140] sm:$0xff]
    %v5829 = vld [vmem:[#allocation2 + $0x148] sm:$0xff]
    %v5830 = vld [vmem:[#allocation2 + $0x150] sm:$0xff]
    %v5831 = vld [vmem:[#allocation2 + $0x158] sm:$0xff]
    %v5832 = vld [vmem:[#allocation2 + $0x160] sm:$0xff]
    %v5833 = vld [vmem:[#allocation2 + $0x168] sm:$0xff]
    %v5834 = vld [vmem:[#allocation2 + $0x170] sm:$0xff]
    %v5835 = vld [vmem:[#allocation2 + $0x178] sm:$0xff]
    %v5836 = vld [vmem:[#allocation2 + $0x180] sm:$0xff]
    %v5837 = vld [vmem:[#allocation2 + $0x188] sm:$0xff]
    %v5838 = vld [vmem:[#allocation2 + $0x190] sm:$0xff]
    %v5839 = vld [vmem:[#allocation2 + $0x198] sm:$0xff]
    %v5840 = vld [vmem:[#allocation2 + $0x1a0] sm:$0xff]
    %v5841 = vld [vmem:[#allocation2 + $0x1a8] sm:$0xff]
    %v5842 = vld [vmem:[#allocation2 + $0x1b0] sm:$0xff]
    %v5843 = vld [vmem:[#allocation2 + $0x1b8] sm:$0xff]
    %v5844 = vld [vmem:[#allocation2 + $0x1c0] sm:$0xff]
    %v5845 = vld [vmem:[#allocation2 + $0x1c8] sm:$0xff]
    %v5846 = vld [vmem:[#allocation2 + $0x1d0] sm:$0xff]
    %v5847 = vld [vmem:[#allocation2 + $0x1d8] sm:$0xff]
    %v5848 = vld [vmem:[#allocation2 + $0x1e0] sm:$0xff]
    %v5849 = vld [vmem:[#allocation2 + $0x1e8] sm:$0xff]
    %v5850 = vld [vmem:[#allocation2 + $0x1f0] sm:$0xff]
    %v5851 = vld [vmem:[#allocation2 + $0x1f8] sm:$0xff]
    %v5852 = vld [vmem:[#allocation2 + $0x200] sm:$0xff]
    %v5853 = vld [vmem:[#allocation2 + $0x208] sm:$0xff]
    %v5854 = vld [vmem:[#allocation2 + $0x210] sm:$0xff]
    %v5855 = vld [vmem:[#allocation2 + $0x218] sm:$0xff]
    %v5856 = vld [vmem:[#allocation2 + $0x220] sm:$0xff]
    %v5857 = vld [vmem:[#allocation2 + $0x228] sm:$0xff]
    %v5858 = vld [vmem:[#allocation2 + $0x230] sm:$0xff]
    %v5859 = vld [vmem:[#allocation2 + $0x238] sm:$0xff]
    %v5860 = vld [vmem:[#allocation2 + $0x240] sm:$0xff]
    %v5861 = vld [vmem:[#allocation2 + $0x248] sm:$0xff]
    %v5862 = vld [vmem:[#allocation2 + $0x250] sm:$0xff]
    %v5863 = vld [vmem:[#allocation2 + $0x258] sm:$0xff]
    %v5864 = vld [vmem:[#allocation2 + $0x260] sm:$0xff]
    %v5865 = vld [vmem:[#allocation2 + $0x268] sm:$0xff]
    %v5866 = vld [vmem:[#allocation2 + $0x270] sm:$0xff]
    %v5867 = vld [vmem:[#allocation2 + $0x278] sm:$0xff]
    %v5868 = vld [vmem:[#allocation2 + $0x280] sm:$0xff]
    %v5869 = vld [vmem:[#allocation2 + $0x288] sm:$0xff]
    %v5870 = vld [vmem:[#allocation2 + $0x290] sm:$0xff]
    %v5871 = vld [vmem:[#allocation2 + $0x298] sm:$0xff]
    %v5872 = vld [vmem:[#allocation2 + $0x2a0] sm:$0xff]
    %v5873 = vld [vmem:[#allocation2 + $0x2a8] sm:$0xff]
    %v5874 = vld [vmem:[#allocation2 + $0x2b0] sm:$0xff]
    %v5875 = vld [vmem:[#allocation2 + $0x2b8] sm:$0xff]
    %v5876 = vld [vmem:[#allocation2 + $0x2c0] sm:$0xff]
    %v5877 = vld [vmem:[#allocation2 + $0x2c8] sm:$0xff]
    %v5878 = vld [vmem:[#allocation2 + $0x2d0] sm:$0xff]
    %v5879 = vld [vmem:[#allocation2 + $0x2d8] sm:$0xff]
    %v5880 = vld [vmem:[#allocation2 + $0x2e0] sm:$0xff]
    %v5881 = vld [vmem:[#allocation2 + $0x2e8] sm:$0xff]
    %v5882 = vld [vmem:[#allocation2 + $0x2f0] sm:$0xff]
    %v5883 = vld [vmem:[#allocation2 + $0x2f8] sm:$0xff]
    %v5884 = vld [vmem:[#allocation2 + $0x300] sm:$0xff]
    %v5885 = vld [vmem:[#allocation2 + $0x308] sm:$0xff]
    %v5886 = vld [vmem:[#allocation2 + $0x310] sm:$0xff]
    %v5887 = vld [vmem:[#allocation2 + $0x318] sm:$0xff]
    %v5888 = vld [vmem:[#allocation2 + $0x320] sm:$0xff]
    %v5889 = vld [vmem:[#allocation2 + $0x328] sm:$0xff]
    %v5890 = vld [vmem:[#allocation2 + $0x330] sm:$0xff]
    %v5891 = vld [vmem:[#allocation2 + $0x338] sm:$0xff]
    %v5892 = vld [vmem:[#allocation2 + $0x340] sm:$0xff]
    %v5893 = vld [vmem:[#allocation2 + $0x348] sm:$0xff]
    %v5894 = vld [vmem:[#allocation2 + $0x350] sm:$0xff]
    %v5895 = vld [vmem:[#allocation2 + $0x358] sm:$0xff]
    %v5896 = vld [vmem:[#allocation2 + $0x360] sm:$0xff]
    %v5897 = vld [vmem:[#allocation2 + $0x368] sm:$0xff]
    %v5898 = vld [vmem:[#allocation2 + $0x370] sm:$0xff]
    %v5899 = vld [vmem:[#allocation2 + $0x378] sm:$0xff]
    %v5900 = vld [vmem:[#allocation2 + $0x380] sm:$0xff]
    %v5901 = vld [vmem:[#allocation2 + $0x388] sm:$0xff]
    %v5902 = vld [vmem:[#allocation2 + $0x390] sm:$0xff]
    %v5903 = vld [vmem:[#allocation2 + $0x398] sm:$0xff]
    %v5904 = vld [vmem:[#allocation2 + $0x3a0] sm:$0xff]
    %v5905 = vld [vmem:[#allocation2 + $0x3a8] sm:$0xff]
    %v5906 = vld [vmem:[#allocation2 + $0x3b0] sm:$0xff]
    %v5907 = vld [vmem:[#allocation2 + $0x3b8] sm:$0xff]
    %v5908 = vld [vmem:[#allocation2 + $0x3c0] sm:$0xff]
    %v5909 = vld [vmem:[#allocation2 + $0x3c8] sm:$0xff]
    %v5910 = vld [vmem:[#allocation2 + $0x3d0] sm:$0xff]
    %v5911 = vld [vmem:[#allocation2 + $0x3d8] sm:$0xff]
    %v5912 = vld [vmem:[#allocation2 + $0x3e0] sm:$0xff]
    %v5913 = vld [vmem:[#allocation2 + $0x3e8] sm:$0xff]
    %v5914 = vld [vmem:[#allocation2 + $0x3f0] sm:$0xff]
    %v5915 = vld [vmem:[#allocation2 + $0x3f8] sm:$0xff]
    %v5916 = vpack.c.bf16 %v5712, %v5712
    %v5917 = vpack.c.bf16 %v5713, %v5713
    %v5918 = vpack.c.bf16 %v5714, %v5714
    %v5919 = vpack.c.bf16 %v5715, %v5715
    %v5920 = vld [vmem:[#allocation2 + $0x400] sm:$0xff]
    %v5921 = vld [vmem:[#allocation2 + $0x408] sm:$0xff]
    %v5922 = vld [vmem:[#allocation2 + $0x410] sm:$0xff]
    %v5923 = vld [vmem:[#allocation2 + $0x418] sm:$0xff]
    %v5924 = vld [vmem:[#allocation2 + $0x420] sm:$0xff]
    %v5925 = vld [vmem:[#allocation2 + $0x428] sm:$0xff]
    %v5926 = vld [vmem:[#allocation2 + $0x430] sm:$0xff]
    %v5927 = vld [vmem:[#allocation2 + $0x438] sm:$0xff]
    %v5928 = vld [vmem:[#allocation2 + $0x440] sm:$0xff]
    %v5929 = vld [vmem:[#allocation2 + $0x448] sm:$0xff]
    %v5930 = vld [vmem:[#allocation2 + $0x450] sm:$0xff]
    %v5931 = vld [vmem:[#allocation2 + $0x458] sm:$0xff]
    %v5932 = vld [vmem:[#allocation2 + $0x460] sm:$0xff]
    %v5933 = vld [vmem:[#allocation2 + $0x468] sm:$0xff]
    %v5934 = vld [vmem:[#allocation2 + $0x470] sm:$0xff]
    %v5935 = vld [vmem:[#allocation2 + $0x478] sm:$0xff]
    %v5936 = vld [vmem:[#allocation2 + $0x480] sm:$0xff]
    %v5937 = vld [vmem:[#allocation2 + $0x488] sm:$0xff]
    %v5938 = vld [vmem:[#allocation2 + $0x490] sm:$0xff]
    %v5939 = vld [vmem:[#allocation2 + $0x498] sm:$0xff]
    %v5940 = vld [vmem:[#allocation2 + $0x4a0] sm:$0xff]
    %v5941 = vld [vmem:[#allocation2 + $0x4a8] sm:$0xff]
    %v5942 = vld [vmem:[#allocation2 + $0x4b0] sm:$0xff]
    %v5943 = vld [vmem:[#allocation2 + $0x4b8] sm:$0xff]
    %v5944 = vld [vmem:[#allocation2 + $0x4c0] sm:$0xff]
    %v5945 = vld [vmem:[#allocation2 + $0x4c8] sm:$0xff]
    %v5946 = vld [vmem:[#allocation2 + $0x4d0] sm:$0xff]
    %v5947 = vld [vmem:[#allocation2 + $0x4d8] sm:$0xff]
    %v5948 = vld [vmem:[#allocation2 + $0x4e0] sm:$0xff]
    %v5949 = vld [vmem:[#allocation2 + $0x4e8] sm:$0xff]
    %v5950 = vld [vmem:[#allocation2 + $0x4f0] sm:$0xff]
    %v5951 = vld [vmem:[#allocation2 + $0x4f8] sm:$0xff]
    %v5952 = vld [vmem:[#allocation2 + $0x500] sm:$0xff]
    %v5953 = vld [vmem:[#allocation2 + $0x508] sm:$0xff]
    %v5954 = vld [vmem:[#allocation2 + $0x510] sm:$0xff]
    %v5955 = vld [vmem:[#allocation2 + $0x518] sm:$0xff]
    %v5956 = vld [vmem:[#allocation2 + $0x520] sm:$0xff]
    %v5957 = vld [vmem:[#allocation2 + $0x528] sm:$0xff]
    %v5958 = vld [vmem:[#allocation2 + $0x530] sm:$0xff]
    %v5959 = vld [vmem:[#allocation2 + $0x538] sm:$0xff]
    %v5960 = vld [vmem:[#allocation2 + $0x540] sm:$0xff]
    %v5961 = vld [vmem:[#allocation2 + $0x548] sm:$0xff]
    %v5962 = vld [vmem:[#allocation2 + $0x550] sm:$0xff]
    %v5963 = vld [vmem:[#allocation2 + $0x558] sm:$0xff]
    %v5964 = vld [vmem:[#allocation2 + $0x560] sm:$0xff]
    %v5965 = vld [vmem:[#allocation2 + $0x568] sm:$0xff]
    %v5966 = vld [vmem:[#allocation2 + $0x570] sm:$0xff]
    %v5967 = vld [vmem:[#allocation2 + $0x578] sm:$0xff]
    %v5968 = vld [vmem:[#allocation2 + $0x580] sm:$0xff]
    %v5969 = vld [vmem:[#allocation2 + $0x588] sm:$0xff]
    %v5970 = vld [vmem:[#allocation2 + $0x590] sm:$0xff]
    %v5971 = vld [vmem:[#allocation2 + $0x598] sm:$0xff]
    %v5972 = vld [vmem:[#allocation2 + $0x5a0] sm:$0xff]
    %v5973 = vld [vmem:[#allocation2 + $0x5a8] sm:$0xff]
    %v5974 = vld [vmem:[#allocation2 + $0x5b0] sm:$0xff]
    %v5975 = vld [vmem:[#allocation2 + $0x5b8] sm:$0xff]
    %v5976 = vld [vmem:[#allocation2 + $0x5c0] sm:$0xff]
    %v5977 = vld [vmem:[#allocation2 + $0x5c8] sm:$0xff]
    %v5978 = vld [vmem:[#allocation2 + $0x5d0] sm:$0xff]
    %v5979 = vld [vmem:[#allocation2 + $0x5d8] sm:$0xff]
    %v5980 = vld [vmem:[#allocation2 + $0x5e0] sm:$0xff]
    %v5981 = vld [vmem:[#allocation2 + $0x5e8] sm:$0xff]
    %v5982 = vld [vmem:[#allocation2 + $0x5f0] sm:$0xff]
    %v5983 = vld [vmem:[#allocation2 + $0x5f8] sm:$0xff]
    %v5984 = vld [vmem:[#allocation2 + $0x600] sm:$0xff]
    %v5985 = vld [vmem:[#allocation2 + $0x608] sm:$0xff]
    %v5986 = vld [vmem:[#allocation2 + $0x610] sm:$0xff]
    %v5987 = vld [vmem:[#allocation2 + $0x618] sm:$0xff]
    %v5988 = vld [vmem:[#allocation2 + $0x620] sm:$0xff]
    %v5989 = vld [vmem:[#allocation2 + $0x628] sm:$0xff]
    %v5990 = vld [vmem:[#allocation2 + $0x630] sm:$0xff]
    %v5991 = vld [vmem:[#allocation2 + $0x638] sm:$0xff]
    %v5992 = vld [vmem:[#allocation2 + $0x640] sm:$0xff]
    %v5993 = vld [vmem:[#allocation2 + $0x648] sm:$0xff]
    %v5994 = vld [vmem:[#allocation2 + $0x650] sm:$0xff]
    %v5995 = vld [vmem:[#allocation2 + $0x658] sm:$0xff]
    %v5996 = vld [vmem:[#allocation2 + $0x660] sm:$0xff]
    %v5997 = vld [vmem:[#allocation2 + $0x668] sm:$0xff]
    %v5998 = vld [vmem:[#allocation2 + $0x670] sm:$0xff]
    %v5999 = vld [vmem:[#allocation2 + $0x678] sm:$0xff]
    %v6000 = vld [vmem:[#allocation2 + $0x680] sm:$0xff]
    %v6001 = vld [vmem:[#allocation2 + $0x688] sm:$0xff]
    %v6002 = vld [vmem:[#allocation2 + $0x690] sm:$0xff]
    %v6003 = vld [vmem:[#allocation2 + $0x698] sm:$0xff]
    %v6004 = vld [vmem:[#allocation2 + $0x6a0] sm:$0xff]
    %v6005 = vld [vmem:[#allocation2 + $0x6a8] sm:$0xff]
    %v6006 = vld [vmem:[#allocation2 + $0x6b0] sm:$0xff]
    %v6007 = vld [vmem:[#allocation2 + $0x6b8] sm:$0xff]
    %v6008 = vld [vmem:[#allocation2 + $0x6c0] sm:$0xff]
    %v6009 = vld [vmem:[#allocation2 + $0x6c8] sm:$0xff]
    %v6010 = vld [vmem:[#allocation2 + $0x6d0] sm:$0xff]
    %v6011 = vld [vmem:[#allocation2 + $0x6d8] sm:$0xff]
    %v6012 = vld [vmem:[#allocation2 + $0x6e0] sm:$0xff]
    %v6013 = vld [vmem:[#allocation2 + $0x6e8] sm:$0xff]
    %v6014 = vld [vmem:[#allocation2 + $0x6f0] sm:$0xff]
    %v6015 = vld [vmem:[#allocation2 + $0x6f8] sm:$0xff]
    %v6016 = vld [vmem:[#allocation2 + $0x700] sm:$0xff]
    %v6017 = vld [vmem:[#allocation2 + $0x708] sm:$0xff]
    %v6018 = vld [vmem:[#allocation2 + $0x710] sm:$0xff]
    %v6019 = vld [vmem:[#allocation2 + $0x718] sm:$0xff]
    %v6020 = vld [vmem:[#allocation2 + $0x720] sm:$0xff]
    %v6021 = vld [vmem:[#allocation2 + $0x728] sm:$0xff]
    %v6022 = vld [vmem:[#allocation2 + $0x730] sm:$0xff]
    %v6023 = vld [vmem:[#allocation2 + $0x738] sm:$0xff]
    %v6024 = vld [vmem:[#allocation2 + $0x740] sm:$0xff]
    %v6025 = vld [vmem:[#allocation2 + $0x748] sm:$0xff]
    %v6026 = vld [vmem:[#allocation2 + $0x750] sm:$0xff]
    %v6027 = vld [vmem:[#allocation2 + $0x758] sm:$0xff]
    %v6028 = vld [vmem:[#allocation2 + $0x760] sm:$0xff]
    %v6029 = vld [vmem:[#allocation2 + $0x768] sm:$0xff]
    %v6030 = vld [vmem:[#allocation2 + $0x770] sm:$0xff]
    %v6031 = vld [vmem:[#allocation2 + $0x778] sm:$0xff]
    %v6032 = vld [vmem:[#allocation2 + $0x780] sm:$0xff]
    %v6033 = vld [vmem:[#allocation2 + $0x788] sm:$0xff]
    %v6034 = vld [vmem:[#allocation2 + $0x790] sm:$0xff]
    %v6035 = vld [vmem:[#allocation2 + $0x798] sm:$0xff]
    %v6036 = vld [vmem:[#allocation2 + $0x7a0] sm:$0xff]
    %v6037 = vld [vmem:[#allocation2 + $0x7a8] sm:$0xff]
    %v6038 = vld [vmem:[#allocation2 + $0x7b0] sm:$0xff]
    %v6039 = vld [vmem:[#allocation2 + $0x7b8] sm:$0xff]
    %v6040 = vld [vmem:[#allocation2 + $0x7c0] sm:$0xff]
    %v6041 = vld [vmem:[#allocation2 + $0x7c8] sm:$0xff]
    %v6042 = vld [vmem:[#allocation2 + $0x7d0] sm:$0xff]
    %v6043 = vld [vmem:[#allocation2 + $0x7d8] sm:$0xff]
    %v6044 = vld [vmem:[#allocation2 + $0x7e0] sm:$0xff]
    %v6045 = vld [vmem:[#allocation2 + $0x7e8] sm:$0xff]
    %v6046 = vld [vmem:[#allocation2 + $0x7f0] sm:$0xff]
    %v6047 = vld [vmem:[#allocation2 + $0x7f8] sm:$0xff]
    %v6176 = vunpack.c.l.b16 %v5920
    %v6177 = vunpack.c.h.b16 %v5920
    %v6178 = vunpack.c.l.b16 %v5921
    %v6179 = vunpack.c.h.b16 %v5921
    %v6180 = vunpack.c.l.b16 %v5922
    %v6181 = vunpack.c.h.b16 %v5922
    %v6182 = vunpack.c.l.b16 %v5923
    %v6183 = vunpack.c.h.b16 %v5923
    %v6184 = vunpack.c.l.b16 %v5924
    %v6185 = vunpack.c.h.b16 %v5924
    %v6186 = vunpack.c.l.b16 %v5925
    %v6187 = vunpack.c.h.b16 %v5925
    %v6188 = vunpack.c.l.b16 %v5926
    %v6189 = vunpack.c.h.b16 %v5926
    %v6190 = vunpack.c.l.b16 %v5927
    %v6191 = vunpack.c.h.b16 %v5927
    %v6192 = vunpack.c.l.b16 %v5928
    %v6193 = vunpack.c.h.b16 %v5928
    %v6194 = vunpack.c.l.b16 %v5929
    %v6195 = vunpack.c.h.b16 %v5929
    %v6196 = vunpack.c.l.b16 %v5930
    %v6197 = vunpack.c.h.b16 %v5930
    %v6198 = vunpack.c.l.b16 %v5931
    %v6199 = vunpack.c.h.b16 %v5931
    %v6200 = vunpack.c.l.b16 %v5932
    %v6201 = vunpack.c.h.b16 %v5932
    %v6202 = vunpack.c.l.b16 %v5933
    %v6203 = vunpack.c.h.b16 %v5933
    %v6204 = vunpack.c.l.b16 %v5934
    %v6205 = vunpack.c.h.b16 %v5934
    %v6206 = vunpack.c.l.b16 %v5935
    %v6207 = vunpack.c.h.b16 %v5935
    %v6208 = vunpack.c.l.b16 %v5936
    %v6209 = vunpack.c.h.b16 %v5936
    %v6210 = vunpack.c.l.b16 %v5937
    %v6211 = vunpack.c.h.b16 %v5937
    %v6212 = vunpack.c.l.b16 %v5938
    %v6213 = vunpack.c.h.b16 %v5938
    %v6214 = vunpack.c.l.b16 %v5939
    %v6215 = vunpack.c.h.b16 %v5939
    %v6216 = vunpack.c.l.b16 %v5940
    %v6217 = vunpack.c.h.b16 %v5940
    %v6218 = vunpack.c.l.b16 %v5941
    %v6219 = vunpack.c.h.b16 %v5941
    %v6220 = vunpack.c.l.b16 %v5942
    %v6221 = vunpack.c.h.b16 %v5942
    %v6222 = vunpack.c.l.b16 %v5943
    %v6223 = vunpack.c.h.b16 %v5943
    %v6224 = vunpack.c.l.b16 %v5944
    %v6225 = vunpack.c.h.b16 %v5944
    %v6226 = vunpack.c.l.b16 %v5945
    %v6227 = vunpack.c.h.b16 %v5945
    %v6228 = vunpack.c.l.b16 %v5946
    %v6229 = vunpack.c.h.b16 %v5946
    %v6230 = vunpack.c.l.b16 %v5947
    %v6231 = vunpack.c.h.b16 %v5947
    %v6232 = vunpack.c.l.b16 %v5948
    %v6233 = vunpack.c.h.b16 %v5948
    %v6234 = vunpack.c.l.b16 %v5949
    %v6235 = vunpack.c.h.b16 %v5949
    %v6236 = vunpack.c.l.b16 %v5950
    %v6237 = vunpack.c.h.b16 %v5950
    %v6238 = vunpack.c.l.b16 %v5951
    %v6239 = vunpack.c.h.b16 %v5951
    %v6240 = vunpack.c.l.b16 %v5952
    %v6241 = vunpack.c.h.b16 %v5952
    %v6242 = vunpack.c.l.b16 %v5953
    %v6243 = vunpack.c.h.b16 %v5953
    %v6244 = vunpack.c.l.b16 %v5954
    %v6245 = vunpack.c.h.b16 %v5954
    %v6246 = vunpack.c.l.b16 %v5955
    %v6247 = vunpack.c.h.b16 %v5955
    %v6248 = vunpack.c.l.b16 %v5956
    %v6249 = vunpack.c.h.b16 %v5956
    %v6250 = vunpack.c.l.b16 %v5957
    %v6251 = vunpack.c.h.b16 %v5957
    %v6252 = vunpack.c.l.b16 %v5958
    %v6253 = vunpack.c.h.b16 %v5958
    %v6254 = vunpack.c.l.b16 %v5959
    %v6255 = vunpack.c.h.b16 %v5959
    %v6256 = vunpack.c.l.b16 %v5960
    %v6257 = vunpack.c.h.b16 %v5960
    %v6258 = vunpack.c.l.b16 %v5961
    %v6259 = vunpack.c.h.b16 %v5961
    %v6260 = vunpack.c.l.b16 %v5962
    %v6261 = vunpack.c.h.b16 %v5962
    %v6262 = vunpack.c.l.b16 %v5963
    %v6263 = vunpack.c.h.b16 %v5963
    %v6264 = vunpack.c.l.b16 %v5964
    %v6265 = vunpack.c.h.b16 %v5964
    %v6266 = vunpack.c.l.b16 %v5965
    %v6267 = vunpack.c.h.b16 %v5965
    %v6268 = vunpack.c.l.b16 %v5966
    %v6269 = vunpack.c.h.b16 %v5966
    %v6270 = vunpack.c.l.b16 %v5967
    %v6271 = vunpack.c.h.b16 %v5967
    %v6272 = vunpack.c.l.b16 %v5968
    %v6273 = vunpack.c.h.b16 %v5968
    %v6274 = vunpack.c.l.b16 %v5969
    %v6275 = vunpack.c.h.b16 %v5969
    %v6276 = vunpack.c.l.b16 %v5970
    %v6277 = vunpack.c.h.b16 %v5970
    %v6278 = vunpack.c.l.b16 %v5971
    %v6279 = vunpack.c.h.b16 %v5971
    %v6280 = vunpack.c.l.b16 %v5972
    %v6281 = vunpack.c.h.b16 %v5972
    %v6282 = vunpack.c.l.b16 %v5973
    %v6283 = vunpack.c.h.b16 %v5973
    %v6284 = vunpack.c.l.b16 %v5974
    %v6285 = vunpack.c.h.b16 %v5974
    %v6286 = vunpack.c.l.b16 %v5975
    %v6287 = vunpack.c.h.b16 %v5975
    %v6288 = vunpack.c.l.b16 %v5976
    %v6289 = vunpack.c.h.b16 %v5976
    %v6290 = vunpack.c.l.b16 %v5977
    %v6291 = vunpack.c.h.b16 %v5977
    %v6292 = vunpack.c.l.b16 %v5978
    %v6293 = vunpack.c.h.b16 %v5978
    %v6294 = vunpack.c.l.b16 %v5979
    %v6295 = vunpack.c.h.b16 %v5979
    %v6296 = vunpack.c.l.b16 %v5980
    %v6297 = vunpack.c.h.b16 %v5980
    %v6298 = vunpack.c.l.b16 %v5981
    %v6299 = vunpack.c.h.b16 %v5981
    %v6300 = vunpack.c.l.b16 %v5982
    %v6301 = vunpack.c.h.b16 %v5982
    %v6302 = vunpack.c.l.b16 %v5983
    %v6303 = vunpack.c.h.b16 %v5983
    %v6304 = vunpack.c.l.b16 %v5984
    %v6305 = vunpack.c.h.b16 %v5984
    %v6306 = vunpack.c.l.b16 %v5985
    %v6307 = vunpack.c.h.b16 %v5985
    %v6308 = vunpack.c.l.b16 %v5986
    %v6309 = vunpack.c.h.b16 %v5986
    %v6310 = vunpack.c.l.b16 %v5987
    %v6311 = vunpack.c.h.b16 %v5987
    %v6312 = vunpack.c.l.b16 %v5988
    %v6313 = vunpack.c.h.b16 %v5988
    %v6314 = vunpack.c.l.b16 %v5989
    %v6315 = vunpack.c.h.b16 %v5989
    %v6316 = vunpack.c.l.b16 %v5990
    %v6317 = vunpack.c.h.b16 %v5990
    %v6318 = vunpack.c.l.b16 %v5991
    %v6319 = vunpack.c.h.b16 %v5991
    %v6320 = vunpack.c.l.b16 %v5992
    %v6321 = vunpack.c.h.b16 %v5992
    %v6322 = vunpack.c.l.b16 %v5993
    %v6323 = vunpack.c.h.b16 %v5993
    %v6324 = vunpack.c.l.b16 %v5994
    %v6325 = vunpack.c.h.b16 %v5994
    %v6326 = vunpack.c.l.b16 %v5995
    %v6327 = vunpack.c.h.b16 %v5995
    %v6328 = vunpack.c.l.b16 %v5996
    %v6329 = vunpack.c.h.b16 %v5996
    %v6330 = vunpack.c.l.b16 %v5997
    %v6331 = vunpack.c.h.b16 %v5997
    %v6332 = vunpack.c.l.b16 %v5998
    %v6333 = vunpack.c.h.b16 %v5998
    %v6334 = vunpack.c.l.b16 %v5999
    %v6335 = vunpack.c.h.b16 %v5999
    %v6336 = vunpack.c.l.b16 %v6000
    %v6337 = vunpack.c.h.b16 %v6000
    %v6338 = vunpack.c.l.b16 %v6001
    %v6339 = vunpack.c.h.b16 %v6001
    %v6340 = vunpack.c.l.b16 %v6002
    %v6341 = vunpack.c.h.b16 %v6002
    %v6342 = vunpack.c.l.b16 %v6003
    %v6343 = vunpack.c.h.b16 %v6003
    %v6344 = vunpack.c.l.b16 %v6004
    %v6345 = vunpack.c.h.b16 %v6004
    %v6346 = vunpack.c.l.b16 %v6005
    %v6347 = vunpack.c.h.b16 %v6005
    %v6348 = vunpack.c.l.b16 %v6006
    %v6349 = vunpack.c.h.b16 %v6006
    %v6350 = vunpack.c.l.b16 %v6007
    %v6351 = vunpack.c.h.b16 %v6007
    %v6352 = vunpack.c.l.b16 %v6008
    %v6353 = vunpack.c.h.b16 %v6008
    %v6354 = vunpack.c.l.b16 %v6009
    %v6355 = vunpack.c.h.b16 %v6009
    %v6356 = vunpack.c.l.b16 %v6010
    %v6357 = vunpack.c.h.b16 %v6010
    %v6358 = vunpack.c.l.b16 %v6011
    %v6359 = vunpack.c.h.b16 %v6011
    %v6360 = vunpack.c.l.b16 %v6012
    %v6361 = vunpack.c.h.b16 %v6012
    %v6362 = vunpack.c.l.b16 %v6013
    %v6363 = vunpack.c.h.b16 %v6013
    %v6364 = vunpack.c.l.b16 %v6014
    %v6365 = vunpack.c.h.b16 %v6014
    %v6366 = vunpack.c.l.b16 %v6015
    %v6367 = vunpack.c.h.b16 %v6015
    %v6368 = vunpack.c.l.b16 %v6016
    %v6369 = vunpack.c.h.b16 %v6016
    %v6370 = vunpack.c.l.b16 %v6017
    %v6371 = vunpack.c.h.b16 %v6017
    %v6372 = vunpack.c.l.b16 %v6018
    %v6373 = vunpack.c.h.b16 %v6018
    %v6374 = vunpack.c.l.b16 %v6019
    %v6375 = vunpack.c.h.b16 %v6019
    %v6376 = vunpack.c.l.b16 %v6020
    %v6377 = vunpack.c.h.b16 %v6020
    %v6378 = vunpack.c.l.b16 %v6021
    %v6379 = vunpack.c.h.b16 %v6021
    %v6380 = vunpack.c.l.b16 %v6022
    %v6381 = vunpack.c.h.b16 %v6022
    %v6382 = vunpack.c.l.b16 %v6023
    %v6383 = vunpack.c.h.b16 %v6023
    %v6384 = vunpack.c.l.b16 %v6024
    %v6385 = vunpack.c.h.b16 %v6024
    %v6386 = vunpack.c.l.b16 %v6025
    %v6387 = vunpack.c.h.b16 %v6025
    %v6388 = vunpack.c.l.b16 %v6026
    %v6389 = vunpack.c.h.b16 %v6026
    %v6390 = vunpack.c.l.b16 %v6027
    %v6391 = vunpack.c.h.b16 %v6027
    %v6392 = vunpack.c.l.b16 %v6028
    %v6393 = vunpack.c.h.b16 %v6028
    %v6394 = vunpack.c.l.b16 %v6029
    %v6395 = vunpack.c.h.b16 %v6029
    %v6396 = vunpack.c.l.b16 %v6030
    %v6397 = vunpack.c.h.b16 %v6030
    %v6398 = vunpack.c.l.b16 %v6031
    %v6399 = vunpack.c.h.b16 %v6031
    %v6400 = vunpack.c.l.b16 %v6032
    %v6401 = vunpack.c.h.b16 %v6032
    %v6402 = vunpack.c.l.b16 %v6033
    %v6403 = vunpack.c.h.b16 %v6033
    %v6404 = vunpack.c.l.b16 %v6034
    %v6405 = vunpack.c.h.b16 %v6034
    %v6406 = vunpack.c.l.b16 %v6035
    %v6407 = vunpack.c.h.b16 %v6035
    %v6408 = vunpack.c.l.b16 %v6036
    %v6409 = vunpack.c.h.b16 %v6036
    %v6410 = vunpack.c.l.b16 %v6037
    %v6411 = vunpack.c.h.b16 %v6037
    %v6412 = vunpack.c.l.b16 %v6038
    %v6413 = vunpack.c.h.b16 %v6038
    %v6414 = vunpack.c.l.b16 %v6039
    %v6415 = vunpack.c.h.b16 %v6039
    %v6416 = vunpack.c.l.b16 %v6040
    %v6417 = vunpack.c.h.b16 %v6040
    %v6418 = vunpack.c.l.b16 %v6041
    %v6419 = vunpack.c.h.b16 %v6041
    %v6420 = vunpack.c.l.b16 %v6042
    %v6421 = vunpack.c.h.b16 %v6042
    %v6422 = vunpack.c.l.b16 %v6043
    %v6423 = vunpack.c.h.b16 %v6043
    %v6424 = vunpack.c.l.b16 %v6044
    %v6425 = vunpack.c.h.b16 %v6044
    %v6426 = vunpack.c.l.b16 %v6045
    %v6427 = vunpack.c.h.b16 %v6045
    %v6428 = vunpack.c.l.b16 %v6046
    %v6429 = vunpack.c.h.b16 %v6046
    %v6430 = vunpack.c.l.b16 %v6047
    %v6431 = vunpack.c.h.b16 %v6047
    %v6432 = vpack.c.b16 %v6180, %v6176
    %v6433 = vpack.c.b16 %v6181, %v6177
    %v6434 = vpack.c.b16 %v6182, %v6178
    %v6435 = vpack.c.b16 %v6183, %v6179
    %v6436 = vpack.c.b16 %v6188, %v6184
    %v6437 = vpack.c.b16 %v6189, %v6185
    %v6438 = vpack.c.b16 %v6190, %v6186
    %v6439 = vpack.c.b16 %v6191, %v6187
    %v6440 = vpack.c.b16 %v6196, %v6192
    %v6441 = vpack.c.b16 %v6197, %v6193
    %v6442 = vpack.c.b16 %v6198, %v6194
    %v6443 = vpack.c.b16 %v6199, %v6195
    %v6444 = vpack.c.b16 %v6204, %v6200
    %v6445 = vpack.c.b16 %v6205, %v6201
    %v6446 = vpack.c.b16 %v6206, %v6202
    %v6447 = vpack.c.b16 %v6207, %v6203
    %v6448 = vpack.c.b16 %v6212, %v6208
    %v6449 = vpack.c.b16 %v6213, %v6209
    %v6450 = vpack.c.b16 %v6214, %v6210
    %v6451 = vpack.c.b16 %v6215, %v6211
    %v6452 = vpack.c.b16 %v6220, %v6216
    %v6453 = vpack.c.b16 %v6221, %v6217
    %v6454 = vpack.c.b16 %v6222, %v6218
    %v6455 = vpack.c.b16 %v6223, %v6219
    %v6456 = vpack.c.b16 %v6228, %v6224
    %v6457 = vpack.c.b16 %v6229, %v6225
    %v6458 = vpack.c.b16 %v6230, %v6226
    %v6459 = vpack.c.b16 %v6231, %v6227
    %v6460 = vpack.c.b16 %v6236, %v6232
    %v6461 = vpack.c.b16 %v6237, %v6233
    %v6462 = vpack.c.b16 %v6238, %v6234
    %v6463 = vpack.c.b16 %v6239, %v6235
    %v6464 = vpack.c.b16 %v6244, %v6240
    %v6465 = vpack.c.b16 %v6245, %v6241
    %v6466 = vpack.c.b16 %v6246, %v6242
    %v6467 = vpack.c.b16 %v6247, %v6243
    %v6468 = vpack.c.b16 %v6252, %v6248
    %v6469 = vpack.c.b16 %v6253, %v6249
    %v6470 = vpack.c.b16 %v6254, %v6250
    %v6471 = vpack.c.b16 %v6255, %v6251
    %v6472 = vpack.c.b16 %v6260, %v6256
    %v6473 = vpack.c.b16 %v6261, %v6257
    %v6474 = vpack.c.b16 %v6262, %v6258
    %v6475 = vpack.c.b16 %v6263, %v6259
    %v6476 = vpack.c.b16 %v6268, %v6264
    %v6477 = vpack.c.b16 %v6269, %v6265
    %v6478 = vpack.c.b16 %v6270, %v6266
    %v6479 = vpack.c.b16 %v6271, %v6267
    %v6480 = vpack.c.b16 %v6276, %v6272
    %v6481 = vpack.c.b16 %v6277, %v6273
    %v6482 = vpack.c.b16 %v6278, %v6274
    %v6483 = vpack.c.b16 %v6279, %v6275
    %v6484 = vpack.c.b16 %v6284, %v6280
    %v6485 = vpack.c.b16 %v6285, %v6281
    %v6486 = vpack.c.b16 %v6286, %v6282
    %v6487 = vpack.c.b16 %v6287, %v6283
    %v6488 = vpack.c.b16 %v6292, %v6288
    %v6489 = vpack.c.b16 %v6293, %v6289
    %v6490 = vpack.c.b16 %v6294, %v6290
    %v6491 = vpack.c.b16 %v6295, %v6291
    %v6492 = vpack.c.b16 %v6300, %v6296
    %v6493 = vpack.c.b16 %v6301, %v6297
    %v6494 = vpack.c.b16 %v6302, %v6298
    %v6495 = vpack.c.b16 %v6303, %v6299
    %v6496 = vpack.c.b16 %v6308, %v6304
    %v6497 = vpack.c.b16 %v6309, %v6305
    %v6498 = vpack.c.b16 %v6310, %v6306
    %v6499 = vpack.c.b16 %v6311, %v6307
    %v6500 = vpack.c.b16 %v6316, %v6312
    %v6501 = vpack.c.b16 %v6317, %v6313
    %v6502 = vpack.c.b16 %v6318, %v6314
    %v6503 = vpack.c.b16 %v6319, %v6315
    %v6504 = vpack.c.b16 %v6324, %v6320
    %v6505 = vpack.c.b16 %v6325, %v6321
    %v6506 = vpack.c.b16 %v6326, %v6322
    %v6507 = vpack.c.b16 %v6327, %v6323
    %v6508 = vpack.c.b16 %v6332, %v6328
    %v6509 = vpack.c.b16 %v6333, %v6329
    %v6510 = vpack.c.b16 %v6334, %v6330
    %v6511 = vpack.c.b16 %v6335, %v6331
    %v6512 = vpack.c.b16 %v6340, %v6336
    %v6513 = vpack.c.b16 %v6341, %v6337
    %v6514 = vpack.c.b16 %v6342, %v6338
    %v6515 = vpack.c.b16 %v6343, %v6339
    %v6516 = vpack.c.b16 %v6348, %v6344
    %v6517 = vpack.c.b16 %v6349, %v6345
    %v6518 = vpack.c.b16 %v6350, %v6346
    %v6519 = vpack.c.b16 %v6351, %v6347
    %v6520 = vpack.c.b16 %v6356, %v6352
    %v6521 = vpack.c.b16 %v6357, %v6353
    %v6522 = vpack.c.b16 %v6358, %v6354
    %v6523 = vpack.c.b16 %v6359, %v6355
    %v6524 = vpack.c.b16 %v6364, %v6360
    %v6525 = vpack.c.b16 %v6365, %v6361
    %v6526 = vpack.c.b16 %v6366, %v6362
    %v6527 = vpack.c.b16 %v6367, %v6363
    %v6528 = vpack.c.b16 %v6372, %v6368
    %v6529 = vpack.c.b16 %v6373, %v6369
    %v6530 = vpack.c.b16 %v6374, %v6370
    %v6531 = vpack.c.b16 %v6375, %v6371
    %v6532 = vpack.c.b16 %v6380, %v6376
    %v6533 = vpack.c.b16 %v6381, %v6377
    %v6534 = vpack.c.b16 %v6382, %v6378
    %v6535 = vpack.c.b16 %v6383, %v6379
    %v6536 = vpack.c.b16 %v6388, %v6384
    %v6537 = vpack.c.b16 %v6389, %v6385
    %v6538 = vpack.c.b16 %v6390, %v6386
    %v6539 = vpack.c.b16 %v6391, %v6387
    %v6540 = vpack.c.b16 %v6396, %v6392
    %v6541 = vpack.c.b16 %v6397, %v6393
    %v6542 = vpack.c.b16 %v6398, %v6394
    %v6543 = vpack.c.b16 %v6399, %v6395
    %v6544 = vpack.c.b16 %v6404, %v6400
    %v6545 = vpack.c.b16 %v6405, %v6401
    %v6546 = vpack.c.b16 %v6406, %v6402
    %v6547 = vpack.c.b16 %v6407, %v6403
    %v6548 = vpack.c.b16 %v6412, %v6408
    %v6549 = vpack.c.b16 %v6413, %v6409
    %v6550 = vpack.c.b16 %v6414, %v6410
    %v6551 = vpack.c.b16 %v6415, %v6411
    %v6552 = vpack.c.b16 %v6420, %v6416
    %v6553 = vpack.c.b16 %v6421, %v6417
    %v6554 = vpack.c.b16 %v6422, %v6418
    %v6555 = vpack.c.b16 %v6423, %v6419
    %v6556 = vpack.c.b16 %v6428, %v6424
    %v6557 = vpack.c.b16 %v6429, %v6425
    %v6558 = vpack.c.b16 %v6430, %v6426
    %v6559 = vpack.c.b16 %v6431, %v6427
    %6688 = vmatpush.bf16.msra.mxu0 %v6460
    %6689 = vmatpush.bf16.msra.mxu0 %v6456
    %6690 = vmatpush.bf16.msra.mxu0 %v6452
    %6691 = vmatpush.bf16.msra.mxu0 %v6448
    %6692 = vmatpush.bf16.msra.mxu0 %v6444
    %6693 = vmatpush.bf16.msra.mxu0 %v6440
    %6694 = vmatpush.bf16.msra.mxu0 %v6436
    %6695 = vmatpush.bf16.msra.mxu0 %v6432
    %6696 = vmatmul.bf16.gmra.mxu0 %v5916
    %v6697 = vpop.f32.mrf.mxu0
    %v6698 = vadd.f32 0.0, %v6697
    %v6699 = vpop.f32.mrf.mxu0
    %6700 = vdwg.mxu0
    %6701 = vmatpush.bf16.msra.mxu0 %v6492
    %6702 = vmatpush.bf16.msra.mxu0 %v6488
    %6703 = vmatpush.bf16.msra.mxu0 %v6484
    %6704 = vmatpush.bf16.msra.mxu0 %v6480
    %6705 = vmatpush.bf16.msra.mxu0 %v6476
    %6706 = vmatpush.bf16.msra.mxu0 %v6472
    %6707 = vmatpush.bf16.msra.mxu0 %v6468
    %6708 = vmatpush.bf16.msra.mxu0 %v6464
    %6709 = vmatmul.bf16.gmra.mxu0 %v5917
    %v6710 = vpop.f32.mrf.mxu0
    %v6711 = vadd.f32 %v6698, %v6710
    %v6712 = vpop.f32.mrf.mxu0
    %6713 = vdwg.mxu0
    %6714 = vmatpush.bf16.msra.mxu0 %v6524
    %6715 = vmatpush.bf16.msra.mxu0 %v6520
    %6716 = vmatpush.bf16.msra.mxu0 %v6516
    %6717 = vmatpush.bf16.msra.mxu0 %v6512
    %6718 = vmatpush.bf16.msra.mxu0 %v6508
    %6719 = vmatpush.bf16.msra.mxu0 %v6504
    %6720 = vmatpush.bf16.msra.mxu0 %v6500
    %6721 = vmatpush.bf16.msra.mxu0 %v6496
    %6722 = vmatmul.bf16.gmra.mxu0 %v5918
    %v6723 = vpop.f32.mrf.mxu0
    %v6724 = vadd.f32 %v6711, %v6723
    %v6725 = vpop.f32.mrf.mxu0
    %6726 = vdwg.mxu0
    %6727 = vmatpush.bf16.msra.mxu0 %v6556
    %6728 = vmatpush.bf16.msra.mxu0 %v6552
    %6729 = vmatpush.bf16.msra.mxu0 %v6548
    %6730 = vmatpush.bf16.msra.mxu0 %v6544
    %6731 = vmatpush.bf16.msra.mxu0 %v6540
    %6732 = vmatpush.bf16.msra.mxu0 %v6536
    %6733 = vmatpush.bf16.msra.mxu0 %v6532
    %6734 = vmatpush.bf16.msra.mxu0 %v6528
    %6735 = vmatmul.bf16.gmra.mxu0 %v5919
    %v6736 = vpop.f32.mrf.mxu0
    %v6737 = vadd.f32 %v6724, %v6736
    %v6738 = vpop.f32.mrf.mxu0
    %6739 = vdwg.mxu0
    %6740 = vmatpush.bf16.msra.mxu0 %v6461
    %6741 = vmatpush.bf16.msra.mxu0 %v6457
    %6742 = vmatpush.bf16.msra.mxu0 %v6453
    %6743 = vmatpush.bf16.msra.mxu0 %v6449
    %6744 = vmatpush.bf16.msra.mxu0 %v6445
    %6745 = vmatpush.bf16.msra.mxu0 %v6441
    %6746 = vmatpush.bf16.msra.mxu0 %v6437
    %6747 = vmatpush.bf16.msra.mxu0 %v6433
    %6748 = vmatmul.bf16.gmra.mxu0 %v5916
    %v6749 = vpop.f32.mrf.mxu0
    %v6750 = vadd.f32 0.0, %v6749
    %v6751 = vpop.f32.mrf.mxu0
    %6752 = vdwg.mxu0
    %6753 = vmatpush.bf16.msra.mxu0 %v6493
    %6754 = vmatpush.bf16.msra.mxu0 %v6489
    %6755 = vmatpush.bf16.msra.mxu0 %v6485
    %6756 = vmatpush.bf16.msra.mxu0 %v6481
    %6757 = vmatpush.bf16.msra.mxu0 %v6477
    %6758 = vmatpush.bf16.msra.mxu0 %v6473
    %6759 = vmatpush.bf16.msra.mxu0 %v6469
    %6760 = vmatpush.bf16.msra.mxu0 %v6465
    %6761 = vmatmul.bf16.gmra.mxu0 %v5917
    %v6762 = vpop.f32.mrf.mxu0
    %v6763 = vadd.f32 %v6750, %v6762
    %v6764 = vpop.f32.mrf.mxu0
    %6765 = vdwg.mxu0
    %6766 = vmatpush.bf16.msra.mxu0 %v6525
    %6767 = vmatpush.bf16.msra.mxu0 %v6521
    %6768 = vmatpush.bf16.msra.mxu0 %v6517
    %6769 = vmatpush.bf16.msra.mxu0 %v6513
    %6770 = vmatpush.bf16.msra.mxu0 %v6509
    %6771 = vmatpush.bf16.msra.mxu0 %v6505
    %6772 = vmatpush.bf16.msra.mxu0 %v6501
    %6773 = vmatpush.bf16.msra.mxu0 %v6497
    %6774 = vmatmul.bf16.gmra.mxu0 %v5918
    %v6775 = vpop.f32.mrf.mxu0
    %v6776 = vadd.f32 %v6763, %v6775
    %v6777 = vpop.f32.mrf.mxu0
    %6778 = vdwg.mxu0
    %6779 = vmatpush.bf16.msra.mxu0 %v6557
    %6780 = vmatpush.bf16.msra.mxu0 %v6553
    %6781 = vmatpush.bf16.msra.mxu0 %v6549
    %6782 = vmatpush.bf16.msra.mxu0 %v6545
    %6783 = vmatpush.bf16.msra.mxu0 %v6541
    %6784 = vmatpush.bf16.msra.mxu0 %v6537
    %6785 = vmatpush.bf16.msra.mxu0 %v6533
    %6786 = vmatpush.bf16.msra.mxu0 %v6529
    %6787 = vmatmul.bf16.gmra.mxu0 %v5919
    %v6788 = vpop.f32.mrf.mxu0
    %v6789 = vadd.f32 %v6776, %v6788
    %v6790 = vpop.f32.mrf.mxu0
    %6791 = vdwg.mxu0
    %6792 = vmatpush.bf16.msra.mxu0 %v6462
    %6793 = vmatpush.bf16.msra.mxu0 %v6458
    %6794 = vmatpush.bf16.msra.mxu0 %v6454
    %6795 = vmatpush.bf16.msra.mxu0 %v6450
    %6796 = vmatpush.bf16.msra.mxu0 %v6446
    %6797 = vmatpush.bf16.msra.mxu0 %v6442
    %6798 = vmatpush.bf16.msra.mxu0 %v6438
    %6799 = vmatpush.bf16.msra.mxu0 %v6434
    %6800 = vmatmul.bf16.gmra.mxu0 %v5916
    %v6801 = vpop.f32.mrf.mxu0
    %v6802 = vadd.f32 0.0, %v6801
    %v6803 = vpop.f32.mrf.mxu0
    %6804 = vdwg.mxu0
    %6805 = vmatpush.bf16.msra.mxu0 %v6494
    %6806 = vmatpush.bf16.msra.mxu0 %v6490
    %6807 = vmatpush.bf16.msra.mxu0 %v6486
    %6808 = vmatpush.bf16.msra.mxu0 %v6482
    %6809 = vmatpush.bf16.msra.mxu0 %v6478
    %6810 = vmatpush.bf16.msra.mxu0 %v6474
    %6811 = vmatpush.bf16.msra.mxu0 %v6470
    %6812 = vmatpush.bf16.msra.mxu0 %v6466
    %6813 = vmatmul.bf16.gmra.mxu0 %v5917
    %v6814 = vpop.f32.mrf.mxu0
    %v6815 = vadd.f32 %v6802, %v6814
    %v6816 = vpop.f32.mrf.mxu0
    %6817 = vdwg.mxu0
    %6818 = vmatpush.bf16.msra.mxu0 %v6526
    %6819 = vmatpush.bf16.msra.mxu0 %v6522
    %6820 = vmatpush.bf16.msra.mxu0 %v6518
    %6821 = vmatpush.bf16.msra.mxu0 %v6514
    %6822 = vmatpush.bf16.msra.mxu0 %v6510
    %6823 = vmatpush.bf16.msra.mxu0 %v6506
    %6824 = vmatpush.bf16.msra.mxu0 %v6502
    %6825 = vmatpush.bf16.msra.mxu0 %v6498
    %6826 = vmatmul.bf16.gmra.mxu0 %v5918
    %v6827 = vpop.f32.mrf.mxu0
    %v6828 = vadd.f32 %v6815, %v6827
    %v6829 = vpop.f32.mrf.mxu0
    %6830 = vdwg.mxu0
    %6831 = vmatpush.bf16.msra.mxu0 %v6558
    %6832 = vmatpush.bf16.msra.mxu0 %v6554
    %6833 = vmatpush.bf16.msra.mxu0 %v6550
    %6834 = vmatpush.bf16.msra.mxu0 %v6546
    %6835 = vmatpush.bf16.msra.mxu0 %v6542
    %6836 = vmatpush.bf16.msra.mxu0 %v6538
    %6837 = vmatpush.bf16.msra.mxu0 %v6534
    %6838 = vmatpush.bf16.msra.mxu0 %v6530
    %6839 = vmatmul.bf16.gmra.mxu0 %v5919
    %v6840 = vpop.f32.mrf.mxu0
    %v6841 = vadd.f32 %v6828, %v6840
    %v6842 = vpop.f32.mrf.mxu0
    %6843 = vdwg.mxu0
    %6844 = vmatpush.bf16.msra.mxu0 %v6463
    %6845 = vmatpush.bf16.msra.mxu0 %v6459
    %6846 = vmatpush.bf16.msra.mxu0 %v6455
    %6847 = vmatpush.bf16.msra.mxu0 %v6451
    %6848 = vmatpush.bf16.msra.mxu0 %v6447
    %6849 = vmatpush.bf16.msra.mxu0 %v6443
    %6850 = vmatpush.bf16.msra.mxu0 %v6439
    %6851 = vmatpush.bf16.msra.mxu0 %v6435
    %6852 = vmatmul.bf16.gmra.mxu0 %v5916
    %v6853 = vpop.f32.mrf.mxu0
    %v6854 = vadd.f32 0.0, %v6853
    %v6855 = vpop.f32.mrf.mxu0
    %6856 = vdwg.mxu0
    %6857 = vmatpush.bf16.msra.mxu0 %v6495
    %6858 = vmatpush.bf16.msra.mxu0 %v6491
    %6859 = vmatpush.bf16.msra.mxu0 %v6487
    %6860 = vmatpush.bf16.msra.mxu0 %v6483
    %6861 = vmatpush.bf16.msra.mxu0 %v6479
    %6862 = vmatpush.bf16.msra.mxu0 %v6475
    %6863 = vmatpush.bf16.msra.mxu0 %v6471
    %6864 = vmatpush.bf16.msra.mxu0 %v6467
    %6865 = vmatmul.bf16.gmra.mxu0 %v5917
    %v6866 = vpop.f32.mrf.mxu0
    %v6867 = vadd.f32 %v6854, %v6866
    %v6868 = vpop.f32.mrf.mxu0
    %6869 = vdwg.mxu0
    %6870 = vmatpush.bf16.msra.mxu0 %v6527
    %6871 = vmatpush.bf16.msra.mxu0 %v6523
    %6872 = vmatpush.bf16.msra.mxu0 %v6519
    %6873 = vmatpush.bf16.msra.mxu0 %v6515
    %6874 = vmatpush.bf16.msra.mxu0 %v6511
    %6875 = vmatpush.bf16.msra.mxu0 %v6507
    %6876 = vmatpush.bf16.msra.mxu0 %v6503
    %6877 = vmatpush.bf16.msra.mxu0 %v6499
    %6878 = vmatmul.bf16.gmra.mxu0 %v5918
    %v6879 = vpop.f32.mrf.mxu0
    %v6880 = vadd.f32 %v6867, %v6879
    %v6881 = vpop.f32.mrf.mxu0
    %6882 = vdwg.mxu0
    %6883 = vmatpush.bf16.msra.mxu0 %v6559
    %6884 = vmatpush.bf16.msra.mxu0 %v6555
    %6885 = vmatpush.bf16.msra.mxu0 %v6551
    %6886 = vmatpush.bf16.msra.mxu0 %v6547
    %6887 = vmatpush.bf16.msra.mxu0 %v6543
    %6888 = vmatpush.bf16.msra.mxu0 %v6539
    %6889 = vmatpush.bf16.msra.mxu0 %v6535
    %6890 = vmatpush.bf16.msra.mxu0 %v6531
    %6891 = vmatmul.bf16.gmra.mxu0 %v5919
    %v6892 = vpop.f32.mrf.mxu0
    %v6893 = vadd.f32 %v6880, %v6892
    %v6894 = vpop.f32.mrf.mxu0
    %6895 = vdwg.mxu0
    %v7024 = vunpack.c.l.b16 %v5788
    %v7025 = vunpack.c.h.b16 %v5788
    %v7026 = vunpack.c.l.b16 %v5789
    %v7027 = vunpack.c.h.b16 %v5789
    %v7028 = vunpack.c.l.b16 %v5790
    %v7029 = vunpack.c.h.b16 %v5790
    %v7030 = vunpack.c.l.b16 %v5791
    %v7031 = vunpack.c.h.b16 %v5791
    %v7032 = vunpack.c.l.b16 %v5792
    %v7033 = vunpack.c.h.b16 %v5792
    %v7034 = vunpack.c.l.b16 %v5793
    %v7035 = vunpack.c.h.b16 %v5793
    %v7036 = vunpack.c.l.b16 %v5794
    %v7037 = vunpack.c.h.b16 %v5794
    %v7038 = vunpack.c.l.b16 %v5795
    %v7039 = vunpack.c.h.b16 %v5795
    %v7040 = vunpack.c.l.b16 %v5796
    %v7041 = vunpack.c.h.b16 %v5796
    %v7042 = vunpack.c.l.b16 %v5797
    %v7043 = vunpack.c.h.b16 %v5797
    %v7044 = vunpack.c.l.b16 %v5798
    %v7045 = vunpack.c.h.b16 %v5798
    %v7046 = vunpack.c.l.b16 %v5799
    %v7047 = vunpack.c.h.b16 %v5799
    %v7048 = vunpack.c.l.b16 %v5800
    %v7049 = vunpack.c.h.b16 %v5800
    %v7050 = vunpack.c.l.b16 %v5801
    %v7051 = vunpack.c.h.b16 %v5801
    %v7052 = vunpack.c.l.b16 %v5802
    %v7053 = vunpack.c.h.b16 %v5802
    %v7054 = vunpack.c.l.b16 %v5803
    %v7055 = vunpack.c.h.b16 %v5803
    %v7056 = vunpack.c.l.b16 %v5804
    %v7057 = vunpack.c.h.b16 %v5804
    %v7058 = vunpack.c.l.b16 %v5805
    %v7059 = vunpack.c.h.b16 %v5805
    %v7060 = vunpack.c.l.b16 %v5806
    %v7061 = vunpack.c.h.b16 %v5806
    %v7062 = vunpack.c.l.b16 %v5807
    %v7063 = vunpack.c.h.b16 %v5807
    %v7064 = vunpack.c.l.b16 %v5808
    %v7065 = vunpack.c.h.b16 %v5808
    %v7066 = vunpack.c.l.b16 %v5809
    %v7067 = vunpack.c.h.b16 %v5809
    %v7068 = vunpack.c.l.b16 %v5810
    %v7069 = vunpack.c.h.b16 %v5810
    %v7070 = vunpack.c.l.b16 %v5811
    %v7071 = vunpack.c.h.b16 %v5811
    %v7072 = vunpack.c.l.b16 %v5812
    %v7073 = vunpack.c.h.b16 %v5812
    %v7074 = vunpack.c.l.b16 %v5813
    %v7075 = vunpack.c.h.b16 %v5813
    %v7076 = vunpack.c.l.b16 %v5814
    %v7077 = vunpack.c.h.b16 %v5814
    %v7078 = vunpack.c.l.b16 %v5815
    %v7079 = vunpack.c.h.b16 %v5815
    %v7080 = vunpack.c.l.b16 %v5816
    %v7081 = vunpack.c.h.b16 %v5816
    %v7082 = vunpack.c.l.b16 %v5817
    %v7083 = vunpack.c.h.b16 %v5817
    %v7084 = vunpack.c.l.b16 %v5818
    %v7085 = vunpack.c.h.b16 %v5818
    %v7086 = vunpack.c.l.b16 %v5819
    %v7087 = vunpack.c.h.b16 %v5819
    %v7088 = vunpack.c.l.b16 %v5820
    %v7089 = vunpack.c.h.b16 %v5820
    %v7090 = vunpack.c.l.b16 %v5821
    %v7091 = vunpack.c.h.b16 %v5821
    %v7092 = vunpack.c.l.b16 %v5822
    %v7093 = vunpack.c.h.b16 %v5822
    %v7094 = vunpack.c.l.b16 %v5823
    %v7095 = vunpack.c.h.b16 %v5823
    %v7096 = vunpack.c.l.b16 %v5824
    %v7097 = vunpack.c.h.b16 %v5824
    %v7098 = vunpack.c.l.b16 %v5825
    %v7099 = vunpack.c.h.b16 %v5825
    %v7100 = vunpack.c.l.b16 %v5826
    %v7101 = vunpack.c.h.b16 %v5826
    %v7102 = vunpack.c.l.b16 %v5827
    %v7103 = vunpack.c.h.b16 %v5827
    %v7104 = vunpack.c.l.b16 %v5828
    %v7105 = vunpack.c.h.b16 %v5828
    %v7106 = vunpack.c.l.b16 %v5829
    %v7107 = vunpack.c.h.b16 %v5829
    %v7108 = vunpack.c.l.b16 %v5830
    %v7109 = vunpack.c.h.b16 %v5830
    %v7110 = vunpack.c.l.b16 %v5831
    %v7111 = vunpack.c.h.b16 %v5831
    %v7112 = vunpack.c.l.b16 %v5832
    %v7113 = vunpack.c.h.b16 %v5832
    %v7114 = vunpack.c.l.b16 %v5833
    %v7115 = vunpack.c.h.b16 %v5833
    %v7116 = vunpack.c.l.b16 %v5834
    %v7117 = vunpack.c.h.b16 %v5834
    %v7118 = vunpack.c.l.b16 %v5835
    %v7119 = vunpack.c.h.b16 %v5835
    %v7120 = vunpack.c.l.b16 %v5836
    %v7121 = vunpack.c.h.b16 %v5836
    %v7122 = vunpack.c.l.b16 %v5837
    %v7123 = vunpack.c.h.b16 %v5837
    %v7124 = vunpack.c.l.b16 %v5838
    %v7125 = vunpack.c.h.b16 %v5838
    %v7126 = vunpack.c.l.b16 %v5839
    %v7127 = vunpack.c.h.b16 %v5839
    %v7128 = vunpack.c.l.b16 %v5840
    %v7129 = vunpack.c.h.b16 %v5840
    %v7130 = vunpack.c.l.b16 %v5841
    %v7131 = vunpack.c.h.b16 %v5841
    %v7132 = vunpack.c.l.b16 %v5842
    %v7133 = vunpack.c.h.b16 %v5842
    %v7134 = vunpack.c.l.b16 %v5843
    %v7135 = vunpack.c.h.b16 %v5843
    %v7136 = vunpack.c.l.b16 %v5844
    %v7137 = vunpack.c.h.b16 %v5844
    %v7138 = vunpack.c.l.b16 %v5845
    %v7139 = vunpack.c.h.b16 %v5845
    %v7140 = vunpack.c.l.b16 %v5846
    %v7141 = vunpack.c.h.b16 %v5846
    %v7142 = vunpack.c.l.b16 %v5847
    %v7143 = vunpack.c.h.b16 %v5847
    %v7144 = vunpack.c.l.b16 %v5848
    %v7145 = vunpack.c.h.b16 %v5848
    %v7146 = vunpack.c.l.b16 %v5849
    %v7147 = vunpack.c.h.b16 %v5849
    %v7148 = vunpack.c.l.b16 %v5850
    %v7149 = vunpack.c.h.b16 %v5850
    %v7150 = vunpack.c.l.b16 %v5851
    %v7151 = vunpack.c.h.b16 %v5851
    %v7152 = vunpack.c.l.b16 %v5852
    %v7153 = vunpack.c.h.b16 %v5852
    %v7154 = vunpack.c.l.b16 %v5853
    %v7155 = vunpack.c.h.b16 %v5853
    %v7156 = vunpack.c.l.b16 %v5854
    %v7157 = vunpack.c.h.b16 %v5854
    %v7158 = vunpack.c.l.b16 %v5855
    %v7159 = vunpack.c.h.b16 %v5855
    %v7160 = vunpack.c.l.b16 %v5856
    %v7161 = vunpack.c.h.b16 %v5856
    %v7162 = vunpack.c.l.b16 %v5857
    %v7163 = vunpack.c.h.b16 %v5857
    %v7164 = vunpack.c.l.b16 %v5858
    %v7165 = vunpack.c.h.b16 %v5858
    %v7166 = vunpack.c.l.b16 %v5859
    %v7167 = vunpack.c.h.b16 %v5859
    %v7168 = vunpack.c.l.b16 %v5860
    %v7169 = vunpack.c.h.b16 %v5860
    %v7170 = vunpack.c.l.b16 %v5861
    %v7171 = vunpack.c.h.b16 %v5861
    %v7172 = vunpack.c.l.b16 %v5862
    %v7173 = vunpack.c.h.b16 %v5862
    %v7174 = vunpack.c.l.b16 %v5863
    %v7175 = vunpack.c.h.b16 %v5863
    %v7176 = vunpack.c.l.b16 %v5864
    %v7177 = vunpack.c.h.b16 %v5864
    %v7178 = vunpack.c.l.b16 %v5865
    %v7179 = vunpack.c.h.b16 %v5865
    %v7180 = vunpack.c.l.b16 %v5866
    %v7181 = vunpack.c.h.b16 %v5866
    %v7182 = vunpack.c.l.b16 %v5867
    %v7183 = vunpack.c.h.b16 %v5867
    %v7184 = vunpack.c.l.b16 %v5868
    %v7185 = vunpack.c.h.b16 %v5868
    %v7186 = vunpack.c.l.b16 %v5869
    %v7187 = vunpack.c.h.b16 %v5869
    %v7188 = vunpack.c.l.b16 %v5870
    %v7189 = vunpack.c.h.b16 %v5870
    %v7190 = vunpack.c.l.b16 %v5871
    %v7191 = vunpack.c.h.b16 %v5871
    %v7192 = vunpack.c.l.b16 %v5872
    %v7193 = vunpack.c.h.b16 %v5872
    %v7194 = vunpack.c.l.b16 %v5873
    %v7195 = vunpack.c.h.b16 %v5873
    %v7196 = vunpack.c.l.b16 %v5874
    %v7197 = vunpack.c.h.b16 %v5874
    %v7198 = vunpack.c.l.b16 %v5875
    %v7199 = vunpack.c.h.b16 %v5875
    %v7200 = vunpack.c.l.b16 %v5876
    %v7201 = vunpack.c.h.b16 %v5876
    %v7202 = vunpack.c.l.b16 %v5877
    %v7203 = vunpack.c.h.b16 %v5877
    %v7204 = vunpack.c.l.b16 %v5878
    %v7205 = vunpack.c.h.b16 %v5878
    %v7206 = vunpack.c.l.b16 %v5879
    %v7207 = vunpack.c.h.b16 %v5879
    %v7208 = vunpack.c.l.b16 %v5880
    %v7209 = vunpack.c.h.b16 %v5880
    %v7210 = vunpack.c.l.b16 %v5881
    %v7211 = vunpack.c.h.b16 %v5881
    %v7212 = vunpack.c.l.b16 %v5882
    %v7213 = vunpack.c.h.b16 %v5882
    %v7214 = vunpack.c.l.b16 %v5883
    %v7215 = vunpack.c.h.b16 %v5883
    %v7216 = vunpack.c.l.b16 %v5884
    %v7217 = vunpack.c.h.b16 %v5884
    %v7218 = vunpack.c.l.b16 %v5885
    %v7219 = vunpack.c.h.b16 %v5885
    %v7220 = vunpack.c.l.b16 %v5886
    %v7221 = vunpack.c.h.b16 %v5886
    %v7222 = vunpack.c.l.b16 %v5887
    %v7223 = vunpack.c.h.b16 %v5887
    %v7224 = vunpack.c.l.b16 %v5888
    %v7225 = vunpack.c.h.b16 %v5888
    %v7226 = vunpack.c.l.b16 %v5889
    %v7227 = vunpack.c.h.b16 %v5889
    %v7228 = vunpack.c.l.b16 %v5890
    %v7229 = vunpack.c.h.b16 %v5890
    %v7230 = vunpack.c.l.b16 %v5891
    %v7231 = vunpack.c.h.b16 %v5891
    %v7232 = vunpack.c.l.b16 %v5892
    %v7233 = vunpack.c.h.b16 %v5892
    %v7234 = vunpack.c.l.b16 %v5893
    %v7235 = vunpack.c.h.b16 %v5893
    %v7236 = vunpack.c.l.b16 %v5894
    %v7237 = vunpack.c.h.b16 %v5894
    %v7238 = vunpack.c.l.b16 %v5895
    %v7239 = vunpack.c.h.b16 %v5895
    %v7240 = vunpack.c.l.b16 %v5896
    %v7241 = vunpack.c.h.b16 %v5896
    %v7242 = vunpack.c.l.b16 %v5897
    %v7243 = vunpack.c.h.b16 %v5897
    %v7244 = vunpack.c.l.b16 %v5898
    %v7245 = vunpack.c.h.b16 %v5898
    %v7246 = vunpack.c.l.b16 %v5899
    %v7247 = vunpack.c.h.b16 %v5899
    %v7248 = vunpack.c.l.b16 %v5900
    %v7249 = vunpack.c.h.b16 %v5900
    %v7250 = vunpack.c.l.b16 %v5901
    %v7251 = vunpack.c.h.b16 %v5901
    %v7252 = vunpack.c.l.b16 %v5902
    %v7253 = vunpack.c.h.b16 %v5902
    %v7254 = vunpack.c.l.b16 %v5903
    %v7255 = vunpack.c.h.b16 %v5903
    %v7256 = vunpack.c.l.b16 %v5904
    %v7257 = vunpack.c.h.b16 %v5904
    %v7258 = vunpack.c.l.b16 %v5905
    %v7259 = vunpack.c.h.b16 %v5905
    %v7260 = vunpack.c.l.b16 %v5906
    %v7261 = vunpack.c.h.b16 %v5906
    %v7262 = vunpack.c.l.b16 %v5907
    %v7263 = vunpack.c.h.b16 %v5907
    %v7264 = vunpack.c.l.b16 %v5908
    %v7265 = vunpack.c.h.b16 %v5908
    %v7266 = vunpack.c.l.b16 %v5909
    %v7267 = vunpack.c.h.b16 %v5909
    %v7268 = vunpack.c.l.b16 %v5910
    %v7269 = vunpack.c.h.b16 %v5910
    %v7270 = vunpack.c.l.b16 %v5911
    %v7271 = vunpack.c.h.b16 %v5911
    %v7272 = vunpack.c.l.b16 %v5912
    %v7273 = vunpack.c.h.b16 %v5912
    %v7274 = vunpack.c.l.b16 %v5913
    %v7275 = vunpack.c.h.b16 %v5913
    %v7276 = vunpack.c.l.b16 %v5914
    %v7277 = vunpack.c.h.b16 %v5914
    %v7278 = vunpack.c.l.b16 %v5915
    %v7279 = vunpack.c.h.b16 %v5915
    %v7280 = vpack.c.b16 %v7028, %v7024
    %v7281 = vpack.c.b16 %v7029, %v7025
    %v7282 = vpack.c.b16 %v7030, %v7026
    %v7283 = vpack.c.b16 %v7031, %v7027
    %v7284 = vpack.c.b16 %v7036, %v7032
    %v7285 = vpack.c.b16 %v7037, %v7033
    %v7286 = vpack.c.b16 %v7038, %v7034
    %v7287 = vpack.c.b16 %v7039, %v7035
    %v7288 = vpack.c.b16 %v7044, %v7040
    %v7289 = vpack.c.b16 %v7045, %v7041
    %v7290 = vpack.c.b16 %v7046, %v7042
    %v7291 = vpack.c.b16 %v7047, %v7043
    %v7292 = vpack.c.b16 %v7052, %v7048
    %v7293 = vpack.c.b16 %v7053, %v7049
    %v7294 = vpack.c.b16 %v7054, %v7050
    %v7295 = vpack.c.b16 %v7055, %v7051
    %v7296 = vpack.c.b16 %v7060, %v7056
    %v7297 = vpack.c.b16 %v7061, %v7057
    %v7298 = vpack.c.b16 %v7062, %v7058
    %v7299 = vpack.c.b16 %v7063, %v7059
    %v7300 = vpack.c.b16 %v7068, %v7064
    %v7301 = vpack.c.b16 %v7069, %v7065
    %v7302 = vpack.c.b16 %v7070, %v7066
    %v7303 = vpack.c.b16 %v7071, %v7067
    %v7304 = vpack.c.b16 %v7076, %v7072
    %v7305 = vpack.c.b16 %v7077, %v7073
    %v7306 = vpack.c.b16 %v7078, %v7074
    %v7307 = vpack.c.b16 %v7079, %v7075
    %v7308 = vpack.c.b16 %v7084, %v7080
    %v7309 = vpack.c.b16 %v7085, %v7081
    %v7310 = vpack.c.b16 %v7086, %v7082
    %v7311 = vpack.c.b16 %v7087, %v7083
    %v7312 = vpack.c.b16 %v7092, %v7088
    %v7313 = vpack.c.b16 %v7093, %v7089
    %v7314 = vpack.c.b16 %v7094, %v7090
    %v7315 = vpack.c.b16 %v7095, %v7091
    %v7316 = vpack.c.b16 %v7100, %v7096
    %v7317 = vpack.c.b16 %v7101, %v7097
    %v7318 = vpack.c.b16 %v7102, %v7098
    %v7319 = vpack.c.b16 %v7103, %v7099
    %v7320 = vpack.c.b16 %v7108, %v7104
    %v7321 = vpack.c.b16 %v7109, %v7105
    %v7322 = vpack.c.b16 %v7110, %v7106
    %v7323 = vpack.c.b16 %v7111, %v7107
    %v7324 = vpack.c.b16 %v7116, %v7112
    %v7325 = vpack.c.b16 %v7117, %v7113
    %v7326 = vpack.c.b16 %v7118, %v7114
    %v7327 = vpack.c.b16 %v7119, %v7115
    %v7328 = vpack.c.b16 %v7124, %v7120
    %v7329 = vpack.c.b16 %v7125, %v7121
    %v7330 = vpack.c.b16 %v7126, %v7122
    %v7331 = vpack.c.b16 %v7127, %v7123
    %v7332 = vpack.c.b16 %v7132, %v7128
    %v7333 = vpack.c.b16 %v7133, %v7129
    %v7334 = vpack.c.b16 %v7134, %v7130
    %v7335 = vpack.c.b16 %v7135, %v7131
    %v7336 = vpack.c.b16 %v7140, %v7136
    %v7337 = vpack.c.b16 %v7141, %v7137
    %v7338 = vpack.c.b16 %v7142, %v7138
    %v7339 = vpack.c.b16 %v7143, %v7139
    %v7340 = vpack.c.b16 %v7148, %v7144
    %v7341 = vpack.c.b16 %v7149, %v7145
    %v7342 = vpack.c.b16 %v7150, %v7146
    %v7343 = vpack.c.b16 %v7151, %v7147
    %v7344 = vpack.c.b16 %v7156, %v7152
    %v7345 = vpack.c.b16 %v7157, %v7153
    %v7346 = vpack.c.b16 %v7158, %v7154
    %v7347 = vpack.c.b16 %v7159, %v7155
    %v7348 = vpack.c.b16 %v7164, %v7160
    %v7349 = vpack.c.b16 %v7165, %v7161
    %v7350 = vpack.c.b16 %v7166, %v7162
    %v7351 = vpack.c.b16 %v7167, %v7163
    %v7352 = vpack.c.b16 %v7172, %v7168
    %v7353 = vpack.c.b16 %v7173, %v7169
    %v7354 = vpack.c.b16 %v7174, %v7170
    %v7355 = vpack.c.b16 %v7175, %v7171
    %v7356 = vpack.c.b16 %v7180, %v7176
    %v7357 = vpack.c.b16 %v7181, %v7177
    %v7358 = vpack.c.b16 %v7182, %v7178
    %v7359 = vpack.c.b16 %v7183, %v7179
    %v7360 = vpack.c.b16 %v7188, %v7184
    %v7361 = vpack.c.b16 %v7189, %v7185
    %v7362 = vpack.c.b16 %v7190, %v7186
    %v7363 = vpack.c.b16 %v7191, %v7187
    %v7364 = vpack.c.b16 %v7196, %v7192
    %v7365 = vpack.c.b16 %v7197, %v7193
    %v7366 = vpack.c.b16 %v7198, %v7194
    %v7367 = vpack.c.b16 %v7199, %v7195
    %v7368 = vpack.c.b16 %v7204, %v7200
    %v7369 = vpack.c.b16 %v7205, %v7201
    %v7370 = vpack.c.b16 %v7206, %v7202
    %v7371 = vpack.c.b16 %v7207, %v7203
    %v7372 = vpack.c.b16 %v7212, %v7208
    %v7373 = vpack.c.b16 %v7213, %v7209
    %v7374 = vpack.c.b16 %v7214, %v7210
    %v7375 = vpack.c.b16 %v7215, %v7211
    %v7376 = vpack.c.b16 %v7220, %v7216
    %v7377 = vpack.c.b16 %v7221, %v7217
    %v7378 = vpack.c.b16 %v7222, %v7218
    %v7379 = vpack.c.b16 %v7223, %v7219
    %v7380 = vpack.c.b16 %v7228, %v7224
    %v7381 = vpack.c.b16 %v7229, %v7225
    %v7382 = vpack.c.b16 %v7230, %v7226
    %v7383 = vpack.c.b16 %v7231, %v7227
    %v7384 = vpack.c.b16 %v7236, %v7232
    %v7385 = vpack.c.b16 %v7237, %v7233
    %v7386 = vpack.c.b16 %v7238, %v7234
    %v7387 = vpack.c.b16 %v7239, %v7235
    %v7388 = vpack.c.b16 %v7244, %v7240
    %v7389 = vpack.c.b16 %v7245, %v7241
    %v7390 = vpack.c.b16 %v7246, %v7242
    %v7391 = vpack.c.b16 %v7247, %v7243
    %v7392 = vpack.c.b16 %v7252, %v7248
    %v7393 = vpack.c.b16 %v7253, %v7249
    %v7394 = vpack.c.b16 %v7254, %v7250
    %v7395 = vpack.c.b16 %v7255, %v7251
    %v7396 = vpack.c.b16 %v7260, %v7256
    %v7397 = vpack.c.b16 %v7261, %v7257
    %v7398 = vpack.c.b16 %v7262, %v7258
    %v7399 = vpack.c.b16 %v7263, %v7259
    %v7400 = vpack.c.b16 %v7268, %v7264
    %v7401 = vpack.c.b16 %v7269, %v7265
    %v7402 = vpack.c.b16 %v7270, %v7266
    %v7403 = vpack.c.b16 %v7271, %v7267
    %v7404 = vpack.c.b16 %v7276, %v7272
    %v7405 = vpack.c.b16 %v7277, %v7273
    %v7406 = vpack.c.b16 %v7278, %v7274
    %v7407 = vpack.c.b16 %v7279, %v7275
    %7536 = vmatpush.bf16.msra.mxu0 %v7308
    %7537 = vmatpush.bf16.msra.mxu0 %v7304
    %7538 = vmatpush.bf16.msra.mxu0 %v7300
    %7539 = vmatpush.bf16.msra.mxu0 %v7296
    %7540 = vmatpush.bf16.msra.mxu0 %v7292
    %7541 = vmatpush.bf16.msra.mxu0 %v7288
    %7542 = vmatpush.bf16.msra.mxu0 %v7284
    %7543 = vmatpush.bf16.msra.mxu0 %v7280
    %7544 = vmatmul.bf16.gmra.mxu0 %v5784
    %v7545 = vpop.f32.mrf.mxu0
    %v7546 = vadd.f32 %v6737, %v7545
    %v7547 = vpop.f32.mrf.mxu0
    %7548 = vdwg.mxu0
    %7549 = vmatpush.bf16.msra.mxu0 %v7340
    %7550 = vmatpush.bf16.msra.mxu0 %v7336
    %7551 = vmatpush.bf16.msra.mxu0 %v7332
    %7552 = vmatpush.bf16.msra.mxu0 %v7328
    %7553 = vmatpush.bf16.msra.mxu0 %v7324
    %7554 = vmatpush.bf16.msra.mxu0 %v7320
    %7555 = vmatpush.bf16.msra.mxu0 %v7316
    %7556 = vmatpush.bf16.msra.mxu0 %v7312
    %7557 = vmatmul.bf16.gmra.mxu0 %v5785
    %v7558 = vpop.f32.mrf.mxu0
    %v7559 = vadd.f32 %v7546, %v7558
    %v7560 = vpop.f32.mrf.mxu0
    %7561 = vdwg.mxu0
    %7562 = vmatpush.bf16.msra.mxu0 %v7372
    %7563 = vmatpush.bf16.msra.mxu0 %v7368
    %7564 = vmatpush.bf16.msra.mxu0 %v7364
    %7565 = vmatpush.bf16.msra.mxu0 %v7360
    %7566 = vmatpush.bf16.msra.mxu0 %v7356
    %7567 = vmatpush.bf16.msra.mxu0 %v7352
    %7568 = vmatpush.bf16.msra.mxu0 %v7348
    %7569 = vmatpush.bf16.msra.mxu0 %v7344
    %7570 = vmatmul.bf16.gmra.mxu0 %v5786
    %v7571 = vpop.f32.mrf.mxu0
    %v7572 = vadd.f32 %v7559, %v7571
    %v7573 = vpop.f32.mrf.mxu0
    %7574 = vdwg.mxu0
    %7575 = vmatpush.bf16.msra.mxu0 %v7404
    %7576 = vmatpush.bf16.msra.mxu0 %v7400
    %7577 = vmatpush.bf16.msra.mxu0 %v7396
    %7578 = vmatpush.bf16.msra.mxu0 %v7392
    %7579 = vmatpush.bf16.msra.mxu0 %v7388
    %7580 = vmatpush.bf16.msra.mxu0 %v7384
    %7581 = vmatpush.bf16.msra.mxu0 %v7380
    %7582 = vmatpush.bf16.msra.mxu0 %v7376
    %7583 = vmatmul.bf16.gmra.mxu0 %v5787
    %v7584 = vpop.f32.mrf.mxu0
    %v7585 = vadd.f32 %v7572, %v7584
    %v7586 = vpop.f32.mrf.mxu0
    %7587 = vdwg.mxu0
    %7588 = vmatpush.bf16.msra.mxu0 %v7309
    %7589 = vmatpush.bf16.msra.mxu0 %v7305
    %7590 = vmatpush.bf16.msra.mxu0 %v7301
    %7591 = vmatpush.bf16.msra.mxu0 %v7297
    %7592 = vmatpush.bf16.msra.mxu0 %v7293
    %7593 = vmatpush.bf16.msra.mxu0 %v7289
    %7594 = vmatpush.bf16.msra.mxu0 %v7285
    %7595 = vmatpush.bf16.msra.mxu0 %v7281
    %7596 = vmatmul.bf16.gmra.mxu0 %v5784
    %v7597 = vpop.f32.mrf.mxu0
    %v7598 = vadd.f32 %v6789, %v7597
    %v7599 = vpop.f32.mrf.mxu0
    %7600 = vdwg.mxu0
    %7601 = vmatpush.bf16.msra.mxu0 %v7341
    %7602 = vmatpush.bf16.msra.mxu0 %v7337
    %7603 = vmatpush.bf16.msra.mxu0 %v7333
    %7604 = vmatpush.bf16.msra.mxu0 %v7329
    %7605 = vmatpush.bf16.msra.mxu0 %v7325
    %7606 = vmatpush.bf16.msra.mxu0 %v7321
    %7607 = vmatpush.bf16.msra.mxu0 %v7317
    %7608 = vmatpush.bf16.msra.mxu0 %v7313
    %7609 = vmatmul.bf16.gmra.mxu0 %v5785
    %v7610 = vpop.f32.mrf.mxu0
    %v7611 = vadd.f32 %v7598, %v7610
    %v7612 = vpop.f32.mrf.mxu0
    %7613 = vdwg.mxu0
    %7614 = vmatpush.bf16.msra.mxu0 %v7373
    %7615 = vmatpush.bf16.msra.mxu0 %v7369
    %7616 = vmatpush.bf16.msra.mxu0 %v7365
    %7617 = vmatpush.bf16.msra.mxu0 %v7361
    %7618 = vmatpush.bf16.msra.mxu0 %v7357
    %7619 = vmatpush.bf16.msra.mxu0 %v7353
    %7620 = vmatpush.bf16.msra.mxu0 %v7349
    %7621 = vmatpush.bf16.msra.mxu0 %v7345
    %7622 = vmatmul.bf16.gmra.mxu0 %v5786
    %v7623 = vpop.f32.mrf.mxu0
    %v7624 = vadd.f32 %v7611, %v7623
    %v7625 = vpop.f32.mrf.mxu0
    %7626 = vdwg.mxu0
    %7627 = vmatpush.bf16.msra.mxu0 %v7405
    %7628 = vmatpush.bf16.msra.mxu0 %v7401
    %7629 = vmatpush.bf16.msra.mxu0 %v7397
    %7630 = vmatpush.bf16.msra.mxu0 %v7393
    %7631 = vmatpush.bf16.msra.mxu0 %v7389
    %7632 = vmatpush.bf16.msra.mxu0 %v7385
    %7633 = vmatpush.bf16.msra.mxu0 %v7381
    %7634 = vmatpush.bf16.msra.mxu0 %v7377
    %7635 = vmatmul.bf16.gmra.mxu0 %v5787
    %v7636 = vpop.f32.mrf.mxu0
    %v7637 = vadd.f32 %v7624, %v7636
    %v7638 = vpop.f32.mrf.mxu0
    %7639 = vdwg.mxu0
    %7640 = vmatpush.bf16.msra.mxu0 %v7310
    %7641 = vmatpush.bf16.msra.mxu0 %v7306
    %7642 = vmatpush.bf16.msra.mxu0 %v7302
    %7643 = vmatpush.bf16.msra.mxu0 %v7298
    %7644 = vmatpush.bf16.msra.mxu0 %v7294
    %7645 = vmatpush.bf16.msra.mxu0 %v7290
    %7646 = vmatpush.bf16.msra.mxu0 %v7286
    %7647 = vmatpush.bf16.msra.mxu0 %v7282
    %7648 = vmatmul.bf16.gmra.mxu0 %v5784
    %v7649 = vpop.f32.mrf.mxu0
    %v7650 = vadd.f32 %v6841, %v7649
    %v7651 = vpop.f32.mrf.mxu0
    %7652 = vdwg.mxu0
    %7653 = vmatpush.bf16.msra.mxu0 %v7342
    %7654 = vmatpush.bf16.msra.mxu0 %v7338
    %7655 = vmatpush.bf16.msra.mxu0 %v7334
    %7656 = vmatpush.bf16.msra.mxu0 %v7330
    %7657 = vmatpush.bf16.msra.mxu0 %v7326
    %7658 = vmatpush.bf16.msra.mxu0 %v7322
    %7659 = vmatpush.bf16.msra.mxu0 %v7318
    %7660 = vmatpush.bf16.msra.mxu0 %v7314
    %7661 = vmatmul.bf16.gmra.mxu0 %v5785
    %v7662 = vpop.f32.mrf.mxu0
    %v7663 = vadd.f32 %v7650, %v7662
    %v7664 = vpop.f32.mrf.mxu0
    %7665 = vdwg.mxu0
    %7666 = vmatpush.bf16.msra.mxu0 %v7374
    %7667 = vmatpush.bf16.msra.mxu0 %v7370
    %7668 = vmatpush.bf16.msra.mxu0 %v7366
    %7669 = vmatpush.bf16.msra.mxu0 %v7362
    %7670 = vmatpush.bf16.msra.mxu0 %v7358
    %7671 = vmatpush.bf16.msra.mxu0 %v7354
    %7672 = vmatpush.bf16.msra.mxu0 %v7350
    %7673 = vmatpush.bf16.msra.mxu0 %v7346
    %7674 = vmatmul.bf16.gmra.mxu0 %v5786
    %v7675 = vpop.f32.mrf.mxu0
    %v7676 = vadd.f32 %v7663, %v7675
    %v7677 = vpop.f32.mrf.mxu0
    %7678 = vdwg.mxu0
    %7679 = vmatpush.bf16.msra.mxu0 %v7406
    %7680 = vmatpush.bf16.msra.mxu0 %v7402
    %7681 = vmatpush.bf16.msra.mxu0 %v7398
    %7682 = vmatpush.bf16.msra.mxu0 %v7394
    %7683 = vmatpush.bf16.msra.mxu0 %v7390
    %7684 = vmatpush.bf16.msra.mxu0 %v7386
    %7685 = vmatpush.bf16.msra.mxu0 %v7382
    %7686 = vmatpush.bf16.msra.mxu0 %v7378
    %7687 = vmatmul.bf16.gmra.mxu0 %v5787
    %v7688 = vpop.f32.mrf.mxu0
    %v7689 = vadd.f32 %v7676, %v7688
    %v7690 = vpop.f32.mrf.mxu0
    %7691 = vdwg.mxu0
    %7692 = vmatpush.bf16.msra.mxu0 %v7311
    %7693 = vmatpush.bf16.msra.mxu0 %v7307
    %7694 = vmatpush.bf16.msra.mxu0 %v7303
    %7695 = vmatpush.bf16.msra.mxu0 %v7299
    %7696 = vmatpush.bf16.msra.mxu0 %v7295
    %7697 = vmatpush.bf16.msra.mxu0 %v7291
    %7698 = vmatpush.bf16.msra.mxu0 %v7287
    %7699 = vmatpush.bf16.msra.mxu0 %v7283
    %7700 = vmatmul.bf16.gmra.mxu0 %v5784
    %v7701 = vpop.f32.mrf.mxu0
    %v7702 = vadd.f32 %v6893, %v7701
    %v7703 = vpop.f32.mrf.mxu0
    %7704 = vdwg.mxu0
    %7705 = vmatpush.bf16.msra.mxu0 %v7343
    %7706 = vmatpush.bf16.msra.mxu0 %v7339
    %7707 = vmatpush.bf16.msra.mxu0 %v7335
    %7708 = vmatpush.bf16.msra.mxu0 %v7331
    %7709 = vmatpush.bf16.msra.mxu0 %v7327
    %7710 = vmatpush.bf16.msra.mxu0 %v7323
    %7711 = vmatpush.bf16.msra.mxu0 %v7319
    %7712 = vmatpush.bf16.msra.mxu0 %v7315
    %7713 = vmatmul.bf16.gmra.mxu0 %v5785
    %v7714 = vpop.f32.mrf.mxu0
    %v7715 = vadd.f32 %v7702, %v7714
    %v7716 = vpop.f32.mrf.mxu0
    %7717 = vdwg.mxu0
    %7718 = vmatpush.bf16.msra.mxu0 %v7375
    %7719 = vmatpush.bf16.msra.mxu0 %v7371
    %7720 = vmatpush.bf16.msra.mxu0 %v7367
    %7721 = vmatpush.bf16.msra.mxu0 %v7363
    %7722 = vmatpush.bf16.msra.mxu0 %v7359
    %7723 = vmatpush.bf16.msra.mxu0 %v7355
    %7724 = vmatpush.bf16.msra.mxu0 %v7351
    %7725 = vmatpush.bf16.msra.mxu0 %v7347
    %7726 = vmatmul.bf16.gmra.mxu0 %v5786
    %v7727 = vpop.f32.mrf.mxu0
    %v7728 = vadd.f32 %v7715, %v7727
    %v7729 = vpop.f32.mrf.mxu0
    %7730 = vdwg.mxu0
    %7731 = vmatpush.bf16.msra.mxu0 %v7407
    %7732 = vmatpush.bf16.msra.mxu0 %v7403
    %7733 = vmatpush.bf16.msra.mxu0 %v7399
    %7734 = vmatpush.bf16.msra.mxu0 %v7395
    %7735 = vmatpush.bf16.msra.mxu0 %v7391
    %7736 = vmatpush.bf16.msra.mxu0 %v7387
    %7737 = vmatpush.bf16.msra.mxu0 %v7383
    %7738 = vmatpush.bf16.msra.mxu0 %v7379
    %7739 = vmatmul.bf16.gmra.mxu0 %v5787
    %v7740 = vpop.f32.mrf.mxu0
    %v7741 = vadd.f32 %v7728, %v7740
    %v7742 = vpop.f32.mrf.mxu0
    %7743 = vdwg.mxu0
    %v7744 = vpack.c.bf16 %v5778, %v5778
    %v7745 = vpack.c.bf16 %v5779, %v5779
    %v7746 = vld [vmem:[#allocation2 + $0x800] sm:$0xff]
    %v7747 = vld [vmem:[#allocation2 + $0x808] sm:$0xff]
    %v7748 = vld [vmem:[#allocation2 + $0x810] sm:$0xff]
    %v7749 = vld [vmem:[#allocation2 + $0x818] sm:$0xff]
    %v7750 = vld [vmem:[#allocation2 + $0x820] sm:$0xff]
    %v7751 = vld [vmem:[#allocation2 + $0x828] sm:$0xff]
    %v7752 = vld [vmem:[#allocation2 + $0x830] sm:$0xff]
    %v7753 = vld [vmem:[#allocation2 + $0x838] sm:$0xff]
    %v7754 = vld [vmem:[#allocation2 + $0x840] sm:$0xff]
    %v7755 = vld [vmem:[#allocation2 + $0x848] sm:$0xff]
    %v7756 = vld [vmem:[#allocation2 + $0x850] sm:$0xff]
    %v7757 = vld [vmem:[#allocation2 + $0x858] sm:$0xff]
    %v7758 = vld [vmem:[#allocation2 + $0x860] sm:$0xff]
    %v7759 = vld [vmem:[#allocation2 + $0x868] sm:$0xff]
    %v7760 = vld [vmem:[#allocation2 + $0x870] sm:$0xff]
    %v7761 = vld [vmem:[#allocation2 + $0x878] sm:$0xff]
    %v7762 = vld [vmem:[#allocation2 + $0x880] sm:$0xff]
    %v7763 = vld [vmem:[#allocation2 + $0x888] sm:$0xff]
    %v7764 = vld [vmem:[#allocation2 + $0x890] sm:$0xff]
    %v7765 = vld [vmem:[#allocation2 + $0x898] sm:$0xff]
    %v7766 = vld [vmem:[#allocation2 + $0x8a0] sm:$0xff]
    %v7767 = vld [vmem:[#allocation2 + $0x8a8] sm:$0xff]
    %v7768 = vld [vmem:[#allocation2 + $0x8b0] sm:$0xff]
    %v7769 = vld [vmem:[#allocation2 + $0x8b8] sm:$0xff]
    %v7770 = vld [vmem:[#allocation2 + $0x8c0] sm:$0xff]
    %v7771 = vld [vmem:[#allocation2 + $0x8c8] sm:$0xff]
    %v7772 = vld [vmem:[#allocation2 + $0x8d0] sm:$0xff]
    %v7773 = vld [vmem:[#allocation2 + $0x8d8] sm:$0xff]
    %v7774 = vld [vmem:[#allocation2 + $0x8e0] sm:$0xff]
    %v7775 = vld [vmem:[#allocation2 + $0x8e8] sm:$0xff]
    %v7776 = vld [vmem:[#allocation2 + $0x8f0] sm:$0xff]
    %v7777 = vld [vmem:[#allocation2 + $0x8f8] sm:$0xff]
    %v7778 = vld [vmem:[#allocation2 + $0x900] sm:$0xff]
    %v7779 = vld [vmem:[#allocation2 + $0x908] sm:$0xff]
    %v7780 = vld [vmem:[#allocation2 + $0x910] sm:$0xff]
    %v7781 = vld [vmem:[#allocation2 + $0x918] sm:$0xff]
    %v7782 = vld [vmem:[#allocation2 + $0x920] sm:$0xff]
    %v7783 = vld [vmem:[#allocation2 + $0x928] sm:$0xff]
    %v7784 = vld [vmem:[#allocation2 + $0x930] sm:$0xff]
    %v7785 = vld [vmem:[#allocation2 + $0x938] sm:$0xff]
    %v7786 = vld [vmem:[#allocation2 + $0x940] sm:$0xff]
    %v7787 = vld [vmem:[#allocation2 + $0x948] sm:$0xff]
    %v7788 = vld [vmem:[#allocation2 + $0x950] sm:$0xff]
    %v7789 = vld [vmem:[#allocation2 + $0x958] sm:$0xff]
    %v7790 = vld [vmem:[#allocation2 + $0x960] sm:$0xff]
    %v7791 = vld [vmem:[#allocation2 + $0x968] sm:$0xff]
    %v7792 = vld [vmem:[#allocation2 + $0x970] sm:$0xff]
    %v7793 = vld [vmem:[#allocation2 + $0x978] sm:$0xff]
    %v7794 = vld [vmem:[#allocation2 + $0x980] sm:$0xff]
    %v7795 = vld [vmem:[#allocation2 + $0x988] sm:$0xff]
    %v7796 = vld [vmem:[#allocation2 + $0x990] sm:$0xff]
    %v7797 = vld [vmem:[#allocation2 + $0x998] sm:$0xff]
    %v7798 = vld [vmem:[#allocation2 + $0x9a0] sm:$0xff]
    %v7799 = vld [vmem:[#allocation2 + $0x9a8] sm:$0xff]
    %v7800 = vld [vmem:[#allocation2 + $0x9b0] sm:$0xff]
    %v7801 = vld [vmem:[#allocation2 + $0x9b8] sm:$0xff]
    %v7802 = vld [vmem:[#allocation2 + $0x9c0] sm:$0xff]
    %v7803 = vld [vmem:[#allocation2 + $0x9c8] sm:$0xff]
    %v7804 = vld [vmem:[#allocation2 + $0x9d0] sm:$0xff]
    %v7805 = vld [vmem:[#allocation2 + $0x9d8] sm:$0xff]
    %v7806 = vld [vmem:[#allocation2 + $0x9e0] sm:$0xff]
    %v7807 = vld [vmem:[#allocation2 + $0x9e8] sm:$0xff]
    %v7808 = vld [vmem:[#allocation2 + $0x9f0] sm:$0xff]
    %v7809 = vld [vmem:[#allocation2 + $0x9f8] sm:$0xff]
    %v7874 = vunpack.c.l.b16 %v7746
    %v7875 = vunpack.c.h.b16 %v7746
    %v7876 = vunpack.c.l.b16 %v7747
    %v7877 = vunpack.c.h.b16 %v7747
    %v7878 = vunpack.c.l.b16 %v7748
    %v7879 = vunpack.c.h.b16 %v7748
    %v7880 = vunpack.c.l.b16 %v7749
    %v7881 = vunpack.c.h.b16 %v7749
    %v7882 = vunpack.c.l.b16 %v7750
    %v7883 = vunpack.c.h.b16 %v7750
    %v7884 = vunpack.c.l.b16 %v7751
    %v7885 = vunpack.c.h.b16 %v7751
    %v7886 = vunpack.c.l.b16 %v7752
    %v7887 = vunpack.c.h.b16 %v7752
    %v7888 = vunpack.c.l.b16 %v7753
    %v7889 = vunpack.c.h.b16 %v7753
    %v7890 = vunpack.c.l.b16 %v7754
    %v7891 = vunpack.c.h.b16 %v7754
    %v7892 = vunpack.c.l.b16 %v7755
    %v7893 = vunpack.c.h.b16 %v7755
    %v7894 = vunpack.c.l.b16 %v7756
    %v7895 = vunpack.c.h.b16 %v7756
    %v7896 = vunpack.c.l.b16 %v7757
    %v7897 = vunpack.c.h.b16 %v7757
    %v7898 = vunpack.c.l.b16 %v7758
    %v7899 = vunpack.c.h.b16 %v7758
    %v7900 = vunpack.c.l.b16 %v7759
    %v7901 = vunpack.c.h.b16 %v7759
    %v7902 = vunpack.c.l.b16 %v7760
    %v7903 = vunpack.c.h.b16 %v7760
    %v7904 = vunpack.c.l.b16 %v7761
    %v7905 = vunpack.c.h.b16 %v7761
    %v7906 = vunpack.c.l.b16 %v7762
    %v7907 = vunpack.c.h.b16 %v7762
    %v7908 = vunpack.c.l.b16 %v7763
    %v7909 = vunpack.c.h.b16 %v7763
    %v7910 = vunpack.c.l.b16 %v7764
    %v7911 = vunpack.c.h.b16 %v7764
    %v7912 = vunpack.c.l.b16 %v7765
    %v7913 = vunpack.c.h.b16 %v7765
    %v7914 = vunpack.c.l.b16 %v7766
    %v7915 = vunpack.c.h.b16 %v7766
    %v7916 = vunpack.c.l.b16 %v7767
    %v7917 = vunpack.c.h.b16 %v7767
    %v7918 = vunpack.c.l.b16 %v7768
    %v7919 = vunpack.c.h.b16 %v7768
    %v7920 = vunpack.c.l.b16 %v7769
    %v7921 = vunpack.c.h.b16 %v7769
    %v7922 = vunpack.c.l.b16 %v7770
    %v7923 = vunpack.c.h.b16 %v7770
    %v7924 = vunpack.c.l.b16 %v7771
    %v7925 = vunpack.c.h.b16 %v7771
    %v7926 = vunpack.c.l.b16 %v7772
    %v7927 = vunpack.c.h.b16 %v7772
    %v7928 = vunpack.c.l.b16 %v7773
    %v7929 = vunpack.c.h.b16 %v7773
    %v7930 = vunpack.c.l.b16 %v7774
    %v7931 = vunpack.c.h.b16 %v7774
    %v7932 = vunpack.c.l.b16 %v7775
    %v7933 = vunpack.c.h.b16 %v7775
    %v7934 = vunpack.c.l.b16 %v7776
    %v7935 = vunpack.c.h.b16 %v7776
    %v7936 = vunpack.c.l.b16 %v7777
    %v7937 = vunpack.c.h.b16 %v7777
    %v7938 = vunpack.c.l.b16 %v7778
    %v7939 = vunpack.c.h.b16 %v7778
    %v7940 = vunpack.c.l.b16 %v7779
    %v7941 = vunpack.c.h.b16 %v7779
    %v7942 = vunpack.c.l.b16 %v7780
    %v7943 = vunpack.c.h.b16 %v7780
    %v7944 = vunpack.c.l.b16 %v7781
    %v7945 = vunpack.c.h.b16 %v7781
    %v7946 = vunpack.c.l.b16 %v7782
    %v7947 = vunpack.c.h.b16 %v7782
    %v7948 = vunpack.c.l.b16 %v7783
    %v7949 = vunpack.c.h.b16 %v7783
    %v7950 = vunpack.c.l.b16 %v7784
    %v7951 = vunpack.c.h.b16 %v7784
    %v7952 = vunpack.c.l.b16 %v7785
    %v7953 = vunpack.c.h.b16 %v7785
    %v7954 = vunpack.c.l.b16 %v7786
    %v7955 = vunpack.c.h.b16 %v7786
    %v7956 = vunpack.c.l.b16 %v7787
    %v7957 = vunpack.c.h.b16 %v7787
    %v7958 = vunpack.c.l.b16 %v7788
    %v7959 = vunpack.c.h.b16 %v7788
    %v7960 = vunpack.c.l.b16 %v7789
    %v7961 = vunpack.c.h.b16 %v7789
    %v7962 = vunpack.c.l.b16 %v7790
    %v7963 = vunpack.c.h.b16 %v7790
    %v7964 = vunpack.c.l.b16 %v7791
    %v7965 = vunpack.c.h.b16 %v7791
    %v7966 = vunpack.c.l.b16 %v7792
    %v7967 = vunpack.c.h.b16 %v7792
    %v7968 = vunpack.c.l.b16 %v7793
    %v7969 = vunpack.c.h.b16 %v7793
    %v7970 = vunpack.c.l.b16 %v7794
    %v7971 = vunpack.c.h.b16 %v7794
    %v7972 = vunpack.c.l.b16 %v7795
    %v7973 = vunpack.c.h.b16 %v7795
    %v7974 = vunpack.c.l.b16 %v7796
    %v7975 = vunpack.c.h.b16 %v7796
    %v7976 = vunpack.c.l.b16 %v7797
    %v7977 = vunpack.c.h.b16 %v7797
    %v7978 = vunpack.c.l.b16 %v7798
    %v7979 = vunpack.c.h.b16 %v7798
    %v7980 = vunpack.c.l.b16 %v7799
    %v7981 = vunpack.c.h.b16 %v7799
    %v7982 = vunpack.c.l.b16 %v7800
    %v7983 = vunpack.c.h.b16 %v7800
    %v7984 = vunpack.c.l.b16 %v7801
    %v7985 = vunpack.c.h.b16 %v7801
    %v7986 = vunpack.c.l.b16 %v7802
    %v7987 = vunpack.c.h.b16 %v7802
    %v7988 = vunpack.c.l.b16 %v7803
    %v7989 = vunpack.c.h.b16 %v7803
    %v7990 = vunpack.c.l.b16 %v7804
    %v7991 = vunpack.c.h.b16 %v7804
    %v7992 = vunpack.c.l.b16 %v7805
    %v7993 = vunpack.c.h.b16 %v7805
    %v7994 = vunpack.c.l.b16 %v7806
    %v7995 = vunpack.c.h.b16 %v7806
    %v7996 = vunpack.c.l.b16 %v7807
    %v7997 = vunpack.c.h.b16 %v7807
    %v7998 = vunpack.c.l.b16 %v7808
    %v7999 = vunpack.c.h.b16 %v7808
    %v8000 = vunpack.c.l.b16 %v7809
    %v8001 = vunpack.c.h.b16 %v7809
    %v8002 = vpack.c.b16 %v7878, %v7874
    %v8003 = vpack.c.b16 %v7879, %v7875
    %v8004 = vpack.c.b16 %v7880, %v7876
    %v8005 = vpack.c.b16 %v7881, %v7877
    %v8006 = vpack.c.b16 %v7886, %v7882
    %v8007 = vpack.c.b16 %v7887, %v7883
    %v8008 = vpack.c.b16 %v7888, %v7884
    %v8009 = vpack.c.b16 %v7889, %v7885
    %v8010 = vpack.c.b16 %v7894, %v7890
    %v8011 = vpack.c.b16 %v7895, %v7891
    %v8012 = vpack.c.b16 %v7896, %v7892
    %v8013 = vpack.c.b16 %v7897, %v7893
    %v8014 = vpack.c.b16 %v7902, %v7898
    %v8015 = vpack.c.b16 %v7903, %v7899
    %v8016 = vpack.c.b16 %v7904, %v7900
    %v8017 = vpack.c.b16 %v7905, %v7901
    %v8018 = vpack.c.b16 %v7910, %v7906
    %v8019 = vpack.c.b16 %v7911, %v7907
    %v8020 = vpack.c.b16 %v7912, %v7908
    %v8021 = vpack.c.b16 %v7913, %v7909
    %v8022 = vpack.c.b16 %v7918, %v7914
    %v8023 = vpack.c.b16 %v7919, %v7915
    %v8024 = vpack.c.b16 %v7920, %v7916
    %v8025 = vpack.c.b16 %v7921, %v7917
    %v8026 = vpack.c.b16 %v7926, %v7922
    %v8027 = vpack.c.b16 %v7927, %v7923
    %v8028 = vpack.c.b16 %v7928, %v7924
    %v8029 = vpack.c.b16 %v7929, %v7925
    %v8030 = vpack.c.b16 %v7934, %v7930
    %v8031 = vpack.c.b16 %v7935, %v7931
    %v8032 = vpack.c.b16 %v7936, %v7932
    %v8033 = vpack.c.b16 %v7937, %v7933
    %v8034 = vpack.c.b16 %v7942, %v7938
    %v8035 = vpack.c.b16 %v7943, %v7939
    %v8036 = vpack.c.b16 %v7944, %v7940
    %v8037 = vpack.c.b16 %v7945, %v7941
    %v8038 = vpack.c.b16 %v7950, %v7946
    %v8039 = vpack.c.b16 %v7951, %v7947
    %v8040 = vpack.c.b16 %v7952, %v7948
    %v8041 = vpack.c.b16 %v7953, %v7949
    %v8042 = vpack.c.b16 %v7958, %v7954
    %v8043 = vpack.c.b16 %v7959, %v7955
    %v8044 = vpack.c.b16 %v7960, %v7956
    %v8045 = vpack.c.b16 %v7961, %v7957
    %v8046 = vpack.c.b16 %v7966, %v7962
    %v8047 = vpack.c.b16 %v7967, %v7963
    %v8048 = vpack.c.b16 %v7968, %v7964
    %v8049 = vpack.c.b16 %v7969, %v7965
    %v8050 = vpack.c.b16 %v7974, %v7970
    %v8051 = vpack.c.b16 %v7975, %v7971
    %v8052 = vpack.c.b16 %v7976, %v7972
    %v8053 = vpack.c.b16 %v7977, %v7973
    %v8054 = vpack.c.b16 %v7982, %v7978
    %v8055 = vpack.c.b16 %v7983, %v7979
    %v8056 = vpack.c.b16 %v7984, %v7980
    %v8057 = vpack.c.b16 %v7985, %v7981
    %v8058 = vpack.c.b16 %v7990, %v7986
    %v8059 = vpack.c.b16 %v7991, %v7987
    %v8060 = vpack.c.b16 %v7992, %v7988
    %v8061 = vpack.c.b16 %v7993, %v7989
    %v8062 = vpack.c.b16 %v7998, %v7994
    %v8063 = vpack.c.b16 %v7999, %v7995
    %v8064 = vpack.c.b16 %v8000, %v7996
    %v8065 = vpack.c.b16 %v8001, %v7997
    %8130 = vmatpush.bf16.msra.mxu0 %v8030
    %8131 = vmatpush.bf16.msra.mxu0 %v8026
    %8132 = vmatpush.bf16.msra.mxu0 %v8022
    %8133 = vmatpush.bf16.msra.mxu0 %v8018
    %8134 = vmatpush.bf16.msra.mxu0 %v8014
    %8135 = vmatpush.bf16.msra.mxu0 %v8010
    %8136 = vmatpush.bf16.msra.mxu0 %v8006
    %8137 = vmatpush.bf16.msra.mxu0 %v8002
    %8138 = vmatmul.bf16.gmra.mxu0 %v7744
    %v8139 = vpop.f32.mrf.mxu0
    %v8140 = vadd.f32 0.0, %v8139
    %v8141 = vpop.f32.mrf.mxu0
    %8142 = vdwg.mxu0
    %8143 = vmatpush.bf16.msra.mxu0 %v8062
    %8144 = vmatpush.bf16.msra.mxu0 %v8058
    %8145 = vmatpush.bf16.msra.mxu0 %v8054
    %8146 = vmatpush.bf16.msra.mxu0 %v8050
    %8147 = vmatpush.bf16.msra.mxu0 %v8046
    %8148 = vmatpush.bf16.msra.mxu0 %v8042
    %8149 = vmatpush.bf16.msra.mxu0 %v8038
    %8150 = vmatpush.bf16.msra.mxu0 %v8034
    %8151 = vmatmul.bf16.gmra.mxu0 %v7745
    %v8152 = vpop.f32.mrf.mxu0
    %v8153 = vadd.f32 %v8140, %v8152
    %v8154 = vpop.f32.mrf.mxu0
    %8155 = vdwg.mxu0
    %8156 = vmatpush.bf16.msra.mxu0 %v8031
    %8157 = vmatpush.bf16.msra.mxu0 %v8027
    %8158 = vmatpush.bf16.msra.mxu0 %v8023
    %8159 = vmatpush.bf16.msra.mxu0 %v8019
    %8160 = vmatpush.bf16.msra.mxu0 %v8015
    %8161 = vmatpush.bf16.msra.mxu0 %v8011
    %8162 = vmatpush.bf16.msra.mxu0 %v8007
    %8163 = vmatpush.bf16.msra.mxu0 %v8003
    %8164 = vmatmul.bf16.gmra.mxu0 %v7744
    %v8165 = vpop.f32.mrf.mxu0
    %v8166 = vadd.f32 0.0, %v8165
    %v8167 = vpop.f32.mrf.mxu0
    %8168 = vdwg.mxu0
    %8169 = vmatpush.bf16.msra.mxu0 %v8063
    %8170 = vmatpush.bf16.msra.mxu0 %v8059
    %8171 = vmatpush.bf16.msra.mxu0 %v8055
    %8172 = vmatpush.bf16.msra.mxu0 %v8051
    %8173 = vmatpush.bf16.msra.mxu0 %v8047
    %8174 = vmatpush.bf16.msra.mxu0 %v8043
    %8175 = vmatpush.bf16.msra.mxu0 %v8039
    %8176 = vmatpush.bf16.msra.mxu0 %v8035
    %8177 = vmatmul.bf16.gmra.mxu0 %v7745
    %v8178 = vpop.f32.mrf.mxu0
    %v8179 = vadd.f32 %v8166, %v8178
    %v8180 = vpop.f32.mrf.mxu0
    %8181 = vdwg.mxu0
    %8182 = vmatpush.bf16.msra.mxu0 %v8032
    %8183 = vmatpush.bf16.msra.mxu0 %v8028
    %8184 = vmatpush.bf16.msra.mxu0 %v8024
    %8185 = vmatpush.bf16.msra.mxu0 %v8020
    %8186 = vmatpush.bf16.msra.mxu0 %v8016
    %8187 = vmatpush.bf16.msra.mxu0 %v8012
    %8188 = vmatpush.bf16.msra.mxu0 %v8008
    %8189 = vmatpush.bf16.msra.mxu0 %v8004
    %8190 = vmatmul.bf16.gmra.mxu0 %v7744
    %v8191 = vpop.f32.mrf.mxu0
    %v8192 = vadd.f32 0.0, %v8191
    %v8193 = vpop.f32.mrf.mxu0
    %8194 = vdwg.mxu0
    %8195 = vmatpush.bf16.msra.mxu0 %v8064
    %8196 = vmatpush.bf16.msra.mxu0 %v8060
    %8197 = vmatpush.bf16.msra.mxu0 %v8056
    %8198 = vmatpush.bf16.msra.mxu0 %v8052
    %8199 = vmatpush.bf16.msra.mxu0 %v8048
    %8200 = vmatpush.bf16.msra.mxu0 %v8044
    %8201 = vmatpush.bf16.msra.mxu0 %v8040
    %8202 = vmatpush.bf16.msra.mxu0 %v8036
    %8203 = vmatmul.bf16.gmra.mxu0 %v7745
    %v8204 = vpop.f32.mrf.mxu0
    %v8205 = vadd.f32 %v8192, %v8204
    %v8206 = vpop.f32.mrf.mxu0
    %8207 = vdwg.mxu0
    %8208 = vmatpush.bf16.msra.mxu0 %v8033
    %8209 = vmatpush.bf16.msra.mxu0 %v8029
    %8210 = vmatpush.bf16.msra.mxu0 %v8025
    %8211 = vmatpush.bf16.msra.mxu0 %v8021
    %8212 = vmatpush.bf16.msra.mxu0 %v8017
    %8213 = vmatpush.bf16.msra.mxu0 %v8013
    %8214 = vmatpush.bf16.msra.mxu0 %v8009
    %8215 = vmatpush.bf16.msra.mxu0 %v8005
    %8216 = vmatmul.bf16.gmra.mxu0 %v7744
    %v8217 = vpop.f32.mrf.mxu0
    %v8218 = vadd.f32 0.0, %v8217
    %v8219 = vpop.f32.mrf.mxu0
    %8220 = vdwg.mxu0
    %8221 = vmatpush.bf16.msra.mxu0 %v8065
    %8222 = vmatpush.bf16.msra.mxu0 %v8061
    %8223 = vmatpush.bf16.msra.mxu0 %v8057
    %8224 = vmatpush.bf16.msra.mxu0 %v8053
    %8225 = vmatpush.bf16.msra.mxu0 %v8049
    %8226 = vmatpush.bf16.msra.mxu0 %v8045
    %8227 = vmatpush.bf16.msra.mxu0 %v8041
    %8228 = vmatpush.bf16.msra.mxu0 %v8037
    %8229 = vmatmul.bf16.gmra.mxu0 %v7745
    %v8230 = vpop.f32.mrf.mxu0
    %v8231 = vadd.f32 %v8218, %v8230
    %v8232 = vpop.f32.mrf.mxu0
    %8233 = vdwg.mxu0
    %v8234 = vadd.f32 %v7585, %v8153
    %v8235 = vadd.f32 %v7637, %v8179
    %v8236 = vadd.f32 %v7689, %v8205
    %v8237 = vadd.f32 %v7741, %v8231
    %v8238 = vld [vmem:[#allocation21] sm:$0xf]
    %v8240 = vperm.slane %v8238, 0
    %v8241 = vperm.slane %v8238, 1
    %v8242 = vperm.slane %v8238, 2
    %v8243 = vperm.slane %v8238, 3
    %v8248 = vadd.f32 %v8234, %v8240
    %v8249 = vadd.f32 %v8235, %v8241
    %v8250 = vadd.f32 %v8236, %v8242
    %v8251 = vadd.f32 %v8237, %v8243
    %v8252 = vmax.f32 %v8248, 0.0
    %v8253 = vmax.f32 %v8249, 0.0
    %v8254 = vmax.f32 %v8250, 0.0
    %v8255 = vmax.f32 %v8251, 0.0
    %s8256 = smul.u32 4, 64
    %s8257 = smul.u32 %s8256, 2
    %s8258 = sshll.u32 %s8257, 4
    %8259 = dma.done %s248, %s8258
    %v8260 = vpack.c.bf16 %v8252, %v8252
    %v8261 = vpack.c.bf16 %v8253, %v8253
    %v8262 = vpack.c.bf16 %v8254, %v8254
    %v8263 = vpack.c.bf16 %v8255, %v8255
    %v8264 = vld [vmem:[#allocation3] sm:$0xff]
    %v8265 = vld [vmem:[#allocation3 + $0x8] sm:$0xff]
    %v8266 = vld [vmem:[#allocation3 + $0x10] sm:$0xff]
    %v8267 = vld [vmem:[#allocation3 + $0x18] sm:$0xff]
    %v8268 = vld [vmem:[#allocation3 + $0x20] sm:$0xff]
    %v8269 = vld [vmem:[#allocation3 + $0x28] sm:$0xff]
    %v8270 = vld [vmem:[#allocation3 + $0x30] sm:$0xff]
    %v8271 = vld [vmem:[#allocation3 + $0x38] sm:$0xff]
    %v8272 = vld [vmem:[#allocation3 + $0x40] sm:$0xff]
    %v8273 = vld [vmem:[#allocation3 + $0x48] sm:$0xff]
    %v8274 = vld [vmem:[#allocation3 + $0x50] sm:$0xff]
    %v8275 = vld [vmem:[#allocation3 + $0x58] sm:$0xff]
    %v8276 = vld [vmem:[#allocation3 + $0x60] sm:$0xff]
    %v8277 = vld [vmem:[#allocation3 + $0x68] sm:$0xff]
    %v8278 = vld [vmem:[#allocation3 + $0x70] sm:$0xff]
    %v8279 = vld [vmem:[#allocation3 + $0x78] sm:$0xff]
    %v8280 = vld [vmem:[#allocation3 + $0x80] sm:$0xff]
    %v8281 = vld [vmem:[#allocation3 + $0x88] sm:$0xff]
    %v8282 = vld [vmem:[#allocation3 + $0x90] sm:$0xff]
    %v8283 = vld [vmem:[#allocation3 + $0x98] sm:$0xff]
    %v8284 = vld [vmem:[#allocation3 + $0xa0] sm:$0xff]
    %v8285 = vld [vmem:[#allocation3 + $0xa8] sm:$0xff]
    %v8286 = vld [vmem:[#allocation3 + $0xb0] sm:$0xff]
    %v8287 = vld [vmem:[#allocation3 + $0xb8] sm:$0xff]
    %v8288 = vld [vmem:[#allocation3 + $0xc0] sm:$0xff]
    %v8289 = vld [vmem:[#allocation3 + $0xc8] sm:$0xff]
    %v8290 = vld [vmem:[#allocation3 + $0xd0] sm:$0xff]
    %v8291 = vld [vmem:[#allocation3 + $0xd8] sm:$0xff]
    %v8292 = vld [vmem:[#allocation3 + $0xe0] sm:$0xff]
    %v8293 = vld [vmem:[#allocation3 + $0xe8] sm:$0xff]
    %v8294 = vld [vmem:[#allocation3 + $0xf0] sm:$0xff]
    %v8295 = vld [vmem:[#allocation3 + $0xf8] sm:$0xff]
    %v8296 = vld [vmem:[#allocation3 + $0x100] sm:$0xff]
    %v8297 = vld [vmem:[#allocation3 + $0x108] sm:$0xff]
    %v8298 = vld [vmem:[#allocation3 + $0x110] sm:$0xff]
    %v8299 = vld [vmem:[#allocation3 + $0x118] sm:$0xff]
    %v8300 = vld [vmem:[#allocation3 + $0x120] sm:$0xff]
    %v8301 = vld [vmem:[#allocation3 + $0x128] sm:$0xff]
    %v8302 = vld [vmem:[#allocation3 + $0x130] sm:$0xff]
    %v8303 = vld [vmem:[#allocation3 + $0x138] sm:$0xff]
    %v8304 = vld [vmem:[#allocation3 + $0x140] sm:$0xff]
    %v8305 = vld [vmem:[#allocation3 + $0x148] sm:$0xff]
    %v8306 = vld [vmem:[#allocation3 + $0x150] sm:$0xff]
    %v8307 = vld [vmem:[#allocation3 + $0x158] sm:$0xff]
    %v8308 = vld [vmem:[#allocation3 + $0x160] sm:$0xff]
    %v8309 = vld [vmem:[#allocation3 + $0x168] sm:$0xff]
    %v8310 = vld [vmem:[#allocation3 + $0x170] sm:$0xff]
    %v8311 = vld [vmem:[#allocation3 + $0x178] sm:$0xff]
    %v8312 = vld [vmem:[#allocation3 + $0x180] sm:$0xff]
    %v8313 = vld [vmem:[#allocation3 + $0x188] sm:$0xff]
    %v8314 = vld [vmem:[#allocation3 + $0x190] sm:$0xff]
    %v8315 = vld [vmem:[#allocation3 + $0x198] sm:$0xff]
    %v8316 = vld [vmem:[#allocation3 + $0x1a0] sm:$0xff]
    %v8317 = vld [vmem:[#allocation3 + $0x1a8] sm:$0xff]
    %v8318 = vld [vmem:[#allocation3 + $0x1b0] sm:$0xff]
    %v8319 = vld [vmem:[#allocation3 + $0x1b8] sm:$0xff]
    %v8320 = vld [vmem:[#allocation3 + $0x1c0] sm:$0xff]
    %v8321 = vld [vmem:[#allocation3 + $0x1c8] sm:$0xff]
    %v8322 = vld [vmem:[#allocation3 + $0x1d0] sm:$0xff]
    %v8323 = vld [vmem:[#allocation3 + $0x1d8] sm:$0xff]
    %v8324 = vld [vmem:[#allocation3 + $0x1e0] sm:$0xff]
    %v8325 = vld [vmem:[#allocation3 + $0x1e8] sm:$0xff]
    %v8326 = vld [vmem:[#allocation3 + $0x1f0] sm:$0xff]
    %v8327 = vld [vmem:[#allocation3 + $0x1f8] sm:$0xff]
    %v8328 = vld [vmem:[#allocation23] sm:$0x3]
    %v8330 = vperm.slane %v8328, 0
    %v8331 = vperm.slane %v8328, 1
    %v8398 = vunpack.c.l.b16 %v8264
    %v8399 = vunpack.c.h.b16 %v8264
    %v8400 = vunpack.c.l.b16 %v8265
    %v8401 = vunpack.c.h.b16 %v8265
    %v8402 = vunpack.c.l.b16 %v8266
    %v8403 = vunpack.c.h.b16 %v8266
    %v8404 = vunpack.c.l.b16 %v8267
    %v8405 = vunpack.c.h.b16 %v8267
    %v8406 = vunpack.c.l.b16 %v8268
    %v8407 = vunpack.c.h.b16 %v8268
    %v8408 = vunpack.c.l.b16 %v8269
    %v8409 = vunpack.c.h.b16 %v8269
    %v8410 = vunpack.c.l.b16 %v8270
    %v8411 = vunpack.c.h.b16 %v8270
    %v8412 = vunpack.c.l.b16 %v8271
    %v8413 = vunpack.c.h.b16 %v8271
    %v8414 = vunpack.c.l.b16 %v8272
    %v8415 = vunpack.c.h.b16 %v8272
    %v8416 = vunpack.c.l.b16 %v8273
    %v8417 = vunpack.c.h.b16 %v8273
    %v8418 = vunpack.c.l.b16 %v8274
    %v8419 = vunpack.c.h.b16 %v8274
    %v8420 = vunpack.c.l.b16 %v8275
    %v8421 = vunpack.c.h.b16 %v8275
    %v8422 = vunpack.c.l.b16 %v8276
    %v8423 = vunpack.c.h.b16 %v8276
    %v8424 = vunpack.c.l.b16 %v8277
    %v8425 = vunpack.c.h.b16 %v8277
    %v8426 = vunpack.c.l.b16 %v8278
    %v8427 = vunpack.c.h.b16 %v8278
    %v8428 = vunpack.c.l.b16 %v8279
    %v8429 = vunpack.c.h.b16 %v8279
    %v8430 = vunpack.c.l.b16 %v8280
    %v8431 = vunpack.c.h.b16 %v8280
    %v8432 = vunpack.c.l.b16 %v8281
    %v8433 = vunpack.c.h.b16 %v8281
    %v8434 = vunpack.c.l.b16 %v8282
    %v8435 = vunpack.c.h.b16 %v8282
    %v8436 = vunpack.c.l.b16 %v8283
    %v8437 = vunpack.c.h.b16 %v8283
    %v8438 = vunpack.c.l.b16 %v8284
    %v8439 = vunpack.c.h.b16 %v8284
    %v8440 = vunpack.c.l.b16 %v8285
    %v8441 = vunpack.c.h.b16 %v8285
    %v8442 = vunpack.c.l.b16 %v8286
    %v8443 = vunpack.c.h.b16 %v8286
    %v8444 = vunpack.c.l.b16 %v8287
    %v8445 = vunpack.c.h.b16 %v8287
    %v8446 = vunpack.c.l.b16 %v8288
    %v8447 = vunpack.c.h.b16 %v8288
    %v8448 = vunpack.c.l.b16 %v8289
    %v8449 = vunpack.c.h.b16 %v8289
    %v8450 = vunpack.c.l.b16 %v8290
    %v8451 = vunpack.c.h.b16 %v8290
    %v8452 = vunpack.c.l.b16 %v8291
    %v8453 = vunpack.c.h.b16 %v8291
    %v8454 = vunpack.c.l.b16 %v8292
    %v8455 = vunpack.c.h.b16 %v8292
    %v8456 = vunpack.c.l.b16 %v8293
    %v8457 = vunpack.c.h.b16 %v8293
    %v8458 = vunpack.c.l.b16 %v8294
    %v8459 = vunpack.c.h.b16 %v8294
    %v8460 = vunpack.c.l.b16 %v8295
    %v8461 = vunpack.c.h.b16 %v8295
    %v8462 = vunpack.c.l.b16 %v8296
    %v8463 = vunpack.c.h.b16 %v8296
    %v8464 = vunpack.c.l.b16 %v8297
    %v8465 = vunpack.c.h.b16 %v8297
    %v8466 = vunpack.c.l.b16 %v8298
    %v8467 = vunpack.c.h.b16 %v8298
    %v8468 = vunpack.c.l.b16 %v8299
    %v8469 = vunpack.c.h.b16 %v8299
    %v8470 = vunpack.c.l.b16 %v8300
    %v8471 = vunpack.c.h.b16 %v8300
    %v8472 = vunpack.c.l.b16 %v8301
    %v8473 = vunpack.c.h.b16 %v8301
    %v8474 = vunpack.c.l.b16 %v8302
    %v8475 = vunpack.c.h.b16 %v8302
    %v8476 = vunpack.c.l.b16 %v8303
    %v8477 = vunpack.c.h.b16 %v8303
    %v8478 = vunpack.c.l.b16 %v8304
    %v8479 = vunpack.c.h.b16 %v8304
    %v8480 = vunpack.c.l.b16 %v8305
    %v8481 = vunpack.c.h.b16 %v8305
    %v8482 = vunpack.c.l.b16 %v8306
    %v8483 = vunpack.c.h.b16 %v8306
    %v8484 = vunpack.c.l.b16 %v8307
    %v8485 = vunpack.c.h.b16 %v8307
    %v8486 = vunpack.c.l.b16 %v8308
    %v8487 = vunpack.c.h.b16 %v8308
    %v8488 = vunpack.c.l.b16 %v8309
    %v8489 = vunpack.c.h.b16 %v8309
    %v8490 = vunpack.c.l.b16 %v8310
    %v8491 = vunpack.c.h.b16 %v8310
    %v8492 = vunpack.c.l.b16 %v8311
    %v8493 = vunpack.c.h.b16 %v8311
    %v8494 = vunpack.c.l.b16 %v8312
    %v8495 = vunpack.c.h.b16 %v8312
    %v8496 = vunpack.c.l.b16 %v8313
    %v8497 = vunpack.c.h.b16 %v8313
    %v8498 = vunpack.c.l.b16 %v8314
    %v8499 = vunpack.c.h.b16 %v8314
    %v8500 = vunpack.c.l.b16 %v8315
    %v8501 = vunpack.c.h.b16 %v8315
    %v8502 = vunpack.c.l.b16 %v8316
    %v8503 = vunpack.c.h.b16 %v8316
    %v8504 = vunpack.c.l.b16 %v8317
    %v8505 = vunpack.c.h.b16 %v8317
    %v8506 = vunpack.c.l.b16 %v8318
    %v8507 = vunpack.c.h.b16 %v8318
    %v8508 = vunpack.c.l.b16 %v8319
    %v8509 = vunpack.c.h.b16 %v8319
    %v8510 = vunpack.c.l.b16 %v8320
    %v8511 = vunpack.c.h.b16 %v8320
    %v8512 = vunpack.c.l.b16 %v8321
    %v8513 = vunpack.c.h.b16 %v8321
    %v8514 = vunpack.c.l.b16 %v8322
    %v8515 = vunpack.c.h.b16 %v8322
    %v8516 = vunpack.c.l.b16 %v8323
    %v8517 = vunpack.c.h.b16 %v8323
    %v8518 = vunpack.c.l.b16 %v8324
    %v8519 = vunpack.c.h.b16 %v8324
    %v8520 = vunpack.c.l.b16 %v8325
    %v8521 = vunpack.c.h.b16 %v8325
    %v8522 = vunpack.c.l.b16 %v8326
    %v8523 = vunpack.c.h.b16 %v8326
    %v8524 = vunpack.c.l.b16 %v8327
    %v8525 = vunpack.c.h.b16 %v8327
    %v8526 = vpack.c.b16 %v8400, %v8398
    %v8527 = vpack.c.b16 %v8401, %v8399
    %v8528 = vpack.c.b16 %v8404, %v8402
    %v8529 = vpack.c.b16 %v8405, %v8403
    %v8530 = vpack.c.b16 %v8408, %v8406
    %v8531 = vpack.c.b16 %v8409, %v8407
    %v8532 = vpack.c.b16 %v8412, %v8410
    %v8533 = vpack.c.b16 %v8413, %v8411
    %v8534 = vpack.c.b16 %v8416, %v8414
    %v8535 = vpack.c.b16 %v8417, %v8415
    %v8536 = vpack.c.b16 %v8420, %v8418
    %v8537 = vpack.c.b16 %v8421, %v8419
    %v8538 = vpack.c.b16 %v8424, %v8422
    %v8539 = vpack.c.b16 %v8425, %v8423
    %v8540 = vpack.c.b16 %v8428, %v8426
    %v8541 = vpack.c.b16 %v8429, %v8427
    %v8542 = vpack.c.b16 %v8432, %v8430
    %v8543 = vpack.c.b16 %v8433, %v8431
    %v8544 = vpack.c.b16 %v8436, %v8434
    %v8545 = vpack.c.b16 %v8437, %v8435
    %v8546 = vpack.c.b16 %v8440, %v8438
    %v8547 = vpack.c.b16 %v8441, %v8439
    %v8548 = vpack.c.b16 %v8444, %v8442
    %v8549 = vpack.c.b16 %v8445, %v8443
    %v8550 = vpack.c.b16 %v8448, %v8446
    %v8551 = vpack.c.b16 %v8449, %v8447
    %v8552 = vpack.c.b16 %v8452, %v8450
    %v8553 = vpack.c.b16 %v8453, %v8451
    %v8554 = vpack.c.b16 %v8456, %v8454
    %v8555 = vpack.c.b16 %v8457, %v8455
    %v8556 = vpack.c.b16 %v8460, %v8458
    %v8557 = vpack.c.b16 %v8461, %v8459
    %v8558 = vpack.c.b16 %v8464, %v8462
    %v8559 = vpack.c.b16 %v8465, %v8463
    %v8560 = vpack.c.b16 %v8468, %v8466
    %v8561 = vpack.c.b16 %v8469, %v8467
    %v8562 = vpack.c.b16 %v8472, %v8470
    %v8563 = vpack.c.b16 %v8473, %v8471
    %v8564 = vpack.c.b16 %v8476, %v8474
    %v8565 = vpack.c.b16 %v8477, %v8475
    %v8566 = vpack.c.b16 %v8480, %v8478
    %v8567 = vpack.c.b16 %v8481, %v8479
    %v8568 = vpack.c.b16 %v8484, %v8482
    %v8569 = vpack.c.b16 %v8485, %v8483
    %v8570 = vpack.c.b16 %v8488, %v8486
    %v8571 = vpack.c.b16 %v8489, %v8487
    %v8572 = vpack.c.b16 %v8492, %v8490
    %v8573 = vpack.c.b16 %v8493, %v8491
    %v8574 = vpack.c.b16 %v8496, %v8494
    %v8575 = vpack.c.b16 %v8497, %v8495
    %v8576 = vpack.c.b16 %v8500, %v8498
    %v8577 = vpack.c.b16 %v8501, %v8499
    %v8578 = vpack.c.b16 %v8504, %v8502
    %v8579 = vpack.c.b16 %v8505, %v8503
    %v8580 = vpack.c.b16 %v8508, %v8506
    %v8581 = vpack.c.b16 %v8509, %v8507
    %v8582 = vpack.c.b16 %v8512, %v8510
    %v8583 = vpack.c.b16 %v8513, %v8511
    %v8584 = vpack.c.b16 %v8516, %v8514
    %v8585 = vpack.c.b16 %v8517, %v8515
    %v8586 = vpack.c.b16 %v8520, %v8518
    %v8587 = vpack.c.b16 %v8521, %v8519
    %v8588 = vpack.c.b16 %v8524, %v8522
    %v8589 = vpack.c.b16 %v8525, %v8523
    %8654 = vmatpush.bf16.msra.mxu0 %v8540
    %8655 = vmatpush.bf16.msra.mxu0 %v8538
    %8656 = vmatpush.bf16.msra.mxu0 %v8536
    %8657 = vmatpush.bf16.msra.mxu0 %v8534
    %8658 = vmatpush.bf16.msra.mxu0 %v8532
    %8659 = vmatpush.bf16.msra.mxu0 %v8530
    %8660 = vmatpush.bf16.msra.mxu0 %v8528
    %8661 = vmatpush.bf16.msra.mxu0 %v8526
    %8662 = vmatmul.bf16.gmra.mxu0 %v8260
    %v8663 = vpop.f32.mrf.mxu0
    %v8664 = vadd.f32 %v8330, %v8663
    %v8665 = vpop.f32.mrf.mxu0
    %8666 = vdwg.mxu0
    %8667 = vmatpush.bf16.msra.mxu0 %v8556
    %8668 = vmatpush.bf16.msra.mxu0 %v8554
    %8669 = vmatpush.bf16.msra.mxu0 %v8552
    %8670 = vmatpush.bf16.msra.mxu0 %v8550
    %8671 = vmatpush.bf16.msra.mxu0 %v8548
    %8672 = vmatpush.bf16.msra.mxu0 %v8546
    %8673 = vmatpush.bf16.msra.mxu0 %v8544
    %8674 = vmatpush.bf16.msra.mxu0 %v8542
    %8675 = vmatmul.bf16.gmra.mxu0 %v8261
    %v8676 = vpop.f32.mrf.mxu0
    %v8677 = vadd.f32 %v8664, %v8676
    %v8678 = vpop.f32.mrf.mxu0
    %8679 = vdwg.mxu0
    %8680 = vmatpush.bf16.msra.mxu0 %v8572
    %8681 = vmatpush.bf16.msra.mxu0 %v8570
    %8682 = vmatpush.bf16.msra.mxu0 %v8568
    %8683 = vmatpush.bf16.msra.mxu0 %v8566
    %8684 = vmatpush.bf16.msra.mxu0 %v8564
    %8685 = vmatpush.bf16.msra.mxu0 %v8562
    %8686 = vmatpush.bf16.msra.mxu0 %v8560
    %8687 = vmatpush.bf16.msra.mxu0 %v8558
    %8688 = vmatmul.bf16.gmra.mxu0 %v8262
    %v8689 = vpop.f32.mrf.mxu0
    %v8690 = vadd.f32 %v8677, %v8689
    %v8691 = vpop.f32.mrf.mxu0
    %8692 = vdwg.mxu0
    %8693 = vmatpush.bf16.msra.mxu0 %v8588
    %8694 = vmatpush.bf16.msra.mxu0 %v8586
    %8695 = vmatpush.bf16.msra.mxu0 %v8584
    %8696 = vmatpush.bf16.msra.mxu0 %v8582
    %8697 = vmatpush.bf16.msra.mxu0 %v8580
    %8698 = vmatpush.bf16.msra.mxu0 %v8578
    %8699 = vmatpush.bf16.msra.mxu0 %v8576
    %8700 = vmatpush.bf16.msra.mxu0 %v8574
    %8701 = vmatmul.bf16.gmra.mxu0 %v8263
    %v8702 = vpop.f32.mrf.mxu0
    %v8703 = vadd.f32 %v8690, %v8702
    %v8704 = vpop.f32.mrf.mxu0
    %8705 = vdwg.mxu0
    %8706 = vmatpush.bf16.msra.mxu0 %v8541
    %8707 = vmatpush.bf16.msra.mxu0 %v8539
    %8708 = vmatpush.bf16.msra.mxu0 %v8537
    %8709 = vmatpush.bf16.msra.mxu0 %v8535
    %8710 = vmatpush.bf16.msra.mxu0 %v8533
    %8711 = vmatpush.bf16.msra.mxu0 %v8531
    %8712 = vmatpush.bf16.msra.mxu0 %v8529
    %8713 = vmatpush.bf16.msra.mxu0 %v8527
    %8714 = vmatmul.bf16.gmra.mxu0 %v8260
    %v8715 = vpop.f32.mrf.mxu0
    %v8716 = vadd.f32 %v8331, %v8715
    %v8717 = vpop.f32.mrf.mxu0
    %8718 = vdwg.mxu0
    %8719 = vmatpush.bf16.msra.mxu0 %v8557
    %8720 = vmatpush.bf16.msra.mxu0 %v8555
    %8721 = vmatpush.bf16.msra.mxu0 %v8553
    %8722 = vmatpush.bf16.msra.mxu0 %v8551
    %8723 = vmatpush.bf16.msra.mxu0 %v8549
    %8724 = vmatpush.bf16.msra.mxu0 %v8547
    %8725 = vmatpush.bf16.msra.mxu0 %v8545
    %8726 = vmatpush.bf16.msra.mxu0 %v8543
    %8727 = vmatmul.bf16.gmra.mxu0 %v8261
    %v8728 = vpop.f32.mrf.mxu0
    %v8729 = vadd.f32 %v8716, %v8728
    %v8730 = vpop.f32.mrf.mxu0
    %8731 = vdwg.mxu0
    %8732 = vmatpush.bf16.msra.mxu0 %v8573
    %8733 = vmatpush.bf16.msra.mxu0 %v8571
    %8734 = vmatpush.bf16.msra.mxu0 %v8569
    %8735 = vmatpush.bf16.msra.mxu0 %v8567
    %8736 = vmatpush.bf16.msra.mxu0 %v8565
    %8737 = vmatpush.bf16.msra.mxu0 %v8563
    %8738 = vmatpush.bf16.msra.mxu0 %v8561
    %8739 = vmatpush.bf16.msra.mxu0 %v8559
    %8740 = vmatmul.bf16.gmra.mxu0 %v8262
    %v8741 = vpop.f32.mrf.mxu0
    %v8742 = vadd.f32 %v8729, %v8741
    %v8743 = vpop.f32.mrf.mxu0
    %8744 = vdwg.mxu0
    %8745 = vmatpush.bf16.msra.mxu0 %v8589
    %8746 = vmatpush.bf16.msra.mxu0 %v8587
    %8747 = vmatpush.bf16.msra.mxu0 %v8585
    %8748 = vmatpush.bf16.msra.mxu0 %v8583
    %8749 = vmatpush.bf16.msra.mxu0 %v8581
    %8750 = vmatpush.bf16.msra.mxu0 %v8579
    %8751 = vmatpush.bf16.msra.mxu0 %v8577
    %8752 = vmatpush.bf16.msra.mxu0 %v8575
    %8753 = vmatmul.bf16.gmra.mxu0 %v8263
    %v8754 = vpop.f32.mrf.mxu0
    %v8755 = vadd.f32 %v8742, %v8754
    %v8756 = vpop.f32.mrf.mxu0
    %8757 = vdwg.mxu0
    %v8758 = vmax.f32 %v8703, 0.0
    %v8759 = vmax.f32 %v8755, 0.0
    %s8760 = smul.u32 4, 32
    %s8761 = smul.u32 %s8760, 1
    %s8762 = sshll.u32 %s8761, 4
    %8763 = dma.done %s262, %s8762
    %v8764 = vpack.c.bf16 %v8758, %v8758
    %v8765 = vpack.c.bf16 %v8759, %v8759
    %v8766 = vld [vmem:[#allocation4] sm:$0xf]
    %v8767 = vld [vmem:[#allocation4 + $0x4] sm:$0xf]
    %v8768 = vld [vmem:[#allocation4 + $0x8] sm:$0xf]
    %v8769 = vld [vmem:[#allocation4 + $0xc] sm:$0xf]
    %v8770 = vld [vmem:[#allocation4 + $0x10] sm:$0xf]
    %v8771 = vld [vmem:[#allocation4 + $0x14] sm:$0xf]
    %v8772 = vld [vmem:[#allocation4 + $0x18] sm:$0xf]
    %v8773 = vld [vmem:[#allocation4 + $0x1c] sm:$0xf]
    %v8774 = vld [vmem:[#allocation4 + $0x20] sm:$0xf]
    %v8775 = vld [vmem:[#allocation4 + $0x24] sm:$0xf]
    %v8776 = vld [vmem:[#allocation4 + $0x28] sm:$0xf]
    %v8777 = vld [vmem:[#allocation4 + $0x2c] sm:$0xf]
    %v8778 = vld [vmem:[#allocation4 + $0x30] sm:$0xf]
    %v8779 = vld [vmem:[#allocation4 + $0x34] sm:$0xf]
    %v8780 = vld [vmem:[#allocation4 + $0x38] sm:$0xf]
    %v8781 = vld [vmem:[#allocation4 + $0x3c] sm:$0xf]
    %v8782 = vld [vmem:[#allocation4 + $0x40] sm:$0xf]
    %v8783 = vld [vmem:[#allocation4 + $0x44] sm:$0xf]
    %v8784 = vld [vmem:[#allocation4 + $0x48] sm:$0xf]
    %v8785 = vld [vmem:[#allocation4 + $0x4c] sm:$0xf]
    %v8786 = vld [vmem:[#allocation4 + $0x50] sm:$0xf]
    %v8787 = vld [vmem:[#allocation4 + $0x54] sm:$0xf]
    %v8788 = vld [vmem:[#allocation4 + $0x58] sm:$0xf]
    %v8789 = vld [vmem:[#allocation4 + $0x5c] sm:$0xf]
    %v8790 = vld [vmem:[#allocation4 + $0x60] sm:$0xf]
    %v8791 = vld [vmem:[#allocation4 + $0x64] sm:$0xf]
    %v8792 = vld [vmem:[#allocation4 + $0x68] sm:$0xf]
    %v8793 = vld [vmem:[#allocation4 + $0x6c] sm:$0xf]
    %v8794 = vld [vmem:[#allocation4 + $0x70] sm:$0xf]
    %v8795 = vld [vmem:[#allocation4 + $0x74] sm:$0xf]
    %v8796 = vld [vmem:[#allocation4 + $0x78] sm:$0xf]
    %v8797 = vld [vmem:[#allocation4 + $0x7c] sm:$0xf]
    %v8798 = vld [vmem:[#allocation24] sm:$0x1]
    %v8800 = vperm.slane %v8798, 0
    %v8834 = vunpack.c.l.b16 %v8766
    %v8835 = vunpack.c.l.b16 %v8767
    %v8836 = vunpack.c.l.b16 %v8768
    %v8837 = vunpack.c.l.b16 %v8769
    %v8838 = vunpack.c.l.b16 %v8770
    %v8839 = vunpack.c.l.b16 %v8771
    %v8840 = vunpack.c.l.b16 %v8772
    %v8841 = vunpack.c.l.b16 %v8773
    %v8842 = vunpack.c.l.b16 %v8774
    %v8843 = vunpack.c.l.b16 %v8775
    %v8844 = vunpack.c.l.b16 %v8776
    %v8845 = vunpack.c.l.b16 %v8777
    %v8846 = vunpack.c.l.b16 %v8778
    %v8847 = vunpack.c.l.b16 %v8779
    %v8848 = vunpack.c.l.b16 %v8780
    %v8849 = vunpack.c.l.b16 %v8781
    %v8850 = vunpack.c.l.b16 %v8782
    %v8851 = vunpack.c.l.b16 %v8783
    %v8852 = vunpack.c.l.b16 %v8784
    %v8853 = vunpack.c.l.b16 %v8785
    %v8854 = vunpack.c.l.b16 %v8786
    %v8855 = vunpack.c.l.b16 %v8787
    %v8856 = vunpack.c.l.b16 %v8788
    %v8857 = vunpack.c.l.b16 %v8789
    %v8858 = vunpack.c.l.b16 %v8790
    %v8859 = vunpack.c.l.b16 %v8791
    %v8860 = vunpack.c.l.b16 %v8792
    %v8861 = vunpack.c.l.b16 %v8793
    %v8862 = vunpack.c.l.b16 %v8794
    %v8863 = vunpack.c.l.b16 %v8795
    %v8864 = vunpack.c.l.b16 %v8796
    %v8865 = vunpack.c.l.b16 %v8797
    %v8866 = vpack.c.b16 %v8835, %v8834
    %v8867 = vpack.c.b16 %v8837, %v8836
    %v8868 = vpack.c.b16 %v8839, %v8838
    %v8869 = vpack.c.b16 %v8841, %v8840
    %v8870 = vpack.c.b16 %v8843, %v8842
    %v8871 = vpack.c.b16 %v8845, %v8844
    %v8872 = vpack.c.b16 %v8847, %v8846
    %v8873 = vpack.c.b16 %v8849, %v8848
    %v8874 = vpack.c.b16 %v8851, %v8850
    %v8875 = vpack.c.b16 %v8853, %v8852
    %v8876 = vpack.c.b16 %v8855, %v8854
    %v8877 = vpack.c.b16 %v8857, %v8856
    %v8878 = vpack.c.b16 %v8859, %v8858
    %v8879 = vpack.c.b16 %v8861, %v8860
    %v8880 = vpack.c.b16 %v8863, %v8862
    %v8881 = vpack.c.b16 %v8865, %v8864
    %8898 = vmatpush.bf16.msra.mxu0 %v8873
    %8899 = vmatpush.bf16.msra.mxu0 %v8872
    %8900 = vmatpush.bf16.msra.mxu0 %v8871
    %8901 = vmatpush.bf16.msra.mxu0 %v8870
    %8902 = vmatpush.bf16.msra.mxu0 %v8869
    %8903 = vmatpush.bf16.msra.mxu0 %v8868
    %8904 = vmatpush.bf16.msra.mxu0 %v8867
    %8905 = vmatpush.bf16.msra.mxu0 %v8866
    %8906 = vmatmul.bf16.gmra.mxu0 %v8764
    %v8907 = vpop.f32.mrf.mxu0
    %v8908 = vadd.f32 %v8800, %v8907
    %v8909 = vpop.f32.mrf.mxu0
    %8910 = vdwg.mxu0
    %8911 = vmatpush.bf16.msra.mxu0 %v8881
    %8912 = vmatpush.bf16.msra.mxu0 %v8880
    %8913 = vmatpush.bf16.msra.mxu0 %v8879
    %8914 = vmatpush.bf16.msra.mxu0 %v8878
    %8915 = vmatpush.bf16.msra.mxu0 %v8877
    %8916 = vmatpush.bf16.msra.mxu0 %v8876
    %8917 = vmatpush.bf16.msra.mxu0 %v8875
    %8918 = vmatpush.bf16.msra.mxu0 %v8874
    %8919 = vmatmul.bf16.gmra.mxu0 %v8765
    %v8920 = vpop.f32.mrf.mxu0
    %v8921 = vadd.f32 %v8908, %v8920
    %v8922 = vpop.f32.mrf.mxu0
    %8923 = vdwg.mxu0
    %v8924 = vmax.f32 %v8921, 0.0
    %v8925 = vld [vmem:[#allocation26] sm:$0x1]
    %v8927 = vperm.slane %v8925, 0
    %v8929 = vmul.f32 %v8924, %v8927
    %8930 = vadd.xlane.f32.xlu0 %v8929
    %v8931 = vpop.xlane.xlu0 %8930
    %v8932 = vld [vmem:[#allocation6] sm:$0x1]
    %v8934 = vperm.slane %v8932, 0
    %v8936 = vadd.f32 %v8931, %v8934
    %vm8937 = vcmask 7168
    %8938 = vst.msk [vmem:[%s17] sm:$0xff] %vm8937, %v8936
    // Predicated region
    $region122: #{tpu_custom_call.1} parent=1 // pred_check
      _
    $region123: #{tpu_custom_call.1} parent=1 // pred_check_branch
      %8940 = sbr.rel (0) target = $region125
    $region124: #{tpu_custom_call.1} parent=1 // pred_region
      _
    $region125: #{tpu_custom_call.1} parent=1 // pred_fallthru
      _
    // Predicated region
    $region126: #{tpu_custom_call.1} parent=1 // pred_check
      _
    $region127: #{tpu_custom_call.1} parent=1 // pred_check_branch
      %8942 = sbr.rel (0) target = $region129
    $region128: #{tpu_custom_call.1} parent=1 // pred_region
      _
    $region129: #{tpu_custom_call.1} parent=1 // pred_fallthru
      _
    %8943 = vsyncpa [#allocation8], 1
    %8944 = vsyncpa [#allocation10], 1
    %8945 = vsyncpa [#allocation13], 1
    %8946 = vsyncpa [#allocation16], 1
    %8947 = vsyncpa [#allocation19], 1
    %8948 = vsyncpa [#allocation22], 1
    %8949 = vsyncpa [#allocation25], 1
  %8950 = vsyncmov [#allocation5]
  %s8951 = vpop.sfrf %8950
  %p8952 = scmp.eq.s32.totalorder %s8951, 0
  %p8953 = pneg %p8952
  %8955 = shalt.err (%p8953)
  %s8956 = scalar_lea.sflag [#allocation5], 1
  %8957 = vsyncmov %s8956
  %s8958 = vpop.sfrf %8957
  %p8959 = scmp.eq.s32.totalorder %s8958, 0
  %p8960 = pneg %p8959
  %8962 = shalt.err (%p8960)
  %s8963 = scalar_lea.sflag [#allocation5], 2
  %8964 = vsyncmov %s8963
  %s8965 = vpop.sfrf %8964
  %p8966 = scmp.eq.s32.totalorder %s8965, 0
  %p8967 = pneg %p8966
  %8969 = shalt.err (%p8967)

</llo_original>
